<compile_context>
chip_gen: v6e
topology: v6e:2x2x1
jax: 0.10.0
libtpu: 0.0.40
codegen_flags: <defaults>
</compile_context>

<pallas_src>
import math

import jax
import jax.numpy as jnp
from jax import lax
from jax.experimental import pallas as pl
from jax.experimental.pallas import tpu as pltpu

# ---- hyper-parameters from the PyTorch spec --------------------------------
N = 6
D_MODEL = 64
NHEAD = 4
DH = D_MODEL // NHEAD          # 16
NUM_LAYERS = 2
VOCAB_SIZE = 3
MAX_SEQ_LEN = N + 1            # 7
TROTTER_STEPS = 1
N_ANGLES = 1 + 2 * TROTTER_STEPS   # 3
DIM_FF = 2048                  # nn.TransformerEncoderLayer default
LN_EPS = 1e-5                  # nn.LayerNorm default
NEG_INF = -1e30

_HP = jax.lax.Precision.HIGHEST


def make_positional_encoding_table(max_len: int, d_model: int) -> jnp.ndarray:
    """Sinusoidal table, same math as PositionalEncoding.__init__, as (L, D)."""
    position = jnp.arange(max_len, dtype=jnp.float32)[:, None]
    div_term = jnp.exp(
        jnp.arange(0, d_model, 2, dtype=jnp.float32) * (-math.log(10000.0) / d_model)
    )
    ang = position * div_term
    pe = jnp.zeros((max_len, d_model), dtype=jnp.float32)
    pe = pe.at[:, 0::2].set(jnp.sin(ang))
    pe = pe.at[:, 1::2].set(jnp.cos(ang))
    return pe                                           # (L, D)


def make_block_causal_mask(batch: int, seq: int) -> jnp.ndarray:
    """(B*S, B*S) additive mask: 0 where same-batch AND causal, else -1e30.

    Rows are ordered batch-major (row = b*S + s).  Built from static shapes only,
    so under jit it is a constant and costs nothing per call.
    """
    rows = jnp.arange(batch * seq)
    same_batch = (rows[:, None] // seq) == (rows[None, :] // seq)
    causal = (rows[None, :] % seq) <= (rows[:, None] % seq)
    return jnp.where(same_batch & causal, 0.0, NEG_INF).astype(jnp.float32)


# ---- fused 2-layer encoder kernel --------------------------------------------

def _layer_norm(x, w, b):
    mu = jnp.mean(x, axis=-1, keepdims=True)
    xc = x - mu
    var = jnp.mean(xc * xc, axis=-1, keepdims=True)
    return xc * lax.rsqrt(var + LN_EPS) * w + b


def _dot_t(a, b):
    # a @ b.T on the MXU via the trans_b dot_general path (no explicit transpose).
    return lax.dot_general(a, b, (((1,), (1,)), ((), ())),
                           preferred_element_type=jnp.float32)


def _fused_encoder_kernel(x_ref, mask_ref,
                          wqkv_ref, bqkv_ref, wo_ref, bo_ref,
                          ln1w_ref, ln1b_ref,
                          w1_ref, b1_ref, w2_ref, b2_ref,
                          ln2w_ref, ln2b_ref,
                          o_ref):
    """Both post-LN TransformerEncoderLayers on one (B*S, D) activation slab."""
    R, D = x_ref.shape

    x = x_ref[...]                      # (R, D) f32, positional encoding already added
    mask = mask_ref[...]                # (R, R) additive block-diag + causal mask
    scale = 1.0 / math.sqrt(DH)

    for l in range(NUM_LAYERS):                         # static unroll (2 layers)
        # --- multi-head causal self-attention (eval-mode dropout = identity) --
        attn = jnp.zeros((R, D), jnp.float32)
        for h in range(NHEAD):                          # static unroll (4 heads)
            q0 = h * DH
            k0 = D + h * DH
            v0 = 2 * D + h * DH
            # Slice the weight refs (free static slices) rather than the activation.
            qh = jnp.dot(x, wqkv_ref[l, :, q0:q0 + DH],
                         preferred_element_type=jnp.float32) + bqkv_ref[l, :, q0:q0 + DH]
            kh = jnp.dot(x, wqkv_ref[l, :, k0:k0 + DH],
                         preferred_element_type=jnp.float32) + bqkv_ref[l, :, k0:k0 + DH]
            vh = jnp.dot(x, wqkv_ref[l, :, v0:v0 + DH],
                         preferred_element_type=jnp.float32) + bqkv_ref[l, :, v0:v0 + DH]

            s = _dot_t(qh, kh) * scale + mask           # (R, R)
            s = s - jnp.max(s, axis=-1, keepdims=True)
            p = jnp.exp(s)
            p = p / jnp.sum(p, axis=-1, keepdims=True)
            hv = jnp.dot(p, vh, preferred_element_type=jnp.float32)    # (R, DH)
            # Per-head partial out-proj: concat(heads) @ Wo == sum_h head_h @ Wo[h-rows].
            attn = attn + jnp.dot(hv, wo_ref[l, h * DH:(h + 1) * DH, :],
                                  preferred_element_type=jnp.float32)
        attn = attn + bo_ref[l]

        x = _layer_norm(x + attn, ln1w_ref[l], ln1b_ref[l])

        # --- feed-forward block (bf16 weights, f32 accumulation) --------------
        h1 = jnp.dot(x.astype(jnp.bfloat16), w1_ref[l],
                     preferred_element_type=jnp.float32) + b1_ref[l]     # (R, F)
        h1 = jnp.maximum(h1, 0.0)
        ff = jnp.dot(h1.astype(jnp.bfloat16), w2_ref[l],
                     preferred_element_type=jnp.float32) + b2_ref[l]     # (R, D)

        x = _layer_norm(x + ff, ln2w_ref[l], ln2b_ref[l])

    o_ref[...] = x


def fused_encoder(x2d, mask, p):
    """x2d: (B*S, D) f32 with PE already added; mask: (B*S, B*S) additive mask."""
    R, D = x2d.shape
    F = p["w1"].shape[-1]
    L = NUM_LAYERS

    def full(shape):
        nd = len(shape)
        return pl.BlockSpec(shape, lambda i, _nd=nd: (0,) * _nd)

    in_specs = [
        full((R, D)),                                    # x
        full((R, R)),                                    # additive attention mask
        full((L, D, 3 * D)), full((L, 1, 3 * D)),        # wqkv, bqkv
        full((L, D, D)), full((L, 1, D)),                # wo, bo
        full((L, 1, D)), full((L, 1, D)),                # ln1 w, b
        full((L, D, F)), full((L, 1, F)),                # w1 (bf16), b1
        full((L, F, D)), full((L, 1, D)),                # w2 (bf16), b2
        full((L, 1, D)), full((L, 1, D)),                # ln2 w, b
    ]

    return pl.pallas_call(
        _fused_encoder_kernel,
        out_shape=jax.ShapeDtypeStruct((R, D), x2d.dtype),
        grid_spec=pltpu.PrefetchScalarGridSpec(
            num_scalar_prefetch=0,
            grid=(1,),                                   # single step: whole slab
            in_specs=in_specs,
            out_specs=full((R, D)),
        ),
        compiler_params=pltpu.CompilerParams(
            dimension_semantics=("arbitrary",),
        ),
    )(x2d, mask,
      p["wqkv"], p["bqkv"], p["wo"], p["bo"], p["ln1w"], p["ln1b"],
      p["w1"], p["b1"], p["w2"], p["b2"], p["ln2w"], p["ln2b"])


# ---- full forward (AutoregressiveTransformer.forward, eval mode) ------------

def transformer_forward(src, angles, params):
    """src: (S_src, B) int32 tokens; angles: (A, 1+2*trotter) f32.
    Returns logits (S_src + A, B, 2) — same seq-first layout as PyTorch."""
    D = D_MODEL
    S_src, B = src.shape

    # Tiny glue ops left to XLA (embedding gather, 3->64 angle encoder, concat,
    # transpose, PE add — all fused by XLA into one cheap prologue).
    emb = params["emb"][src] * math.sqrt(D)                          # (S_src, B, D)
    ang = jnp.dot(angles, params["w_ang"].T, precision=_HP) + params["b_ang"]
    A = ang.shape[0]
    ang = jnp.broadcast_to(ang[:, None, :], (A, B, D))               # tile over batch
    x = jnp.concatenate([ang, emb], axis=0)                          # (S, B, D)
    S = x.shape[0]
    x = jnp.transpose(x, (1, 0, 2))                                  # (B, S, D)
    x = x + params["pe"][:S][None, :, :]                             # PE add (fused)
    x2d = x.reshape(B * S, D)                                        # (B*S, D) slab

    mask = make_block_causal_mask(B, S)                              # jit constant
    y2d = fused_encoder(x2d, mask, params)                           # ONE Pallas call
    y = y2d.reshape(B, S, D)

    # fc_out: 64 -> 2. Lane-width-2 output would force masked stores in a kernel;
    # leave this tiny matmul to XLA.
    logits = jnp.einsum("bsd,od->bso", y, params["w_out"], precision=_HP)
    logits = logits + params["b_out"]
    return jnp.transpose(logits, (1, 0, 2))                          # (S, B, 2)


# ---- pure-JAX reference (batched 3-D math; FFN mirrors the bf16 weight storage) --

def _layer_norm_ref(x, w, b):
    mu = jnp.mean(x, axis=-1, keepdims=True)
    var = jnp.mean((x - mu) ** 2, axis=-1, keepdims=True)
    return (x - mu) * lax.rsqrt(var + LN_EPS) * w + b


def reference_forward(src, angles, params):
    D = D_MODEL
    S_src, B = src.shape
    emb = params["emb"][src] * math.sqrt(D)
    ang = jnp.dot(angles, params["w_ang"].T, precision=_HP) + params["b_ang"]
    A = ang.shape[0]
    ang = jnp.broadcast_to(ang[:, None, :], (A, B, D))
    x = jnp.concatenate([ang, emb], axis=0)
    S = x.shape[0]
    x = jnp.transpose(x, (1, 0, 2))                                  # (B, S, D)
    x = x + params["pe"][:S]

    row = jnp.arange(S)[:, None]
    col = jnp.arange(S)[None, :]
    neg_mask = jnp.where(col > row, NEG_INF, 0.0).astype(jnp.float32)

    for l in range(NUM_LAYERS):
        qkv = (jnp.einsum("bsd,de->bse", x, params["wqkv"][l], precision=_HP)
               + params["bqkv"][l, 0])
        q = qkv[..., :D].reshape(B, S, NHEAD, DH)
        k = qkv[..., D:2 * D].reshape(B, S, NHEAD, DH)
        v = qkv[..., 2 * D:].reshape(B, S, NHEAD, DH)
        s = jnp.einsum("bqhd,bkhd->bhqk", q, k, precision=_HP) / math.sqrt(DH)
        s = s + neg_mask
        p = jax.nn.softmax(s, axis=-1)
        o = jnp.einsum("bhqk,bkhd->bqhd", p, v, precision=_HP).reshape(B, S, D)
        o = (jnp.einsum("bsd,de->bse", o, params["wo"][l], precision=_HP)
             + params["bo"][l, 0])
        x = _layer_norm_ref(x + o, params["ln1w"][l, 0], params["ln1b"][l, 0])

        h1 = jax.nn.relu(
            jnp.einsum("bsd,df->bsf", x.astype(jnp.bfloat16), params["w1"][l],
                       preferred_element_type=jnp.float32) + params["b1"][l, 0])
        ff = (jnp.einsum("bsf,fd->bsd", h1.astype(jnp.bfloat16), params["w2"][l],
                         preferred_element_type=jnp.float32) + params["b2"][l, 0])
        x = _layer_norm_ref(x + ff, params["ln2w"][l, 0], params["ln2b"][l, 0])

    logits = jnp.einsum("bsd,od->bso", x, params["w_out"], precision=_HP)
    logits = logits + params["b_out"]
    return jnp.transpose(logits, (1, 0, 2))


# ---- parameter construction ---------------------------------------------------

def init_params(key):
    keys = iter(jax.random.split(key, 64))

    def nrm(shape, scale):
        return scale * jax.random.normal(next(keys), shape, dtype=jnp.float32)

    L = NUM_LAYERS
    return {
        "emb": nrm((VOCAB_SIZE, D_MODEL), 0.3),
        "w_ang": nrm((D_MODEL, N_ANGLES), 0.5),     # PyTorch Linear weight (out, in)
        "b_ang": nrm((D_MODEL,), 0.1),
        "pe": make_positional_encoding_table(MAX_SEQ_LEN, D_MODEL),
        "w_out": nrm((2, D_MODEL), 0.2),
        "b_out": nrm((2,), 0.1),
        # Layer weights stacked on a leading (num_layers,) axis, pre-transposed so
        # the kernel computes x @ W directly.
        "wqkv": nrm((L, D_MODEL, 3 * D_MODEL), 1.0 / math.sqrt(D_MODEL)),
        "bqkv": nrm((L, 1, 3 * D_MODEL), 0.02),
        "wo": nrm((L, D_MODEL, D_MODEL), 1.0 / math.sqrt(D_MODEL)),
        "bo": nrm((L, 1, D_MODEL), 0.02),
        "ln1w": 1.0 + nrm((L, 1, D_MODEL), 0.05),
        "ln1b": nrm((L, 1, D_MODEL), 0.05),
        # FFN weights stored in bf16 (dominant HBM bytes); f32 accumulation in-kernel.
        "w1": nrm((L, D_MODEL, DIM_FF), 1.0 / math.sqrt(D_MODEL)).astype(jnp.bfloat16),
        "b1": nrm((L, 1, DIM_FF), 0.02),
        "w2": nrm((L, DIM_FF, D_MODEL), 1.0 / math.sqrt(DIM_FF)).astype(jnp.bfloat16),
        "b2": nrm((L, 1, D_MODEL), 0.02),
        "ln2w": 1.0 + nrm((L, 1, D_MODEL), 0.05),
        "ln2b": nrm((L, 1, D_MODEL), 0.05),
    }


# ---- main ---------------------------------------------------------------------

if __name__ == "__main__":
    key = jax.random.PRNGKey(0)
    k_par, k_src, k_ang = jax.random.split(key, 3)

    params = init_params(k_par)

    B = 8
    src = jax.random.randint(k_src, (N, B), 0, VOCAB_SIZE, dtype=jnp.int32)   # (6, 8)
    angles = jax.random.normal(k_ang, (1, N_ANGLES), dtype=jnp.float32)       # (1, 3)

    logits = jax.jit(transformer_forward)(src, angles, params)
    logits = jax.block_until_ready(logits)

    ref = reference_forward(src, angles, params)

    assert logits.shape == (MAX_SEQ_LEN, B, 2), logits.shape
    assert jnp.allclose(logits, ref, atol=2e-3, rtol=2e-3), (
        f"max abs diff vs reference: {jnp.max(jnp.abs(logits - ref))}")

    print("KERNEL_OK")
</pallas_src>

<mosaic_0001>
module attributes {stable_mosaic.version = 11 : i64} {
  func.func @_fused_encoder_kernel(%arg0: i32, %arg1: memref<56x64xf32, #tpu.memory_space<vmem>>, %arg2: memref<56x56xf32, #tpu.memory_space<vmem>>, %arg3: memref<2x64x192xf32, #tpu.memory_space<vmem>>, %arg4: memref<2x1x192xf32, #tpu.memory_space<vmem>>, %arg5: memref<2x64x64xf32, #tpu.memory_space<vmem>>, %arg6: memref<2x1x64xf32, #tpu.memory_space<vmem>>, %arg7: memref<2x1x64xf32, #tpu.memory_space<vmem>>, %arg8: memref<2x1x64xf32, #tpu.memory_space<vmem>>, %arg9: memref<2x64x2048xbf16, #tpu.memory_space<vmem>>, %arg10: memref<2x1x2048xf32, #tpu.memory_space<vmem>>, %arg11: memref<2x2048x64xbf16, #tpu.memory_space<vmem>>, %arg12: memref<2x1x64xf32, #tpu.memory_space<vmem>>, %arg13: memref<2x1x64xf32, #tpu.memory_space<vmem>>, %arg14: memref<2x1x64xf32, #tpu.memory_space<vmem>>, %arg15: memref<56x64xf32, #tpu.memory_space<vmem>>) attributes {dimension_semantics = [#tpu.dimension_semantics<arbitrary>], iteration_bounds = array<i64: 1>, scalar_prefetch = 0 : i64, scratch_operands = 0 : i64, tpu.core_type = #tpu.core_type<tc>, window_params = [{pipeline_mode = #tpu.pipeline_mode<synchronous>, transform_indices = @transform_0, window_bounds = array<i64: 56, 64>}, {pipeline_mode = #tpu.pipeline_mode<synchronous>, transform_indices = @transform_1, window_bounds = array<i64: 56, 56>}, {pipeline_mode = #tpu.pipeline_mode<synchronous>, transform_indices = @transform_2, window_bounds = array<i64: 2, 64, 192>}, {pipeline_mode = #tpu.pipeline_mode<synchronous>, transform_indices = @transform_3, window_bounds = array<i64: 2, 1, 192>}, {pipeline_mode = #tpu.pipeline_mode<synchronous>, transform_indices = @transform_4, window_bounds = array<i64: 2, 64, 64>}, {pipeline_mode = #tpu.pipeline_mode<synchronous>, transform_indices = @transform_5, window_bounds = array<i64: 2, 1, 64>}, {pipeline_mode = #tpu.pipeline_mode<synchronous>, transform_indices = @transform_6, window_bounds = array<i64: 2, 1, 64>}, {pipeline_mode = #tpu.pipeline_mode<synchronous>, transform_indices = @transform_7, window_bounds = array<i64: 2, 1, 64>}, {pipeline_mode = #tpu.pipeline_mode<synchronous>, transform_indices = @transform_8, window_bounds = array<i64: 2, 64, 2048>}, {pipeline_mode = #tpu.pipeline_mode<synchronous>, transform_indices = @transform_9, window_bounds = array<i64: 2, 1, 2048>}, {pipeline_mode = #tpu.pipeline_mode<synchronous>, transform_indices = @transform_10, window_bounds = array<i64: 2, 2048, 64>}, {pipeline_mode = #tpu.pipeline_mode<synchronous>, transform_indices = @transform_11, window_bounds = array<i64: 2, 1, 64>}, {pipeline_mode = #tpu.pipeline_mode<synchronous>, transform_indices = @transform_12, window_bounds = array<i64: 2, 1, 64>}, {pipeline_mode = #tpu.pipeline_mode<synchronous>, transform_indices = @transform_13, window_bounds = array<i64: 2, 1, 64>}, {pipeline_mode = #tpu.pipeline_mode<synchronous>, transform_indices = @transform_14, window_bounds = array<i64: 56, 64>}]} {
    %c0 = arith.constant 0 : index
    %c0_0 = arith.constant 0 : index
    %0 = vector.load %arg1[%c0, %c0_0] : memref<56x64xf32, #tpu.memory_space<vmem>>, vector<56x64xf32>
    %c0_1 = arith.constant 0 : index
    %c0_2 = arith.constant 0 : index
    %1 = vector.load %arg2[%c0_1, %c0_2] : memref<56x56xf32, #tpu.memory_space<vmem>>, vector<56x56xf32>
    %cst = arith.constant 0.000000e+00 : f32
    %2 = vector.broadcast %cst : f32 to vector<56x64xf32>
    %c0_3 = arith.constant 0 : index
    %c0_4 = arith.constant 0 : index
    %c0_5 = arith.constant 0 : index
    %3 = vector.load %arg3[%c0_3, %c0_4, %c0_5] : memref<2x64x192xf32, #tpu.memory_space<vmem>>, vector<1x64x16xf32>
    %4 = vector.shape_cast %3 : vector<1x64x16xf32> to vector<64x16xf32>
    %cst_6 = arith.constant dense<0.000000e+00> : vector<56x16xf32>
    %5 = tpu.matmul %0, %4, %cst_6 {dimension_numbers = #tpu.dot_dimension_numbers<[1], [0], [0], [1], [0, 0, 1, 1], [], []>} : vector<56x64xf32>, vector<64x16xf32>, vector<56x16xf32> -> vector<56x16xf32>
    %c0_7 = arith.constant 0 : index
    %c0_8 = arith.constant 0 : index
    %c0_9 = arith.constant 0 : index
    %6 = vector.load %arg4[%c0_7, %c0_8, %c0_9] : memref<2x1x192xf32, #tpu.memory_space<vmem>>, vector<1x1x16xf32>
    %7 = vector.shape_cast %6 : vector<1x1x16xf32> to vector<1x16xf32>
    %8 = vector.broadcast %7 : vector<1x16xf32> to vector<56x16xf32>
    %9 = arith.addf %5, %8 : vector<56x16xf32>
    %c0_10 = arith.constant 0 : index
    %c0_11 = arith.constant 0 : index
    %c64 = arith.constant 64 : index
    %10 = vector.load %arg3[%c0_10, %c0_11, %c64] : memref<2x64x192xf32, #tpu.memory_space<vmem>>, vector<1x64x16xf32>
    %11 = vector.shape_cast %10 : vector<1x64x16xf32> to vector<64x16xf32>
    %cst_12 = arith.constant dense<0.000000e+00> : vector<56x16xf32>
    %12 = tpu.matmul %0, %11, %cst_12 {dimension_numbers = #tpu.dot_dimension_numbers<[1], [0], [0], [1], [0, 0, 1, 1], [], []>} : vector<56x64xf32>, vector<64x16xf32>, vector<56x16xf32> -> vector<56x16xf32>
    %c0_13 = arith.constant 0 : index
    %c0_14 = arith.constant 0 : index
    %c64_15 = arith.constant 64 : index
    %13 = vector.load %arg4[%c0_13, %c0_14, %c64_15] : memref<2x1x192xf32, #tpu.memory_space<vmem>>, vector<1x1x16xf32>
    %14 = vector.shape_cast %13 : vector<1x1x16xf32> to vector<1x16xf32>
    %15 = vector.broadcast %14 : vector<1x16xf32> to vector<56x16xf32>
    %16 = arith.addf %12, %15 : vector<56x16xf32>
    %c0_16 = arith.constant 0 : index
    %c0_17 = arith.constant 0 : index
    %c128 = arith.constant 128 : index
    %17 = vector.load %arg3[%c0_16, %c0_17, %c128] : memref<2x64x192xf32, #tpu.memory_space<vmem>>, vector<1x64x16xf32>
    %18 = vector.shape_cast %17 : vector<1x64x16xf32> to vector<64x16xf32>
    %cst_18 = arith.constant dense<0.000000e+00> : vector<56x16xf32>
    %19 = tpu.matmul %0, %18, %cst_18 {dimension_numbers = #tpu.dot_dimension_numbers<[1], [0], [0], [1], [0, 0, 1, 1], [], []>} : vector<56x64xf32>, vector<64x16xf32>, vector<56x16xf32> -> vector<56x16xf32>
    %c0_19 = arith.constant 0 : index
    %c0_20 = arith.constant 0 : index
    %c128_21 = arith.constant 128 : index
    %20 = vector.load %arg4[%c0_19, %c0_20, %c128_21] : memref<2x1x192xf32, #tpu.memory_space<vmem>>, vector<1x1x16xf32>
    %21 = vector.shape_cast %20 : vector<1x1x16xf32> to vector<1x16xf32>
    %22 = vector.broadcast %21 : vector<1x16xf32> to vector<56x16xf32>
    %23 = arith.addf %19, %22 : vector<56x16xf32>
    %cst_22 = arith.constant dense<0.000000e+00> : vector<56x56xf32>
    %24 = tpu.matmul %9, %16, %cst_22 {dimension_numbers = #tpu.dot_dimension_numbers<[1], [1], [0], [0], [0, 0, 1, 0], [], []>} : vector<56x16xf32>, vector<56x16xf32>, vector<56x56xf32> -> vector<56x56xf32>
    %cst_23 = arith.constant 2.500000e-01 : f32
    %25 = vector.broadcast %cst_23 : f32 to vector<56x56xf32>
    %26 = arith.mulf %24, %25 : vector<56x56xf32>
    %27 = arith.addf %26, %1 : vector<56x56xf32>
    %cst_24 = arith.constant dense<0xFF800000> : vector<56xf32>
    %28 = vector.multi_reduction <maximumf>, %27, %cst_24 [1] : vector<56x56xf32> to vector<56xf32>
    %29 = vector.shape_cast %28 : vector<56xf32> to vector<56x1xf32>
    %30 = vector.broadcast %29 : vector<56x1xf32> to vector<56x56xf32>
    %31 = arith.subf %27, %30 : vector<56x56xf32>
    %32 = math.exp %31 : vector<56x56xf32>
    %cst_25 = arith.constant dense<0.000000e+00> : vector<56xf32>
    %33 = vector.multi_reduction <add>, %32, %cst_25 [1] : vector<56x56xf32> to vector<56xf32>
    %34 = vector.shape_cast %33 : vector<56xf32> to vector<56x1xf32>
    %35 = vector.broadcast %34 : vector<56x1xf32> to vector<56x56xf32>
    %36 = arith.divf %32, %35 : vector<56x56xf32>
    %cst_26 = arith.constant dense<0.000000e+00> : vector<56x16xf32>
    %37 = tpu.matmul %36, %23, %cst_26 {dimension_numbers = #tpu.dot_dimension_numbers<[1], [0], [0], [1], [0, 0, 1, 1], [], []>} : vector<56x56xf32>, vector<56x16xf32>, vector<56x16xf32> -> vector<56x16xf32>
    %c0_27 = arith.constant 0 : index
    %c0_28 = arith.constant 0 : index
    %c0_29 = arith.constant 0 : index
    %38 = vector.load %arg5[%c0_27, %c0_28, %c0_29] : memref<2x64x64xf32, #tpu.memory_space<vmem>>, vector<1x16x64xf32>
    %39 = vector.shape_cast %38 : vector<1x16x64xf32> to vector<16x64xf32>
    %cst_30 = arith.constant dense<0.000000e+00> : vector<56x64xf32>
    %40 = tpu.matmul %37, %39, %cst_30 {dimension_numbers = #tpu.dot_dimension_numbers<[1], [0], [0], [1], [0, 0, 1, 1], [], []>} : vector<56x16xf32>, vector<16x64xf32>, vector<56x64xf32> -> vector<56x64xf32>
    %41 = arith.addf %2, %40 : vector<56x64xf32>
    %c0_31 = arith.constant 0 : index
    %c0_32 = arith.constant 0 : index
    %c16 = arith.constant 16 : index
    %42 = vector.load %arg3[%c0_31, %c0_32, %c16] : memref<2x64x192xf32, #tpu.memory_space<vmem>>, vector<1x64x16xf32>
    %43 = vector.shape_cast %42 : vector<1x64x16xf32> to vector<64x16xf32>
    %cst_33 = arith.constant dense<0.000000e+00> : vector<56x16xf32>
    %44 = tpu.matmul %0, %43, %cst_33 {dimension_numbers = #tpu.dot_dimension_numbers<[1], [0], [0], [1], [0, 0, 1, 1], [], []>} : vector<56x64xf32>, vector<64x16xf32>, vector<56x16xf32> -> vector<56x16xf32>
    %c0_34 = arith.constant 0 : index
    %c0_35 = arith.constant 0 : index
    %c16_36 = arith.constant 16 : index
    %45 = vector.load %arg4[%c0_34, %c0_35, %c16_36] : memref<2x1x192xf32, #tpu.memory_space<vmem>>, vector<1x1x16xf32>
    %46 = vector.shape_cast %45 : vector<1x1x16xf32> to vector<1x16xf32>
    %47 = vector.broadcast %46 : vector<1x16xf32> to vector<56x16xf32>
    %48 = arith.addf %44, %47 : vector<56x16xf32>
    %c0_37 = arith.constant 0 : index
    %c0_38 = arith.constant 0 : index
    %c80 = arith.constant 80 : index
    %49 = vector.load %arg3[%c0_37, %c0_38, %c80] : memref<2x64x192xf32, #tpu.memory_space<vmem>>, vector<1x64x16xf32>
    %50 = vector.shape_cast %49 : vector<1x64x16xf32> to vector<64x16xf32>
    %cst_39 = arith.constant dense<0.000000e+00> : vector<56x16xf32>
    %51 = tpu.matmul %0, %50, %cst_39 {dimension_numbers = #tpu.dot_dimension_numbers<[1], [0], [0], [1], [0, 0, 1, 1], [], []>} : vector<56x64xf32>, vector<64x16xf32>, vector<56x16xf32> -> vector<56x16xf32>
    %c0_40 = arith.constant 0 : index
    %c0_41 = arith.constant 0 : index
    %c80_42 = arith.constant 80 : index
    %52 = vector.load %arg4[%c0_40, %c0_41, %c80_42] : memref<2x1x192xf32, #tpu.memory_space<vmem>>, vector<1x1x16xf32>
    %53 = vector.shape_cast %52 : vector<1x1x16xf32> to vector<1x16xf32>
    %54 = vector.broadcast %53 : vector<1x16xf32> to vector<56x16xf32>
    %55 = arith.addf %51, %54 : vector<56x16xf32>
    %c0_43 = arith.constant 0 : index
    %c0_44 = arith.constant 0 : index
    %c144 = arith.constant 144 : index
    %56 = vector.load %arg3[%c0_43, %c0_44, %c144] : memref<2x64x192xf32, #tpu.memory_space<vmem>>, vector<1x64x16xf32>
    %57 = vector.shape_cast %56 : vector<1x64x16xf32> to vector<64x16xf32>
    %cst_45 = arith.constant dense<0.000000e+00> : vector<56x16xf32>
    %58 = tpu.matmul %0, %57, %cst_45 {dimension_numbers = #tpu.dot_dimension_numbers<[1], [0], [0], [1], [0, 0, 1, 1], [], []>} : vector<56x64xf32>, vector<64x16xf32>, vector<56x16xf32> -> vector<56x16xf32>
    %c0_46 = arith.constant 0 : index
    %c0_47 = arith.constant 0 : index
    %c144_48 = arith.constant 144 : index
    %59 = vector.load %arg4[%c0_46, %c0_47, %c144_48] : memref<2x1x192xf32, #tpu.memory_space<vmem>>, vector<1x1x16xf32>
    %60 = vector.shape_cast %59 : vector<1x1x16xf32> to vector<1x16xf32>
    %61 = vector.broadcast %60 : vector<1x16xf32> to vector<56x16xf32>
    %62 = arith.addf %58, %61 : vector<56x16xf32>
    %cst_49 = arith.constant dense<0.000000e+00> : vector<56x56xf32>
    %63 = tpu.matmul %48, %55, %cst_49 {dimension_numbers = #tpu.dot_dimension_numbers<[1], [1], [0], [0], [0, 0, 1, 0], [], []>} : vector<56x16xf32>, vector<56x16xf32>, vector<56x56xf32> -> vector<56x56xf32>
    %cst_50 = arith.constant 2.500000e-01 : f32
    %64 = vector.broadcast %cst_50 : f32 to vector<56x56xf32>
    %65 = arith.mulf %63, %64 : vector<56x56xf32>
    %66 = arith.addf %65, %1 : vector<56x56xf32>
    %cst_51 = arith.constant dense<0xFF800000> : vector<56xf32>
    %67 = vector.multi_reduction <maximumf>, %66, %cst_51 [1] : vector<56x56xf32> to vector<56xf32>
    %68 = vector.shape_cast %67 : vector<56xf32> to vector<56x1xf32>
    %69 = vector.broadcast %68 : vector<56x1xf32> to vector<56x56xf32>
    %70 = arith.subf %66, %69 : vector<56x56xf32>
    %71 = math.exp %70 : vector<56x56xf32>
    %cst_52 = arith.constant dense<0.000000e+00> : vector<56xf32>
    %72 = vector.multi_reduction <add>, %71, %cst_52 [1] : vector<56x56xf32> to vector<56xf32>
    %73 = vector.shape_cast %72 : vector<56xf32> to vector<56x1xf32>
    %74 = vector.broadcast %73 : vector<56x1xf32> to vector<56x56xf32>
    %75 = arith.divf %71, %74 : vector<56x56xf32>
    %cst_53 = arith.constant dense<0.000000e+00> : vector<56x16xf32>
    %76 = tpu.matmul %75, %62, %cst_53 {dimension_numbers = #tpu.dot_dimension_numbers<[1], [0], [0], [1], [0, 0, 1, 1], [], []>} : vector<56x56xf32>, vector<56x16xf32>, vector<56x16xf32> -> vector<56x16xf32>
    %c0_54 = arith.constant 0 : index
    %c16_55 = arith.constant 16 : index
    %c0_56 = arith.constant 0 : index
    %77 = vector.load %arg5[%c0_54, %c16_55, %c0_56] : memref<2x64x64xf32, #tpu.memory_space<vmem>>, vector<1x16x64xf32>
    %78 = vector.shape_cast %77 : vector<1x16x64xf32> to vector<16x64xf32>
    %cst_57 = arith.constant dense<0.000000e+00> : vector<56x64xf32>
    %79 = tpu.matmul %76, %78, %cst_57 {dimension_numbers = #tpu.dot_dimension_numbers<[1], [0], [0], [1], [0, 0, 1, 1], [], []>} : vector<56x16xf32>, vector<16x64xf32>, vector<56x64xf32> -> vector<56x64xf32>
    %80 = arith.addf %41, %79 : vector<56x64xf32>
    %c0_58 = arith.constant 0 : index
    %c0_59 = arith.constant 0 : index
    %c32 = arith.constant 32 : index
    %81 = vector.load %arg3[%c0_58, %c0_59, %c32] : memref<2x64x192xf32, #tpu.memory_space<vmem>>, vector<1x64x16xf32>
    %82 = vector.shape_cast %81 : vector<1x64x16xf32> to vector<64x16xf32>
    %cst_60 = arith.constant dense<0.000000e+00> : vector<56x16xf32>
    %83 = tpu.matmul %0, %82, %cst_60 {dimension_numbers = #tpu.dot_dimension_numbers<[1], [0], [0], [1], [0, 0, 1, 1], [], []>} : vector<56x64xf32>, vector<64x16xf32>, vector<56x16xf32> -> vector<56x16xf32>
    %c0_61 = arith.constant 0 : index
    %c0_62 = arith.constant 0 : index
    %c32_63 = arith.constant 32 : index
    %84 = vector.load %arg4[%c0_61, %c0_62, %c32_63] : memref<2x1x192xf32, #tpu.memory_space<vmem>>, vector<1x1x16xf32>
    %85 = vector.shape_cast %84 : vector<1x1x16xf32> to vector<1x16xf32>
    %86 = vector.broadcast %85 : vector<1x16xf32> to vector<56x16xf32>
    %87 = arith.addf %83, %86 : vector<56x16xf32>
    %c0_64 = arith.constant 0 : index
    %c0_65 = arith.constant 0 : index
    %c96 = arith.constant 96 : index
    %88 = vector.load %arg3[%c0_64, %c0_65, %c96] : memref<2x64x192xf32, #tpu.memory_space<vmem>>, vector<1x64x16xf32>
    %89 = vector.shape_cast %88 : vector<1x64x16xf32> to vector<64x16xf32>
    %cst_66 = arith.constant dense<0.000000e+00> : vector<56x16xf32>
    %90 = tpu.matmul %0, %89, %cst_66 {dimension_numbers = #tpu.dot_dimension_numbers<[1], [0], [0], [1], [0, 0, 1, 1], [], []>} : vector<56x64xf32>, vector<64x16xf32>, vector<56x16xf32> -> vector<56x16xf32>
    %c0_67 = arith.constant 0 : index
    %c0_68 = arith.constant 0 : index
    %c96_69 = arith.constant 96 : index
    %91 = vector.load %arg4[%c0_67, %c0_68, %c96_69] : memref<2x1x192xf32, #tpu.memory_space<vmem>>, vector<1x1x16xf32>
    %92 = vector.shape_cast %91 : vector<1x1x16xf32> to vector<1x16xf32>
    %93 = vector.broadcast %92 : vector<1x16xf32> to vector<56x16xf32>
    %94 = arith.addf %90, %93 : vector<56x16xf32>
    %c0_70 = arith.constant 0 : index
    %c0_71 = arith.constant 0 : index
    %c160 = arith.constant 160 : index
    %95 = vector.load %arg3[%c0_70, %c0_71, %c160] : memref<2x64x192xf32, #tpu.memory_space<vmem>>, vector<1x64x16xf32>
    %96 = vector.shape_cast %95 : vector<1x64x16xf32> to vector<64x16xf32>
    %cst_72 = arith.constant dense<0.000000e+00> : vector<56x16xf32>
    %97 = tpu.matmul %0, %96, %cst_72 {dimension_numbers = #tpu.dot_dimension_numbers<[1], [0], [0], [1], [0, 0, 1, 1], [], []>} : vector<56x64xf32>, vector<64x16xf32>, vector<56x16xf32> -> vector<56x16xf32>
    %c0_73 = arith.constant 0 : index
    %c0_74 = arith.constant 0 : index
    %c160_75 = arith.constant 160 : index
    %98 = vector.load %arg4[%c0_73, %c0_74, %c160_75] : memref<2x1x192xf32, #tpu.memory_space<vmem>>, vector<1x1x16xf32>
    %99 = vector.shape_cast %98 : vector<1x1x16xf32> to vector<1x16xf32>
    %100 = vector.broadcast %99 : vector<1x16xf32> to vector<56x16xf32>
    %101 = arith.addf %97, %100 : vector<56x16xf32>
    %cst_76 = arith.constant dense<0.000000e+00> : vector<56x56xf32>
    %102 = tpu.matmul %87, %94, %cst_76 {dimension_numbers = #tpu.dot_dimension_numbers<[1], [1], [0], [0], [0, 0, 1, 0], [], []>} : vector<56x16xf32>, vector<56x16xf32>, vector<56x56xf32> -> vector<56x56xf32>
    %cst_77 = arith.constant 2.500000e-01 : f32
    %103 = vector.broadcast %cst_77 : f32 to vector<56x56xf32>
    %104 = arith.mulf %102, %103 : vector<56x56xf32>
    %105 = arith.addf %104, %1 : vector<56x56xf32>
    %cst_78 = arith.constant dense<0xFF800000> : vector<56xf32>
    %106 = vector.multi_reduction <maximumf>, %105, %cst_78 [1] : vector<56x56xf32> to vector<56xf32>
    %107 = vector.shape_cast %106 : vector<56xf32> to vector<56x1xf32>
    %108 = vector.broadcast %107 : vector<56x1xf32> to vector<56x56xf32>
    %109 = arith.subf %105, %108 : vector<56x56xf32>
    %110 = math.exp %109 : vector<56x56xf32>
    %cst_79 = arith.constant dense<0.000000e+00> : vector<56xf32>
    %111 = vector.multi_reduction <add>, %110, %cst_79 [1] : vector<56x56xf32> to vector<56xf32>
    %112 = vector.shape_cast %111 : vector<56xf32> to vector<56x1xf32>
    %113 = vector.broadcast %112 : vector<56x1xf32> to vector<56x56xf32>
    %114 = arith.divf %110, %113 : vector<56x56xf32>
    %cst_80 = arith.constant dense<0.000000e+00> : vector<56x16xf32>
    %115 = tpu.matmul %114, %101, %cst_80 {dimension_numbers = #tpu.dot_dimension_numbers<[1], [0], [0], [1], [0, 0, 1, 1], [], []>} : vector<56x56xf32>, vector<56x16xf32>, vector<56x16xf32> -> vector<56x16xf32>
    %c0_81 = arith.constant 0 : index
    %c32_82 = arith.constant 32 : index
    %c0_83 = arith.constant 0 : index
    %116 = vector.load %arg5[%c0_81, %c32_82, %c0_83] : memref<2x64x64xf32, #tpu.memory_space<vmem>>, vector<1x16x64xf32>
    %117 = vector.shape_cast %116 : vector<1x16x64xf32> to vector<16x64xf32>
    %cst_84 = arith.constant dense<0.000000e+00> : vector<56x64xf32>
    %118 = tpu.matmul %115, %117, %cst_84 {dimension_numbers = #tpu.dot_dimension_numbers<[1], [0], [0], [1], [0, 0, 1, 1], [], []>} : vector<56x16xf32>, vector<16x64xf32>, vector<56x64xf32> -> vector<56x64xf32>
    %119 = arith.addf %80, %118 : vector<56x64xf32>
    %c0_85 = arith.constant 0 : index
    %c0_86 = arith.constant 0 : index
    %c48 = arith.constant 48 : index
    %120 = vector.load %arg3[%c0_85, %c0_86, %c48] : memref<2x64x192xf32, #tpu.memory_space<vmem>>, vector<1x64x16xf32>
    %121 = vector.shape_cast %120 : vector<1x64x16xf32> to vector<64x16xf32>
    %cst_87 = arith.constant dense<0.000000e+00> : vector<56x16xf32>
    %122 = tpu.matmul %0, %121, %cst_87 {dimension_numbers = #tpu.dot_dimension_numbers<[1], [0], [0], [1], [0, 0, 1, 1], [], []>} : vector<56x64xf32>, vector<64x16xf32>, vector<56x16xf32> -> vector<56x16xf32>
    %c0_88 = arith.constant 0 : index
    %c0_89 = arith.constant 0 : index
    %c48_90 = arith.constant 48 : index
    %123 = vector.load %arg4[%c0_88, %c0_89, %c48_90] : memref<2x1x192xf32, #tpu.memory_space<vmem>>, vector<1x1x16xf32>
    %124 = vector.shape_cast %123 : vector<1x1x16xf32> to vector<1x16xf32>
    %125 = vector.broadcast %124 : vector<1x16xf32> to vector<56x16xf32>
    %126 = arith.addf %122, %125 : vector<56x16xf32>
    %c0_91 = arith.constant 0 : index
    %c0_92 = arith.constant 0 : index
    %c112 = arith.constant 112 : index
    %127 = vector.load %arg3[%c0_91, %c0_92, %c112] : memref<2x64x192xf32, #tpu.memory_space<vmem>>, vector<1x64x16xf32>
    %128 = vector.shape_cast %127 : vector<1x64x16xf32> to vector<64x16xf32>
    %cst_93 = arith.constant dense<0.000000e+00> : vector<56x16xf32>
    %129 = tpu.matmul %0, %128, %cst_93 {dimension_numbers = #tpu.dot_dimension_numbers<[1], [0], [0], [1], [0, 0, 1, 1], [], []>} : vector<56x64xf32>, vector<64x16xf32>, vector<56x16xf32> -> vector<56x16xf32>
    %c0_94 = arith.constant 0 : index
    %c0_95 = arith.constant 0 : index
    %c112_96 = arith.constant 112 : index
    %130 = vector.load %arg4[%c0_94, %c0_95, %c112_96] : memref<2x1x192xf32, #tpu.memory_space<vmem>>, vector<1x1x16xf32>
    %131 = vector.shape_cast %130 : vector<1x1x16xf32> to vector<1x16xf32>
    %132 = vector.broadcast %131 : vector<1x16xf32> to vector<56x16xf32>
    %133 = arith.addf %129, %132 : vector<56x16xf32>
    %c0_97 = arith.constant 0 : index
    %c0_98 = arith.constant 0 : index
    %c176 = arith.constant 176 : index
    %134 = vector.load %arg3[%c0_97, %c0_98, %c176] : memref<2x64x192xf32, #tpu.memory_space<vmem>>, vector<1x64x16xf32>
    %135 = vector.shape_cast %134 : vector<1x64x16xf32> to vector<64x16xf32>
    %cst_99 = arith.constant dense<0.000000e+00> : vector<56x16xf32>
    %136 = tpu.matmul %0, %135, %cst_99 {dimension_numbers = #tpu.dot_dimension_numbers<[1], [0], [0], [1], [0, 0, 1, 1], [], []>} : vector<56x64xf32>, vector<64x16xf32>, vector<56x16xf32> -> vector<56x16xf32>
    %c0_100 = arith.constant 0 : index
    %c0_101 = arith.constant 0 : index
    %c176_102 = arith.constant 176 : index
    %137 = vector.load %arg4[%c0_100, %c0_101, %c176_102] : memref<2x1x192xf32, #tpu.memory_space<vmem>>, vector<1x1x16xf32>
    %138 = vector.shape_cast %137 : vector<1x1x16xf32> to vector<1x16xf32>
    %139 = vector.broadcast %138 : vector<1x16xf32> to vector<56x16xf32>
    %140 = arith.addf %136, %139 : vector<56x16xf32>
    %cst_103 = arith.constant dense<0.000000e+00> : vector<56x56xf32>
    %141 = tpu.matmul %126, %133, %cst_103 {dimension_numbers = #tpu.dot_dimension_numbers<[1], [1], [0], [0], [0, 0, 1, 0], [], []>} : vector<56x16xf32>, vector<56x16xf32>, vector<56x56xf32> -> vector<56x56xf32>
    %cst_104 = arith.constant 2.500000e-01 : f32
    %142 = vector.broadcast %cst_104 : f32 to vector<56x56xf32>
    %143 = arith.mulf %141, %142 : vector<56x56xf32>
    %144 = arith.addf %143, %1 : vector<56x56xf32>
    %cst_105 = arith.constant dense<0xFF800000> : vector<56xf32>
    %145 = vector.multi_reduction <maximumf>, %144, %cst_105 [1] : vector<56x56xf32> to vector<56xf32>
    %146 = vector.shape_cast %145 : vector<56xf32> to vector<56x1xf32>
    %147 = vector.broadcast %146 : vector<56x1xf32> to vector<56x56xf32>
    %148 = arith.subf %144, %147 : vector<56x56xf32>
    %149 = math.exp %148 : vector<56x56xf32>
    %cst_106 = arith.constant dense<0.000000e+00> : vector<56xf32>
    %150 = vector.multi_reduction <add>, %149, %cst_106 [1] : vector<56x56xf32> to vector<56xf32>
    %151 = vector.shape_cast %150 : vector<56xf32> to vector<56x1xf32>
    %152 = vector.broadcast %151 : vector<56x1xf32> to vector<56x56xf32>
    %153 = arith.divf %149, %152 : vector<56x56xf32>
    %cst_107 = arith.constant dense<0.000000e+00> : vector<56x16xf32>
    %154 = tpu.matmul %153, %140, %cst_107 {dimension_numbers = #tpu.dot_dimension_numbers<[1], [0], [0], [1], [0, 0, 1, 1], [], []>} : vector<56x56xf32>, vector<56x16xf32>, vector<56x16xf32> -> vector<56x16xf32>
    %c0_108 = arith.constant 0 : index
    %c48_109 = arith.constant 48 : index
    %c0_110 = arith.constant 0 : index
    %155 = vector.load %arg5[%c0_108, %c48_109, %c0_110] : memref<2x64x64xf32, #tpu.memory_space<vmem>>, vector<1x16x64xf32>
    %156 = vector.shape_cast %155 : vector<1x16x64xf32> to vector<16x64xf32>
    %cst_111 = arith.constant dense<0.000000e+00> : vector<56x64xf32>
    %157 = tpu.matmul %154, %156, %cst_111 {dimension_numbers = #tpu.dot_dimension_numbers<[1], [0], [0], [1], [0, 0, 1, 1], [], []>} : vector<56x16xf32>, vector<16x64xf32>, vector<56x64xf32> -> vector<56x64xf32>
    %158 = arith.addf %119, %157 : vector<56x64xf32>
    %c0_112 = arith.constant 0 : index
    %c0_113 = arith.constant 0 : index
    %c0_114 = arith.constant 0 : index
    %159 = vector.load %arg6[%c0_112, %c0_113, %c0_114] : memref<2x1x64xf32, #tpu.memory_space<vmem>>, vector<1x1x64xf32>
    %160 = vector.shape_cast %159 : vector<1x1x64xf32> to vector<1x64xf32>
    %161 = vector.broadcast %160 : vector<1x64xf32> to vector<56x64xf32>
    %162 = arith.addf %158, %161 : vector<56x64xf32>
    %163 = arith.addf %0, %162 : vector<56x64xf32>
    %c0_115 = arith.constant 0 : index
    %c0_116 = arith.constant 0 : index
    %c0_117 = arith.constant 0 : index
    %164 = vector.load %arg7[%c0_115, %c0_116, %c0_117] : memref<2x1x64xf32, #tpu.memory_space<vmem>>, vector<1x1x64xf32>
    %165 = vector.shape_cast %164 : vector<1x1x64xf32> to vector<1x64xf32>
    %c0_118 = arith.constant 0 : index
    %c0_119 = arith.constant 0 : index
    %c0_120 = arith.constant 0 : index
    %166 = vector.load %arg8[%c0_118, %c0_119, %c0_120] : memref<2x1x64xf32, #tpu.memory_space<vmem>>, vector<1x1x64xf32>
    %167 = vector.shape_cast %166 : vector<1x1x64xf32> to vector<1x64xf32>
    %cst_121 = arith.constant dense<0.000000e+00> : vector<56xf32>
    %168 = vector.multi_reduction <add>, %163, %cst_121 [1] : vector<56x64xf32> to vector<56xf32>
    %169 = vector.shape_cast %168 : vector<56xf32> to vector<56x1xf32>
    %cst_122 = arith.constant 6.400000e+01 : f32
    %170 = vector.broadcast %cst_122 : f32 to vector<56x1xf32>
    %171 = arith.divf %169, %170 : vector<56x1xf32>
    %172 = vector.broadcast %171 : vector<56x1xf32> to vector<56x64xf32>
    %173 = arith.subf %163, %172 : vector<56x64xf32>
    %174 = arith.mulf %173, %173 : vector<56x64xf32>
    %cst_123 = arith.constant dense<0.000000e+00> : vector<56xf32>
    %175 = vector.multi_reduction <add>, %174, %cst_123 [1] : vector<56x64xf32> to vector<56xf32>
    %176 = vector.shape_cast %175 : vector<56xf32> to vector<56x1xf32>
    %cst_124 = arith.constant 6.400000e+01 : f32
    %177 = vector.broadcast %cst_124 : f32 to vector<56x1xf32>
    %178 = arith.divf %176, %177 : vector<56x1xf32>
    %cst_125 = arith.constant 9.99999974E-6 : f32
    %179 = vector.broadcast %cst_125 : f32 to vector<56x1xf32>
    %180 = arith.addf %178, %179 : vector<56x1xf32>
    %181 = math.rsqrt %180 : vector<56x1xf32>
    %182 = vector.broadcast %181 : vector<56x1xf32> to vector<56x64xf32>
    %183 = arith.mulf %173, %182 : vector<56x64xf32>
    %184 = vector.broadcast %165 : vector<1x64xf32> to vector<56x64xf32>
    %185 = arith.mulf %183, %184 : vector<56x64xf32>
    %186 = vector.broadcast %167 : vector<1x64xf32> to vector<56x64xf32>
    %187 = arith.addf %185, %186 : vector<56x64xf32>
    %188 = arith.truncf %187 : vector<56x64xf32> to vector<56x64xbf16>
    %c0_126 = arith.constant 0 : index
    %c0_127 = arith.constant 0 : index
    %c0_128 = arith.constant 0 : index
    %189 = vector.load %arg9[%c0_126, %c0_127, %c0_128] : memref<2x64x2048xbf16, #tpu.memory_space<vmem>>, vector<1x64x2048xbf16>
    %190 = vector.shape_cast %189 : vector<1x64x2048xbf16> to vector<64x2048xbf16>
    %cst_129 = arith.constant dense<0.000000e+00> : vector<56x2048xf32>
    %191 = tpu.matmul %188, %190, %cst_129 {dimension_numbers = #tpu.dot_dimension_numbers<[1], [0], [0], [1], [0, 0, 1, 1], [], []>} : vector<56x64xbf16>, vector<64x2048xbf16>, vector<56x2048xf32> -> vector<56x2048xf32>
    %c0_130 = arith.constant 0 : index
    %c0_131 = arith.constant 0 : index
    %c0_132 = arith.constant 0 : index
    %192 = vector.load %arg10[%c0_130, %c0_131, %c0_132] : memref<2x1x2048xf32, #tpu.memory_space<vmem>>, vector<1x1x2048xf32>
    %193 = vector.shape_cast %192 : vector<1x1x2048xf32> to vector<1x2048xf32>
    %194 = vector.broadcast %193 : vector<1x2048xf32> to vector<56x2048xf32>
    %195 = arith.addf %191, %194 : vector<56x2048xf32>
    %cst_133 = arith.constant 0.000000e+00 : f32
    %196 = vector.broadcast %cst_133 : f32 to vector<56x2048xf32>
    %197 = arith.maximumf %195, %196 : vector<56x2048xf32>
    %198 = arith.truncf %197 : vector<56x2048xf32> to vector<56x2048xbf16>
    %c0_134 = arith.constant 0 : index
    %c0_135 = arith.constant 0 : index
    %c0_136 = arith.constant 0 : index
    %199 = vector.load %arg11[%c0_134, %c0_135, %c0_136] : memref<2x2048x64xbf16, #tpu.memory_space<vmem>>, vector<1x2048x64xbf16>
    %200 = vector.shape_cast %199 : vector<1x2048x64xbf16> to vector<2048x64xbf16>
    %cst_137 = arith.constant dense<0.000000e+00> : vector<56x64xf32>
    %201 = tpu.matmul %198, %200, %cst_137 {dimension_numbers = #tpu.dot_dimension_numbers<[1], [0], [0], [1], [0, 0, 1, 1], [], []>} : vector<56x2048xbf16>, vector<2048x64xbf16>, vector<56x64xf32> -> vector<56x64xf32>
    %c0_138 = arith.constant 0 : index
    %c0_139 = arith.constant 0 : index
    %c0_140 = arith.constant 0 : index
    %202 = vector.load %arg12[%c0_138, %c0_139, %c0_140] : memref<2x1x64xf32, #tpu.memory_space<vmem>>, vector<1x1x64xf32>
    %203 = vector.shape_cast %202 : vector<1x1x64xf32> to vector<1x64xf32>
    %204 = vector.broadcast %203 : vector<1x64xf32> to vector<56x64xf32>
    %205 = arith.addf %201, %204 : vector<56x64xf32>
    %206 = arith.addf %187, %205 : vector<56x64xf32>
    %c0_141 = arith.constant 0 : index
    %c0_142 = arith.constant 0 : index
    %c0_143 = arith.constant 0 : index
    %207 = vector.load %arg13[%c0_141, %c0_142, %c0_143] : memref<2x1x64xf32, #tpu.memory_space<vmem>>, vector<1x1x64xf32>
    %208 = vector.shape_cast %207 : vector<1x1x64xf32> to vector<1x64xf32>
    %c0_144 = arith.constant 0 : index
    %c0_145 = arith.constant 0 : index
    %c0_146 = arith.constant 0 : index
    %209 = vector.load %arg14[%c0_144, %c0_145, %c0_146] : memref<2x1x64xf32, #tpu.memory_space<vmem>>, vector<1x1x64xf32>
    %210 = vector.shape_cast %209 : vector<1x1x64xf32> to vector<1x64xf32>
    %cst_147 = arith.constant dense<0.000000e+00> : vector<56xf32>
    %211 = vector.multi_reduction <add>, %206, %cst_147 [1] : vector<56x64xf32> to vector<56xf32>
    %212 = vector.shape_cast %211 : vector<56xf32> to vector<56x1xf32>
    %cst_148 = arith.constant 6.400000e+01 : f32
    %213 = vector.broadcast %cst_148 : f32 to vector<56x1xf32>
    %214 = arith.divf %212, %213 : vector<56x1xf32>
    %215 = vector.broadcast %214 : vector<56x1xf32> to vector<56x64xf32>
    %216 = arith.subf %206, %215 : vector<56x64xf32>
    %217 = arith.mulf %216, %216 : vector<56x64xf32>
    %cst_149 = arith.constant dense<0.000000e+00> : vector<56xf32>
    %218 = vector.multi_reduction <add>, %217, %cst_149 [1] : vector<56x64xf32> to vector<56xf32>
    %219 = vector.shape_cast %218 : vector<56xf32> to vector<56x1xf32>
    %cst_150 = arith.constant 6.400000e+01 : f32
    %220 = vector.broadcast %cst_150 : f32 to vector<56x1xf32>
    %221 = arith.divf %219, %220 : vector<56x1xf32>
    %cst_151 = arith.constant 9.99999974E-6 : f32
    %222 = vector.broadcast %cst_151 : f32 to vector<56x1xf32>
    %223 = arith.addf %221, %222 : vector<56x1xf32>
    %224 = math.rsqrt %223 : vector<56x1xf32>
    %225 = vector.broadcast %224 : vector<56x1xf32> to vector<56x64xf32>
    %226 = arith.mulf %216, %225 : vector<56x64xf32>
    %227 = vector.broadcast %208 : vector<1x64xf32> to vector<56x64xf32>
    %228 = arith.mulf %226, %227 : vector<56x64xf32>
    %229 = vector.broadcast %210 : vector<1x64xf32> to vector<56x64xf32>
    %230 = arith.addf %228, %229 : vector<56x64xf32>
    %cst_152 = arith.constant 0.000000e+00 : f32
    %231 = vector.broadcast %cst_152 : f32 to vector<56x64xf32>
    %c1 = arith.constant 1 : index
    %c0_153 = arith.constant 0 : index
    %c0_154 = arith.constant 0 : index
    %232 = vector.load %arg3[%c1, %c0_153, %c0_154] : memref<2x64x192xf32, #tpu.memory_space<vmem>>, vector<1x64x16xf32>
    %233 = vector.shape_cast %232 : vector<1x64x16xf32> to vector<64x16xf32>
    %cst_155 = arith.constant dense<0.000000e+00> : vector<56x16xf32>
    %234 = tpu.matmul %230, %233, %cst_155 {dimension_numbers = #tpu.dot_dimension_numbers<[1], [0], [0], [1], [0, 0, 1, 1], [], []>} : vector<56x64xf32>, vector<64x16xf32>, vector<56x16xf32> -> vector<56x16xf32>
    %c1_156 = arith.constant 1 : index
    %c0_157 = arith.constant 0 : index
    %c0_158 = arith.constant 0 : index
    %235 = vector.load %arg4[%c1_156, %c0_157, %c0_158] : memref<2x1x192xf32, #tpu.memory_space<vmem>>, vector<1x1x16xf32>
    %236 = vector.shape_cast %235 : vector<1x1x16xf32> to vector<1x16xf32>
    %237 = vector.broadcast %236 : vector<1x16xf32> to vector<56x16xf32>
    %238 = arith.addf %234, %237 : vector<56x16xf32>
    %c1_159 = arith.constant 1 : index
    %c0_160 = arith.constant 0 : index
    %c64_161 = arith.constant 64 : index
    %239 = vector.load %arg3[%c1_159, %c0_160, %c64_161] : memref<2x64x192xf32, #tpu.memory_space<vmem>>, vector<1x64x16xf32>
    %240 = vector.shape_cast %239 : vector<1x64x16xf32> to vector<64x16xf32>
    %cst_162 = arith.constant dense<0.000000e+00> : vector<56x16xf32>
    %241 = tpu.matmul %230, %240, %cst_162 {dimension_numbers = #tpu.dot_dimension_numbers<[1], [0], [0], [1], [0, 0, 1, 1], [], []>} : vector<56x64xf32>, vector<64x16xf32>, vector<56x16xf32> -> vector<56x16xf32>
    %c1_163 = arith.constant 1 : index
    %c0_164 = arith.constant 0 : index
    %c64_165 = arith.constant 64 : index
    %242 = vector.load %arg4[%c1_163, %c0_164, %c64_165] : memref<2x1x192xf32, #tpu.memory_space<vmem>>, vector<1x1x16xf32>
    %243 = vector.shape_cast %242 : vector<1x1x16xf32> to vector<1x16xf32>
    %244 = vector.broadcast %243 : vector<1x16xf32> to vector<56x16xf32>
    %245 = arith.addf %241, %244 : vector<56x16xf32>
    %c1_166 = arith.constant 1 : index
    %c0_167 = arith.constant 0 : index
    %c128_168 = arith.constant 128 : index
    %246 = vector.load %arg3[%c1_166, %c0_167, %c128_168] : memref<2x64x192xf32, #tpu.memory_space<vmem>>, vector<1x64x16xf32>
    %247 = vector.shape_cast %246 : vector<1x64x16xf32> to vector<64x16xf32>
    %cst_169 = arith.constant dense<0.000000e+00> : vector<56x16xf32>
    %248 = tpu.matmul %230, %247, %cst_169 {dimension_numbers = #tpu.dot_dimension_numbers<[1], [0], [0], [1], [0, 0, 1, 1], [], []>} : vector<56x64xf32>, vector<64x16xf32>, vector<56x16xf32> -> vector<56x16xf32>
    %c1_170 = arith.constant 1 : index
    %c0_171 = arith.constant 0 : index
    %c128_172 = arith.constant 128 : index
    %249 = vector.load %arg4[%c1_170, %c0_171, %c128_172] : memref<2x1x192xf32, #tpu.memory_space<vmem>>, vector<1x1x16xf32>
    %250 = vector.shape_cast %249 : vector<1x1x16xf32> to vector<1x16xf32>
    %251 = vector.broadcast %250 : vector<1x16xf32> to vector<56x16xf32>
    %252 = arith.addf %248, %251 : vector<56x16xf32>
    %cst_173 = arith.constant dense<0.000000e+00> : vector<56x56xf32>
    %253 = tpu.matmul %238, %245, %cst_173 {dimension_numbers = #tpu.dot_dimension_numbers<[1], [1], [0], [0], [0, 0, 1, 0], [], []>} : vector<56x16xf32>, vector<56x16xf32>, vector<56x56xf32> -> vector<56x56xf32>
    %cst_174 = arith.constant 2.500000e-01 : f32
    %254 = vector.broadcast %cst_174 : f32 to vector<56x56xf32>
    %255 = arith.mulf %253, %254 : vector<56x56xf32>
    %256 = arith.addf %255, %1 : vector<56x56xf32>
    %cst_175 = arith.constant dense<0xFF800000> : vector<56xf32>
    %257 = vector.multi_reduction <maximumf>, %256, %cst_175 [1] : vector<56x56xf32> to vector<56xf32>
    %258 = vector.shape_cast %257 : vector<56xf32> to vector<56x1xf32>
    %259 = vector.broadcast %258 : vector<56x1xf32> to vector<56x56xf32>
    %260 = arith.subf %256, %259 : vector<56x56xf32>
    %261 = math.exp %260 : vector<56x56xf32>
    %cst_176 = arith.constant dense<0.000000e+00> : vector<56xf32>
    %262 = vector.multi_reduction <add>, %261, %cst_176 [1] : vector<56x56xf32> to vector<56xf32>
    %263 = vector.shape_cast %262 : vector<56xf32> to vector<56x1xf32>
    %264 = vector.broadcast %263 : vector<56x1xf32> to vector<56x56xf32>
    %265 = arith.divf %261, %264 : vector<56x56xf32>
    %cst_177 = arith.constant dense<0.000000e+00> : vector<56x16xf32>
    %266 = tpu.matmul %265, %252, %cst_177 {dimension_numbers = #tpu.dot_dimension_numbers<[1], [0], [0], [1], [0, 0, 1, 1], [], []>} : vector<56x56xf32>, vector<56x16xf32>, vector<56x16xf32> -> vector<56x16xf32>
    %c1_178 = arith.constant 1 : index
    %c0_179 = arith.constant 0 : index
    %c0_180 = arith.constant 0 : index
    %267 = vector.load %arg5[%c1_178, %c0_179, %c0_180] : memref<2x64x64xf32, #tpu.memory_space<vmem>>, vector<1x16x64xf32>
    %268 = vector.shape_cast %267 : vector<1x16x64xf32> to vector<16x64xf32>
    %cst_181 = arith.constant dense<0.000000e+00> : vector<56x64xf32>
    %269 = tpu.matmul %266, %268, %cst_181 {dimension_numbers = #tpu.dot_dimension_numbers<[1], [0], [0], [1], [0, 0, 1, 1], [], []>} : vector<56x16xf32>, vector<16x64xf32>, vector<56x64xf32> -> vector<56x64xf32>
    %270 = arith.addf %231, %269 : vector<56x64xf32>
    %c1_182 = arith.constant 1 : index
    %c0_183 = arith.constant 0 : index
    %c16_184 = arith.constant 16 : index
    %271 = vector.load %arg3[%c1_182, %c0_183, %c16_184] : memref<2x64x192xf32, #tpu.memory_space<vmem>>, vector<1x64x16xf32>
    %272 = vector.shape_cast %271 : vector<1x64x16xf32> to vector<64x16xf32>
    %cst_185 = arith.constant dense<0.000000e+00> : vector<56x16xf32>
    %273 = tpu.matmul %230, %272, %cst_185 {dimension_numbers = #tpu.dot_dimension_numbers<[1], [0], [0], [1], [0, 0, 1, 1], [], []>} : vector<56x64xf32>, vector<64x16xf32>, vector<56x16xf32> -> vector<56x16xf32>
    %c1_186 = arith.constant 1 : index
    %c0_187 = arith.constant 0 : index
    %c16_188 = arith.constant 16 : index
    %274 = vector.load %arg4[%c1_186, %c0_187, %c16_188] : memref<2x1x192xf32, #tpu.memory_space<vmem>>, vector<1x1x16xf32>
    %275 = vector.shape_cast %274 : vector<1x1x16xf32> to vector<1x16xf32>
    %276 = vector.broadcast %275 : vector<1x16xf32> to vector<56x16xf32>
    %277 = arith.addf %273, %276 : vector<56x16xf32>
    %c1_189 = arith.constant 1 : index
    %c0_190 = arith.constant 0 : index
    %c80_191 = arith.constant 80 : index
    %278 = vector.load %arg3[%c1_189, %c0_190, %c80_191] : memref<2x64x192xf32, #tpu.memory_space<vmem>>, vector<1x64x16xf32>
    %279 = vector.shape_cast %278 : vector<1x64x16xf32> to vector<64x16xf32>
    %cst_192 = arith.constant dense<0.000000e+00> : vector<56x16xf32>
    %280 = tpu.matmul %230, %279, %cst_192 {dimension_numbers = #tpu.dot_dimension_numbers<[1], [0], [0], [1], [0, 0, 1, 1], [], []>} : vector<56x64xf32>, vector<64x16xf32>, vector<56x16xf32> -> vector<56x16xf32>
    %c1_193 = arith.constant 1 : index
    %c0_194 = arith.constant 0 : index
    %c80_195 = arith.constant 80 : index
    %281 = vector.load %arg4[%c1_193, %c0_194, %c80_195] : memref<2x1x192xf32, #tpu.memory_space<vmem>>, vector<1x1x16xf32>
    %282 = vector.shape_cast %281 : vector<1x1x16xf32> to vector<1x16xf32>
    %283 = vector.broadcast %282 : vector<1x16xf32> to vector<56x16xf32>
    %284 = arith.addf %280, %283 : vector<56x16xf32>
    %c1_196 = arith.constant 1 : index
    %c0_197 = arith.constant 0 : index
    %c144_198 = arith.constant 144 : index
    %285 = vector.load %arg3[%c1_196, %c0_197, %c144_198] : memref<2x64x192xf32, #tpu.memory_space<vmem>>, vector<1x64x16xf32>
    %286 = vector.shape_cast %285 : vector<1x64x16xf32> to vector<64x16xf32>
    %cst_199 = arith.constant dense<0.000000e+00> : vector<56x16xf32>
    %287 = tpu.matmul %230, %286, %cst_199 {dimension_numbers = #tpu.dot_dimension_numbers<[1], [0], [0], [1], [0, 0, 1, 1], [], []>} : vector<56x64xf32>, vector<64x16xf32>, vector<56x16xf32> -> vector<56x16xf32>
    %c1_200 = arith.constant 1 : index
    %c0_201 = arith.constant 0 : index
    %c144_202 = arith.constant 144 : index
    %288 = vector.load %arg4[%c1_200, %c0_201, %c144_202] : memref<2x1x192xf32, #tpu.memory_space<vmem>>, vector<1x1x16xf32>
    %289 = vector.shape_cast %288 : vector<1x1x16xf32> to vector<1x16xf32>
    %290 = vector.broadcast %289 : vector<1x16xf32> to vector<56x16xf32>
    %291 = arith.addf %287, %290 : vector<56x16xf32>
    %cst_203 = arith.constant dense<0.000000e+00> : vector<56x56xf32>
    %292 = tpu.matmul %277, %284, %cst_203 {dimension_numbers = #tpu.dot_dimension_numbers<[1], [1], [0], [0], [0, 0, 1, 0], [], []>} : vector<56x16xf32>, vector<56x16xf32>, vector<56x56xf32> -> vector<56x56xf32>
    %cst_204 = arith.constant 2.500000e-01 : f32
    %293 = vector.broadcast %cst_204 : f32 to vector<56x56xf32>
    %294 = arith.mulf %292, %293 : vector<56x56xf32>
    %295 = arith.addf %294, %1 : vector<56x56xf32>
    %cst_205 = arith.constant dense<0xFF800000> : vector<56xf32>
    %296 = vector.multi_reduction <maximumf>, %295, %cst_205 [1] : vector<56x56xf32> to vector<56xf32>
    %297 = vector.shape_cast %296 : vector<56xf32> to vector<56x1xf32>
    %298 = vector.broadcast %297 : vector<56x1xf32> to vector<56x56xf32>
    %299 = arith.subf %295, %298 : vector<56x56xf32>
    %300 = math.exp %299 : vector<56x56xf32>
    %cst_206 = arith.constant dense<0.000000e+00> : vector<56xf32>
    %301 = vector.multi_reduction <add>, %300, %cst_206 [1] : vector<56x56xf32> to vector<56xf32>
    %302 = vector.shape_cast %301 : vector<56xf32> to vector<56x1xf32>
    %303 = vector.broadcast %302 : vector<56x1xf32> to vector<56x56xf32>
    %304 = arith.divf %300, %303 : vector<56x56xf32>
    %cst_207 = arith.constant dense<0.000000e+00> : vector<56x16xf32>
    %305 = tpu.matmul %304, %291, %cst_207 {dimension_numbers = #tpu.dot_dimension_numbers<[1], [0], [0], [1], [0, 0, 1, 1], [], []>} : vector<56x56xf32>, vector<56x16xf32>, vector<56x16xf32> -> vector<56x16xf32>
    %c1_208 = arith.constant 1 : index
    %c16_209 = arith.constant 16 : index
    %c0_210 = arith.constant 0 : index
    %306 = vector.load %arg5[%c1_208, %c16_209, %c0_210] : memref<2x64x64xf32, #tpu.memory_space<vmem>>, vector<1x16x64xf32>
    %307 = vector.shape_cast %306 : vector<1x16x64xf32> to vector<16x64xf32>
    %cst_211 = arith.constant dense<0.000000e+00> : vector<56x64xf32>
    %308 = tpu.matmul %305, %307, %cst_211 {dimension_numbers = #tpu.dot_dimension_numbers<[1], [0], [0], [1], [0, 0, 1, 1], [], []>} : vector<56x16xf32>, vector<16x64xf32>, vector<56x64xf32> -> vector<56x64xf32>
    %309 = arith.addf %270, %308 : vector<56x64xf32>
    %c1_212 = arith.constant 1 : index
    %c0_213 = arith.constant 0 : index
    %c32_214 = arith.constant 32 : index
    %310 = vector.load %arg3[%c1_212, %c0_213, %c32_214] : memref<2x64x192xf32, #tpu.memory_space<vmem>>, vector<1x64x16xf32>
    %311 = vector.shape_cast %310 : vector<1x64x16xf32> to vector<64x16xf32>
    %cst_215 = arith.constant dense<0.000000e+00> : vector<56x16xf32>
    %312 = tpu.matmul %230, %311, %cst_215 {dimension_numbers = #tpu.dot_dimension_numbers<[1], [0], [0], [1], [0, 0, 1, 1], [], []>} : vector<56x64xf32>, vector<64x16xf32>, vector<56x16xf32> -> vector<56x16xf32>
    %c1_216 = arith.constant 1 : index
    %c0_217 = arith.constant 0 : index
    %c32_218 = arith.constant 32 : index
    %313 = vector.load %arg4[%c1_216, %c0_217, %c32_218] : memref<2x1x192xf32, #tpu.memory_space<vmem>>, vector<1x1x16xf32>
    %314 = vector.shape_cast %313 : vector<1x1x16xf32> to vector<1x16xf32>
    %315 = vector.broadcast %314 : vector<1x16xf32> to vector<56x16xf32>
    %316 = arith.addf %312, %315 : vector<56x16xf32>
    %c1_219 = arith.constant 1 : index
    %c0_220 = arith.constant 0 : index
    %c96_221 = arith.constant 96 : index
    %317 = vector.load %arg3[%c1_219, %c0_220, %c96_221] : memref<2x64x192xf32, #tpu.memory_space<vmem>>, vector<1x64x16xf32>
    %318 = vector.shape_cast %317 : vector<1x64x16xf32> to vector<64x16xf32>
    %cst_222 = arith.constant dense<0.000000e+00> : vector<56x16xf32>
    %319 = tpu.matmul %230, %318, %cst_222 {dimension_numbers = #tpu.dot_dimension_numbers<[1], [0], [0], [1], [0, 0, 1, 1], [], []>} : vector<56x64xf32>, vector<64x16xf32>, vector<56x16xf32> -> vector<56x16xf32>
    %c1_223 = arith.constant 1 : index
    %c0_224 = arith.constant 0 : index
    %c96_225 = arith.constant 96 : index
    %320 = vector.load %arg4[%c1_223, %c0_224, %c96_225] : memref<2x1x192xf32, #tpu.memory_space<vmem>>, vector<1x1x16xf32>
    %321 = vector.shape_cast %320 : vector<1x1x16xf32> to vector<1x16xf32>
    %322 = vector.broadcast %321 : vector<1x16xf32> to vector<56x16xf32>
    %323 = arith.addf %319, %322 : vector<56x16xf32>
    %c1_226 = arith.constant 1 : index
    %c0_227 = arith.constant 0 : index
    %c160_228 = arith.constant 160 : index
    %324 = vector.load %arg3[%c1_226, %c0_227, %c160_228] : memref<2x64x192xf32, #tpu.memory_space<vmem>>, vector<1x64x16xf32>
    %325 = vector.shape_cast %324 : vector<1x64x16xf32> to vector<64x16xf32>
    %cst_229 = arith.constant dense<0.000000e+00> : vector<56x16xf32>
    %326 = tpu.matmul %230, %325, %cst_229 {dimension_numbers = #tpu.dot_dimension_numbers<[1], [0], [0], [1], [0, 0, 1, 1], [], []>} : vector<56x64xf32>, vector<64x16xf32>, vector<56x16xf32> -> vector<56x16xf32>
    %c1_230 = arith.constant 1 : index
    %c0_231 = arith.constant 0 : index
    %c160_232 = arith.constant 160 : index
    %327 = vector.load %arg4[%c1_230, %c0_231, %c160_232] : memref<2x1x192xf32, #tpu.memory_space<vmem>>, vector<1x1x16xf32>
    %328 = vector.shape_cast %327 : vector<1x1x16xf32> to vector<1x16xf32>
    %329 = vector.broadcast %328 : vector<1x16xf32> to vector<56x16xf32>
    %330 = arith.addf %326, %329 : vector<56x16xf32>
    %cst_233 = arith.constant dense<0.000000e+00> : vector<56x56xf32>
    %331 = tpu.matmul %316, %323, %cst_233 {dimension_numbers = #tpu.dot_dimension_numbers<[1], [1], [0], [0], [0, 0, 1, 0], [], []>} : vector<56x16xf32>, vector<56x16xf32>, vector<56x56xf32> -> vector<56x56xf32>
    %cst_234 = arith.constant 2.500000e-01 : f32
    %332 = vector.broadcast %cst_234 : f32 to vector<56x56xf32>
    %333 = arith.mulf %331, %332 : vector<56x56xf32>
    %334 = arith.addf %333, %1 : vector<56x56xf32>
    %cst_235 = arith.constant dense<0xFF800000> : vector<56xf32>
    %335 = vector.multi_reduction <maximumf>, %334, %cst_235 [1] : vector<56x56xf32> to vector<56xf32>
    %336 = vector.shape_cast %335 : vector<56xf32> to vector<56x1xf32>
    %337 = vector.broadcast %336 : vector<56x1xf32> to vector<56x56xf32>
    %338 = arith.subf %334, %337 : vector<56x56xf32>
    %339 = math.exp %338 : vector<56x56xf32>
    %cst_236 = arith.constant dense<0.000000e+00> : vector<56xf32>
    %340 = vector.multi_reduction <add>, %339, %cst_236 [1] : vector<56x56xf32> to vector<56xf32>
    %341 = vector.shape_cast %340 : vector<56xf32> to vector<56x1xf32>
    %342 = vector.broadcast %341 : vector<56x1xf32> to vector<56x56xf32>
    %343 = arith.divf %339, %342 : vector<56x56xf32>
    %cst_237 = arith.constant dense<0.000000e+00> : vector<56x16xf32>
    %344 = tpu.matmul %343, %330, %cst_237 {dimension_numbers = #tpu.dot_dimension_numbers<[1], [0], [0], [1], [0, 0, 1, 1], [], []>} : vector<56x56xf32>, vector<56x16xf32>, vector<56x16xf32> -> vector<56x16xf32>
    %c1_238 = arith.constant 1 : index
    %c32_239 = arith.constant 32 : index
    %c0_240 = arith.constant 0 : index
    %345 = vector.load %arg5[%c1_238, %c32_239, %c0_240] : memref<2x64x64xf32, #tpu.memory_space<vmem>>, vector<1x16x64xf32>
    %346 = vector.shape_cast %345 : vector<1x16x64xf32> to vector<16x64xf32>
    %cst_241 = arith.constant dense<0.000000e+00> : vector<56x64xf32>
    %347 = tpu.matmul %344, %346, %cst_241 {dimension_numbers = #tpu.dot_dimension_numbers<[1], [0], [0], [1], [0, 0, 1, 1], [], []>} : vector<56x16xf32>, vector<16x64xf32>, vector<56x64xf32> -> vector<56x64xf32>
    %348 = arith.addf %309, %347 : vector<56x64xf32>
    %c1_242 = arith.constant 1 : index
    %c0_243 = arith.constant 0 : index
    %c48_244 = arith.constant 48 : index
    %349 = vector.load %arg3[%c1_242, %c0_243, %c48_244] : memref<2x64x192xf32, #tpu.memory_space<vmem>>, vector<1x64x16xf32>
    %350 = vector.shape_cast %349 : vector<1x64x16xf32> to vector<64x16xf32>
    %cst_245 = arith.constant dense<0.000000e+00> : vector<56x16xf32>
    %351 = tpu.matmul %230, %350, %cst_245 {dimension_numbers = #tpu.dot_dimension_numbers<[1], [0], [0], [1], [0, 0, 1, 1], [], []>} : vector<56x64xf32>, vector<64x16xf32>, vector<56x16xf32> -> vector<56x16xf32>
    %c1_246 = arith.constant 1 : index
    %c0_247 = arith.constant 0 : index
    %c48_248 = arith.constant 48 : index
    %352 = vector.load %arg4[%c1_246, %c0_247, %c48_248] : memref<2x1x192xf32, #tpu.memory_space<vmem>>, vector<1x1x16xf32>
    %353 = vector.shape_cast %352 : vector<1x1x16xf32> to vector<1x16xf32>
    %354 = vector.broadcast %353 : vector<1x16xf32> to vector<56x16xf32>
    %355 = arith.addf %351, %354 : vector<56x16xf32>
    %c1_249 = arith.constant 1 : index
    %c0_250 = arith.constant 0 : index
    %c112_251 = arith.constant 112 : index
    %356 = vector.load %arg3[%c1_249, %c0_250, %c112_251] : memref<2x64x192xf32, #tpu.memory_space<vmem>>, vector<1x64x16xf32>
    %357 = vector.shape_cast %356 : vector<1x64x16xf32> to vector<64x16xf32>
    %cst_252 = arith.constant dense<0.000000e+00> : vector<56x16xf32>
    %358 = tpu.matmul %230, %357, %cst_252 {dimension_numbers = #tpu.dot_dimension_numbers<[1], [0], [0], [1], [0, 0, 1, 1], [], []>} : vector<56x64xf32>, vector<64x16xf32>, vector<56x16xf32> -> vector<56x16xf32>
    %c1_253 = arith.constant 1 : index
    %c0_254 = arith.constant 0 : index
    %c112_255 = arith.constant 112 : index
    %359 = vector.load %arg4[%c1_253, %c0_254, %c112_255] : memref<2x1x192xf32, #tpu.memory_space<vmem>>, vector<1x1x16xf32>
    %360 = vector.shape_cast %359 : vector<1x1x16xf32> to vector<1x16xf32>
    %361 = vector.broadcast %360 : vector<1x16xf32> to vector<56x16xf32>
    %362 = arith.addf %358, %361 : vector<56x16xf32>
    %c1_256 = arith.constant 1 : index
    %c0_257 = arith.constant 0 : index
    %c176_258 = arith.constant 176 : index
    %363 = vector.load %arg3[%c1_256, %c0_257, %c176_258] : memref<2x64x192xf32, #tpu.memory_space<vmem>>, vector<1x64x16xf32>
    %364 = vector.shape_cast %363 : vector<1x64x16xf32> to vector<64x16xf32>
    %cst_259 = arith.constant dense<0.000000e+00> : vector<56x16xf32>
    %365 = tpu.matmul %230, %364, %cst_259 {dimension_numbers = #tpu.dot_dimension_numbers<[1], [0], [0], [1], [0, 0, 1, 1], [], []>} : vector<56x64xf32>, vector<64x16xf32>, vector<56x16xf32> -> vector<56x16xf32>
    %c1_260 = arith.constant 1 : index
    %c0_261 = arith.constant 0 : index
    %c176_262 = arith.constant 176 : index
    %366 = vector.load %arg4[%c1_260, %c0_261, %c176_262] : memref<2x1x192xf32, #tpu.memory_space<vmem>>, vector<1x1x16xf32>
    %367 = vector.shape_cast %366 : vector<1x1x16xf32> to vector<1x16xf32>
    %368 = vector.broadcast %367 : vector<1x16xf32> to vector<56x16xf32>
    %369 = arith.addf %365, %368 : vector<56x16xf32>
    %cst_263 = arith.constant dense<0.000000e+00> : vector<56x56xf32>
    %370 = tpu.matmul %355, %362, %cst_263 {dimension_numbers = #tpu.dot_dimension_numbers<[1], [1], [0], [0], [0, 0, 1, 0], [], []>} : vector<56x16xf32>, vector<56x16xf32>, vector<56x56xf32> -> vector<56x56xf32>
    %cst_264 = arith.constant 2.500000e-01 : f32
    %371 = vector.broadcast %cst_264 : f32 to vector<56x56xf32>
    %372 = arith.mulf %370, %371 : vector<56x56xf32>
    %373 = arith.addf %372, %1 : vector<56x56xf32>
    %cst_265 = arith.constant dense<0xFF800000> : vector<56xf32>
    %374 = vector.multi_reduction <maximumf>, %373, %cst_265 [1] : vector<56x56xf32> to vector<56xf32>
    %375 = vector.shape_cast %374 : vector<56xf32> to vector<56x1xf32>
    %376 = vector.broadcast %375 : vector<56x1xf32> to vector<56x56xf32>
    %377 = arith.subf %373, %376 : vector<56x56xf32>
    %378 = math.exp %377 : vector<56x56xf32>
    %cst_266 = arith.constant dense<0.000000e+00> : vector<56xf32>
    %379 = vector.multi_reduction <add>, %378, %cst_266 [1] : vector<56x56xf32> to vector<56xf32>
    %380 = vector.shape_cast %379 : vector<56xf32> to vector<56x1xf32>
    %381 = vector.broadcast %380 : vector<56x1xf32> to vector<56x56xf32>
    %382 = arith.divf %378, %381 : vector<56x56xf32>
    %cst_267 = arith.constant dense<0.000000e+00> : vector<56x16xf32>
    %383 = tpu.matmul %382, %369, %cst_267 {dimension_numbers = #tpu.dot_dimension_numbers<[1], [0], [0], [1], [0, 0, 1, 1], [], []>} : vector<56x56xf32>, vector<56x16xf32>, vector<56x16xf32> -> vector<56x16xf32>
    %c1_268 = arith.constant 1 : index
    %c48_269 = arith.constant 48 : index
    %c0_270 = arith.constant 0 : index
    %384 = vector.load %arg5[%c1_268, %c48_269, %c0_270] : memref<2x64x64xf32, #tpu.memory_space<vmem>>, vector<1x16x64xf32>
    %385 = vector.shape_cast %384 : vector<1x16x64xf32> to vector<16x64xf32>
    %cst_271 = arith.constant dense<0.000000e+00> : vector<56x64xf32>
    %386 = tpu.matmul %383, %385, %cst_271 {dimension_numbers = #tpu.dot_dimension_numbers<[1], [0], [0], [1], [0, 0, 1, 1], [], []>} : vector<56x16xf32>, vector<16x64xf32>, vector<56x64xf32> -> vector<56x64xf32>
    %387 = arith.addf %348, %386 : vector<56x64xf32>
    %c1_272 = arith.constant 1 : index
    %c0_273 = arith.constant 0 : index
    %c0_274 = arith.constant 0 : index
    %388 = vector.load %arg6[%c1_272, %c0_273, %c0_274] : memref<2x1x64xf32, #tpu.memory_space<vmem>>, vector<1x1x64xf32>
    %389 = vector.shape_cast %388 : vector<1x1x64xf32> to vector<1x64xf32>
    %390 = vector.broadcast %389 : vector<1x64xf32> to vector<56x64xf32>
    %391 = arith.addf %387, %390 : vector<56x64xf32>
    %392 = arith.addf %230, %391 : vector<56x64xf32>
    %c1_275 = arith.constant 1 : index
    %c0_276 = arith.constant 0 : index
    %c0_277 = arith.constant 0 : index
    %393 = vector.load %arg7[%c1_275, %c0_276, %c0_277] : memref<2x1x64xf32, #tpu.memory_space<vmem>>, vector<1x1x64xf32>
    %394 = vector.shape_cast %393 : vector<1x1x64xf32> to vector<1x64xf32>
    %c1_278 = arith.constant 1 : index
    %c0_279 = arith.constant 0 : index
    %c0_280 = arith.constant 0 : index
    %395 = vector.load %arg8[%c1_278, %c0_279, %c0_280] : memref<2x1x64xf32, #tpu.memory_space<vmem>>, vector<1x1x64xf32>
    %396 = vector.shape_cast %395 : vector<1x1x64xf32> to vector<1x64xf32>
    %cst_281 = arith.constant dense<0.000000e+00> : vector<56xf32>
    %397 = vector.multi_reduction <add>, %392, %cst_281 [1] : vector<56x64xf32> to vector<56xf32>
    %398 = vector.shape_cast %397 : vector<56xf32> to vector<56x1xf32>
    %cst_282 = arith.constant 6.400000e+01 : f32
    %399 = vector.broadcast %cst_282 : f32 to vector<56x1xf32>
    %400 = arith.divf %398, %399 : vector<56x1xf32>
    %401 = vector.broadcast %400 : vector<56x1xf32> to vector<56x64xf32>
    %402 = arith.subf %392, %401 : vector<56x64xf32>
    %403 = arith.mulf %402, %402 : vector<56x64xf32>
    %cst_283 = arith.constant dense<0.000000e+00> : vector<56xf32>
    %404 = vector.multi_reduction <add>, %403, %cst_283 [1] : vector<56x64xf32> to vector<56xf32>
    %405 = vector.shape_cast %404 : vector<56xf32> to vector<56x1xf32>
    %cst_284 = arith.constant 6.400000e+01 : f32
    %406 = vector.broadcast %cst_284 : f32 to vector<56x1xf32>
    %407 = arith.divf %405, %406 : vector<56x1xf32>
    %cst_285 = arith.constant 9.99999974E-6 : f32
    %408 = vector.broadcast %cst_285 : f32 to vector<56x1xf32>
    %409 = arith.addf %407, %408 : vector<56x1xf32>
    %410 = math.rsqrt %409 : vector<56x1xf32>
    %411 = vector.broadcast %410 : vector<56x1xf32> to vector<56x64xf32>
    %412 = arith.mulf %402, %411 : vector<56x64xf32>
    %413 = vector.broadcast %394 : vector<1x64xf32> to vector<56x64xf32>
    %414 = arith.mulf %412, %413 : vector<56x64xf32>
    %415 = vector.broadcast %396 : vector<1x64xf32> to vector<56x64xf32>
    %416 = arith.addf %414, %415 : vector<56x64xf32>
    %417 = arith.truncf %416 : vector<56x64xf32> to vector<56x64xbf16>
    %c1_286 = arith.constant 1 : index
    %c0_287 = arith.constant 0 : index
    %c0_288 = arith.constant 0 : index
    %418 = vector.load %arg9[%c1_286, %c0_287, %c0_288] : memref<2x64x2048xbf16, #tpu.memory_space<vmem>>, vector<1x64x2048xbf16>
    %419 = vector.shape_cast %418 : vector<1x64x2048xbf16> to vector<64x2048xbf16>
    %cst_289 = arith.constant dense<0.000000e+00> : vector<56x2048xf32>
    %420 = tpu.matmul %417, %419, %cst_289 {dimension_numbers = #tpu.dot_dimension_numbers<[1], [0], [0], [1], [0, 0, 1, 1], [], []>} : vector<56x64xbf16>, vector<64x2048xbf16>, vector<56x2048xf32> -> vector<56x2048xf32>
    %c1_290 = arith.constant 1 : index
    %c0_291 = arith.constant 0 : index
    %c0_292 = arith.constant 0 : index
    %421 = vector.load %arg10[%c1_290, %c0_291, %c0_292] : memref<2x1x2048xf32, #tpu.memory_space<vmem>>, vector<1x1x2048xf32>
    %422 = vector.shape_cast %421 : vector<1x1x2048xf32> to vector<1x2048xf32>
    %423 = vector.broadcast %422 : vector<1x2048xf32> to vector<56x2048xf32>
    %424 = arith.addf %420, %423 : vector<56x2048xf32>
    %cst_293 = arith.constant 0.000000e+00 : f32
    %425 = vector.broadcast %cst_293 : f32 to vector<56x2048xf32>
    %426 = arith.maximumf %424, %425 : vector<56x2048xf32>
    %427 = arith.truncf %426 : vector<56x2048xf32> to vector<56x2048xbf16>
    %c1_294 = arith.constant 1 : index
    %c0_295 = arith.constant 0 : index
    %c0_296 = arith.constant 0 : index
    %428 = vector.load %arg11[%c1_294, %c0_295, %c0_296] : memref<2x2048x64xbf16, #tpu.memory_space<vmem>>, vector<1x2048x64xbf16>
    %429 = vector.shape_cast %428 : vector<1x2048x64xbf16> to vector<2048x64xbf16>
    %cst_297 = arith.constant dense<0.000000e+00> : vector<56x64xf32>
    %430 = tpu.matmul %427, %429, %cst_297 {dimension_numbers = #tpu.dot_dimension_numbers<[1], [0], [0], [1], [0, 0, 1, 1], [], []>} : vector<56x2048xbf16>, vector<2048x64xbf16>, vector<56x64xf32> -> vector<56x64xf32>
    %c1_298 = arith.constant 1 : index
    %c0_299 = arith.constant 0 : index
    %c0_300 = arith.constant 0 : index
    %431 = vector.load %arg12[%c1_298, %c0_299, %c0_300] : memref<2x1x64xf32, #tpu.memory_space<vmem>>, vector<1x1x64xf32>
    %432 = vector.shape_cast %431 : vector<1x1x64xf32> to vector<1x64xf32>
    %433 = vector.broadcast %432 : vector<1x64xf32> to vector<56x64xf32>
    %434 = arith.addf %430, %433 : vector<56x64xf32>
    %435 = arith.addf %416, %434 : vector<56x64xf32>
    %c1_301 = arith.constant 1 : index
    %c0_302 = arith.constant 0 : index
    %c0_303 = arith.constant 0 : index
    %436 = vector.load %arg13[%c1_301, %c0_302, %c0_303] : memref<2x1x64xf32, #tpu.memory_space<vmem>>, vector<1x1x64xf32>
    %437 = vector.shape_cast %436 : vector<1x1x64xf32> to vector<1x64xf32>
    %c1_304 = arith.constant 1 : index
    %c0_305 = arith.constant 0 : index
    %c0_306 = arith.constant 0 : index
    %438 = vector.load %arg14[%c1_304, %c0_305, %c0_306] : memref<2x1x64xf32, #tpu.memory_space<vmem>>, vector<1x1x64xf32>
    %439 = vector.shape_cast %438 : vector<1x1x64xf32> to vector<1x64xf32>
    %cst_307 = arith.constant dense<0.000000e+00> : vector<56xf32>
    %440 = vector.multi_reduction <add>, %435, %cst_307 [1] : vector<56x64xf32> to vector<56xf32>
    %441 = vector.shape_cast %440 : vector<56xf32> to vector<56x1xf32>
    %cst_308 = arith.constant 6.400000e+01 : f32
    %442 = vector.broadcast %cst_308 : f32 to vector<56x1xf32>
    %443 = arith.divf %441, %442 : vector<56x1xf32>
    %444 = vector.broadcast %443 : vector<56x1xf32> to vector<56x64xf32>
    %445 = arith.subf %435, %444 : vector<56x64xf32>
    %446 = arith.mulf %445, %445 : vector<56x64xf32>
    %cst_309 = arith.constant dense<0.000000e+00> : vector<56xf32>
    %447 = vector.multi_reduction <add>, %446, %cst_309 [1] : vector<56x64xf32> to vector<56xf32>
    %448 = vector.shape_cast %447 : vector<56xf32> to vector<56x1xf32>
    %cst_310 = arith.constant 6.400000e+01 : f32
    %449 = vector.broadcast %cst_310 : f32 to vector<56x1xf32>
    %450 = arith.divf %448, %449 : vector<56x1xf32>
    %cst_311 = arith.constant 9.99999974E-6 : f32
    %451 = vector.broadcast %cst_311 : f32 to vector<56x1xf32>
    %452 = arith.addf %450, %451 : vector<56x1xf32>
    %453 = math.rsqrt %452 : vector<56x1xf32>
    %454 = vector.broadcast %453 : vector<56x1xf32> to vector<56x64xf32>
    %455 = arith.mulf %445, %454 : vector<56x64xf32>
    %456 = vector.broadcast %437 : vector<1x64xf32> to vector<56x64xf32>
    %457 = arith.mulf %455, %456 : vector<56x64xf32>
    %458 = vector.broadcast %439 : vector<1x64xf32> to vector<56x64xf32>
    %459 = arith.addf %457, %458 : vector<56x64xf32>
    %c0_312 = arith.constant 0 : index
    %c0_313 = arith.constant 0 : index
    %460 = vector.load %arg15[%c0_312, %c0_313] : memref<56x64xf32, #tpu.memory_space<vmem>>, vector<56x64xf32>
    tpu.vector_store %arg15[%c0_312, %c0_313], %459 {strides = array<i32>} : memref<56x64xf32, #tpu.memory_space<vmem>>, vector<56x64xf32>,
    return
  }
  func.func @transform_0(%arg0: i32) -> (i32, i32) {
    %c0_i32 = arith.constant 0 : i32
    %c0_i32_0 = arith.constant 0 : i32
    %c0_i32_1 = arith.constant 0 : i32
    return %c0_i32, %c0_i32_0 : i32, i32
  }
  func.func @transform_1(%arg0: i32) -> (i32, i32) {
    %c0_i32 = arith.constant 0 : i32
    %c0_i32_0 = arith.constant 0 : i32
    %c0_i32_1 = arith.constant 0 : i32
    return %c0_i32, %c0_i32_0 : i32, i32
  }
  func.func @transform_2(%arg0: i32) -> (i32, i32, i32) {
    %c0_i32 = arith.constant 0 : i32
    %c0_i32_0 = arith.constant 0 : i32
    %c0_i32_1 = arith.constant 0 : i32
    %c0_i32_2 = arith.constant 0 : i32
    return %c0_i32, %c0_i32_0, %c0_i32_1 : i32, i32, i32
  }
  func.func @transform_3(%arg0: i32) -> (i32, i32, i32) {
    %c0_i32 = arith.constant 0 : i32
    %c0_i32_0 = arith.constant 0 : i32
    %c0_i32_1 = arith.constant 0 : i32
    %c0_i32_2 = arith.constant 0 : i32
    return %c0_i32, %c0_i32_0, %c0_i32_1 : i32, i32, i32
  }
  func.func @transform_4(%arg0: i32) -> (i32, i32, i32) {
    %c0_i32 = arith.constant 0 : i32
    %c0_i32_0 = arith.constant 0 : i32
    %c0_i32_1 = arith.constant 0 : i32
    %c0_i32_2 = arith.constant 0 : i32
    return %c0_i32, %c0_i32_0, %c0_i32_1 : i32, i32, i32
  }
  func.func @transform_5(%arg0: i32) -> (i32, i32, i32) {
    %c0_i32 = arith.constant 0 : i32
    %c0_i32_0 = arith.constant 0 : i32
    %c0_i32_1 = arith.constant 0 : i32
    %c0_i32_2 = arith.constant 0 : i32
    return %c0_i32, %c0_i32_0, %c0_i32_1 : i32, i32, i32
  }
  func.func @transform_6(%arg0: i32) -> (i32, i32, i32) {
    %c0_i32 = arith.constant 0 : i32
    %c0_i32_0 = arith.constant 0 : i32
    %c0_i32_1 = arith.constant 0 : i32
    %c0_i32_2 = arith.constant 0 : i32
    return %c0_i32, %c0_i32_0, %c0_i32_1 : i32, i32, i32
  }
  func.func @transform_7(%arg0: i32) -> (i32, i32, i32) {
    %c0_i32 = arith.constant 0 : i32
    %c0_i32_0 = arith.constant 0 : i32
    %c0_i32_1 = arith.constant 0 : i32
    %c0_i32_2 = arith.constant 0 : i32
    return %c0_i32, %c0_i32_0, %c0_i32_1 : i32, i32, i32
  }
  func.func @transform_8(%arg0: i32) -> (i32, i32, i32) {
    %c0_i32 = arith.constant 0 : i32
    %c0_i32_0 = arith.constant 0 : i32
    %c0_i32_1 = arith.constant 0 : i32
    %c0_i32_2 = arith.constant 0 : i32
    return %c0_i32, %c0_i32_0, %c0_i32_1 : i32, i32, i32
  }
  func.func @transform_9(%arg0: i32) -> (i32, i32, i32) {
    %c0_i32 = arith.constant 0 : i32
    %c0_i32_0 = arith.constant 0 : i32
    %c0_i32_1 = arith.constant 0 : i32
    %c0_i32_2 = arith.constant 0 : i32
    return %c0_i32, %c0_i32_0, %c0_i32_1 : i32, i32, i32
  }
  func.func @transform_10(%arg0: i32) -> (i32, i32, i32) {
    %c0_i32 = arith.constant 0 : i32
    %c0_i32_0 = arith.constant 0 : i32
    %c0_i32_1 = arith.constant 0 : i32
    %c0_i32_2 = arith.constant 0 : i32
    return %c0_i32, %c0_i32_0, %c0_i32_1 : i32, i32, i32
  }
  func.func @transform_11(%arg0: i32) -> (i32, i32, i32) {
    %c0_i32 = arith.constant 0 : i32
    %c0_i32_0 = arith.constant 0 : i32
    %c0_i32_1 = arith.constant 0 : i32
    %c0_i32_2 = arith.constant 0 : i32
    return %c0_i32, %c0_i32_0, %c0_i32_1 : i32, i32, i32
  }
  func.func @transform_12(%arg0: i32) -> (i32, i32, i32) {
    %c0_i32 = arith.constant 0 : i32
    %c0_i32_0 = arith.constant 0 : i32
    %c0_i32_1 = arith.constant 0 : i32
    %c0_i32_2 = arith.constant 0 : i32
    return %c0_i32, %c0_i32_0, %c0_i32_1 : i32, i32, i32
  }
  func.func @transform_13(%arg0: i32) -> (i32, i32, i32) {
    %c0_i32 = arith.constant 0 : i32
    %c0_i32_0 = arith.constant 0 : i32
    %c0_i32_1 = arith.constant 0 : i32
    %c0_i32_2 = arith.constant 0 : i32
    return %c0_i32, %c0_i32_0, %c0_i32_1 : i32, i32, i32
  }
  func.func @transform_14(%arg0: i32) -> (i32, i32) {
    %c0_i32 = arith.constant 0 : i32
    %c0_i32_0 = arith.constant 0 : i32
    %c0_i32_1 = arith.constant 0 : i32
    return %c0_i32, %c0_i32_0 : i32, i32
  }
}

</mosaic_0001>

<llo_original>
// kernel: transformer_forward.1
$region0: #{transformer_forward.1}
  #allocation0 [shape = 'u32[]', space=smem, size = 0x4, offset = 0x4, fixed_abs, tag = 'smem constant byte address 0x4 - core index']
  #allocation1 [shape = 'u32[144,128]{1,0:T(1,128)}', space=vmem, size = 0x12000, scoped, tag = 'internal scratch']
  %s0 = inlined_call_operand.vmem [shape: f32[56,64], index: 0, kind: input, shape index: {}]
  %s1 = inlined_call_operand.vmem [shape: f32[56,56], index: 1, kind: input, shape index: {}]
  %s2 = inlined_call_operand.vmem [shape: f32[2,64,192], index: 2, kind: input, shape index: {}]
  %s3 = inlined_call_operand.vmem [shape: f32[2,1,192], index: 3, kind: input, shape index: {}]
  %s4 = inlined_call_operand.vmem [shape: f32[2,64,64], index: 4, kind: input, shape index: {}]
  %s5 = inlined_call_operand.vmem [shape: f32[2,1,64], index: 5, kind: input, shape index: {}]
  %s6 = inlined_call_operand.vmem [shape: f32[2,1,64], index: 6, kind: input, shape index: {}]
  %s7 = inlined_call_operand.vmem [shape: f32[2,1,64], index: 7, kind: input, shape index: {}]
  %s8 = inlined_call_operand.vmem [shape: bf16[2,64,2048], index: 8, kind: input, shape index: {}]
  %s9 = inlined_call_operand.vmem [shape: f32[2,1,2048], index: 9, kind: input, shape index: {}]
  %s10 = inlined_call_operand.vmem [shape: bf16[2,2048,64], index: 10, kind: input, shape index: {}]
  %s11 = inlined_call_operand.vmem [shape: f32[2,1,64], index: 11, kind: input, shape index: {}]
  %s12 = inlined_call_operand.vmem [shape: f32[2,1,64], index: 12, kind: input, shape index: {}]
  %s13 = inlined_call_operand.vmem [shape: f32[2,1,64], index: 13, kind: input, shape index: {}]
  %s14 = inlined_call_operand.vmem [shape: f32[56,64], index: 14, kind: output, shape index: {}]
  %s15 = sld [smem:[#allocation0]]
  $region66: #{transformer_forward.1} parent=0
    _
  %s17 = ssub.s32 1, %s15
  %s18 = scalar_select 0, %s17, %s15
  // Predicated region
  $region2: #{transformer_forward.1} parent=0 // pred_check
    _
  $region3: #{transformer_forward.1} parent=0 // pred_check_branch
    %20 = sbr.rel (0) target = $region5
  $region4: #{transformer_forward.1} parent=0 // pred_region
    _
  $region5: #{transformer_forward.1} parent=0 // pred_fallthru
    _
  // Predicated region
  $region6: #{transformer_forward.1} parent=0 // pred_check
    _
  $region7: #{transformer_forward.1} parent=0 // pred_check_branch
    %22 = sbr.rel (0) target = $region9
  $region8: #{transformer_forward.1} parent=0 // pred_region
    _
  $region9: #{transformer_forward.1} parent=0 // pred_fallthru
    _
  // Predicated region
  $region10: #{transformer_forward.1} parent=0 // pred_check
    _
  $region11: #{transformer_forward.1} parent=0 // pred_check_branch
    %24 = sbr.rel (0) target = $region13
  $region12: #{transformer_forward.1} parent=0 // pred_region
    _
  $region13: #{transformer_forward.1} parent=0 // pred_fallthru
    _
  // Predicated region
  $region14: #{transformer_forward.1} parent=0 // pred_check
    _
  $region15: #{transformer_forward.1} parent=0 // pred_check_branch
    %26 = sbr.rel (0) target = $region17
  $region16: #{transformer_forward.1} parent=0 // pred_region
    _
  $region17: #{transformer_forward.1} parent=0 // pred_fallthru
    _
  // Predicated region
  $region18: #{transformer_forward.1} parent=0 // pred_check
    _
  $region19: #{transformer_forward.1} parent=0 // pred_check_branch
    %28 = sbr.rel (0) target = $region21
  $region20: #{transformer_forward.1} parent=0 // pred_region
    _
  $region21: #{transformer_forward.1} parent=0 // pred_fallthru
    _
  // Predicated region
  $region22: #{transformer_forward.1} parent=0 // pred_check
    _
  $region23: #{transformer_forward.1} parent=0 // pred_check_branch
    %30 = sbr.rel (0) target = $region25
  $region24: #{transformer_forward.1} parent=0 // pred_region
    _
  $region25: #{transformer_forward.1} parent=0 // pred_fallthru
    _
  // Predicated region
  $region26: #{transformer_forward.1} parent=0 // pred_check
    _
  $region27: #{transformer_forward.1} parent=0 // pred_check_branch
    %32 = sbr.rel (0) target = $region29
  $region28: #{transformer_forward.1} parent=0 // pred_region
    _
  $region29: #{transformer_forward.1} parent=0 // pred_fallthru
    _
  // Predicated region
  $region30: #{transformer_forward.1} parent=0 // pred_check
    _
  $region31: #{transformer_forward.1} parent=0 // pred_check_branch
    %34 = sbr.rel (0) target = $region33
  $region32: #{transformer_forward.1} parent=0 // pred_region
    _
  $region33: #{transformer_forward.1} parent=0 // pred_fallthru
    _
  // Predicated region
  $region34: #{transformer_forward.1} parent=0 // pred_check
    _
  $region35: #{transformer_forward.1} parent=0 // pred_check_branch
    %36 = sbr.rel (0) target = $region37
  $region36: #{transformer_forward.1} parent=0 // pred_region
    _
  $region37: #{transformer_forward.1} parent=0 // pred_fallthru
    _
  // Predicated region
  $region38: #{transformer_forward.1} parent=0 // pred_check
    _
  $region39: #{transformer_forward.1} parent=0 // pred_check_branch
    %38 = sbr.rel (0) target = $region41
  $region40: #{transformer_forward.1} parent=0 // pred_region
    _
  $region41: #{transformer_forward.1} parent=0 // pred_fallthru
    _
  // Predicated region
  $region42: #{transformer_forward.1} parent=0 // pred_check
    _
  $region43: #{transformer_forward.1} parent=0 // pred_check_branch
    %40 = sbr.rel (0) target = $region45
  $region44: #{transformer_forward.1} parent=0 // pred_region
    _
  $region45: #{transformer_forward.1} parent=0 // pred_fallthru
    _
  // Predicated region
  $region46: #{transformer_forward.1} parent=0 // pred_check
    _
  $region47: #{transformer_forward.1} parent=0 // pred_check_branch
    %42 = sbr.rel (0) target = $region49
  $region48: #{transformer_forward.1} parent=0 // pred_region
    _
  $region49: #{transformer_forward.1} parent=0 // pred_fallthru
    _
  // Predicated region
  $region50: #{transformer_forward.1} parent=0 // pred_check
    _
  $region51: #{transformer_forward.1} parent=0 // pred_check_branch
    %44 = sbr.rel (0) target = $region53
  $region52: #{transformer_forward.1} parent=0 // pred_region
    _
  $region53: #{transformer_forward.1} parent=0 // pred_fallthru
    _
  // Predicated region
  $region54: #{transformer_forward.1} parent=0 // pred_check
    _
  $region55: #{transformer_forward.1} parent=0 // pred_check_branch
    %46 = sbr.rel (0) target = $region57
  $region56: #{transformer_forward.1} parent=0 // pred_region
    _
  $region57: #{transformer_forward.1} parent=0 // pred_fallthru
    _
  %v48 = vld [vmem:[%s0] sm:$0xff]
  %v49 = vld [vmem:[%s0 + $0x8] sm:$0xff]
  %v50 = vld [vmem:[%s0 + $0x10] sm:$0xff]
  %v51 = vld [vmem:[%s0 + $0x18] sm:$0xff]
  %v52 = vld [vmem:[%s0 + $0x20] sm:$0xff]
  %v53 = vld [vmem:[%s0 + $0x28] sm:$0xff]
  %v54 = vld [vmem:[%s0 + $0x30] sm:$0xff]
  %v55 = vld [vmem:[%s1] sm:$0xff]
  %v56 = vld [vmem:[%s1 + $0x8] sm:$0xff]
  %v57 = vld [vmem:[%s1 + $0x10] sm:$0xff]
  %v58 = vld [vmem:[%s1 + $0x18] sm:$0xff]
  %v59 = vld [vmem:[%s1 + $0x20] sm:$0xff]
  %v60 = vld [vmem:[%s1 + $0x28] sm:$0xff]
  %v61 = vld [vmem:[%s1 + $0x30] sm:$0xff]
  %v62 = vld [vmem:[%s2] sm:$0xff]
  %v63 = vld [vmem:[%s2 + $0x10] sm:$0xff]
  %v64 = vld [vmem:[%s2 + $0x20] sm:$0xff]
  %v65 = vld [vmem:[%s2 + $0x30] sm:$0xff]
  %v66 = vld [vmem:[%s2 + $0x40] sm:$0xff]
  %v67 = vld [vmem:[%s2 + $0x50] sm:$0xff]
  %v68 = vld [vmem:[%s2 + $0x60] sm:$0xff]
  %v69 = vld [vmem:[%s2 + $0x70] sm:$0xff]
  %v70 = vld [vmem:[%s3] sm:$0x1]
  %v72 = vlaneseq
  %v73 = vshrl.u32 %v72, 7
  %v74 = vsub.s32 0, %v73
  %v75 = vrot.slane %v70, %v74
  %vm77 = vcmask 523264
  %v79 = vsel %vm77, %v48, 0
  %v82 = vsel %vm77, %v49, 0
  %v85 = vsel %vm77, %v50, 0
  %v88 = vsel %vm77, %v51, 0
  %v91 = vsel %vm77, %v52, 0
  %v94 = vsel %vm77, %v53, 0
  %v97 = vsel %vm77, %v54, 0
  %99 = vmatprep.subr.mxu0 0.0
  %100 = vmatpush1.msra.mxu0 0.0
  %101 = vmatprep.subr.mxu0 0.0
  %102 = vmatpush1.msra.mxu0 0.0
  %103 = vmatprep.subr.mxu0 0.0
  %104 = vmatpush1.msra.mxu0 0.0
  %105 = vmatprep.subr.mxu0 0.0
  %106 = vmatpush1.msra.mxu0 0.0
  %107 = vmatprep.subr.mxu0 0.0
  %108 = vmatpush1.msra.mxu0 0.0
  %109 = vmatprep.subr.mxu0 0.0
  %110 = vmatpush1.msra.mxu0 0.0
  %111 = vmatprep.subr.mxu0 0.0
  %112 = vmatpush1.msra.mxu0 0.0
  %113 = vmatprep.subr.mxu0 0.0
  %114 = vmatpush1.msra.mxu0 0.0
  %115 = vmatprep.subr.mxu0 0.0
  %116 = vmatpush1.msra.mxu0 %v69
  %117 = vmatprep.subr.mxu0 0.0
  %118 = vmatpush1.msra.mxu0 %v68
  %119 = vmatprep.subr.mxu0 0.0
  %120 = vmatpush1.msra.mxu0 %v67
  %121 = vmatprep.subr.mxu0 0.0
  %122 = vmatpush1.msra.mxu0 %v66
  %123 = vmatprep.subr.mxu0 0.0
  %124 = vmatpush1.msra.mxu0 %v65
  %125 = vmatprep.subr.mxu0 0.0
  %126 = vmatpush1.msra.mxu0 %v64
  %127 = vmatprep.subr.mxu0 0.0
  %128 = vmatpush1.msra.mxu0 %v63
  %129 = vmatprep.subr.mxu0 0.0
  %130 = vmatpush1.msra.mxu0 %v62
  %131 = vmatprep.subr.mxu0 0.0
  %132 = vmatpush2.msra.mxu0 0.0
  %133 = vmatprep.subr.mxu0 0.0
  %134 = vmatpush2.msra.mxu0 0.0
  %135 = vmatprep.subr.mxu0 0.0
  %136 = vmatpush2.msra.mxu0 0.0
  %137 = vmatprep.subr.mxu0 0.0
  %138 = vmatpush2.msra.mxu0 0.0
  %139 = vmatprep.subr.mxu0 0.0
  %140 = vmatpush2.msra.mxu0 0.0
  %141 = vmatprep.subr.mxu0 0.0
  %142 = vmatpush2.msra.mxu0 0.0
  %143 = vmatprep.subr.mxu0 0.0
  %144 = vmatpush2.msra.mxu0 0.0
  %145 = vmatprep.subr.mxu0 0.0
  %146 = vmatpush2.msra.mxu0 0.0
  %147 = vmatprep.subr.mxu0 0.0
  %148 = vmatpush2.msra.mxu0 0.0
  %149 = vmatprep.subr.mxu0 0.0
  %150 = vmatpush2.msra.mxu0 0.0
  %151 = vmatprep.subr.mxu0 0.0
  %152 = vmatpush2.msra.mxu0 0.0
  %153 = vmatprep.subr.mxu0 0.0
  %154 = vmatpush2.msra.mxu0 0.0
  %155 = vmatprep.subr.mxu0 0.0
  %156 = vmatpush2.msra.mxu0 0.0
  %157 = vmatprep.subr.mxu0 0.0
  %158 = vmatpush2.msra.mxu0 0.0
  %159 = vmatprep.subr.mxu0 0.0
  %160 = vmatpush2.msra.mxu0 0.0
  %161 = vmatprep.subr.mxu0 0.0
  %162 = vmatpush2.msra.mxu0 0.0
  %163 = vmatprep.mubr.f32.mxu0 0.0
  %164 = vmatmul.mubr.f32.gmra.mxu0 %v79
  %v165 = vpop.f32.mrf.mxu0
  %v166 = vadd.f32 %v75, %v165
  %v167 = vpop.f32.mrf.mxu0
  %168 = vmatprep.mubr.f32.mxu0 0.0
  %169 = vmatmul.mubr.f32.gmra.mxu0 %v82
  %v170 = vpop.f32.mrf.mxu0
  %v171 = vadd.f32 %v75, %v170
  %v172 = vpop.f32.mrf.mxu0
  %173 = vmatprep.mubr.f32.mxu0 0.0
  %174 = vmatmul.mubr.f32.gmra.mxu0 %v85
  %v175 = vpop.f32.mrf.mxu0
  %v176 = vadd.f32 %v75, %v175
  %v177 = vpop.f32.mrf.mxu0
  %178 = vmatprep.mubr.f32.mxu0 0.0
  %179 = vmatmul.mubr.f32.gmra.mxu0 %v88
  %v180 = vpop.f32.mrf.mxu0
  %v181 = vadd.f32 %v75, %v180
  %v182 = vpop.f32.mrf.mxu0
  %183 = vmatprep.mubr.f32.mxu0 0.0
  %184 = vmatmul.mubr.f32.gmra.mxu0 %v91
  %v185 = vpop.f32.mrf.mxu0
  %v186 = vadd.f32 %v75, %v185
  %v187 = vpop.f32.mrf.mxu0
  %188 = vmatprep.mubr.f32.mxu0 0.0
  %189 = vmatmul.mubr.f32.gmra.mxu0 %v94
  %v190 = vpop.f32.mrf.mxu0
  %v191 = vadd.f32 %v75, %v190
  %v192 = vpop.f32.mrf.mxu0
  %193 = vmatprep.mubr.f32.mxu0 0.0
  %194 = vmatmul.mubr.f32.gmra.mxu0 %v97
  %v195 = vpop.f32.mrf.mxu0
  %v196 = vadd.f32 %v75, %v195
  %v197 = vpop.f32.mrf.mxu0
  %198 = vdwg.mxu0
  %207 = vrot.lane.b32.xlu0 %v62, 64
  %v208 = vpop.permute.xlu0 %207
  %209 = vrot.lane.b32.xlu0 %v63, 64
  %v210 = vpop.permute.xlu0 %209
  %211 = vrot.lane.b32.xlu0 %v64, 64
  %v212 = vpop.permute.xlu0 %211
  %213 = vrot.lane.b32.xlu0 %v65, 64
  %v214 = vpop.permute.xlu0 %213
  %215 = vrot.lane.b32.xlu0 %v66, 64
  %v216 = vpop.permute.xlu0 %215
  %217 = vrot.lane.b32.xlu0 %v67, 64
  %v218 = vpop.permute.xlu0 %217
  %219 = vrot.lane.b32.xlu0 %v68, 64
  %v220 = vpop.permute.xlu0 %219
  %221 = vrot.lane.b32.xlu0 %v69, 64
  %v222 = vpop.permute.xlu0 %221
  %231 = vrot.lane.b32.xlu0 %v75, 64
  %v232 = vpop.permute.xlu0 %231
  %234 = vmatprep.subr.mxu0 0.0
  %235 = vmatpush1.msra.mxu0 0.0
  %236 = vmatprep.subr.mxu0 0.0
  %237 = vmatpush1.msra.mxu0 0.0
  %238 = vmatprep.subr.mxu0 0.0
  %239 = vmatpush1.msra.mxu0 0.0
  %240 = vmatprep.subr.mxu0 0.0
  %241 = vmatpush1.msra.mxu0 0.0
  %242 = vmatprep.subr.mxu0 0.0
  %243 = vmatpush1.msra.mxu0 0.0
  %244 = vmatprep.subr.mxu0 0.0
  %245 = vmatpush1.msra.mxu0 0.0
  %246 = vmatprep.subr.mxu0 0.0
  %247 = vmatpush1.msra.mxu0 0.0
  %248 = vmatprep.subr.mxu0 0.0
  %249 = vmatpush1.msra.mxu0 0.0
  %250 = vmatprep.subr.mxu0 0.0
  %251 = vmatpush1.msra.mxu0 %v222
  %252 = vmatprep.subr.mxu0 0.0
  %253 = vmatpush1.msra.mxu0 %v220
  %254 = vmatprep.subr.mxu0 0.0
  %255 = vmatpush1.msra.mxu0 %v218
  %256 = vmatprep.subr.mxu0 0.0
  %257 = vmatpush1.msra.mxu0 %v216
  %258 = vmatprep.subr.mxu0 0.0
  %259 = vmatpush1.msra.mxu0 %v214
  %260 = vmatprep.subr.mxu0 0.0
  %261 = vmatpush1.msra.mxu0 %v212
  %262 = vmatprep.subr.mxu0 0.0
  %263 = vmatpush1.msra.mxu0 %v210
  %264 = vmatprep.subr.mxu0 0.0
  %265 = vmatpush1.msra.mxu0 %v208
  %266 = vmatprep.subr.mxu0 0.0
  %267 = vmatpush2.msra.mxu0 0.0
  %268 = vmatprep.subr.mxu0 0.0
  %269 = vmatpush2.msra.mxu0 0.0
  %270 = vmatprep.subr.mxu0 0.0
  %271 = vmatpush2.msra.mxu0 0.0
  %272 = vmatprep.subr.mxu0 0.0
  %273 = vmatpush2.msra.mxu0 0.0
  %274 = vmatprep.subr.mxu0 0.0
  %275 = vmatpush2.msra.mxu0 0.0
  %276 = vmatprep.subr.mxu0 0.0
  %277 = vmatpush2.msra.mxu0 0.0
  %278 = vmatprep.subr.mxu0 0.0
  %279 = vmatpush2.msra.mxu0 0.0
  %280 = vmatprep.subr.mxu0 0.0
  %281 = vmatpush2.msra.mxu0 0.0
  %282 = vmatprep.subr.mxu0 0.0
  %283 = vmatpush2.msra.mxu0 0.0
  %284 = vmatprep.subr.mxu0 0.0
  %285 = vmatpush2.msra.mxu0 0.0
  %286 = vmatprep.subr.mxu0 0.0
  %287 = vmatpush2.msra.mxu0 0.0
  %288 = vmatprep.subr.mxu0 0.0
  %289 = vmatpush2.msra.mxu0 0.0
  %290 = vmatprep.subr.mxu0 0.0
  %291 = vmatpush2.msra.mxu0 0.0
  %292 = vmatprep.subr.mxu0 0.0
  %293 = vmatpush2.msra.mxu0 0.0
  %294 = vmatprep.subr.mxu0 0.0
  %295 = vmatpush2.msra.mxu0 0.0
  %296 = vmatprep.subr.mxu0 0.0
  %297 = vmatpush2.msra.mxu0 0.0
  %298 = vmatprep.mubr.f32.mxu0 0.0
  %299 = vmatmul.mubr.f32.gmra.mxu0 %v79
  %v300 = vpop.f32.mrf.mxu0
  %v301 = vadd.f32 %v232, %v300
  %v302 = vpop.f32.mrf.mxu0
  %303 = vmatprep.mubr.f32.mxu0 0.0
  %304 = vmatmul.mubr.f32.gmra.mxu0 %v82
  %v305 = vpop.f32.mrf.mxu0
  %v306 = vadd.f32 %v232, %v305
  %v307 = vpop.f32.mrf.mxu0
  %308 = vmatprep.mubr.f32.mxu0 0.0
  %309 = vmatmul.mubr.f32.gmra.mxu0 %v85
  %v310 = vpop.f32.mrf.mxu0
  %v311 = vadd.f32 %v232, %v310
  %v312 = vpop.f32.mrf.mxu0
  %313 = vmatprep.mubr.f32.mxu0 0.0
  %314 = vmatmul.mubr.f32.gmra.mxu0 %v88
  %v315 = vpop.f32.mrf.mxu0
  %v316 = vadd.f32 %v232, %v315
  %v317 = vpop.f32.mrf.mxu0
  %318 = vmatprep.mubr.f32.mxu0 0.0
  %319 = vmatmul.mubr.f32.gmra.mxu0 %v91
  %v320 = vpop.f32.mrf.mxu0
  %v321 = vadd.f32 %v232, %v320
  %v322 = vpop.f32.mrf.mxu0
  %323 = vmatprep.mubr.f32.mxu0 0.0
  %324 = vmatmul.mubr.f32.gmra.mxu0 %v94
  %v325 = vpop.f32.mrf.mxu0
  %v326 = vadd.f32 %v232, %v325
  %v327 = vpop.f32.mrf.mxu0
  %328 = vmatprep.mubr.f32.mxu0 0.0
  %329 = vmatmul.mubr.f32.gmra.mxu0 %v97
  %v330 = vpop.f32.mrf.mxu0
  %v331 = vadd.f32 %v232, %v330
  %v332 = vpop.f32.mrf.mxu0
  %333 = vdwg.mxu0
  %v334 = vld [vmem:[%s2 + $0x8] sm:$0xff]
  %v335 = vld [vmem:[%s2 + $0x18] sm:$0xff]
  %v336 = vld [vmem:[%s2 + $0x28] sm:$0xff]
  %v337 = vld [vmem:[%s2 + $0x38] sm:$0xff]
  %v338 = vld [vmem:[%s2 + $0x48] sm:$0xff]
  %v339 = vld [vmem:[%s2 + $0x58] sm:$0xff]
  %v340 = vld [vmem:[%s2 + $0x68] sm:$0xff]
  %v341 = vld [vmem:[%s2 + $0x78] sm:$0xff]
  %v342 = vld [vmem:[%s3 + $0x1] sm:$0x1]
  %v344 = vlaneseq
  %v345 = vshrl.u32 %v344, 7
  %v346 = vsub.s32 0, %v345
  %v347 = vrot.slane %v342, %v346
  %349 = vmatprep.subr.mxu0 0.0
  %350 = vmatpush1.msra.mxu0 0.0
  %351 = vmatprep.subr.mxu0 0.0
  %352 = vmatpush1.msra.mxu0 0.0
  %353 = vmatprep.subr.mxu0 0.0
  %354 = vmatpush1.msra.mxu0 0.0
  %355 = vmatprep.subr.mxu0 0.0
  %356 = vmatpush1.msra.mxu0 0.0
  %357 = vmatprep.subr.mxu0 0.0
  %358 = vmatpush1.msra.mxu0 0.0
  %359 = vmatprep.subr.mxu0 0.0
  %360 = vmatpush1.msra.mxu0 0.0
  %361 = vmatprep.subr.mxu0 0.0
  %362 = vmatpush1.msra.mxu0 0.0
  %363 = vmatprep.subr.mxu0 0.0
  %364 = vmatpush1.msra.mxu0 0.0
  %365 = vmatprep.subr.mxu0 0.0
  %366 = vmatpush1.msra.mxu0 %v341
  %367 = vmatprep.subr.mxu0 0.0
  %368 = vmatpush1.msra.mxu0 %v340
  %369 = vmatprep.subr.mxu0 0.0
  %370 = vmatpush1.msra.mxu0 %v339
  %371 = vmatprep.subr.mxu0 0.0
  %372 = vmatpush1.msra.mxu0 %v338
  %373 = vmatprep.subr.mxu0 0.0
  %374 = vmatpush1.msra.mxu0 %v337
  %375 = vmatprep.subr.mxu0 0.0
  %376 = vmatpush1.msra.mxu0 %v336
  %377 = vmatprep.subr.mxu0 0.0
  %378 = vmatpush1.msra.mxu0 %v335
  %379 = vmatprep.subr.mxu0 0.0
  %380 = vmatpush1.msra.mxu0 %v334
  %381 = vmatprep.subr.mxu0 0.0
  %382 = vmatpush2.msra.mxu0 0.0
  %383 = vmatprep.subr.mxu0 0.0
  %384 = vmatpush2.msra.mxu0 0.0
  %385 = vmatprep.subr.mxu0 0.0
  %386 = vmatpush2.msra.mxu0 0.0
  %387 = vmatprep.subr.mxu0 0.0
  %388 = vmatpush2.msra.mxu0 0.0
  %389 = vmatprep.subr.mxu0 0.0
  %390 = vmatpush2.msra.mxu0 0.0
  %391 = vmatprep.subr.mxu0 0.0
  %392 = vmatpush2.msra.mxu0 0.0
  %393 = vmatprep.subr.mxu0 0.0
  %394 = vmatpush2.msra.mxu0 0.0
  %395 = vmatprep.subr.mxu0 0.0
  %396 = vmatpush2.msra.mxu0 0.0
  %397 = vmatprep.subr.mxu0 0.0
  %398 = vmatpush2.msra.mxu0 0.0
  %399 = vmatprep.subr.mxu0 0.0
  %400 = vmatpush2.msra.mxu0 0.0
  %401 = vmatprep.subr.mxu0 0.0
  %402 = vmatpush2.msra.mxu0 0.0
  %403 = vmatprep.subr.mxu0 0.0
  %404 = vmatpush2.msra.mxu0 0.0
  %405 = vmatprep.subr.mxu0 0.0
  %406 = vmatpush2.msra.mxu0 0.0
  %407 = vmatprep.subr.mxu0 0.0
  %408 = vmatpush2.msra.mxu0 0.0
  %409 = vmatprep.subr.mxu0 0.0
  %410 = vmatpush2.msra.mxu0 0.0
  %411 = vmatprep.subr.mxu0 0.0
  %412 = vmatpush2.msra.mxu0 0.0
  %413 = vmatprep.mubr.f32.mxu0 0.0
  %414 = vmatmul.mubr.f32.gmra.mxu0 %v79
  %v415 = vpop.f32.mrf.mxu0
  %v416 = vadd.f32 %v347, %v415
  %v417 = vpop.f32.mrf.mxu0
  %418 = vmatprep.mubr.f32.mxu0 0.0
  %419 = vmatmul.mubr.f32.gmra.mxu0 %v82
  %v420 = vpop.f32.mrf.mxu0
  %v421 = vadd.f32 %v347, %v420
  %v422 = vpop.f32.mrf.mxu0
  %423 = vmatprep.mubr.f32.mxu0 0.0
  %424 = vmatmul.mubr.f32.gmra.mxu0 %v85
  %v425 = vpop.f32.mrf.mxu0
  %v426 = vadd.f32 %v347, %v425
  %v427 = vpop.f32.mrf.mxu0
  %428 = vmatprep.mubr.f32.mxu0 0.0
  %429 = vmatmul.mubr.f32.gmra.mxu0 %v88
  %v430 = vpop.f32.mrf.mxu0
  %v431 = vadd.f32 %v347, %v430
  %v432 = vpop.f32.mrf.mxu0
  %433 = vmatprep.mubr.f32.mxu0 0.0
  %434 = vmatmul.mubr.f32.gmra.mxu0 %v91
  %v435 = vpop.f32.mrf.mxu0
  %v436 = vadd.f32 %v347, %v435
  %v437 = vpop.f32.mrf.mxu0
  %438 = vmatprep.mubr.f32.mxu0 0.0
  %439 = vmatmul.mubr.f32.gmra.mxu0 %v94
  %v440 = vpop.f32.mrf.mxu0
  %v441 = vadd.f32 %v347, %v440
  %v442 = vpop.f32.mrf.mxu0
  %443 = vmatprep.mubr.f32.mxu0 0.0
  %444 = vmatmul.mubr.f32.gmra.mxu0 %v97
  %v445 = vpop.f32.mrf.mxu0
  %v446 = vadd.f32 %v347, %v445
  %v447 = vpop.f32.mrf.mxu0
  %448 = vdwg.mxu0
  %vm449 = vcmask 130048
  %v451 = vsel %vm449, %v166, 0
  %v454 = vsel %vm449, %v171, 0
  %v457 = vsel %vm449, %v176, 0
  %v460 = vsel %vm449, %v181, 0
  %v463 = vsel %vm449, %v186, 0
  %v466 = vsel %vm449, %v191, 0
  %v469 = vsel %vm449, %v196, 0
  %v472 = vsel %vm449, %v301, 0
  %v475 = vsel %vm449, %v306, 0
  %v478 = vsel %vm449, %v311, 0
  %v481 = vsel %vm449, %v316, 0
  %v484 = vsel %vm449, %v321, 0
  %v487 = vsel %vm449, %v326, 0
  %v490 = vsel %vm449, %v331, 0
  %492 = vmatprep.subr.mxu0 0.0
  %493 = vmatpush1.xpose.msra.mxu0 0.0
  %494 = vmatprep.subr.mxu0 0.0
  %495 = vmatpush1.xpose.msra.mxu0 0.0
  %496 = vmatprep.subr.mxu0 0.0
  %497 = vmatpush1.xpose.msra.mxu0 0.0
  %498 = vmatprep.subr.mxu0 0.0
  %499 = vmatpush1.xpose.msra.mxu0 0.0
  %500 = vmatprep.subr.mxu0 0.0
  %501 = vmatpush1.xpose.msra.mxu0 0.0
  %502 = vmatprep.subr.mxu0 0.0
  %503 = vmatpush1.xpose.msra.mxu0 0.0
  %504 = vmatprep.subr.mxu0 0.0
  %505 = vmatpush1.xpose.msra.mxu0 0.0
  %506 = vmatprep.subr.mxu0 0.0
  %507 = vmatpush1.xpose.msra.mxu0 0.0
  %508 = vmatprep.subr.mxu0 0.0
  %509 = vmatpush1.xpose.msra.mxu0 0.0
  %510 = vmatprep.subr.mxu0 0.0
  %511 = vmatpush1.xpose.msra.mxu0 %v490
  %512 = vmatprep.subr.mxu0 0.0
  %513 = vmatpush1.xpose.msra.mxu0 %v487
  %514 = vmatprep.subr.mxu0 0.0
  %515 = vmatpush1.xpose.msra.mxu0 %v484
  %516 = vmatprep.subr.mxu0 0.0
  %517 = vmatpush1.xpose.msra.mxu0 %v481
  %518 = vmatprep.subr.mxu0 0.0
  %519 = vmatpush1.xpose.msra.mxu0 %v478
  %520 = vmatprep.subr.mxu0 0.0
  %521 = vmatpush1.xpose.msra.mxu0 %v475
  %522 = vmatprep.subr.mxu0 0.0
  %523 = vmatpush1.xpose.msra.mxu0 %v472
  %524 = vmatprep.subr.mxu0 0.0
  %525 = vmatpush2.xpose.msra.mxu0 0.0
  %526 = vmatprep.subr.mxu0 0.0
  %527 = vmatpush2.xpose.msra.mxu0 0.0
  %528 = vmatprep.subr.mxu0 0.0
  %529 = vmatpush2.xpose.msra.mxu0 0.0
  %530 = vmatprep.subr.mxu0 0.0
  %531 = vmatpush2.xpose.msra.mxu0 0.0
  %532 = vmatprep.subr.mxu0 0.0
  %533 = vmatpush2.xpose.msra.mxu0 0.0
  %534 = vmatprep.subr.mxu0 0.0
  %535 = vmatpush2.xpose.msra.mxu0 0.0
  %536 = vmatprep.subr.mxu0 0.0
  %537 = vmatpush2.xpose.msra.mxu0 0.0
  %538 = vmatprep.subr.mxu0 0.0
  %539 = vmatpush2.xpose.msra.mxu0 0.0
  %540 = vmatprep.subr.mxu0 0.0
  %541 = vmatpush2.xpose.msra.mxu0 0.0
  %542 = vmatprep.subr.mxu0 0.0
  %543 = vmatpush2.xpose.msra.mxu0 0.0
  %544 = vmatprep.subr.mxu0 0.0
  %545 = vmatpush2.xpose.msra.mxu0 0.0
  %546 = vmatprep.subr.mxu0 0.0
  %547 = vmatpush2.xpose.msra.mxu0 0.0
  %548 = vmatprep.subr.mxu0 0.0
  %549 = vmatpush2.xpose.msra.mxu0 0.0
  %550 = vmatprep.subr.mxu0 0.0
  %551 = vmatpush2.xpose.msra.mxu0 0.0
  %552 = vmatprep.subr.mxu0 0.0
  %553 = vmatpush2.xpose.msra.mxu0 0.0
  %554 = vmatprep.subr.mxu0 0.0
  %555 = vmatpush2.xpose.msra.mxu0 0.0
  %556 = vmatprep.mubr.f32.mxu0 0.0
  %557 = vmatmul.mubr.f32.gmra.mxu0 %v451
  %v558 = vpop.f32.mrf.mxu0
  %v559 = vadd.f32 0.0, %v558
  %v560 = vpop.f32.mrf.mxu0
  %561 = vmatprep.mubr.f32.mxu0 0.0
  %562 = vmatmul.mubr.f32.gmra.mxu0 %v454
  %v563 = vpop.f32.mrf.mxu0
  %v564 = vadd.f32 0.0, %v563
  %v565 = vpop.f32.mrf.mxu0
  %566 = vmatprep.mubr.f32.mxu0 0.0
  %567 = vmatmul.mubr.f32.gmra.mxu0 %v457
  %v568 = vpop.f32.mrf.mxu0
  %v569 = vadd.f32 0.0, %v568
  %v570 = vpop.f32.mrf.mxu0
  %571 = vmatprep.mubr.f32.mxu0 0.0
  %572 = vmatmul.mubr.f32.gmra.mxu0 %v460
  %v573 = vpop.f32.mrf.mxu0
  %v574 = vadd.f32 0.0, %v573
  %v575 = vpop.f32.mrf.mxu0
  %576 = vmatprep.mubr.f32.mxu0 0.0
  %577 = vmatmul.mubr.f32.gmra.mxu0 %v463
  %v578 = vpop.f32.mrf.mxu0
  %v579 = vadd.f32 0.0, %v578
  %v580 = vpop.f32.mrf.mxu0
  %581 = vmatprep.mubr.f32.mxu0 0.0
  %582 = vmatmul.mubr.f32.gmra.mxu0 %v466
  %v583 = vpop.f32.mrf.mxu0
  %v584 = vadd.f32 0.0, %v583
  %v585 = vpop.f32.mrf.mxu0
  %586 = vmatprep.mubr.f32.mxu0 0.0
  %587 = vmatmul.mubr.f32.gmra.mxu0 %v469
  %v588 = vpop.f32.mrf.mxu0
  %v589 = vadd.f32 0.0, %v588
  %v590 = vpop.f32.mrf.mxu0
  %591 = vdwg.mxu0
  %v592 = vmul.f32 %v559, 0.25
  %v593 = vmul.f32 %v564, 0.25
  %v594 = vmul.f32 %v569, 0.25
  %v595 = vmul.f32 %v574, 0.25
  %v596 = vmul.f32 %v579, 0.25
  %v597 = vmul.f32 %v584, 0.25
  %v598 = vmul.f32 %v589, 0.25
  %v599 = vadd.f32 %v592, %v55
  %v600 = vadd.f32 %v593, %v56
  %v601 = vadd.f32 %v594, %v57
  %v602 = vadd.f32 %v595, %v58
  %v603 = vadd.f32 %v596, %v59
  %v604 = vadd.f32 %v597, %v60
  %v605 = vadd.f32 %v598, %v61
  %vm606 = vcmask 457728
  %v607 = vsel %vm606, %v599, -inf
  %608 = vmax.xlane.f32.xlu0 %v607
  %v609 = vpop.xlane.xlu0 %608
  %v610 = vsel %vm606, %v600, -inf
  %611 = vmax.xlane.f32.xlu0 %v610
  %v612 = vpop.xlane.xlu0 %611
  %v613 = vsel %vm606, %v601, -inf
  %614 = vmax.xlane.f32.xlu0 %v613
  %v615 = vpop.xlane.xlu0 %614
  %v616 = vsel %vm606, %v602, -inf
  %617 = vmax.xlane.f32.xlu0 %v616
  %v618 = vpop.xlane.xlu0 %617
  %v619 = vsel %vm606, %v603, -inf
  %620 = vmax.xlane.f32.xlu0 %v619
  %v621 = vpop.xlane.xlu0 %620
  %v622 = vsel %vm606, %v604, -inf
  %623 = vmax.xlane.f32.xlu0 %v622
  %v624 = vpop.xlane.xlu0 %623
  %v625 = vsel %vm606, %v605, -inf
  %626 = vmax.xlane.f32.xlu0 %v625
  %v627 = vpop.xlane.xlu0 %626
  %v628 = vsub.f32 %v599, %v609
  %v629 = vsub.f32 %v600, %v612
  %v630 = vsub.f32 %v601, %v615
  %v631 = vsub.f32 %v602, %v618
  %v632 = vsub.f32 %v603, %v621
  %v633 = vsub.f32 %v604, %v624
  %v634 = vsub.f32 %v605, %v627
  %v635 = vmul.f32 %v628, 1.442695
  %v636 = vpow.pop %v635
  %v637 = vmul.f32 %v629, 1.442695
  %v638 = vpow.pop %v637
  %v639 = vmul.f32 %v630, 1.442695
  %v640 = vpow.pop %v639
  %v641 = vmul.f32 %v631, 1.442695
  %v642 = vpow.pop %v641
  %v643 = vmul.f32 %v632, 1.442695
  %v644 = vpow.pop %v643
  %v645 = vmul.f32 %v633, 1.442695
  %v646 = vpow.pop %v645
  %v647 = vmul.f32 %v634, 1.442695
  %v648 = vpow.pop %v647
  %v649 = vsel %vm606, %v636, 0.0
  %650 = vadd.xlane.f32.xlu0 %v649
  %v651 = vpop.xlane.xlu0 %650
  %v652 = vsel %vm606, %v638, 0.0
  %653 = vadd.xlane.f32.xlu0 %v652
  %v654 = vpop.xlane.xlu0 %653
  %v655 = vsel %vm606, %v640, 0.0
  %656 = vadd.xlane.f32.xlu0 %v655
  %v657 = vpop.xlane.xlu0 %656
  %v658 = vsel %vm606, %v642, 0.0
  %659 = vadd.xlane.f32.xlu0 %v658
  %v660 = vpop.xlane.xlu0 %659
  %v661 = vsel %vm606, %v644, 0.0
  %662 = vadd.xlane.f32.xlu0 %v661
  %v663 = vpop.xlane.xlu0 %662
  %v664 = vsel %vm606, %v646, 0.0
  %665 = vadd.xlane.f32.xlu0 %v664
  %v666 = vpop.xlane.xlu0 %665
  %v667 = vsel %vm606, %v648, 0.0
  %668 = vadd.xlane.f32.xlu0 %v667
  %v669 = vpop.xlane.xlu0 %668
  %v670 = vrcp.pop %v651
  %v671 = vmul.f32 %v636, %v670
  %v672 = vrcp.pop %v654
  %v673 = vmul.f32 %v638, %v672
  %v674 = vrcp.pop %v657
  %v675 = vmul.f32 %v640, %v674
  %v676 = vrcp.pop %v660
  %v677 = vmul.f32 %v642, %v676
  %v678 = vrcp.pop %v663
  %v679 = vmul.f32 %v644, %v678
  %v680 = vrcp.pop %v666
  %v681 = vmul.f32 %v646, %v680
  %v682 = vrcp.pop %v669
  %v683 = vmul.f32 %v648, %v682
  %v685 = vsel %vm606, %v671, 0
  %v688 = vsel %vm606, %v673, 0
  %v691 = vsel %vm606, %v675, 0
  %v694 = vsel %vm606, %v677, 0
  %v697 = vsel %vm606, %v679, 0
  %v700 = vsel %vm606, %v681, 0
  %v703 = vsel %vm606, %v683, 0
  %705 = vmatprep.subr.mxu0 0.0
  %706 = vmatpush1.msra.mxu0 0.0
  %707 = vmatprep.subr.mxu0 0.0
  %708 = vmatpush1.msra.mxu0 0.0
  %709 = vmatprep.subr.mxu0 0.0
  %710 = vmatpush1.msra.mxu0 0.0
  %711 = vmatprep.subr.mxu0 0.0
  %712 = vmatpush1.msra.mxu0 0.0
  %713 = vmatprep.subr.mxu0 0.0
  %714 = vmatpush1.msra.mxu0 0.0
  %715 = vmatprep.subr.mxu0 0.0
  %716 = vmatpush1.msra.mxu0 0.0
  %717 = vmatprep.subr.mxu0 0.0
  %718 = vmatpush1.msra.mxu0 0.0
  %719 = vmatprep.subr.mxu0 0.0
  %720 = vmatpush1.msra.mxu0 0.0
  %721 = vmatprep.subr.mxu0 0.0
  %722 = vmatpush1.msra.mxu0 0.0
  %723 = vmatprep.subr.mxu0 0.0
  %724 = vmatpush1.msra.mxu0 %v446
  %725 = vmatprep.subr.mxu0 0.0
  %726 = vmatpush1.msra.mxu0 %v441
  %727 = vmatprep.subr.mxu0 0.0
  %728 = vmatpush1.msra.mxu0 %v436
  %729 = vmatprep.subr.mxu0 0.0
  %730 = vmatpush1.msra.mxu0 %v431
  %731 = vmatprep.subr.mxu0 0.0
  %732 = vmatpush1.msra.mxu0 %v426
  %733 = vmatprep.subr.mxu0 0.0
  %734 = vmatpush1.msra.mxu0 %v421
  %735 = vmatprep.subr.mxu0 0.0
  %736 = vmatpush1.msra.mxu0 %v416
  %737 = vmatprep.subr.mxu0 0.0
  %738 = vmatpush2.msra.mxu0 0.0
  %739 = vmatprep.subr.mxu0 0.0
  %740 = vmatpush2.msra.mxu0 0.0
  %741 = vmatprep.subr.mxu0 0.0
  %742 = vmatpush2.msra.mxu0 0.0
  %743 = vmatprep.subr.mxu0 0.0
  %744 = vmatpush2.msra.mxu0 0.0
  %745 = vmatprep.subr.mxu0 0.0
  %746 = vmatpush2.msra.mxu0 0.0
  %747 = vmatprep.subr.mxu0 0.0
  %748 = vmatpush2.msra.mxu0 0.0
  %749 = vmatprep.subr.mxu0 0.0
  %750 = vmatpush2.msra.mxu0 0.0
  %751 = vmatprep.subr.mxu0 0.0
  %752 = vmatpush2.msra.mxu0 0.0
  %753 = vmatprep.subr.mxu0 0.0
  %754 = vmatpush2.msra.mxu0 0.0
  %755 = vmatprep.subr.mxu0 0.0
  %756 = vmatpush2.msra.mxu0 0.0
  %757 = vmatprep.subr.mxu0 0.0
  %758 = vmatpush2.msra.mxu0 0.0
  %759 = vmatprep.subr.mxu0 0.0
  %760 = vmatpush2.msra.mxu0 0.0
  %761 = vmatprep.subr.mxu0 0.0
  %762 = vmatpush2.msra.mxu0 0.0
  %763 = vmatprep.subr.mxu0 0.0
  %764 = vmatpush2.msra.mxu0 0.0
  %765 = vmatprep.subr.mxu0 0.0
  %766 = vmatpush2.msra.mxu0 0.0
  %767 = vmatprep.subr.mxu0 0.0
  %768 = vmatpush2.msra.mxu0 0.0
  %769 = vmatprep.mubr.f32.mxu0 0.0
  %770 = vmatmul.mubr.f32.gmra.mxu0 %v685
  %v771 = vpop.f32.mrf.mxu0
  %v772 = vadd.f32 0.0, %v771
  %v773 = vpop.f32.mrf.mxu0
  %774 = vmatprep.mubr.f32.mxu0 0.0
  %775 = vmatmul.mubr.f32.gmra.mxu0 %v688
  %v776 = vpop.f32.mrf.mxu0
  %v777 = vadd.f32 0.0, %v776
  %v778 = vpop.f32.mrf.mxu0
  %779 = vmatprep.mubr.f32.mxu0 0.0
  %780 = vmatmul.mubr.f32.gmra.mxu0 %v691
  %v781 = vpop.f32.mrf.mxu0
  %v782 = vadd.f32 0.0, %v781
  %v783 = vpop.f32.mrf.mxu0
  %784 = vmatprep.mubr.f32.mxu0 0.0
  %785 = vmatmul.mubr.f32.gmra.mxu0 %v694
  %v786 = vpop.f32.mrf.mxu0
  %v787 = vadd.f32 0.0, %v786
  %v788 = vpop.f32.mrf.mxu0
  %789 = vmatprep.mubr.f32.mxu0 0.0
  %790 = vmatmul.mubr.f32.gmra.mxu0 %v697
  %v791 = vpop.f32.mrf.mxu0
  %v792 = vadd.f32 0.0, %v791
  %v793 = vpop.f32.mrf.mxu0
  %794 = vmatprep.mubr.f32.mxu0 0.0
  %795 = vmatmul.mubr.f32.gmra.mxu0 %v700
  %v796 = vpop.f32.mrf.mxu0
  %v797 = vadd.f32 0.0, %v796
  %v798 = vpop.f32.mrf.mxu0
  %799 = vmatprep.mubr.f32.mxu0 0.0
  %800 = vmatmul.mubr.f32.gmra.mxu0 %v703
  %v801 = vpop.f32.mrf.mxu0
  %v802 = vadd.f32 0.0, %v801
  %v803 = vpop.f32.mrf.mxu0
  %804 = vdwg.mxu0
  %v805 = vld [vmem:[%s4] sm:$0xff]
  %v806 = vld [vmem:[%s4 + $0x8] sm:$0xff]
  %807 = vrot.lane.b32.xlu0 %v62, 112
  %v808 = vpop.permute.xlu0 %807
  %809 = vrot.lane.b32.xlu0 %v63, 112
  %v810 = vpop.permute.xlu0 %809
  %811 = vrot.lane.b32.xlu0 %v64, 112
  %v812 = vpop.permute.xlu0 %811
  %813 = vrot.lane.b32.xlu0 %v65, 112
  %v814 = vpop.permute.xlu0 %813
  %815 = vrot.lane.b32.xlu0 %v66, 112
  %v816 = vpop.permute.xlu0 %815
  %817 = vrot.lane.b32.xlu0 %v67, 112
  %v818 = vpop.permute.xlu0 %817
  %819 = vrot.lane.b32.xlu0 %v68, 112
  %v820 = vpop.permute.xlu0 %819
  %821 = vrot.lane.b32.xlu0 %v69, 112
  %v822 = vpop.permute.xlu0 %821
  %831 = vrot.lane.b32.xlu0 %v75, 112
  %v832 = vpop.permute.xlu0 %831
  %834 = vmatprep.subr.mxu0 0.0
  %835 = vmatpush1.msra.mxu0 0.0
  %836 = vmatprep.subr.mxu0 0.0
  %837 = vmatpush1.msra.mxu0 0.0
  %838 = vmatprep.subr.mxu0 0.0
  %839 = vmatpush1.msra.mxu0 0.0
  %840 = vmatprep.subr.mxu0 0.0
  %841 = vmatpush1.msra.mxu0 0.0
  %842 = vmatprep.subr.mxu0 0.0
  %843 = vmatpush1.msra.mxu0 0.0
  %844 = vmatprep.subr.mxu0 0.0
  %845 = vmatpush1.msra.mxu0 0.0
  %846 = vmatprep.subr.mxu0 0.0
  %847 = vmatpush1.msra.mxu0 0.0
  %848 = vmatprep.subr.mxu0 0.0
  %849 = vmatpush1.msra.mxu0 0.0
  %850 = vmatprep.subr.mxu0 0.0
  %851 = vmatpush1.msra.mxu0 %v822
  %852 = vmatprep.subr.mxu0 0.0
  %853 = vmatpush1.msra.mxu0 %v820
  %854 = vmatprep.subr.mxu0 0.0
  %855 = vmatpush1.msra.mxu0 %v818
  %856 = vmatprep.subr.mxu0 0.0
  %857 = vmatpush1.msra.mxu0 %v816
  %858 = vmatprep.subr.mxu0 0.0
  %859 = vmatpush1.msra.mxu0 %v814
  %860 = vmatprep.subr.mxu0 0.0
  %861 = vmatpush1.msra.mxu0 %v812
  %862 = vmatprep.subr.mxu0 0.0
  %863 = vmatpush1.msra.mxu0 %v810
  %864 = vmatprep.subr.mxu0 0.0
  %865 = vmatpush1.msra.mxu0 %v808
  %866 = vmatprep.subr.mxu0 0.0
  %867 = vmatpush2.msra.mxu0 0.0
  %868 = vmatprep.subr.mxu0 0.0
  %869 = vmatpush2.msra.mxu0 0.0
  %870 = vmatprep.subr.mxu0 0.0
  %871 = vmatpush2.msra.mxu0 0.0
  %872 = vmatprep.subr.mxu0 0.0
  %873 = vmatpush2.msra.mxu0 0.0
  %874 = vmatprep.subr.mxu0 0.0
  %875 = vmatpush2.msra.mxu0 0.0
  %876 = vmatprep.subr.mxu0 0.0
  %877 = vmatpush2.msra.mxu0 0.0
  %878 = vmatprep.subr.mxu0 0.0
  %879 = vmatpush2.msra.mxu0 0.0
  %880 = vmatprep.subr.mxu0 0.0
  %881 = vmatpush2.msra.mxu0 0.0
  %882 = vmatprep.subr.mxu0 0.0
  %883 = vmatpush2.msra.mxu0 0.0
  %884 = vmatprep.subr.mxu0 0.0
  %885 = vmatpush2.msra.mxu0 0.0
  %886 = vmatprep.subr.mxu0 0.0
  %887 = vmatpush2.msra.mxu0 0.0
  %888 = vmatprep.subr.mxu0 0.0
  %889 = vmatpush2.msra.mxu0 0.0
  %890 = vmatprep.subr.mxu0 0.0
  %891 = vmatpush2.msra.mxu0 0.0
  %892 = vmatprep.subr.mxu0 0.0
  %893 = vmatpush2.msra.mxu0 0.0
  %894 = vmatprep.subr.mxu0 0.0
  %895 = vmatpush2.msra.mxu0 0.0
  %896 = vmatprep.subr.mxu0 0.0
  %897 = vmatpush2.msra.mxu0 0.0
  %898 = vmatprep.mubr.f32.mxu0 0.0
  %899 = vmatmul.mubr.f32.gmra.mxu0 %v79
  %v900 = vpop.f32.mrf.mxu0
  %v901 = vadd.f32 %v832, %v900
  %v902 = vpop.f32.mrf.mxu0
  %903 = vmatprep.mubr.f32.mxu0 0.0
  %904 = vmatmul.mubr.f32.gmra.mxu0 %v82
  %v905 = vpop.f32.mrf.mxu0
  %v906 = vadd.f32 %v832, %v905
  %v907 = vpop.f32.mrf.mxu0
  %908 = vmatprep.mubr.f32.mxu0 0.0
  %909 = vmatmul.mubr.f32.gmra.mxu0 %v85
  %v910 = vpop.f32.mrf.mxu0
  %v911 = vadd.f32 %v832, %v910
  %v912 = vpop.f32.mrf.mxu0
  %913 = vmatprep.mubr.f32.mxu0 0.0
  %914 = vmatmul.mubr.f32.gmra.mxu0 %v88
  %v915 = vpop.f32.mrf.mxu0
  %v916 = vadd.f32 %v832, %v915
  %v917 = vpop.f32.mrf.mxu0
  %918 = vmatprep.mubr.f32.mxu0 0.0
  %919 = vmatmul.mubr.f32.gmra.mxu0 %v91
  %v920 = vpop.f32.mrf.mxu0
  %v921 = vadd.f32 %v832, %v920
  %v922 = vpop.f32.mrf.mxu0
  %923 = vmatprep.mubr.f32.mxu0 0.0
  %924 = vmatmul.mubr.f32.gmra.mxu0 %v94
  %v925 = vpop.f32.mrf.mxu0
  %v926 = vadd.f32 %v832, %v925
  %v927 = vpop.f32.mrf.mxu0
  %928 = vmatprep.mubr.f32.mxu0 0.0
  %929 = vmatmul.mubr.f32.gmra.mxu0 %v97
  %v930 = vpop.f32.mrf.mxu0
  %v931 = vadd.f32 %v832, %v930
  %v932 = vpop.f32.mrf.mxu0
  %933 = vdwg.mxu0
  %934 = vrot.lane.b32.xlu0 %v62, 48
  %v935 = vpop.permute.xlu0 %934
  %936 = vrot.lane.b32.xlu0 %v63, 48
  %v937 = vpop.permute.xlu0 %936
  %938 = vrot.lane.b32.xlu0 %v64, 48
  %v939 = vpop.permute.xlu0 %938
  %940 = vrot.lane.b32.xlu0 %v65, 48
  %v941 = vpop.permute.xlu0 %940
  %942 = vrot.lane.b32.xlu0 %v66, 48
  %v943 = vpop.permute.xlu0 %942
  %944 = vrot.lane.b32.xlu0 %v67, 48
  %v945 = vpop.permute.xlu0 %944
  %946 = vrot.lane.b32.xlu0 %v68, 48
  %v947 = vpop.permute.xlu0 %946
  %948 = vrot.lane.b32.xlu0 %v69, 48
  %v949 = vpop.permute.xlu0 %948
  %958 = vrot.lane.b32.xlu0 %v75, 48
  %v959 = vpop.permute.xlu0 %958
  %961 = vmatprep.subr.mxu0 0.0
  %962 = vmatpush1.msra.mxu0 0.0
  %963 = vmatprep.subr.mxu0 0.0
  %964 = vmatpush1.msra.mxu0 0.0
  %965 = vmatprep.subr.mxu0 0.0
  %966 = vmatpush1.msra.mxu0 0.0
  %967 = vmatprep.subr.mxu0 0.0
  %968 = vmatpush1.msra.mxu0 0.0
  %969 = vmatprep.subr.mxu0 0.0
  %970 = vmatpush1.msra.mxu0 0.0
  %971 = vmatprep.subr.mxu0 0.0
  %972 = vmatpush1.msra.mxu0 0.0
  %973 = vmatprep.subr.mxu0 0.0
  %974 = vmatpush1.msra.mxu0 0.0
  %975 = vmatprep.subr.mxu0 0.0
  %976 = vmatpush1.msra.mxu0 0.0
  %977 = vmatprep.subr.mxu0 0.0
  %978 = vmatpush1.msra.mxu0 %v949
  %979 = vmatprep.subr.mxu0 0.0
  %980 = vmatpush1.msra.mxu0 %v947
  %981 = vmatprep.subr.mxu0 0.0
  %982 = vmatpush1.msra.mxu0 %v945
  %983 = vmatprep.subr.mxu0 0.0
  %984 = vmatpush1.msra.mxu0 %v943
  %985 = vmatprep.subr.mxu0 0.0
  %986 = vmatpush1.msra.mxu0 %v941
  %987 = vmatprep.subr.mxu0 0.0
  %988 = vmatpush1.msra.mxu0 %v939
  %989 = vmatprep.subr.mxu0 0.0
  %990 = vmatpush1.msra.mxu0 %v937
  %991 = vmatprep.subr.mxu0 0.0
  %992 = vmatpush1.msra.mxu0 %v935
  %993 = vmatprep.subr.mxu0 0.0
  %994 = vmatpush2.msra.mxu0 0.0
  %995 = vmatprep.subr.mxu0 0.0
  %996 = vmatpush2.msra.mxu0 0.0
  %997 = vmatprep.subr.mxu0 0.0
  %998 = vmatpush2.msra.mxu0 0.0
  %999 = vmatprep.subr.mxu0 0.0
  %1000 = vmatpush2.msra.mxu0 0.0
  %1001 = vmatprep.subr.mxu0 0.0
  %1002 = vmatpush2.msra.mxu0 0.0
  %1003 = vmatprep.subr.mxu0 0.0
  %1004 = vmatpush2.msra.mxu0 0.0
  %1005 = vmatprep.subr.mxu0 0.0
  %1006 = vmatpush2.msra.mxu0 0.0
  %1007 = vmatprep.subr.mxu0 0.0
  %1008 = vmatpush2.msra.mxu0 0.0
  %1009 = vmatprep.subr.mxu0 0.0
  %1010 = vmatpush2.msra.mxu0 0.0
  %1011 = vmatprep.subr.mxu0 0.0
  %1012 = vmatpush2.msra.mxu0 0.0
  %1013 = vmatprep.subr.mxu0 0.0
  %1014 = vmatpush2.msra.mxu0 0.0
  %1015 = vmatprep.subr.mxu0 0.0
  %1016 = vmatpush2.msra.mxu0 0.0
  %1017 = vmatprep.subr.mxu0 0.0
  %1018 = vmatpush2.msra.mxu0 0.0
  %1019 = vmatprep.subr.mxu0 0.0
  %1020 = vmatpush2.msra.mxu0 0.0
  %1021 = vmatprep.subr.mxu0 0.0
  %1022 = vmatpush2.msra.mxu0 0.0
  %1023 = vmatprep.subr.mxu0 0.0
  %1024 = vmatpush2.msra.mxu0 0.0
  %1025 = vmatprep.mubr.f32.mxu0 0.0
  %1026 = vmatmul.mubr.f32.gmra.mxu0 %v79
  %v1027 = vpop.f32.mrf.mxu0
  %v1028 = vadd.f32 %v959, %v1027
  %v1029 = vpop.f32.mrf.mxu0
  %1030 = vmatprep.mubr.f32.mxu0 0.0
  %1031 = vmatmul.mubr.f32.gmra.mxu0 %v82
  %v1032 = vpop.f32.mrf.mxu0
  %v1033 = vadd.f32 %v959, %v1032
  %v1034 = vpop.f32.mrf.mxu0
  %1035 = vmatprep.mubr.f32.mxu0 0.0
  %1036 = vmatmul.mubr.f32.gmra.mxu0 %v85
  %v1037 = vpop.f32.mrf.mxu0
  %v1038 = vadd.f32 %v959, %v1037
  %v1039 = vpop.f32.mrf.mxu0
  %1040 = vmatprep.mubr.f32.mxu0 0.0
  %1041 = vmatmul.mubr.f32.gmra.mxu0 %v88
  %v1042 = vpop.f32.mrf.mxu0
  %v1043 = vadd.f32 %v959, %v1042
  %v1044 = vpop.f32.mrf.mxu0
  %1045 = vmatprep.mubr.f32.mxu0 0.0
  %1046 = vmatmul.mubr.f32.gmra.mxu0 %v91
  %v1047 = vpop.f32.mrf.mxu0
  %v1048 = vadd.f32 %v959, %v1047
  %v1049 = vpop.f32.mrf.mxu0
  %1050 = vmatprep.mubr.f32.mxu0 0.0
  %1051 = vmatmul.mubr.f32.gmra.mxu0 %v94
  %v1052 = vpop.f32.mrf.mxu0
  %v1053 = vadd.f32 %v959, %v1052
  %v1054 = vpop.f32.mrf.mxu0
  %1055 = vmatprep.mubr.f32.mxu0 0.0
  %1056 = vmatmul.mubr.f32.gmra.mxu0 %v97
  %v1057 = vpop.f32.mrf.mxu0
  %v1058 = vadd.f32 %v959, %v1057
  %v1059 = vpop.f32.mrf.mxu0
  %1060 = vdwg.mxu0
  %1069 = vrot.lane.b32.xlu0 %v334, 112
  %v1070 = vpop.permute.xlu0 %1069
  %1071 = vrot.lane.b32.xlu0 %v335, 112
  %v1072 = vpop.permute.xlu0 %1071
  %1073 = vrot.lane.b32.xlu0 %v336, 112
  %v1074 = vpop.permute.xlu0 %1073
  %1075 = vrot.lane.b32.xlu0 %v337, 112
  %v1076 = vpop.permute.xlu0 %1075
  %1077 = vrot.lane.b32.xlu0 %v338, 112
  %v1078 = vpop.permute.xlu0 %1077
  %1079 = vrot.lane.b32.xlu0 %v339, 112
  %v1080 = vpop.permute.xlu0 %1079
  %1081 = vrot.lane.b32.xlu0 %v340, 112
  %v1082 = vpop.permute.xlu0 %1081
  %1083 = vrot.lane.b32.xlu0 %v341, 112
  %v1084 = vpop.permute.xlu0 %1083
  %1093 = vrot.lane.b32.xlu0 %v347, 112
  %v1094 = vpop.permute.xlu0 %1093
  %1096 = vmatprep.subr.mxu0 0.0
  %1097 = vmatpush1.msra.mxu0 0.0
  %1098 = vmatprep.subr.mxu0 0.0
  %1099 = vmatpush1.msra.mxu0 0.0
  %1100 = vmatprep.subr.mxu0 0.0
  %1101 = vmatpush1.msra.mxu0 0.0
  %1102 = vmatprep.subr.mxu0 0.0
  %1103 = vmatpush1.msra.mxu0 0.0
  %1104 = vmatprep.subr.mxu0 0.0
  %1105 = vmatpush1.msra.mxu0 0.0
  %1106 = vmatprep.subr.mxu0 0.0
  %1107 = vmatpush1.msra.mxu0 0.0
  %1108 = vmatprep.subr.mxu0 0.0
  %1109 = vmatpush1.msra.mxu0 0.0
  %1110 = vmatprep.subr.mxu0 0.0
  %1111 = vmatpush1.msra.mxu0 0.0
  %1112 = vmatprep.subr.mxu0 0.0
  %1113 = vmatpush1.msra.mxu0 %v1084
  %1114 = vmatprep.subr.mxu0 0.0
  %1115 = vmatpush1.msra.mxu0 %v1082
  %1116 = vmatprep.subr.mxu0 0.0
  %1117 = vmatpush1.msra.mxu0 %v1080
  %1118 = vmatprep.subr.mxu0 0.0
  %1119 = vmatpush1.msra.mxu0 %v1078
  %1120 = vmatprep.subr.mxu0 0.0
  %1121 = vmatpush1.msra.mxu0 %v1076
  %1122 = vmatprep.subr.mxu0 0.0
  %1123 = vmatpush1.msra.mxu0 %v1074
  %1124 = vmatprep.subr.mxu0 0.0
  %1125 = vmatpush1.msra.mxu0 %v1072
  %1126 = vmatprep.subr.mxu0 0.0
  %1127 = vmatpush1.msra.mxu0 %v1070
  %1128 = vmatprep.subr.mxu0 0.0
  %1129 = vmatpush2.msra.mxu0 0.0
  %1130 = vmatprep.subr.mxu0 0.0
  %1131 = vmatpush2.msra.mxu0 0.0
  %1132 = vmatprep.subr.mxu0 0.0
  %1133 = vmatpush2.msra.mxu0 0.0
  %1134 = vmatprep.subr.mxu0 0.0
  %1135 = vmatpush2.msra.mxu0 0.0
  %1136 = vmatprep.subr.mxu0 0.0
  %1137 = vmatpush2.msra.mxu0 0.0
  %1138 = vmatprep.subr.mxu0 0.0
  %1139 = vmatpush2.msra.mxu0 0.0
  %1140 = vmatprep.subr.mxu0 0.0
  %1141 = vmatpush2.msra.mxu0 0.0
  %1142 = vmatprep.subr.mxu0 0.0
  %1143 = vmatpush2.msra.mxu0 0.0
  %1144 = vmatprep.subr.mxu0 0.0
  %1145 = vmatpush2.msra.mxu0 0.0
  %1146 = vmatprep.subr.mxu0 0.0
  %1147 = vmatpush2.msra.mxu0 0.0
  %1148 = vmatprep.subr.mxu0 0.0
  %1149 = vmatpush2.msra.mxu0 0.0
  %1150 = vmatprep.subr.mxu0 0.0
  %1151 = vmatpush2.msra.mxu0 0.0
  %1152 = vmatprep.subr.mxu0 0.0
  %1153 = vmatpush2.msra.mxu0 0.0
  %1154 = vmatprep.subr.mxu0 0.0
  %1155 = vmatpush2.msra.mxu0 0.0
  %1156 = vmatprep.subr.mxu0 0.0
  %1157 = vmatpush2.msra.mxu0 0.0
  %1158 = vmatprep.subr.mxu0 0.0
  %1159 = vmatpush2.msra.mxu0 0.0
  %1160 = vmatprep.mubr.f32.mxu0 0.0
  %1161 = vmatmul.mubr.f32.gmra.mxu0 %v79
  %v1162 = vpop.f32.mrf.mxu0
  %v1163 = vadd.f32 %v1094, %v1162
  %v1164 = vpop.f32.mrf.mxu0
  %1165 = vmatprep.mubr.f32.mxu0 0.0
  %1166 = vmatmul.mubr.f32.gmra.mxu0 %v82
  %v1167 = vpop.f32.mrf.mxu0
  %v1168 = vadd.f32 %v1094, %v1167
  %v1169 = vpop.f32.mrf.mxu0
  %1170 = vmatprep.mubr.f32.mxu0 0.0
  %1171 = vmatmul.mubr.f32.gmra.mxu0 %v85
  %v1172 = vpop.f32.mrf.mxu0
  %v1173 = vadd.f32 %v1094, %v1172
  %v1174 = vpop.f32.mrf.mxu0
  %1175 = vmatprep.mubr.f32.mxu0 0.0
  %1176 = vmatmul.mubr.f32.gmra.mxu0 %v88
  %v1177 = vpop.f32.mrf.mxu0
  %v1178 = vadd.f32 %v1094, %v1177
  %v1179 = vpop.f32.mrf.mxu0
  %1180 = vmatprep.mubr.f32.mxu0 0.0
  %1181 = vmatmul.mubr.f32.gmra.mxu0 %v91
  %v1182 = vpop.f32.mrf.mxu0
  %v1183 = vadd.f32 %v1094, %v1182
  %v1184 = vpop.f32.mrf.mxu0
  %1185 = vmatprep.mubr.f32.mxu0 0.0
  %1186 = vmatmul.mubr.f32.gmra.mxu0 %v94
  %v1187 = vpop.f32.mrf.mxu0
  %v1188 = vadd.f32 %v1094, %v1187
  %v1189 = vpop.f32.mrf.mxu0
  %1190 = vmatprep.mubr.f32.mxu0 0.0
  %1191 = vmatmul.mubr.f32.gmra.mxu0 %v97
  %v1192 = vpop.f32.mrf.mxu0
  %v1193 = vadd.f32 %v1094, %v1192
  %v1194 = vpop.f32.mrf.mxu0
  %1195 = vdwg.mxu0
  %v1197 = vsel %vm449, %v901, 0
  %v1200 = vsel %vm449, %v906, 0
  %v1203 = vsel %vm449, %v911, 0
  %v1206 = vsel %vm449, %v916, 0
  %v1209 = vsel %vm449, %v921, 0
  %v1212 = vsel %vm449, %v926, 0
  %v1215 = vsel %vm449, %v931, 0
  %v1218 = vsel %vm449, %v1028, 0
  %v1221 = vsel %vm449, %v1033, 0
  %v1224 = vsel %vm449, %v1038, 0
  %v1227 = vsel %vm449, %v1043, 0
  %v1230 = vsel %vm449, %v1048, 0
  %v1233 = vsel %vm449, %v1053, 0
  %v1236 = vsel %vm449, %v1058, 0
  %1238 = vmatprep.subr.mxu0 0.0
  %1239 = vmatpush1.xpose.msra.mxu0 0.0
  %1240 = vmatprep.subr.mxu0 0.0
  %1241 = vmatpush1.xpose.msra.mxu0 0.0
  %1242 = vmatprep.subr.mxu0 0.0
  %1243 = vmatpush1.xpose.msra.mxu0 0.0
  %1244 = vmatprep.subr.mxu0 0.0
  %1245 = vmatpush1.xpose.msra.mxu0 0.0
  %1246 = vmatprep.subr.mxu0 0.0
  %1247 = vmatpush1.xpose.msra.mxu0 0.0
  %1248 = vmatprep.subr.mxu0 0.0
  %1249 = vmatpush1.xpose.msra.mxu0 0.0
  %1250 = vmatprep.subr.mxu0 0.0
  %1251 = vmatpush1.xpose.msra.mxu0 0.0
  %1252 = vmatprep.subr.mxu0 0.0
  %1253 = vmatpush1.xpose.msra.mxu0 0.0
  %1254 = vmatprep.subr.mxu0 0.0
  %1255 = vmatpush1.xpose.msra.mxu0 0.0
  %1256 = vmatprep.subr.mxu0 0.0
  %1257 = vmatpush1.xpose.msra.mxu0 %v1236
  %1258 = vmatprep.subr.mxu0 0.0
  %1259 = vmatpush1.xpose.msra.mxu0 %v1233
  %1260 = vmatprep.subr.mxu0 0.0
  %1261 = vmatpush1.xpose.msra.mxu0 %v1230
  %1262 = vmatprep.subr.mxu0 0.0
  %1263 = vmatpush1.xpose.msra.mxu0 %v1227
  %1264 = vmatprep.subr.mxu0 0.0
  %1265 = vmatpush1.xpose.msra.mxu0 %v1224
  %1266 = vmatprep.subr.mxu0 0.0
  %1267 = vmatpush1.xpose.msra.mxu0 %v1221
  %1268 = vmatprep.subr.mxu0 0.0
  %1269 = vmatpush1.xpose.msra.mxu0 %v1218
  %1270 = vmatprep.subr.mxu0 0.0
  %1271 = vmatpush2.xpose.msra.mxu0 0.0
  %1272 = vmatprep.subr.mxu0 0.0
  %1273 = vmatpush2.xpose.msra.mxu0 0.0
  %1274 = vmatprep.subr.mxu0 0.0
  %1275 = vmatpush2.xpose.msra.mxu0 0.0
  %1276 = vmatprep.subr.mxu0 0.0
  %1277 = vmatpush2.xpose.msra.mxu0 0.0
  %1278 = vmatprep.subr.mxu0 0.0
  %1279 = vmatpush2.xpose.msra.mxu0 0.0
  %1280 = vmatprep.subr.mxu0 0.0
  %1281 = vmatpush2.xpose.msra.mxu0 0.0
  %1282 = vmatprep.subr.mxu0 0.0
  %1283 = vmatpush2.xpose.msra.mxu0 0.0
  %1284 = vmatprep.subr.mxu0 0.0
  %1285 = vmatpush2.xpose.msra.mxu0 0.0
  %1286 = vmatprep.subr.mxu0 0.0
  %1287 = vmatpush2.xpose.msra.mxu0 0.0
  %1288 = vmatprep.subr.mxu0 0.0
  %1289 = vmatpush2.xpose.msra.mxu0 0.0
  %1290 = vmatprep.subr.mxu0 0.0
  %1291 = vmatpush2.xpose.msra.mxu0 0.0
  %1292 = vmatprep.subr.mxu0 0.0
  %1293 = vmatpush2.xpose.msra.mxu0 0.0
  %1294 = vmatprep.subr.mxu0 0.0
  %1295 = vmatpush2.xpose.msra.mxu0 0.0
  %1296 = vmatprep.subr.mxu0 0.0
  %1297 = vmatpush2.xpose.msra.mxu0 0.0
  %1298 = vmatprep.subr.mxu0 0.0
  %1299 = vmatpush2.xpose.msra.mxu0 0.0
  %1300 = vmatprep.subr.mxu0 0.0
  %1301 = vmatpush2.xpose.msra.mxu0 0.0
  %1302 = vmatprep.mubr.f32.mxu0 0.0
  %1303 = vmatmul.mubr.f32.gmra.mxu0 %v1197
  %v1304 = vpop.f32.mrf.mxu0
  %v1305 = vadd.f32 0.0, %v1304
  %v1306 = vpop.f32.mrf.mxu0
  %1307 = vmatprep.mubr.f32.mxu0 0.0
  %1308 = vmatmul.mubr.f32.gmra.mxu0 %v1200
  %v1309 = vpop.f32.mrf.mxu0
  %v1310 = vadd.f32 0.0, %v1309
  %v1311 = vpop.f32.mrf.mxu0
  %1312 = vmatprep.mubr.f32.mxu0 0.0
  %1313 = vmatmul.mubr.f32.gmra.mxu0 %v1203
  %v1314 = vpop.f32.mrf.mxu0
  %v1315 = vadd.f32 0.0, %v1314
  %v1316 = vpop.f32.mrf.mxu0
  %1317 = vmatprep.mubr.f32.mxu0 0.0
  %1318 = vmatmul.mubr.f32.gmra.mxu0 %v1206
  %v1319 = vpop.f32.mrf.mxu0
  %v1320 = vadd.f32 0.0, %v1319
  %v1321 = vpop.f32.mrf.mxu0
  %1322 = vmatprep.mubr.f32.mxu0 0.0
  %1323 = vmatmul.mubr.f32.gmra.mxu0 %v1209
  %v1324 = vpop.f32.mrf.mxu0
  %v1325 = vadd.f32 0.0, %v1324
  %v1326 = vpop.f32.mrf.mxu0
  %1327 = vmatprep.mubr.f32.mxu0 0.0
  %1328 = vmatmul.mubr.f32.gmra.mxu0 %v1212
  %v1329 = vpop.f32.mrf.mxu0
  %v1330 = vadd.f32 0.0, %v1329
  %v1331 = vpop.f32.mrf.mxu0
  %1332 = vmatprep.mubr.f32.mxu0 0.0
  %1333 = vmatmul.mubr.f32.gmra.mxu0 %v1215
  %v1334 = vpop.f32.mrf.mxu0
  %v1335 = vadd.f32 0.0, %v1334
  %v1336 = vpop.f32.mrf.mxu0
  %1337 = vdwg.mxu0
  %v1338 = vmul.f32 %v1305, 0.25
  %v1339 = vmul.f32 %v1310, 0.25
  %v1340 = vmul.f32 %v1315, 0.25
  %v1341 = vmul.f32 %v1320, 0.25
  %v1342 = vmul.f32 %v1325, 0.25
  %v1343 = vmul.f32 %v1330, 0.25
  %v1344 = vmul.f32 %v1335, 0.25
  %v1345 = vadd.f32 %v1338, %v55
  %v1346 = vadd.f32 %v1339, %v56
  %v1347 = vadd.f32 %v1340, %v57
  %v1348 = vadd.f32 %v1341, %v58
  %v1349 = vadd.f32 %v1342, %v59
  %v1350 = vadd.f32 %v1343, %v60
  %v1351 = vadd.f32 %v1344, %v61
  %v1352 = vsel %vm606, %v1345, -inf
  %1353 = vmax.xlane.f32.xlu0 %v1352
  %v1354 = vpop.xlane.xlu0 %1353
  %v1355 = vsel %vm606, %v1346, -inf
  %1356 = vmax.xlane.f32.xlu0 %v1355
  %v1357 = vpop.xlane.xlu0 %1356
  %v1358 = vsel %vm606, %v1347, -inf
  %1359 = vmax.xlane.f32.xlu0 %v1358
  %v1360 = vpop.xlane.xlu0 %1359
  %v1361 = vsel %vm606, %v1348, -inf
  %1362 = vmax.xlane.f32.xlu0 %v1361
  %v1363 = vpop.xlane.xlu0 %1362
  %v1364 = vsel %vm606, %v1349, -inf
  %1365 = vmax.xlane.f32.xlu0 %v1364
  %v1366 = vpop.xlane.xlu0 %1365
  %v1367 = vsel %vm606, %v1350, -inf
  %1368 = vmax.xlane.f32.xlu0 %v1367
  %v1369 = vpop.xlane.xlu0 %1368
  %v1370 = vsel %vm606, %v1351, -inf
  %1371 = vmax.xlane.f32.xlu0 %v1370
  %v1372 = vpop.xlane.xlu0 %1371
  %v1373 = vsub.f32 %v1345, %v1354
  %v1374 = vsub.f32 %v1346, %v1357
  %v1375 = vsub.f32 %v1347, %v1360
  %v1376 = vsub.f32 %v1348, %v1363
  %v1377 = vsub.f32 %v1349, %v1366
  %v1378 = vsub.f32 %v1350, %v1369
  %v1379 = vsub.f32 %v1351, %v1372
  %v1380 = vmul.f32 %v1373, 1.442695
  %v1381 = vpow.pop %v1380
  %v1382 = vmul.f32 %v1374, 1.442695
  %v1383 = vpow.pop %v1382
  %v1384 = vmul.f32 %v1375, 1.442695
  %v1385 = vpow.pop %v1384
  %v1386 = vmul.f32 %v1376, 1.442695
  %v1387 = vpow.pop %v1386
  %v1388 = vmul.f32 %v1377, 1.442695
  %v1389 = vpow.pop %v1388
  %v1390 = vmul.f32 %v1378, 1.442695
  %v1391 = vpow.pop %v1390
  %v1392 = vmul.f32 %v1379, 1.442695
  %v1393 = vpow.pop %v1392
  %v1394 = vsel %vm606, %v1381, 0.0
  %1395 = vadd.xlane.f32.xlu0 %v1394
  %v1396 = vpop.xlane.xlu0 %1395
  %v1397 = vsel %vm606, %v1383, 0.0
  %1398 = vadd.xlane.f32.xlu0 %v1397
  %v1399 = vpop.xlane.xlu0 %1398
  %v1400 = vsel %vm606, %v1385, 0.0
  %1401 = vadd.xlane.f32.xlu0 %v1400
  %v1402 = vpop.xlane.xlu0 %1401
  %v1403 = vsel %vm606, %v1387, 0.0
  %1404 = vadd.xlane.f32.xlu0 %v1403
  %v1405 = vpop.xlane.xlu0 %1404
  %v1406 = vsel %vm606, %v1389, 0.0
  %1407 = vadd.xlane.f32.xlu0 %v1406
  %v1408 = vpop.xlane.xlu0 %1407
  %v1409 = vsel %vm606, %v1391, 0.0
  %1410 = vadd.xlane.f32.xlu0 %v1409
  %v1411 = vpop.xlane.xlu0 %1410
  %v1412 = vsel %vm606, %v1393, 0.0
  %1413 = vadd.xlane.f32.xlu0 %v1412
  %v1414 = vpop.xlane.xlu0 %1413
  %v1415 = vrcp.pop %v1396
  %v1416 = vmul.f32 %v1381, %v1415
  %v1417 = vrcp.pop %v1399
  %v1418 = vmul.f32 %v1383, %v1417
  %v1419 = vrcp.pop %v1402
  %v1420 = vmul.f32 %v1385, %v1419
  %v1421 = vrcp.pop %v1405
  %v1422 = vmul.f32 %v1387, %v1421
  %v1423 = vrcp.pop %v1408
  %v1424 = vmul.f32 %v1389, %v1423
  %v1425 = vrcp.pop %v1411
  %v1426 = vmul.f32 %v1391, %v1425
  %v1427 = vrcp.pop %v1414
  %v1428 = vmul.f32 %v1393, %v1427
  %v1430 = vsel %vm606, %v1416, 0
  %v1433 = vsel %vm606, %v1418, 0
  %v1436 = vsel %vm606, %v1420, 0
  %v1439 = vsel %vm606, %v1422, 0
  %v1442 = vsel %vm606, %v1424, 0
  %v1445 = vsel %vm606, %v1426, 0
  %v1448 = vsel %vm606, %v1428, 0
  %1450 = vmatprep.subr.mxu0 0.0
  %1451 = vmatpush1.msra.mxu0 0.0
  %1452 = vmatprep.subr.mxu0 0.0
  %1453 = vmatpush1.msra.mxu0 0.0
  %1454 = vmatprep.subr.mxu0 0.0
  %1455 = vmatpush1.msra.mxu0 0.0
  %1456 = vmatprep.subr.mxu0 0.0
  %1457 = vmatpush1.msra.mxu0 0.0
  %1458 = vmatprep.subr.mxu0 0.0
  %1459 = vmatpush1.msra.mxu0 0.0
  %1460 = vmatprep.subr.mxu0 0.0
  %1461 = vmatpush1.msra.mxu0 0.0
  %1462 = vmatprep.subr.mxu0 0.0
  %1463 = vmatpush1.msra.mxu0 0.0
  %1464 = vmatprep.subr.mxu0 0.0
  %1465 = vmatpush1.msra.mxu0 0.0
  %1466 = vmatprep.subr.mxu0 0.0
  %1467 = vmatpush1.msra.mxu0 0.0
  %1468 = vmatprep.subr.mxu0 0.0
  %1469 = vmatpush1.msra.mxu0 %v1193
  %1470 = vmatprep.subr.mxu0 0.0
  %1471 = vmatpush1.msra.mxu0 %v1188
  %1472 = vmatprep.subr.mxu0 0.0
  %1473 = vmatpush1.msra.mxu0 %v1183
  %1474 = vmatprep.subr.mxu0 0.0
  %1475 = vmatpush1.msra.mxu0 %v1178
  %1476 = vmatprep.subr.mxu0 0.0
  %1477 = vmatpush1.msra.mxu0 %v1173
  %1478 = vmatprep.subr.mxu0 0.0
  %1479 = vmatpush1.msra.mxu0 %v1168
  %1480 = vmatprep.subr.mxu0 0.0
  %1481 = vmatpush1.msra.mxu0 %v1163
  %1482 = vmatprep.subr.mxu0 0.0
  %1483 = vmatpush2.msra.mxu0 0.0
  %1484 = vmatprep.subr.mxu0 0.0
  %1485 = vmatpush2.msra.mxu0 0.0
  %1486 = vmatprep.subr.mxu0 0.0
  %1487 = vmatpush2.msra.mxu0 0.0
  %1488 = vmatprep.subr.mxu0 0.0
  %1489 = vmatpush2.msra.mxu0 0.0
  %1490 = vmatprep.subr.mxu0 0.0
  %1491 = vmatpush2.msra.mxu0 0.0
  %1492 = vmatprep.subr.mxu0 0.0
  %1493 = vmatpush2.msra.mxu0 0.0
  %1494 = vmatprep.subr.mxu0 0.0
  %1495 = vmatpush2.msra.mxu0 0.0
  %1496 = vmatprep.subr.mxu0 0.0
  %1497 = vmatpush2.msra.mxu0 0.0
  %1498 = vmatprep.subr.mxu0 0.0
  %1499 = vmatpush2.msra.mxu0 0.0
  %1500 = vmatprep.subr.mxu0 0.0
  %1501 = vmatpush2.msra.mxu0 0.0
  %1502 = vmatprep.subr.mxu0 0.0
  %1503 = vmatpush2.msra.mxu0 0.0
  %1504 = vmatprep.subr.mxu0 0.0
  %1505 = vmatpush2.msra.mxu0 0.0
  %1506 = vmatprep.subr.mxu0 0.0
  %1507 = vmatpush2.msra.mxu0 0.0
  %1508 = vmatprep.subr.mxu0 0.0
  %1509 = vmatpush2.msra.mxu0 0.0
  %1510 = vmatprep.subr.mxu0 0.0
  %1511 = vmatpush2.msra.mxu0 0.0
  %1512 = vmatprep.subr.mxu0 0.0
  %1513 = vmatpush2.msra.mxu0 0.0
  %1514 = vmatprep.mubr.f32.mxu0 0.0
  %1515 = vmatmul.mubr.f32.gmra.mxu0 %v1430
  %v1516 = vpop.f32.mrf.mxu0
  %v1517 = vadd.f32 0.0, %v1516
  %v1518 = vpop.f32.mrf.mxu0
  %1519 = vmatprep.mubr.f32.mxu0 0.0
  %1520 = vmatmul.mubr.f32.gmra.mxu0 %v1433
  %v1521 = vpop.f32.mrf.mxu0
  %v1522 = vadd.f32 0.0, %v1521
  %v1523 = vpop.f32.mrf.mxu0
  %1524 = vmatprep.mubr.f32.mxu0 0.0
  %1525 = vmatmul.mubr.f32.gmra.mxu0 %v1436
  %v1526 = vpop.f32.mrf.mxu0
  %v1527 = vadd.f32 0.0, %v1526
  %v1528 = vpop.f32.mrf.mxu0
  %1529 = vmatprep.mubr.f32.mxu0 0.0
  %1530 = vmatmul.mubr.f32.gmra.mxu0 %v1439
  %v1531 = vpop.f32.mrf.mxu0
  %v1532 = vadd.f32 0.0, %v1531
  %v1533 = vpop.f32.mrf.mxu0
  %1534 = vmatprep.mubr.f32.mxu0 0.0
  %1535 = vmatmul.mubr.f32.gmra.mxu0 %v1442
  %v1536 = vpop.f32.mrf.mxu0
  %v1537 = vadd.f32 0.0, %v1536
  %v1538 = vpop.f32.mrf.mxu0
  %1539 = vmatprep.mubr.f32.mxu0 0.0
  %1540 = vmatmul.mubr.f32.gmra.mxu0 %v1445
  %v1541 = vpop.f32.mrf.mxu0
  %v1542 = vadd.f32 0.0, %v1541
  %v1543 = vpop.f32.mrf.mxu0
  %1544 = vmatprep.mubr.f32.mxu0 0.0
  %1545 = vmatmul.mubr.f32.gmra.mxu0 %v1448
  %v1546 = vpop.f32.mrf.mxu0
  %v1547 = vadd.f32 0.0, %v1546
  %v1548 = vpop.f32.mrf.mxu0
  %1549 = vdwg.mxu0
  %v1550 = vld [vmem:[%s4 + $0x10] sm:$0xff]
  %v1551 = vld [vmem:[%s4 + $0x18] sm:$0xff]
  %v1553 = vsel %vm449, %v1517, 0
  %v1556 = vsel %vm449, %v1522, 0
  %v1559 = vsel %vm449, %v1527, 0
  %v1562 = vsel %vm449, %v1532, 0
  %v1565 = vsel %vm449, %v1537, 0
  %v1568 = vsel %vm449, %v1542, 0
  %v1571 = vsel %vm449, %v1547, 0
  %1573 = vmatprep.subr.mxu0 0.0
  %1574 = vmatpush1.msra.mxu0 0.0
  %1575 = vmatprep.subr.mxu0 0.0
  %1576 = vmatpush1.msra.mxu0 0.0
  %1577 = vmatprep.subr.mxu0 0.0
  %1578 = vmatpush1.msra.mxu0 0.0
  %1579 = vmatprep.subr.mxu0 0.0
  %1580 = vmatpush1.msra.mxu0 0.0
  %1581 = vmatprep.subr.mxu0 0.0
  %1582 = vmatpush1.msra.mxu0 0.0
  %1583 = vmatprep.subr.mxu0 0.0
  %1584 = vmatpush1.msra.mxu0 0.0
  %1585 = vmatprep.subr.mxu0 0.0
  %1586 = vmatpush1.msra.mxu0 0.0
  %1587 = vmatprep.subr.mxu0 0.0
  %1588 = vmatpush1.msra.mxu0 0.0
  %1589 = vmatprep.subr.mxu0 0.0
  %1590 = vmatpush1.msra.mxu0 0.0
  %1591 = vmatprep.subr.mxu0 0.0
  %1592 = vmatpush1.msra.mxu0 0.0
  %1593 = vmatprep.subr.mxu0 0.0
  %1594 = vmatpush1.msra.mxu0 0.0
  %1595 = vmatprep.subr.mxu0 0.0
  %1596 = vmatpush1.msra.mxu0 0.0
  %1597 = vmatprep.subr.mxu0 0.0
  %1598 = vmatpush1.msra.mxu0 0.0
  %1599 = vmatprep.subr.mxu0 0.0
  %1600 = vmatpush1.msra.mxu0 0.0
  %1601 = vmatprep.subr.mxu0 0.0
  %1602 = vmatpush1.msra.mxu0 %v1551
  %1603 = vmatprep.subr.mxu0 0.0
  %1604 = vmatpush1.msra.mxu0 %v1550
  %1605 = vmatprep.subr.mxu0 0.0
  %1606 = vmatpush2.msra.mxu0 0.0
  %1607 = vmatprep.subr.mxu0 0.0
  %1608 = vmatpush2.msra.mxu0 0.0
  %1609 = vmatprep.subr.mxu0 0.0
  %1610 = vmatpush2.msra.mxu0 0.0
  %1611 = vmatprep.subr.mxu0 0.0
  %1612 = vmatpush2.msra.mxu0 0.0
  %1613 = vmatprep.subr.mxu0 0.0
  %1614 = vmatpush2.msra.mxu0 0.0
  %1615 = vmatprep.subr.mxu0 0.0
  %1616 = vmatpush2.msra.mxu0 0.0
  %1617 = vmatprep.subr.mxu0 0.0
  %1618 = vmatpush2.msra.mxu0 0.0
  %1619 = vmatprep.subr.mxu0 0.0
  %1620 = vmatpush2.msra.mxu0 0.0
  %1621 = vmatprep.subr.mxu0 0.0
  %1622 = vmatpush2.msra.mxu0 0.0
  %1623 = vmatprep.subr.mxu0 0.0
  %1624 = vmatpush2.msra.mxu0 0.0
  %1625 = vmatprep.subr.mxu0 0.0
  %1626 = vmatpush2.msra.mxu0 0.0
  %1627 = vmatprep.subr.mxu0 0.0
  %1628 = vmatpush2.msra.mxu0 0.0
  %1629 = vmatprep.subr.mxu0 0.0
  %1630 = vmatpush2.msra.mxu0 0.0
  %1631 = vmatprep.subr.mxu0 0.0
  %1632 = vmatpush2.msra.mxu0 0.0
  %1633 = vmatprep.subr.mxu0 0.0
  %1634 = vmatpush2.msra.mxu0 0.0
  %1635 = vmatprep.subr.mxu0 0.0
  %1636 = vmatpush2.msra.mxu0 0.0
  %1637 = vmatprep.mubr.f32.mxu0 0.0
  %1638 = vmatmul.mubr.f32.gmra.mxu0 %v1553
  %v1639 = vpop.f32.mrf.mxu0
  %v1640 = vadd.f32 0.0, %v1639
  %v1641 = vpop.f32.mrf.mxu0
  %1642 = vmatprep.mubr.f32.mxu0 0.0
  %1643 = vmatmul.mubr.f32.gmra.mxu0 %v1556
  %v1644 = vpop.f32.mrf.mxu0
  %v1645 = vadd.f32 0.0, %v1644
  %v1646 = vpop.f32.mrf.mxu0
  %1647 = vmatprep.mubr.f32.mxu0 0.0
  %1648 = vmatmul.mubr.f32.gmra.mxu0 %v1559
  %v1649 = vpop.f32.mrf.mxu0
  %v1650 = vadd.f32 0.0, %v1649
  %v1651 = vpop.f32.mrf.mxu0
  %1652 = vmatprep.mubr.f32.mxu0 0.0
  %1653 = vmatmul.mubr.f32.gmra.mxu0 %v1562
  %v1654 = vpop.f32.mrf.mxu0
  %v1655 = vadd.f32 0.0, %v1654
  %v1656 = vpop.f32.mrf.mxu0
  %1657 = vmatprep.mubr.f32.mxu0 0.0
  %1658 = vmatmul.mubr.f32.gmra.mxu0 %v1565
  %v1659 = vpop.f32.mrf.mxu0
  %v1660 = vadd.f32 0.0, %v1659
  %v1661 = vpop.f32.mrf.mxu0
  %1662 = vmatprep.mubr.f32.mxu0 0.0
  %1663 = vmatmul.mubr.f32.gmra.mxu0 %v1568
  %v1664 = vpop.f32.mrf.mxu0
  %v1665 = vadd.f32 0.0, %v1664
  %v1666 = vpop.f32.mrf.mxu0
  %1667 = vmatprep.mubr.f32.mxu0 0.0
  %1668 = vmatmul.mubr.f32.gmra.mxu0 %v1571
  %v1669 = vpop.f32.mrf.mxu0
  %v1670 = vadd.f32 0.0, %v1669
  %v1671 = vpop.f32.mrf.mxu0
  %1672 = vdwg.mxu0
  %v1674 = vsel %vm449, %v772, 0
  %v1677 = vsel %vm449, %v777, 0
  %v1680 = vsel %vm449, %v782, 0
  %v1683 = vsel %vm449, %v787, 0
  %v1686 = vsel %vm449, %v792, 0
  %v1689 = vsel %vm449, %v797, 0
  %v1692 = vsel %vm449, %v802, 0
  %1694 = vmatprep.subr.mxu0 0.0
  %1695 = vmatpush1.msra.mxu0 0.0
  %1696 = vmatprep.subr.mxu0 0.0
  %1697 = vmatpush1.msra.mxu0 0.0
  %1698 = vmatprep.subr.mxu0 0.0
  %1699 = vmatpush1.msra.mxu0 0.0
  %1700 = vmatprep.subr.mxu0 0.0
  %1701 = vmatpush1.msra.mxu0 0.0
  %1702 = vmatprep.subr.mxu0 0.0
  %1703 = vmatpush1.msra.mxu0 0.0
  %1704 = vmatprep.subr.mxu0 0.0
  %1705 = vmatpush1.msra.mxu0 0.0
  %1706 = vmatprep.subr.mxu0 0.0
  %1707 = vmatpush1.msra.mxu0 0.0
  %1708 = vmatprep.subr.mxu0 0.0
  %1709 = vmatpush1.msra.mxu0 0.0
  %1710 = vmatprep.subr.mxu0 0.0
  %1711 = vmatpush1.msra.mxu0 0.0
  %1712 = vmatprep.subr.mxu0 0.0
  %1713 = vmatpush1.msra.mxu0 0.0
  %1714 = vmatprep.subr.mxu0 0.0
  %1715 = vmatpush1.msra.mxu0 0.0
  %1716 = vmatprep.subr.mxu0 0.0
  %1717 = vmatpush1.msra.mxu0 0.0
  %1718 = vmatprep.subr.mxu0 0.0
  %1719 = vmatpush1.msra.mxu0 0.0
  %1720 = vmatprep.subr.mxu0 0.0
  %1721 = vmatpush1.msra.mxu0 0.0
  %1722 = vmatprep.subr.mxu0 0.0
  %1723 = vmatpush1.msra.mxu0 %v806
  %1724 = vmatprep.subr.mxu0 0.0
  %1725 = vmatpush1.msra.mxu0 %v805
  %1726 = vmatprep.subr.mxu0 0.0
  %1727 = vmatpush2.msra.mxu0 0.0
  %1728 = vmatprep.subr.mxu0 0.0
  %1729 = vmatpush2.msra.mxu0 0.0
  %1730 = vmatprep.subr.mxu0 0.0
  %1731 = vmatpush2.msra.mxu0 0.0
  %1732 = vmatprep.subr.mxu0 0.0
  %1733 = vmatpush2.msra.mxu0 0.0
  %1734 = vmatprep.subr.mxu0 0.0
  %1735 = vmatpush2.msra.mxu0 0.0
  %1736 = vmatprep.subr.mxu0 0.0
  %1737 = vmatpush2.msra.mxu0 0.0
  %1738 = vmatprep.subr.mxu0 0.0
  %1739 = vmatpush2.msra.mxu0 0.0
  %1740 = vmatprep.subr.mxu0 0.0
  %1741 = vmatpush2.msra.mxu0 0.0
  %1742 = vmatprep.subr.mxu0 0.0
  %1743 = vmatpush2.msra.mxu0 0.0
  %1744 = vmatprep.subr.mxu0 0.0
  %1745 = vmatpush2.msra.mxu0 0.0
  %1746 = vmatprep.subr.mxu0 0.0
  %1747 = vmatpush2.msra.mxu0 0.0
  %1748 = vmatprep.subr.mxu0 0.0
  %1749 = vmatpush2.msra.mxu0 0.0
  %1750 = vmatprep.subr.mxu0 0.0
  %1751 = vmatpush2.msra.mxu0 0.0
  %1752 = vmatprep.subr.mxu0 0.0
  %1753 = vmatpush2.msra.mxu0 0.0
  %1754 = vmatprep.subr.mxu0 0.0
  %1755 = vmatpush2.msra.mxu0 0.0
  %1756 = vmatprep.subr.mxu0 0.0
  %1757 = vmatpush2.msra.mxu0 0.0
  %1758 = vmatprep.mubr.f32.mxu0 0.0
  %1759 = vmatmul.mubr.f32.gmra.mxu0 %v1674
  %v1760 = vpop.f32.mrf.mxu0
  %v1761 = vadd.f32 %v1640, %v1760
  %v1762 = vpop.f32.mrf.mxu0
  %1763 = vmatprep.mubr.f32.mxu0 0.0
  %1764 = vmatmul.mubr.f32.gmra.mxu0 %v1677
  %v1765 = vpop.f32.mrf.mxu0
  %v1766 = vadd.f32 %v1645, %v1765
  %v1767 = vpop.f32.mrf.mxu0
  %1768 = vmatprep.mubr.f32.mxu0 0.0
  %1769 = vmatmul.mubr.f32.gmra.mxu0 %v1680
  %v1770 = vpop.f32.mrf.mxu0
  %v1771 = vadd.f32 %v1650, %v1770
  %v1772 = vpop.f32.mrf.mxu0
  %1773 = vmatprep.mubr.f32.mxu0 0.0
  %1774 = vmatmul.mubr.f32.gmra.mxu0 %v1683
  %v1775 = vpop.f32.mrf.mxu0
  %v1776 = vadd.f32 %v1655, %v1775
  %v1777 = vpop.f32.mrf.mxu0
  %1778 = vmatprep.mubr.f32.mxu0 0.0
  %1779 = vmatmul.mubr.f32.gmra.mxu0 %v1686
  %v1780 = vpop.f32.mrf.mxu0
  %v1781 = vadd.f32 %v1660, %v1780
  %v1782 = vpop.f32.mrf.mxu0
  %1783 = vmatprep.mubr.f32.mxu0 0.0
  %1784 = vmatmul.mubr.f32.gmra.mxu0 %v1689
  %v1785 = vpop.f32.mrf.mxu0
  %v1786 = vadd.f32 %v1665, %v1785
  %v1787 = vpop.f32.mrf.mxu0
  %1788 = vmatprep.mubr.f32.mxu0 0.0
  %1789 = vmatmul.mubr.f32.gmra.mxu0 %v1692
  %v1790 = vpop.f32.mrf.mxu0
  %v1791 = vadd.f32 %v1670, %v1790
  %v1792 = vpop.f32.mrf.mxu0
  %1793 = vdwg.mxu0
  %1794 = vrot.lane.b32.xlu0 %v62, 96
  %v1795 = vpop.permute.xlu0 %1794
  %1796 = vrot.lane.b32.xlu0 %v63, 96
  %v1797 = vpop.permute.xlu0 %1796
  %1798 = vrot.lane.b32.xlu0 %v64, 96
  %v1799 = vpop.permute.xlu0 %1798
  %1800 = vrot.lane.b32.xlu0 %v65, 96
  %v1801 = vpop.permute.xlu0 %1800
  %1802 = vrot.lane.b32.xlu0 %v66, 96
  %v1803 = vpop.permute.xlu0 %1802
  %1804 = vrot.lane.b32.xlu0 %v67, 96
  %v1805 = vpop.permute.xlu0 %1804
  %1806 = vrot.lane.b32.xlu0 %v68, 96
  %v1807 = vpop.permute.xlu0 %1806
  %1808 = vrot.lane.b32.xlu0 %v69, 96
  %v1809 = vpop.permute.xlu0 %1808
  %1818 = vrot.lane.b32.xlu0 %v75, 96
  %v1819 = vpop.permute.xlu0 %1818
  %1821 = vmatprep.subr.mxu0 0.0
  %1822 = vmatpush1.msra.mxu0 0.0
  %1823 = vmatprep.subr.mxu0 0.0
  %1824 = vmatpush1.msra.mxu0 0.0
  %1825 = vmatprep.subr.mxu0 0.0
  %1826 = vmatpush1.msra.mxu0 0.0
  %1827 = vmatprep.subr.mxu0 0.0
  %1828 = vmatpush1.msra.mxu0 0.0
  %1829 = vmatprep.subr.mxu0 0.0
  %1830 = vmatpush1.msra.mxu0 0.0
  %1831 = vmatprep.subr.mxu0 0.0
  %1832 = vmatpush1.msra.mxu0 0.0
  %1833 = vmatprep.subr.mxu0 0.0
  %1834 = vmatpush1.msra.mxu0 0.0
  %1835 = vmatprep.subr.mxu0 0.0
  %1836 = vmatpush1.msra.mxu0 0.0
  %1837 = vmatprep.subr.mxu0 0.0
  %1838 = vmatpush1.msra.mxu0 %v1809
  %1839 = vmatprep.subr.mxu0 0.0
  %1840 = vmatpush1.msra.mxu0 %v1807
  %1841 = vmatprep.subr.mxu0 0.0
  %1842 = vmatpush1.msra.mxu0 %v1805
  %1843 = vmatprep.subr.mxu0 0.0
  %1844 = vmatpush1.msra.mxu0 %v1803
  %1845 = vmatprep.subr.mxu0 0.0
  %1846 = vmatpush1.msra.mxu0 %v1801
  %1847 = vmatprep.subr.mxu0 0.0
  %1848 = vmatpush1.msra.mxu0 %v1799
  %1849 = vmatprep.subr.mxu0 0.0
  %1850 = vmatpush1.msra.mxu0 %v1797
  %1851 = vmatprep.subr.mxu0 0.0
  %1852 = vmatpush1.msra.mxu0 %v1795
  %1853 = vmatprep.subr.mxu0 0.0
  %1854 = vmatpush2.msra.mxu0 0.0
  %1855 = vmatprep.subr.mxu0 0.0
  %1856 = vmatpush2.msra.mxu0 0.0
  %1857 = vmatprep.subr.mxu0 0.0
  %1858 = vmatpush2.msra.mxu0 0.0
  %1859 = vmatprep.subr.mxu0 0.0
  %1860 = vmatpush2.msra.mxu0 0.0
  %1861 = vmatprep.subr.mxu0 0.0
  %1862 = vmatpush2.msra.mxu0 0.0
  %1863 = vmatprep.subr.mxu0 0.0
  %1864 = vmatpush2.msra.mxu0 0.0
  %1865 = vmatprep.subr.mxu0 0.0
  %1866 = vmatpush2.msra.mxu0 0.0
  %1867 = vmatprep.subr.mxu0 0.0
  %1868 = vmatpush2.msra.mxu0 0.0
  %1869 = vmatprep.subr.mxu0 0.0
  %1870 = vmatpush2.msra.mxu0 0.0
  %1871 = vmatprep.subr.mxu0 0.0
  %1872 = vmatpush2.msra.mxu0 0.0
  %1873 = vmatprep.subr.mxu0 0.0
  %1874 = vmatpush2.msra.mxu0 0.0
  %1875 = vmatprep.subr.mxu0 0.0
  %1876 = vmatpush2.msra.mxu0 0.0
  %1877 = vmatprep.subr.mxu0 0.0
  %1878 = vmatpush2.msra.mxu0 0.0
  %1879 = vmatprep.subr.mxu0 0.0
  %1880 = vmatpush2.msra.mxu0 0.0
  %1881 = vmatprep.subr.mxu0 0.0
  %1882 = vmatpush2.msra.mxu0 0.0
  %1883 = vmatprep.subr.mxu0 0.0
  %1884 = vmatpush2.msra.mxu0 0.0
  %1885 = vmatprep.mubr.f32.mxu0 0.0
  %1886 = vmatmul.mubr.f32.gmra.mxu0 %v79
  %v1887 = vpop.f32.mrf.mxu0
  %v1888 = vadd.f32 %v1819, %v1887
  %v1889 = vpop.f32.mrf.mxu0
  %1890 = vmatprep.mubr.f32.mxu0 0.0
  %1891 = vmatmul.mubr.f32.gmra.mxu0 %v82
  %v1892 = vpop.f32.mrf.mxu0
  %v1893 = vadd.f32 %v1819, %v1892
  %v1894 = vpop.f32.mrf.mxu0
  %1895 = vmatprep.mubr.f32.mxu0 0.0
  %1896 = vmatmul.mubr.f32.gmra.mxu0 %v85
  %v1897 = vpop.f32.mrf.mxu0
  %v1898 = vadd.f32 %v1819, %v1897
  %v1899 = vpop.f32.mrf.mxu0
  %1900 = vmatprep.mubr.f32.mxu0 0.0
  %1901 = vmatmul.mubr.f32.gmra.mxu0 %v88
  %v1902 = vpop.f32.mrf.mxu0
  %v1903 = vadd.f32 %v1819, %v1902
  %v1904 = vpop.f32.mrf.mxu0
  %1905 = vmatprep.mubr.f32.mxu0 0.0
  %1906 = vmatmul.mubr.f32.gmra.mxu0 %v91
  %v1907 = vpop.f32.mrf.mxu0
  %v1908 = vadd.f32 %v1819, %v1907
  %v1909 = vpop.f32.mrf.mxu0
  %1910 = vmatprep.mubr.f32.mxu0 0.0
  %1911 = vmatmul.mubr.f32.gmra.mxu0 %v94
  %v1912 = vpop.f32.mrf.mxu0
  %v1913 = vadd.f32 %v1819, %v1912
  %v1914 = vpop.f32.mrf.mxu0
  %1915 = vmatprep.mubr.f32.mxu0 0.0
  %1916 = vmatmul.mubr.f32.gmra.mxu0 %v97
  %v1917 = vpop.f32.mrf.mxu0
  %v1918 = vadd.f32 %v1819, %v1917
  %v1919 = vpop.f32.mrf.mxu0
  %1920 = vdwg.mxu0
  %1921 = vrot.lane.b32.xlu0 %v62, 32
  %v1922 = vpop.permute.xlu0 %1921
  %1923 = vrot.lane.b32.xlu0 %v63, 32
  %v1924 = vpop.permute.xlu0 %1923
  %1925 = vrot.lane.b32.xlu0 %v64, 32
  %v1926 = vpop.permute.xlu0 %1925
  %1927 = vrot.lane.b32.xlu0 %v65, 32
  %v1928 = vpop.permute.xlu0 %1927
  %1929 = vrot.lane.b32.xlu0 %v66, 32
  %v1930 = vpop.permute.xlu0 %1929
  %1931 = vrot.lane.b32.xlu0 %v67, 32
  %v1932 = vpop.permute.xlu0 %1931
  %1933 = vrot.lane.b32.xlu0 %v68, 32
  %v1934 = vpop.permute.xlu0 %1933
  %1935 = vrot.lane.b32.xlu0 %v69, 32
  %v1936 = vpop.permute.xlu0 %1935
  %1945 = vrot.lane.b32.xlu0 %v75, 32
  %v1946 = vpop.permute.xlu0 %1945
  %1948 = vmatprep.subr.mxu0 0.0
  %1949 = vmatpush1.msra.mxu0 0.0
  %1950 = vmatprep.subr.mxu0 0.0
  %1951 = vmatpush1.msra.mxu0 0.0
  %1952 = vmatprep.subr.mxu0 0.0
  %1953 = vmatpush1.msra.mxu0 0.0
  %1954 = vmatprep.subr.mxu0 0.0
  %1955 = vmatpush1.msra.mxu0 0.0
  %1956 = vmatprep.subr.mxu0 0.0
  %1957 = vmatpush1.msra.mxu0 0.0
  %1958 = vmatprep.subr.mxu0 0.0
  %1959 = vmatpush1.msra.mxu0 0.0
  %1960 = vmatprep.subr.mxu0 0.0
  %1961 = vmatpush1.msra.mxu0 0.0
  %1962 = vmatprep.subr.mxu0 0.0
  %1963 = vmatpush1.msra.mxu0 0.0
  %1964 = vmatprep.subr.mxu0 0.0
  %1965 = vmatpush1.msra.mxu0 %v1936
  %1966 = vmatprep.subr.mxu0 0.0
  %1967 = vmatpush1.msra.mxu0 %v1934
  %1968 = vmatprep.subr.mxu0 0.0
  %1969 = vmatpush1.msra.mxu0 %v1932
  %1970 = vmatprep.subr.mxu0 0.0
  %1971 = vmatpush1.msra.mxu0 %v1930
  %1972 = vmatprep.subr.mxu0 0.0
  %1973 = vmatpush1.msra.mxu0 %v1928
  %1974 = vmatprep.subr.mxu0 0.0
  %1975 = vmatpush1.msra.mxu0 %v1926
  %1976 = vmatprep.subr.mxu0 0.0
  %1977 = vmatpush1.msra.mxu0 %v1924
  %1978 = vmatprep.subr.mxu0 0.0
  %1979 = vmatpush1.msra.mxu0 %v1922
  %1980 = vmatprep.subr.mxu0 0.0
  %1981 = vmatpush2.msra.mxu0 0.0
  %1982 = vmatprep.subr.mxu0 0.0
  %1983 = vmatpush2.msra.mxu0 0.0
  %1984 = vmatprep.subr.mxu0 0.0
  %1985 = vmatpush2.msra.mxu0 0.0
  %1986 = vmatprep.subr.mxu0 0.0
  %1987 = vmatpush2.msra.mxu0 0.0
  %1988 = vmatprep.subr.mxu0 0.0
  %1989 = vmatpush2.msra.mxu0 0.0
  %1990 = vmatprep.subr.mxu0 0.0
  %1991 = vmatpush2.msra.mxu0 0.0
  %1992 = vmatprep.subr.mxu0 0.0
  %1993 = vmatpush2.msra.mxu0 0.0
  %1994 = vmatprep.subr.mxu0 0.0
  %1995 = vmatpush2.msra.mxu0 0.0
  %1996 = vmatprep.subr.mxu0 0.0
  %1997 = vmatpush2.msra.mxu0 0.0
  %1998 = vmatprep.subr.mxu0 0.0
  %1999 = vmatpush2.msra.mxu0 0.0
  %2000 = vmatprep.subr.mxu0 0.0
  %2001 = vmatpush2.msra.mxu0 0.0
  %2002 = vmatprep.subr.mxu0 0.0
  %2003 = vmatpush2.msra.mxu0 0.0
  %2004 = vmatprep.subr.mxu0 0.0
  %2005 = vmatpush2.msra.mxu0 0.0
  %2006 = vmatprep.subr.mxu0 0.0
  %2007 = vmatpush2.msra.mxu0 0.0
  %2008 = vmatprep.subr.mxu0 0.0
  %2009 = vmatpush2.msra.mxu0 0.0
  %2010 = vmatprep.subr.mxu0 0.0
  %2011 = vmatpush2.msra.mxu0 0.0
  %2012 = vmatprep.mubr.f32.mxu0 0.0
  %2013 = vmatmul.mubr.f32.gmra.mxu0 %v79
  %v2014 = vpop.f32.mrf.mxu0
  %v2015 = vadd.f32 %v1946, %v2014
  %v2016 = vpop.f32.mrf.mxu0
  %2017 = vmatprep.mubr.f32.mxu0 0.0
  %2018 = vmatmul.mubr.f32.gmra.mxu0 %v82
  %v2019 = vpop.f32.mrf.mxu0
  %v2020 = vadd.f32 %v1946, %v2019
  %v2021 = vpop.f32.mrf.mxu0
  %2022 = vmatprep.mubr.f32.mxu0 0.0
  %2023 = vmatmul.mubr.f32.gmra.mxu0 %v85
  %v2024 = vpop.f32.mrf.mxu0
  %v2025 = vadd.f32 %v1946, %v2024
  %v2026 = vpop.f32.mrf.mxu0
  %2027 = vmatprep.mubr.f32.mxu0 0.0
  %2028 = vmatmul.mubr.f32.gmra.mxu0 %v88
  %v2029 = vpop.f32.mrf.mxu0
  %v2030 = vadd.f32 %v1946, %v2029
  %v2031 = vpop.f32.mrf.mxu0
  %2032 = vmatprep.mubr.f32.mxu0 0.0
  %2033 = vmatmul.mubr.f32.gmra.mxu0 %v91
  %v2034 = vpop.f32.mrf.mxu0
  %v2035 = vadd.f32 %v1946, %v2034
  %v2036 = vpop.f32.mrf.mxu0
  %2037 = vmatprep.mubr.f32.mxu0 0.0
  %2038 = vmatmul.mubr.f32.gmra.mxu0 %v94
  %v2039 = vpop.f32.mrf.mxu0
  %v2040 = vadd.f32 %v1946, %v2039
  %v2041 = vpop.f32.mrf.mxu0
  %2042 = vmatprep.mubr.f32.mxu0 0.0
  %2043 = vmatmul.mubr.f32.gmra.mxu0 %v97
  %v2044 = vpop.f32.mrf.mxu0
  %v2045 = vadd.f32 %v1946, %v2044
  %v2046 = vpop.f32.mrf.mxu0
  %2047 = vdwg.mxu0
  %2048 = vrot.lane.b32.xlu0 %v334, 96
  %v2049 = vpop.permute.xlu0 %2048
  %2050 = vrot.lane.b32.xlu0 %v335, 96
  %v2051 = vpop.permute.xlu0 %2050
  %2052 = vrot.lane.b32.xlu0 %v336, 96
  %v2053 = vpop.permute.xlu0 %2052
  %2054 = vrot.lane.b32.xlu0 %v337, 96
  %v2055 = vpop.permute.xlu0 %2054
  %2056 = vrot.lane.b32.xlu0 %v338, 96
  %v2057 = vpop.permute.xlu0 %2056
  %2058 = vrot.lane.b32.xlu0 %v339, 96
  %v2059 = vpop.permute.xlu0 %2058
  %2060 = vrot.lane.b32.xlu0 %v340, 96
  %v2061 = vpop.permute.xlu0 %2060
  %2062 = vrot.lane.b32.xlu0 %v341, 96
  %v2063 = vpop.permute.xlu0 %2062
  %2072 = vrot.lane.b32.xlu0 %v347, 96
  %v2073 = vpop.permute.xlu0 %2072
  %2075 = vmatprep.subr.mxu0 0.0
  %2076 = vmatpush1.msra.mxu0 0.0
  %2077 = vmatprep.subr.mxu0 0.0
  %2078 = vmatpush1.msra.mxu0 0.0
  %2079 = vmatprep.subr.mxu0 0.0
  %2080 = vmatpush1.msra.mxu0 0.0
  %2081 = vmatprep.subr.mxu0 0.0
  %2082 = vmatpush1.msra.mxu0 0.0
  %2083 = vmatprep.subr.mxu0 0.0
  %2084 = vmatpush1.msra.mxu0 0.0
  %2085 = vmatprep.subr.mxu0 0.0
  %2086 = vmatpush1.msra.mxu0 0.0
  %2087 = vmatprep.subr.mxu0 0.0
  %2088 = vmatpush1.msra.mxu0 0.0
  %2089 = vmatprep.subr.mxu0 0.0
  %2090 = vmatpush1.msra.mxu0 0.0
  %2091 = vmatprep.subr.mxu0 0.0
  %2092 = vmatpush1.msra.mxu0 %v2063
  %2093 = vmatprep.subr.mxu0 0.0
  %2094 = vmatpush1.msra.mxu0 %v2061
  %2095 = vmatprep.subr.mxu0 0.0
  %2096 = vmatpush1.msra.mxu0 %v2059
  %2097 = vmatprep.subr.mxu0 0.0
  %2098 = vmatpush1.msra.mxu0 %v2057
  %2099 = vmatprep.subr.mxu0 0.0
  %2100 = vmatpush1.msra.mxu0 %v2055
  %2101 = vmatprep.subr.mxu0 0.0
  %2102 = vmatpush1.msra.mxu0 %v2053
  %2103 = vmatprep.subr.mxu0 0.0
  %2104 = vmatpush1.msra.mxu0 %v2051
  %2105 = vmatprep.subr.mxu0 0.0
  %2106 = vmatpush1.msra.mxu0 %v2049
  %2107 = vmatprep.subr.mxu0 0.0
  %2108 = vmatpush2.msra.mxu0 0.0
  %2109 = vmatprep.subr.mxu0 0.0
  %2110 = vmatpush2.msra.mxu0 0.0
  %2111 = vmatprep.subr.mxu0 0.0
  %2112 = vmatpush2.msra.mxu0 0.0
  %2113 = vmatprep.subr.mxu0 0.0
  %2114 = vmatpush2.msra.mxu0 0.0
  %2115 = vmatprep.subr.mxu0 0.0
  %2116 = vmatpush2.msra.mxu0 0.0
  %2117 = vmatprep.subr.mxu0 0.0
  %2118 = vmatpush2.msra.mxu0 0.0
  %2119 = vmatprep.subr.mxu0 0.0
  %2120 = vmatpush2.msra.mxu0 0.0
  %2121 = vmatprep.subr.mxu0 0.0
  %2122 = vmatpush2.msra.mxu0 0.0
  %2123 = vmatprep.subr.mxu0 0.0
  %2124 = vmatpush2.msra.mxu0 0.0
  %2125 = vmatprep.subr.mxu0 0.0
  %2126 = vmatpush2.msra.mxu0 0.0
  %2127 = vmatprep.subr.mxu0 0.0
  %2128 = vmatpush2.msra.mxu0 0.0
  %2129 = vmatprep.subr.mxu0 0.0
  %2130 = vmatpush2.msra.mxu0 0.0
  %2131 = vmatprep.subr.mxu0 0.0
  %2132 = vmatpush2.msra.mxu0 0.0
  %2133 = vmatprep.subr.mxu0 0.0
  %2134 = vmatpush2.msra.mxu0 0.0
  %2135 = vmatprep.subr.mxu0 0.0
  %2136 = vmatpush2.msra.mxu0 0.0
  %2137 = vmatprep.subr.mxu0 0.0
  %2138 = vmatpush2.msra.mxu0 0.0
  %2139 = vmatprep.mubr.f32.mxu0 0.0
  %2140 = vmatmul.mubr.f32.gmra.mxu0 %v79
  %v2141 = vpop.f32.mrf.mxu0
  %v2142 = vadd.f32 %v2073, %v2141
  %v2143 = vpop.f32.mrf.mxu0
  %2144 = vmatprep.mubr.f32.mxu0 0.0
  %2145 = vmatmul.mubr.f32.gmra.mxu0 %v82
  %v2146 = vpop.f32.mrf.mxu0
  %v2147 = vadd.f32 %v2073, %v2146
  %v2148 = vpop.f32.mrf.mxu0
  %2149 = vmatprep.mubr.f32.mxu0 0.0
  %2150 = vmatmul.mubr.f32.gmra.mxu0 %v85
  %v2151 = vpop.f32.mrf.mxu0
  %v2152 = vadd.f32 %v2073, %v2151
  %v2153 = vpop.f32.mrf.mxu0
  %2154 = vmatprep.mubr.f32.mxu0 0.0
  %2155 = vmatmul.mubr.f32.gmra.mxu0 %v88
  %v2156 = vpop.f32.mrf.mxu0
  %v2157 = vadd.f32 %v2073, %v2156
  %v2158 = vpop.f32.mrf.mxu0
  %2159 = vmatprep.mubr.f32.mxu0 0.0
  %2160 = vmatmul.mubr.f32.gmra.mxu0 %v91
  %v2161 = vpop.f32.mrf.mxu0
  %v2162 = vadd.f32 %v2073, %v2161
  %v2163 = vpop.f32.mrf.mxu0
  %2164 = vmatprep.mubr.f32.mxu0 0.0
  %2165 = vmatmul.mubr.f32.gmra.mxu0 %v94
  %v2166 = vpop.f32.mrf.mxu0
  %v2167 = vadd.f32 %v2073, %v2166
  %v2168 = vpop.f32.mrf.mxu0
  %2169 = vmatprep.mubr.f32.mxu0 0.0
  %2170 = vmatmul.mubr.f32.gmra.mxu0 %v97
  %v2171 = vpop.f32.mrf.mxu0
  %v2172 = vadd.f32 %v2073, %v2171
  %v2173 = vpop.f32.mrf.mxu0
  %2174 = vdwg.mxu0
  %v2176 = vsel %vm449, %v1888, 0
  %v2179 = vsel %vm449, %v1893, 0
  %v2182 = vsel %vm449, %v1898, 0
  %v2185 = vsel %vm449, %v1903, 0
  %v2188 = vsel %vm449, %v1908, 0
  %v2191 = vsel %vm449, %v1913, 0
  %v2194 = vsel %vm449, %v1918, 0
  %v2197 = vsel %vm449, %v2015, 0
  %v2200 = vsel %vm449, %v2020, 0
  %v2203 = vsel %vm449, %v2025, 0
  %v2206 = vsel %vm449, %v2030, 0
  %v2209 = vsel %vm449, %v2035, 0
  %v2212 = vsel %vm449, %v2040, 0
  %v2215 = vsel %vm449, %v2045, 0
  %2217 = vmatprep.subr.mxu0 0.0
  %2218 = vmatpush1.xpose.msra.mxu0 0.0
  %2219 = vmatprep.subr.mxu0 0.0
  %2220 = vmatpush1.xpose.msra.mxu0 0.0
  %2221 = vmatprep.subr.mxu0 0.0
  %2222 = vmatpush1.xpose.msra.mxu0 0.0
  %2223 = vmatprep.subr.mxu0 0.0
  %2224 = vmatpush1.xpose.msra.mxu0 0.0
  %2225 = vmatprep.subr.mxu0 0.0
  %2226 = vmatpush1.xpose.msra.mxu0 0.0
  %2227 = vmatprep.subr.mxu0 0.0
  %2228 = vmatpush1.xpose.msra.mxu0 0.0
  %2229 = vmatprep.subr.mxu0 0.0
  %2230 = vmatpush1.xpose.msra.mxu0 0.0
  %2231 = vmatprep.subr.mxu0 0.0
  %2232 = vmatpush1.xpose.msra.mxu0 0.0
  %2233 = vmatprep.subr.mxu0 0.0
  %2234 = vmatpush1.xpose.msra.mxu0 0.0
  %2235 = vmatprep.subr.mxu0 0.0
  %2236 = vmatpush1.xpose.msra.mxu0 %v2215
  %2237 = vmatprep.subr.mxu0 0.0
  %2238 = vmatpush1.xpose.msra.mxu0 %v2212
  %2239 = vmatprep.subr.mxu0 0.0
  %2240 = vmatpush1.xpose.msra.mxu0 %v2209
  %2241 = vmatprep.subr.mxu0 0.0
  %2242 = vmatpush1.xpose.msra.mxu0 %v2206
  %2243 = vmatprep.subr.mxu0 0.0
  %2244 = vmatpush1.xpose.msra.mxu0 %v2203
  %2245 = vmatprep.subr.mxu0 0.0
  %2246 = vmatpush1.xpose.msra.mxu0 %v2200
  %2247 = vmatprep.subr.mxu0 0.0
  %2248 = vmatpush1.xpose.msra.mxu0 %v2197
  %2249 = vmatprep.subr.mxu0 0.0
  %2250 = vmatpush2.xpose.msra.mxu0 0.0
  %2251 = vmatprep.subr.mxu0 0.0
  %2252 = vmatpush2.xpose.msra.mxu0 0.0
  %2253 = vmatprep.subr.mxu0 0.0
  %2254 = vmatpush2.xpose.msra.mxu0 0.0
  %2255 = vmatprep.subr.mxu0 0.0
  %2256 = vmatpush2.xpose.msra.mxu0 0.0
  %2257 = vmatprep.subr.mxu0 0.0
  %2258 = vmatpush2.xpose.msra.mxu0 0.0
  %2259 = vmatprep.subr.mxu0 0.0
  %2260 = vmatpush2.xpose.msra.mxu0 0.0
  %2261 = vmatprep.subr.mxu0 0.0
  %2262 = vmatpush2.xpose.msra.mxu0 0.0
  %2263 = vmatprep.subr.mxu0 0.0
  %2264 = vmatpush2.xpose.msra.mxu0 0.0
  %2265 = vmatprep.subr.mxu0 0.0
  %2266 = vmatpush2.xpose.msra.mxu0 0.0
  %2267 = vmatprep.subr.mxu0 0.0
  %2268 = vmatpush2.xpose.msra.mxu0 0.0
  %2269 = vmatprep.subr.mxu0 0.0
  %2270 = vmatpush2.xpose.msra.mxu0 0.0
  %2271 = vmatprep.subr.mxu0 0.0
  %2272 = vmatpush2.xpose.msra.mxu0 0.0
  %2273 = vmatprep.subr.mxu0 0.0
  %2274 = vmatpush2.xpose.msra.mxu0 0.0
  %2275 = vmatprep.subr.mxu0 0.0
  %2276 = vmatpush2.xpose.msra.mxu0 0.0
  %2277 = vmatprep.subr.mxu0 0.0
  %2278 = vmatpush2.xpose.msra.mxu0 0.0
  %2279 = vmatprep.subr.mxu0 0.0
  %2280 = vmatpush2.xpose.msra.mxu0 0.0
  %2281 = vmatprep.mubr.f32.mxu0 0.0
  %2282 = vmatmul.mubr.f32.gmra.mxu0 %v2176
  %v2283 = vpop.f32.mrf.mxu0
  %v2284 = vadd.f32 0.0, %v2283
  %v2285 = vpop.f32.mrf.mxu0
  %2286 = vmatprep.mubr.f32.mxu0 0.0
  %2287 = vmatmul.mubr.f32.gmra.mxu0 %v2179
  %v2288 = vpop.f32.mrf.mxu0
  %v2289 = vadd.f32 0.0, %v2288
  %v2290 = vpop.f32.mrf.mxu0
  %2291 = vmatprep.mubr.f32.mxu0 0.0
  %2292 = vmatmul.mubr.f32.gmra.mxu0 %v2182
  %v2293 = vpop.f32.mrf.mxu0
  %v2294 = vadd.f32 0.0, %v2293
  %v2295 = vpop.f32.mrf.mxu0
  %2296 = vmatprep.mubr.f32.mxu0 0.0
  %2297 = vmatmul.mubr.f32.gmra.mxu0 %v2185
  %v2298 = vpop.f32.mrf.mxu0
  %v2299 = vadd.f32 0.0, %v2298
  %v2300 = vpop.f32.mrf.mxu0
  %2301 = vmatprep.mubr.f32.mxu0 0.0
  %2302 = vmatmul.mubr.f32.gmra.mxu0 %v2188
  %v2303 = vpop.f32.mrf.mxu0
  %v2304 = vadd.f32 0.0, %v2303
  %v2305 = vpop.f32.mrf.mxu0
  %2306 = vmatprep.mubr.f32.mxu0 0.0
  %2307 = vmatmul.mubr.f32.gmra.mxu0 %v2191
  %v2308 = vpop.f32.mrf.mxu0
  %v2309 = vadd.f32 0.0, %v2308
  %v2310 = vpop.f32.mrf.mxu0
  %2311 = vmatprep.mubr.f32.mxu0 0.0
  %2312 = vmatmul.mubr.f32.gmra.mxu0 %v2194
  %v2313 = vpop.f32.mrf.mxu0
  %v2314 = vadd.f32 0.0, %v2313
  %v2315 = vpop.f32.mrf.mxu0
  %2316 = vdwg.mxu0
  %v2317 = vmul.f32 %v2284, 0.25
  %v2318 = vmul.f32 %v2289, 0.25
  %v2319 = vmul.f32 %v2294, 0.25
  %v2320 = vmul.f32 %v2299, 0.25
  %v2321 = vmul.f32 %v2304, 0.25
  %v2322 = vmul.f32 %v2309, 0.25
  %v2323 = vmul.f32 %v2314, 0.25
  %v2324 = vadd.f32 %v2317, %v55
  %v2325 = vadd.f32 %v2318, %v56
  %v2326 = vadd.f32 %v2319, %v57
  %v2327 = vadd.f32 %v2320, %v58
  %v2328 = vadd.f32 %v2321, %v59
  %v2329 = vadd.f32 %v2322, %v60
  %v2330 = vadd.f32 %v2323, %v61
  %v2331 = vsel %vm606, %v2324, -inf
  %2332 = vmax.xlane.f32.xlu0 %v2331
  %v2333 = vpop.xlane.xlu0 %2332
  %v2334 = vsel %vm606, %v2325, -inf
  %2335 = vmax.xlane.f32.xlu0 %v2334
  %v2336 = vpop.xlane.xlu0 %2335
  %v2337 = vsel %vm606, %v2326, -inf
  %2338 = vmax.xlane.f32.xlu0 %v2337
  %v2339 = vpop.xlane.xlu0 %2338
  %v2340 = vsel %vm606, %v2327, -inf
  %2341 = vmax.xlane.f32.xlu0 %v2340
  %v2342 = vpop.xlane.xlu0 %2341
  %v2343 = vsel %vm606, %v2328, -inf
  %2344 = vmax.xlane.f32.xlu0 %v2343
  %v2345 = vpop.xlane.xlu0 %2344
  %v2346 = vsel %vm606, %v2329, -inf
  %2347 = vmax.xlane.f32.xlu0 %v2346
  %v2348 = vpop.xlane.xlu0 %2347
  %v2349 = vsel %vm606, %v2330, -inf
  %2350 = vmax.xlane.f32.xlu0 %v2349
  %v2351 = vpop.xlane.xlu0 %2350
  %v2352 = vsub.f32 %v2324, %v2333
  %v2353 = vsub.f32 %v2325, %v2336
  %v2354 = vsub.f32 %v2326, %v2339
  %v2355 = vsub.f32 %v2327, %v2342
  %v2356 = vsub.f32 %v2328, %v2345
  %v2357 = vsub.f32 %v2329, %v2348
  %v2358 = vsub.f32 %v2330, %v2351
  %v2359 = vmul.f32 %v2352, 1.442695
  %v2360 = vpow.pop %v2359
  %v2361 = vmul.f32 %v2353, 1.442695
  %v2362 = vpow.pop %v2361
  %v2363 = vmul.f32 %v2354, 1.442695
  %v2364 = vpow.pop %v2363
  %v2365 = vmul.f32 %v2355, 1.442695
  %v2366 = vpow.pop %v2365
  %v2367 = vmul.f32 %v2356, 1.442695
  %v2368 = vpow.pop %v2367
  %v2369 = vmul.f32 %v2357, 1.442695
  %v2370 = vpow.pop %v2369
  %v2371 = vmul.f32 %v2358, 1.442695
  %v2372 = vpow.pop %v2371
  %v2373 = vsel %vm606, %v2360, 0.0
  %2374 = vadd.xlane.f32.xlu0 %v2373
  %v2375 = vpop.xlane.xlu0 %2374
  %v2376 = vsel %vm606, %v2362, 0.0
  %2377 = vadd.xlane.f32.xlu0 %v2376
  %v2378 = vpop.xlane.xlu0 %2377
  %v2379 = vsel %vm606, %v2364, 0.0
  %2380 = vadd.xlane.f32.xlu0 %v2379
  %v2381 = vpop.xlane.xlu0 %2380
  %v2382 = vsel %vm606, %v2366, 0.0
  %2383 = vadd.xlane.f32.xlu0 %v2382
  %v2384 = vpop.xlane.xlu0 %2383
  %v2385 = vsel %vm606, %v2368, 0.0
  %2386 = vadd.xlane.f32.xlu0 %v2385
  %v2387 = vpop.xlane.xlu0 %2386
  %v2388 = vsel %vm606, %v2370, 0.0
  %2389 = vadd.xlane.f32.xlu0 %v2388
  %v2390 = vpop.xlane.xlu0 %2389
  %v2391 = vsel %vm606, %v2372, 0.0
  %2392 = vadd.xlane.f32.xlu0 %v2391
  %v2393 = vpop.xlane.xlu0 %2392
  %v2394 = vrcp.pop %v2375
  %v2395 = vmul.f32 %v2360, %v2394
  %v2396 = vrcp.pop %v2378
  %v2397 = vmul.f32 %v2362, %v2396
  %v2398 = vrcp.pop %v2381
  %v2399 = vmul.f32 %v2364, %v2398
  %v2400 = vrcp.pop %v2384
  %v2401 = vmul.f32 %v2366, %v2400
  %v2402 = vrcp.pop %v2387
  %v2403 = vmul.f32 %v2368, %v2402
  %v2404 = vrcp.pop %v2390
  %v2405 = vmul.f32 %v2370, %v2404
  %v2406 = vrcp.pop %v2393
  %v2407 = vmul.f32 %v2372, %v2406
  %v2409 = vsel %vm606, %v2395, 0
  %v2412 = vsel %vm606, %v2397, 0
  %v2415 = vsel %vm606, %v2399, 0
  %v2418 = vsel %vm606, %v2401, 0
  %v2421 = vsel %vm606, %v2403, 0
  %v2424 = vsel %vm606, %v2405, 0
  %v2427 = vsel %vm606, %v2407, 0
  %2429 = vmatprep.subr.mxu0 0.0
  %2430 = vmatpush1.msra.mxu0 0.0
  %2431 = vmatprep.subr.mxu0 0.0
  %2432 = vmatpush1.msra.mxu0 0.0
  %2433 = vmatprep.subr.mxu0 0.0
  %2434 = vmatpush1.msra.mxu0 0.0
  %2435 = vmatprep.subr.mxu0 0.0
  %2436 = vmatpush1.msra.mxu0 0.0
  %2437 = vmatprep.subr.mxu0 0.0
  %2438 = vmatpush1.msra.mxu0 0.0
  %2439 = vmatprep.subr.mxu0 0.0
  %2440 = vmatpush1.msra.mxu0 0.0
  %2441 = vmatprep.subr.mxu0 0.0
  %2442 = vmatpush1.msra.mxu0 0.0
  %2443 = vmatprep.subr.mxu0 0.0
  %2444 = vmatpush1.msra.mxu0 0.0
  %2445 = vmatprep.subr.mxu0 0.0
  %2446 = vmatpush1.msra.mxu0 0.0
  %2447 = vmatprep.subr.mxu0 0.0
  %2448 = vmatpush1.msra.mxu0 %v2172
  %2449 = vmatprep.subr.mxu0 0.0
  %2450 = vmatpush1.msra.mxu0 %v2167
  %2451 = vmatprep.subr.mxu0 0.0
  %2452 = vmatpush1.msra.mxu0 %v2162
  %2453 = vmatprep.subr.mxu0 0.0
  %2454 = vmatpush1.msra.mxu0 %v2157
  %2455 = vmatprep.subr.mxu0 0.0
  %2456 = vmatpush1.msra.mxu0 %v2152
  %2457 = vmatprep.subr.mxu0 0.0
  %2458 = vmatpush1.msra.mxu0 %v2147
  %2459 = vmatprep.subr.mxu0 0.0
  %2460 = vmatpush1.msra.mxu0 %v2142
  %2461 = vmatprep.subr.mxu0 0.0
  %2462 = vmatpush2.msra.mxu0 0.0
  %2463 = vmatprep.subr.mxu0 0.0
  %2464 = vmatpush2.msra.mxu0 0.0
  %2465 = vmatprep.subr.mxu0 0.0
  %2466 = vmatpush2.msra.mxu0 0.0
  %2467 = vmatprep.subr.mxu0 0.0
  %2468 = vmatpush2.msra.mxu0 0.0
  %2469 = vmatprep.subr.mxu0 0.0
  %2470 = vmatpush2.msra.mxu0 0.0
  %2471 = vmatprep.subr.mxu0 0.0
  %2472 = vmatpush2.msra.mxu0 0.0
  %2473 = vmatprep.subr.mxu0 0.0
  %2474 = vmatpush2.msra.mxu0 0.0
  %2475 = vmatprep.subr.mxu0 0.0
  %2476 = vmatpush2.msra.mxu0 0.0
  %2477 = vmatprep.subr.mxu0 0.0
  %2478 = vmatpush2.msra.mxu0 0.0
  %2479 = vmatprep.subr.mxu0 0.0
  %2480 = vmatpush2.msra.mxu0 0.0
  %2481 = vmatprep.subr.mxu0 0.0
  %2482 = vmatpush2.msra.mxu0 0.0
  %2483 = vmatprep.subr.mxu0 0.0
  %2484 = vmatpush2.msra.mxu0 0.0
  %2485 = vmatprep.subr.mxu0 0.0
  %2486 = vmatpush2.msra.mxu0 0.0
  %2487 = vmatprep.subr.mxu0 0.0
  %2488 = vmatpush2.msra.mxu0 0.0
  %2489 = vmatprep.subr.mxu0 0.0
  %2490 = vmatpush2.msra.mxu0 0.0
  %2491 = vmatprep.subr.mxu0 0.0
  %2492 = vmatpush2.msra.mxu0 0.0
  %2493 = vmatprep.mubr.f32.mxu0 0.0
  %2494 = vmatmul.mubr.f32.gmra.mxu0 %v2409
  %v2495 = vpop.f32.mrf.mxu0
  %v2496 = vadd.f32 0.0, %v2495
  %v2497 = vpop.f32.mrf.mxu0
  %2498 = vmatprep.mubr.f32.mxu0 0.0
  %2499 = vmatmul.mubr.f32.gmra.mxu0 %v2412
  %v2500 = vpop.f32.mrf.mxu0
  %v2501 = vadd.f32 0.0, %v2500
  %v2502 = vpop.f32.mrf.mxu0
  %2503 = vmatprep.mubr.f32.mxu0 0.0
  %2504 = vmatmul.mubr.f32.gmra.mxu0 %v2415
  %v2505 = vpop.f32.mrf.mxu0
  %v2506 = vadd.f32 0.0, %v2505
  %v2507 = vpop.f32.mrf.mxu0
  %2508 = vmatprep.mubr.f32.mxu0 0.0
  %2509 = vmatmul.mubr.f32.gmra.mxu0 %v2418
  %v2510 = vpop.f32.mrf.mxu0
  %v2511 = vadd.f32 0.0, %v2510
  %v2512 = vpop.f32.mrf.mxu0
  %2513 = vmatprep.mubr.f32.mxu0 0.0
  %2514 = vmatmul.mubr.f32.gmra.mxu0 %v2421
  %v2515 = vpop.f32.mrf.mxu0
  %v2516 = vadd.f32 0.0, %v2515
  %v2517 = vpop.f32.mrf.mxu0
  %2518 = vmatprep.mubr.f32.mxu0 0.0
  %2519 = vmatmul.mubr.f32.gmra.mxu0 %v2424
  %v2520 = vpop.f32.mrf.mxu0
  %v2521 = vadd.f32 0.0, %v2520
  %v2522 = vpop.f32.mrf.mxu0
  %2523 = vmatprep.mubr.f32.mxu0 0.0
  %2524 = vmatmul.mubr.f32.gmra.mxu0 %v2427
  %v2525 = vpop.f32.mrf.mxu0
  %v2526 = vadd.f32 0.0, %v2525
  %v2527 = vpop.f32.mrf.mxu0
  %2528 = vdwg.mxu0
  %v2529 = vld [vmem:[%s4 + $0x20] sm:$0xff]
  %v2530 = vld [vmem:[%s4 + $0x28] sm:$0xff]
  %v2532 = vsel %vm449, %v2496, 0
  %v2535 = vsel %vm449, %v2501, 0
  %v2538 = vsel %vm449, %v2506, 0
  %v2541 = vsel %vm449, %v2511, 0
  %v2544 = vsel %vm449, %v2516, 0
  %v2547 = vsel %vm449, %v2521, 0
  %v2550 = vsel %vm449, %v2526, 0
  %2552 = vmatprep.subr.mxu0 0.0
  %2553 = vmatpush1.msra.mxu0 0.0
  %2554 = vmatprep.subr.mxu0 0.0
  %2555 = vmatpush1.msra.mxu0 0.0
  %2556 = vmatprep.subr.mxu0 0.0
  %2557 = vmatpush1.msra.mxu0 0.0
  %2558 = vmatprep.subr.mxu0 0.0
  %2559 = vmatpush1.msra.mxu0 0.0
  %2560 = vmatprep.subr.mxu0 0.0
  %2561 = vmatpush1.msra.mxu0 0.0
  %2562 = vmatprep.subr.mxu0 0.0
  %2563 = vmatpush1.msra.mxu0 0.0
  %2564 = vmatprep.subr.mxu0 0.0
  %2565 = vmatpush1.msra.mxu0 0.0
  %2566 = vmatprep.subr.mxu0 0.0
  %2567 = vmatpush1.msra.mxu0 0.0
  %2568 = vmatprep.subr.mxu0 0.0
  %2569 = vmatpush1.msra.mxu0 0.0
  %2570 = vmatprep.subr.mxu0 0.0
  %2571 = vmatpush1.msra.mxu0 0.0
  %2572 = vmatprep.subr.mxu0 0.0
  %2573 = vmatpush1.msra.mxu0 0.0
  %2574 = vmatprep.subr.mxu0 0.0
  %2575 = vmatpush1.msra.mxu0 0.0
  %2576 = vmatprep.subr.mxu0 0.0
  %2577 = vmatpush1.msra.mxu0 0.0
  %2578 = vmatprep.subr.mxu0 0.0
  %2579 = vmatpush1.msra.mxu0 0.0
  %2580 = vmatprep.subr.mxu0 0.0
  %2581 = vmatpush1.msra.mxu0 %v2530
  %2582 = vmatprep.subr.mxu0 0.0
  %2583 = vmatpush1.msra.mxu0 %v2529
  %2584 = vmatprep.subr.mxu0 0.0
  %2585 = vmatpush2.msra.mxu0 0.0
  %2586 = vmatprep.subr.mxu0 0.0
  %2587 = vmatpush2.msra.mxu0 0.0
  %2588 = vmatprep.subr.mxu0 0.0
  %2589 = vmatpush2.msra.mxu0 0.0
  %2590 = vmatprep.subr.mxu0 0.0
  %2591 = vmatpush2.msra.mxu0 0.0
  %2592 = vmatprep.subr.mxu0 0.0
  %2593 = vmatpush2.msra.mxu0 0.0
  %2594 = vmatprep.subr.mxu0 0.0
  %2595 = vmatpush2.msra.mxu0 0.0
  %2596 = vmatprep.subr.mxu0 0.0
  %2597 = vmatpush2.msra.mxu0 0.0
  %2598 = vmatprep.subr.mxu0 0.0
  %2599 = vmatpush2.msra.mxu0 0.0
  %2600 = vmatprep.subr.mxu0 0.0
  %2601 = vmatpush2.msra.mxu0 0.0
  %2602 = vmatprep.subr.mxu0 0.0
  %2603 = vmatpush2.msra.mxu0 0.0
  %2604 = vmatprep.subr.mxu0 0.0
  %2605 = vmatpush2.msra.mxu0 0.0
  %2606 = vmatprep.subr.mxu0 0.0
  %2607 = vmatpush2.msra.mxu0 0.0
  %2608 = vmatprep.subr.mxu0 0.0
  %2609 = vmatpush2.msra.mxu0 0.0
  %2610 = vmatprep.subr.mxu0 0.0
  %2611 = vmatpush2.msra.mxu0 0.0
  %2612 = vmatprep.subr.mxu0 0.0
  %2613 = vmatpush2.msra.mxu0 0.0
  %2614 = vmatprep.subr.mxu0 0.0
  %2615 = vmatpush2.msra.mxu0 0.0
  %2616 = vmatprep.mubr.f32.mxu0 0.0
  %2617 = vmatmul.mubr.f32.gmra.mxu0 %v2532
  %v2618 = vpop.f32.mrf.mxu0
  %v2619 = vadd.f32 0.0, %v2618
  %v2620 = vpop.f32.mrf.mxu0
  %2621 = vmatprep.mubr.f32.mxu0 0.0
  %2622 = vmatmul.mubr.f32.gmra.mxu0 %v2535
  %v2623 = vpop.f32.mrf.mxu0
  %v2624 = vadd.f32 0.0, %v2623
  %v2625 = vpop.f32.mrf.mxu0
  %2626 = vmatprep.mubr.f32.mxu0 0.0
  %2627 = vmatmul.mubr.f32.gmra.mxu0 %v2538
  %v2628 = vpop.f32.mrf.mxu0
  %v2629 = vadd.f32 0.0, %v2628
  %v2630 = vpop.f32.mrf.mxu0
  %2631 = vmatprep.mubr.f32.mxu0 0.0
  %2632 = vmatmul.mubr.f32.gmra.mxu0 %v2541
  %v2633 = vpop.f32.mrf.mxu0
  %v2634 = vadd.f32 0.0, %v2633
  %v2635 = vpop.f32.mrf.mxu0
  %2636 = vmatprep.mubr.f32.mxu0 0.0
  %2637 = vmatmul.mubr.f32.gmra.mxu0 %v2544
  %v2638 = vpop.f32.mrf.mxu0
  %v2639 = vadd.f32 0.0, %v2638
  %v2640 = vpop.f32.mrf.mxu0
  %2641 = vmatprep.mubr.f32.mxu0 0.0
  %2642 = vmatmul.mubr.f32.gmra.mxu0 %v2547
  %v2643 = vpop.f32.mrf.mxu0
  %v2644 = vadd.f32 0.0, %v2643
  %v2645 = vpop.f32.mrf.mxu0
  %2646 = vmatprep.mubr.f32.mxu0 0.0
  %2647 = vmatmul.mubr.f32.gmra.mxu0 %v2550
  %v2648 = vpop.f32.mrf.mxu0
  %v2649 = vadd.f32 0.0, %v2648
  %v2650 = vpop.f32.mrf.mxu0
  %2651 = vdwg.mxu0
  %v2652 = vadd.f32 %v1761, %v2619
  %v2653 = vadd.f32 %v1766, %v2624
  %v2654 = vadd.f32 %v1771, %v2629
  %v2655 = vadd.f32 %v1776, %v2634
  %v2656 = vadd.f32 %v1781, %v2639
  %v2657 = vadd.f32 %v1786, %v2644
  %v2658 = vadd.f32 %v1791, %v2649
  %2659 = vrot.lane.b32.xlu0 %v62, 80
  %v2660 = vpop.permute.xlu0 %2659
  %2661 = vrot.lane.b32.xlu0 %v63, 80
  %v2662 = vpop.permute.xlu0 %2661
  %2663 = vrot.lane.b32.xlu0 %v64, 80
  %v2664 = vpop.permute.xlu0 %2663
  %2665 = vrot.lane.b32.xlu0 %v65, 80
  %v2666 = vpop.permute.xlu0 %2665
  %2667 = vrot.lane.b32.xlu0 %v66, 80
  %v2668 = vpop.permute.xlu0 %2667
  %2669 = vrot.lane.b32.xlu0 %v67, 80
  %v2670 = vpop.permute.xlu0 %2669
  %2671 = vrot.lane.b32.xlu0 %v68, 80
  %v2672 = vpop.permute.xlu0 %2671
  %2673 = vrot.lane.b32.xlu0 %v69, 80
  %v2674 = vpop.permute.xlu0 %2673
  %2683 = vrot.lane.b32.xlu0 %v75, 80
  %v2684 = vpop.permute.xlu0 %2683
  %2686 = vmatprep.subr.mxu0 0.0
  %2687 = vmatpush1.msra.mxu0 0.0
  %2688 = vmatprep.subr.mxu0 0.0
  %2689 = vmatpush1.msra.mxu0 0.0
  %2690 = vmatprep.subr.mxu0 0.0
  %2691 = vmatpush1.msra.mxu0 0.0
  %2692 = vmatprep.subr.mxu0 0.0
  %2693 = vmatpush1.msra.mxu0 0.0
  %2694 = vmatprep.subr.mxu0 0.0
  %2695 = vmatpush1.msra.mxu0 0.0
  %2696 = vmatprep.subr.mxu0 0.0
  %2697 = vmatpush1.msra.mxu0 0.0
  %2698 = vmatprep.subr.mxu0 0.0
  %2699 = vmatpush1.msra.mxu0 0.0
  %2700 = vmatprep.subr.mxu0 0.0
  %2701 = vmatpush1.msra.mxu0 0.0
  %2702 = vmatprep.subr.mxu0 0.0
  %2703 = vmatpush1.msra.mxu0 %v2674
  %2704 = vmatprep.subr.mxu0 0.0
  %2705 = vmatpush1.msra.mxu0 %v2672
  %2706 = vmatprep.subr.mxu0 0.0
  %2707 = vmatpush1.msra.mxu0 %v2670
  %2708 = vmatprep.subr.mxu0 0.0
  %2709 = vmatpush1.msra.mxu0 %v2668
  %2710 = vmatprep.subr.mxu0 0.0
  %2711 = vmatpush1.msra.mxu0 %v2666
  %2712 = vmatprep.subr.mxu0 0.0
  %2713 = vmatpush1.msra.mxu0 %v2664
  %2714 = vmatprep.subr.mxu0 0.0
  %2715 = vmatpush1.msra.mxu0 %v2662
  %2716 = vmatprep.subr.mxu0 0.0
  %2717 = vmatpush1.msra.mxu0 %v2660
  %2718 = vmatprep.subr.mxu0 0.0
  %2719 = vmatpush2.msra.mxu0 0.0
  %2720 = vmatprep.subr.mxu0 0.0
  %2721 = vmatpush2.msra.mxu0 0.0
  %2722 = vmatprep.subr.mxu0 0.0
  %2723 = vmatpush2.msra.mxu0 0.0
  %2724 = vmatprep.subr.mxu0 0.0
  %2725 = vmatpush2.msra.mxu0 0.0
  %2726 = vmatprep.subr.mxu0 0.0
  %2727 = vmatpush2.msra.mxu0 0.0
  %2728 = vmatprep.subr.mxu0 0.0
  %2729 = vmatpush2.msra.mxu0 0.0
  %2730 = vmatprep.subr.mxu0 0.0
  %2731 = vmatpush2.msra.mxu0 0.0
  %2732 = vmatprep.subr.mxu0 0.0
  %2733 = vmatpush2.msra.mxu0 0.0
  %2734 = vmatprep.subr.mxu0 0.0
  %2735 = vmatpush2.msra.mxu0 0.0
  %2736 = vmatprep.subr.mxu0 0.0
  %2737 = vmatpush2.msra.mxu0 0.0
  %2738 = vmatprep.subr.mxu0 0.0
  %2739 = vmatpush2.msra.mxu0 0.0
  %2740 = vmatprep.subr.mxu0 0.0
  %2741 = vmatpush2.msra.mxu0 0.0
  %2742 = vmatprep.subr.mxu0 0.0
  %2743 = vmatpush2.msra.mxu0 0.0
  %2744 = vmatprep.subr.mxu0 0.0
  %2745 = vmatpush2.msra.mxu0 0.0
  %2746 = vmatprep.subr.mxu0 0.0
  %2747 = vmatpush2.msra.mxu0 0.0
  %2748 = vmatprep.subr.mxu0 0.0
  %2749 = vmatpush2.msra.mxu0 0.0
  %2750 = vmatprep.mubr.f32.mxu0 0.0
  %2751 = vmatmul.mubr.f32.gmra.mxu0 %v79
  %v2752 = vpop.f32.mrf.mxu0
  %v2753 = vadd.f32 %v2684, %v2752
  %v2754 = vpop.f32.mrf.mxu0
  %2755 = vmatprep.mubr.f32.mxu0 0.0
  %2756 = vmatmul.mubr.f32.gmra.mxu0 %v82
  %v2757 = vpop.f32.mrf.mxu0
  %v2758 = vadd.f32 %v2684, %v2757
  %v2759 = vpop.f32.mrf.mxu0
  %2760 = vmatprep.mubr.f32.mxu0 0.0
  %2761 = vmatmul.mubr.f32.gmra.mxu0 %v85
  %v2762 = vpop.f32.mrf.mxu0
  %v2763 = vadd.f32 %v2684, %v2762
  %v2764 = vpop.f32.mrf.mxu0
  %2765 = vmatprep.mubr.f32.mxu0 0.0
  %2766 = vmatmul.mubr.f32.gmra.mxu0 %v88
  %v2767 = vpop.f32.mrf.mxu0
  %v2768 = vadd.f32 %v2684, %v2767
  %v2769 = vpop.f32.mrf.mxu0
  %2770 = vmatprep.mubr.f32.mxu0 0.0
  %2771 = vmatmul.mubr.f32.gmra.mxu0 %v91
  %v2772 = vpop.f32.mrf.mxu0
  %v2773 = vadd.f32 %v2684, %v2772
  %v2774 = vpop.f32.mrf.mxu0
  %2775 = vmatprep.mubr.f32.mxu0 0.0
  %2776 = vmatmul.mubr.f32.gmra.mxu0 %v94
  %v2777 = vpop.f32.mrf.mxu0
  %v2778 = vadd.f32 %v2684, %v2777
  %v2779 = vpop.f32.mrf.mxu0
  %2780 = vmatprep.mubr.f32.mxu0 0.0
  %2781 = vmatmul.mubr.f32.gmra.mxu0 %v97
  %v2782 = vpop.f32.mrf.mxu0
  %v2783 = vadd.f32 %v2684, %v2782
  %v2784 = vpop.f32.mrf.mxu0
  %2785 = vdwg.mxu0
  %2786 = vrot.lane.b32.xlu0 %v62, 16
  %v2787 = vpop.permute.xlu0 %2786
  %2788 = vrot.lane.b32.xlu0 %v63, 16
  %v2789 = vpop.permute.xlu0 %2788
  %2790 = vrot.lane.b32.xlu0 %v64, 16
  %v2791 = vpop.permute.xlu0 %2790
  %2792 = vrot.lane.b32.xlu0 %v65, 16
  %v2793 = vpop.permute.xlu0 %2792
  %2794 = vrot.lane.b32.xlu0 %v66, 16
  %v2795 = vpop.permute.xlu0 %2794
  %2796 = vrot.lane.b32.xlu0 %v67, 16
  %v2797 = vpop.permute.xlu0 %2796
  %2798 = vrot.lane.b32.xlu0 %v68, 16
  %v2799 = vpop.permute.xlu0 %2798
  %2800 = vrot.lane.b32.xlu0 %v69, 16
  %v2801 = vpop.permute.xlu0 %2800
  %2810 = vrot.lane.b32.xlu0 %v75, 16
  %v2811 = vpop.permute.xlu0 %2810
  %2813 = vmatprep.subr.mxu0 0.0
  %2814 = vmatpush1.msra.mxu0 0.0
  %2815 = vmatprep.subr.mxu0 0.0
  %2816 = vmatpush1.msra.mxu0 0.0
  %2817 = vmatprep.subr.mxu0 0.0
  %2818 = vmatpush1.msra.mxu0 0.0
  %2819 = vmatprep.subr.mxu0 0.0
  %2820 = vmatpush1.msra.mxu0 0.0
  %2821 = vmatprep.subr.mxu0 0.0
  %2822 = vmatpush1.msra.mxu0 0.0
  %2823 = vmatprep.subr.mxu0 0.0
  %2824 = vmatpush1.msra.mxu0 0.0
  %2825 = vmatprep.subr.mxu0 0.0
  %2826 = vmatpush1.msra.mxu0 0.0
  %2827 = vmatprep.subr.mxu0 0.0
  %2828 = vmatpush1.msra.mxu0 0.0
  %2829 = vmatprep.subr.mxu0 0.0
  %2830 = vmatpush1.msra.mxu0 %v2801
  %2831 = vmatprep.subr.mxu0 0.0
  %2832 = vmatpush1.msra.mxu0 %v2799
  %2833 = vmatprep.subr.mxu0 0.0
  %2834 = vmatpush1.msra.mxu0 %v2797
  %2835 = vmatprep.subr.mxu0 0.0
  %2836 = vmatpush1.msra.mxu0 %v2795
  %2837 = vmatprep.subr.mxu0 0.0
  %2838 = vmatpush1.msra.mxu0 %v2793
  %2839 = vmatprep.subr.mxu0 0.0
  %2840 = vmatpush1.msra.mxu0 %v2791
  %2841 = vmatprep.subr.mxu0 0.0
  %2842 = vmatpush1.msra.mxu0 %v2789
  %2843 = vmatprep.subr.mxu0 0.0
  %2844 = vmatpush1.msra.mxu0 %v2787
  %2845 = vmatprep.subr.mxu0 0.0
  %2846 = vmatpush2.msra.mxu0 0.0
  %2847 = vmatprep.subr.mxu0 0.0
  %2848 = vmatpush2.msra.mxu0 0.0
  %2849 = vmatprep.subr.mxu0 0.0
  %2850 = vmatpush2.msra.mxu0 0.0
  %2851 = vmatprep.subr.mxu0 0.0
  %2852 = vmatpush2.msra.mxu0 0.0
  %2853 = vmatprep.subr.mxu0 0.0
  %2854 = vmatpush2.msra.mxu0 0.0
  %2855 = vmatprep.subr.mxu0 0.0
  %2856 = vmatpush2.msra.mxu0 0.0
  %2857 = vmatprep.subr.mxu0 0.0
  %2858 = vmatpush2.msra.mxu0 0.0
  %2859 = vmatprep.subr.mxu0 0.0
  %2860 = vmatpush2.msra.mxu0 0.0
  %2861 = vmatprep.subr.mxu0 0.0
  %2862 = vmatpush2.msra.mxu0 0.0
  %2863 = vmatprep.subr.mxu0 0.0
  %2864 = vmatpush2.msra.mxu0 0.0
  %2865 = vmatprep.subr.mxu0 0.0
  %2866 = vmatpush2.msra.mxu0 0.0
  %2867 = vmatprep.subr.mxu0 0.0
  %2868 = vmatpush2.msra.mxu0 0.0
  %2869 = vmatprep.subr.mxu0 0.0
  %2870 = vmatpush2.msra.mxu0 0.0
  %2871 = vmatprep.subr.mxu0 0.0
  %2872 = vmatpush2.msra.mxu0 0.0
  %2873 = vmatprep.subr.mxu0 0.0
  %2874 = vmatpush2.msra.mxu0 0.0
  %2875 = vmatprep.subr.mxu0 0.0
  %2876 = vmatpush2.msra.mxu0 0.0
  %2877 = vmatprep.mubr.f32.mxu0 0.0
  %2878 = vmatmul.mubr.f32.gmra.mxu0 %v79
  %v2879 = vpop.f32.mrf.mxu0
  %v2880 = vadd.f32 %v2811, %v2879
  %v2881 = vpop.f32.mrf.mxu0
  %2882 = vmatprep.mubr.f32.mxu0 0.0
  %2883 = vmatmul.mubr.f32.gmra.mxu0 %v82
  %v2884 = vpop.f32.mrf.mxu0
  %v2885 = vadd.f32 %v2811, %v2884
  %v2886 = vpop.f32.mrf.mxu0
  %2887 = vmatprep.mubr.f32.mxu0 0.0
  %2888 = vmatmul.mubr.f32.gmra.mxu0 %v85
  %v2889 = vpop.f32.mrf.mxu0
  %v2890 = vadd.f32 %v2811, %v2889
  %v2891 = vpop.f32.mrf.mxu0
  %2892 = vmatprep.mubr.f32.mxu0 0.0
  %2893 = vmatmul.mubr.f32.gmra.mxu0 %v88
  %v2894 = vpop.f32.mrf.mxu0
  %v2895 = vadd.f32 %v2811, %v2894
  %v2896 = vpop.f32.mrf.mxu0
  %2897 = vmatprep.mubr.f32.mxu0 0.0
  %2898 = vmatmul.mubr.f32.gmra.mxu0 %v91
  %v2899 = vpop.f32.mrf.mxu0
  %v2900 = vadd.f32 %v2811, %v2899
  %v2901 = vpop.f32.mrf.mxu0
  %2902 = vmatprep.mubr.f32.mxu0 0.0
  %2903 = vmatmul.mubr.f32.gmra.mxu0 %v94
  %v2904 = vpop.f32.mrf.mxu0
  %v2905 = vadd.f32 %v2811, %v2904
  %v2906 = vpop.f32.mrf.mxu0
  %2907 = vmatprep.mubr.f32.mxu0 0.0
  %2908 = vmatmul.mubr.f32.gmra.mxu0 %v97
  %v2909 = vpop.f32.mrf.mxu0
  %v2910 = vadd.f32 %v2811, %v2909
  %v2911 = vpop.f32.mrf.mxu0
  %2912 = vdwg.mxu0
  %2913 = vrot.lane.b32.xlu0 %v334, 80
  %v2914 = vpop.permute.xlu0 %2913
  %2915 = vrot.lane.b32.xlu0 %v335, 80
  %v2916 = vpop.permute.xlu0 %2915
  %2917 = vrot.lane.b32.xlu0 %v336, 80
  %v2918 = vpop.permute.xlu0 %2917
  %2919 = vrot.lane.b32.xlu0 %v337, 80
  %v2920 = vpop.permute.xlu0 %2919
  %2921 = vrot.lane.b32.xlu0 %v338, 80
  %v2922 = vpop.permute.xlu0 %2921
  %2923 = vrot.lane.b32.xlu0 %v339, 80
  %v2924 = vpop.permute.xlu0 %2923
  %2925 = vrot.lane.b32.xlu0 %v340, 80
  %v2926 = vpop.permute.xlu0 %2925
  %2927 = vrot.lane.b32.xlu0 %v341, 80
  %v2928 = vpop.permute.xlu0 %2927
  %2937 = vrot.lane.b32.xlu0 %v347, 80
  %v2938 = vpop.permute.xlu0 %2937
  %2940 = vmatprep.subr.mxu0 0.0
  %2941 = vmatpush1.msra.mxu0 0.0
  %2942 = vmatprep.subr.mxu0 0.0
  %2943 = vmatpush1.msra.mxu0 0.0
  %2944 = vmatprep.subr.mxu0 0.0
  %2945 = vmatpush1.msra.mxu0 0.0
  %2946 = vmatprep.subr.mxu0 0.0
  %2947 = vmatpush1.msra.mxu0 0.0
  %2948 = vmatprep.subr.mxu0 0.0
  %2949 = vmatpush1.msra.mxu0 0.0
  %2950 = vmatprep.subr.mxu0 0.0
  %2951 = vmatpush1.msra.mxu0 0.0
  %2952 = vmatprep.subr.mxu0 0.0
  %2953 = vmatpush1.msra.mxu0 0.0
  %2954 = vmatprep.subr.mxu0 0.0
  %2955 = vmatpush1.msra.mxu0 0.0
  %2956 = vmatprep.subr.mxu0 0.0
  %2957 = vmatpush1.msra.mxu0 %v2928
  %2958 = vmatprep.subr.mxu0 0.0
  %2959 = vmatpush1.msra.mxu0 %v2926
  %2960 = vmatprep.subr.mxu0 0.0
  %2961 = vmatpush1.msra.mxu0 %v2924
  %2962 = vmatprep.subr.mxu0 0.0
  %2963 = vmatpush1.msra.mxu0 %v2922
  %2964 = vmatprep.subr.mxu0 0.0
  %2965 = vmatpush1.msra.mxu0 %v2920
  %2966 = vmatprep.subr.mxu0 0.0
  %2967 = vmatpush1.msra.mxu0 %v2918
  %2968 = vmatprep.subr.mxu0 0.0
  %2969 = vmatpush1.msra.mxu0 %v2916
  %2970 = vmatprep.subr.mxu0 0.0
  %2971 = vmatpush1.msra.mxu0 %v2914
  %2972 = vmatprep.subr.mxu0 0.0
  %2973 = vmatpush2.msra.mxu0 0.0
  %2974 = vmatprep.subr.mxu0 0.0
  %2975 = vmatpush2.msra.mxu0 0.0
  %2976 = vmatprep.subr.mxu0 0.0
  %2977 = vmatpush2.msra.mxu0 0.0
  %2978 = vmatprep.subr.mxu0 0.0
  %2979 = vmatpush2.msra.mxu0 0.0
  %2980 = vmatprep.subr.mxu0 0.0
  %2981 = vmatpush2.msra.mxu0 0.0
  %2982 = vmatprep.subr.mxu0 0.0
  %2983 = vmatpush2.msra.mxu0 0.0
  %2984 = vmatprep.subr.mxu0 0.0
  %2985 = vmatpush2.msra.mxu0 0.0
  %2986 = vmatprep.subr.mxu0 0.0
  %2987 = vmatpush2.msra.mxu0 0.0
  %2988 = vmatprep.subr.mxu0 0.0
  %2989 = vmatpush2.msra.mxu0 0.0
  %2990 = vmatprep.subr.mxu0 0.0
  %2991 = vmatpush2.msra.mxu0 0.0
  %2992 = vmatprep.subr.mxu0 0.0
  %2993 = vmatpush2.msra.mxu0 0.0
  %2994 = vmatprep.subr.mxu0 0.0
  %2995 = vmatpush2.msra.mxu0 0.0
  %2996 = vmatprep.subr.mxu0 0.0
  %2997 = vmatpush2.msra.mxu0 0.0
  %2998 = vmatprep.subr.mxu0 0.0
  %2999 = vmatpush2.msra.mxu0 0.0
  %3000 = vmatprep.subr.mxu0 0.0
  %3001 = vmatpush2.msra.mxu0 0.0
  %3002 = vmatprep.subr.mxu0 0.0
  %3003 = vmatpush2.msra.mxu0 0.0
  %3004 = vmatprep.mubr.f32.mxu0 0.0
  %3005 = vmatmul.mubr.f32.gmra.mxu0 %v79
  %v3006 = vpop.f32.mrf.mxu0
  %v3007 = vadd.f32 %v2938, %v3006
  %v3008 = vpop.f32.mrf.mxu0
  %3009 = vmatprep.mubr.f32.mxu0 0.0
  %3010 = vmatmul.mubr.f32.gmra.mxu0 %v82
  %v3011 = vpop.f32.mrf.mxu0
  %v3012 = vadd.f32 %v2938, %v3011
  %v3013 = vpop.f32.mrf.mxu0
  %3014 = vmatprep.mubr.f32.mxu0 0.0
  %3015 = vmatmul.mubr.f32.gmra.mxu0 %v85
  %v3016 = vpop.f32.mrf.mxu0
  %v3017 = vadd.f32 %v2938, %v3016
  %v3018 = vpop.f32.mrf.mxu0
  %3019 = vmatprep.mubr.f32.mxu0 0.0
  %3020 = vmatmul.mubr.f32.gmra.mxu0 %v88
  %v3021 = vpop.f32.mrf.mxu0
  %v3022 = vadd.f32 %v2938, %v3021
  %v3023 = vpop.f32.mrf.mxu0
  %3024 = vmatprep.mubr.f32.mxu0 0.0
  %3025 = vmatmul.mubr.f32.gmra.mxu0 %v91
  %v3026 = vpop.f32.mrf.mxu0
  %v3027 = vadd.f32 %v2938, %v3026
  %v3028 = vpop.f32.mrf.mxu0
  %3029 = vmatprep.mubr.f32.mxu0 0.0
  %3030 = vmatmul.mubr.f32.gmra.mxu0 %v94
  %v3031 = vpop.f32.mrf.mxu0
  %v3032 = vadd.f32 %v2938, %v3031
  %v3033 = vpop.f32.mrf.mxu0
  %3034 = vmatprep.mubr.f32.mxu0 0.0
  %3035 = vmatmul.mubr.f32.gmra.mxu0 %v97
  %v3036 = vpop.f32.mrf.mxu0
  %v3037 = vadd.f32 %v2938, %v3036
  %v3038 = vpop.f32.mrf.mxu0
  %3039 = vdwg.mxu0
  %v3041 = vsel %vm449, %v2753, 0
  %v3044 = vsel %vm449, %v2758, 0
  %v3047 = vsel %vm449, %v2763, 0
  %v3050 = vsel %vm449, %v2768, 0
  %v3053 = vsel %vm449, %v2773, 0
  %v3056 = vsel %vm449, %v2778, 0
  %v3059 = vsel %vm449, %v2783, 0
  %v3062 = vsel %vm449, %v2880, 0
  %v3065 = vsel %vm449, %v2885, 0
  %v3068 = vsel %vm449, %v2890, 0
  %v3071 = vsel %vm449, %v2895, 0
  %v3074 = vsel %vm449, %v2900, 0
  %v3077 = vsel %vm449, %v2905, 0
  %v3080 = vsel %vm449, %v2910, 0
  %3082 = vmatprep.subr.mxu0 0.0
  %3083 = vmatpush1.xpose.msra.mxu0 0.0
  %3084 = vmatprep.subr.mxu0 0.0
  %3085 = vmatpush1.xpose.msra.mxu0 0.0
  %3086 = vmatprep.subr.mxu0 0.0
  %3087 = vmatpush1.xpose.msra.mxu0 0.0
  %3088 = vmatprep.subr.mxu0 0.0
  %3089 = vmatpush1.xpose.msra.mxu0 0.0
  %3090 = vmatprep.subr.mxu0 0.0
  %3091 = vmatpush1.xpose.msra.mxu0 0.0
  %3092 = vmatprep.subr.mxu0 0.0
  %3093 = vmatpush1.xpose.msra.mxu0 0.0
  %3094 = vmatprep.subr.mxu0 0.0
  %3095 = vmatpush1.xpose.msra.mxu0 0.0
  %3096 = vmatprep.subr.mxu0 0.0
  %3097 = vmatpush1.xpose.msra.mxu0 0.0
  %3098 = vmatprep.subr.mxu0 0.0
  %3099 = vmatpush1.xpose.msra.mxu0 0.0
  %3100 = vmatprep.subr.mxu0 0.0
  %3101 = vmatpush1.xpose.msra.mxu0 %v3080
  %3102 = vmatprep.subr.mxu0 0.0
  %3103 = vmatpush1.xpose.msra.mxu0 %v3077
  %3104 = vmatprep.subr.mxu0 0.0
  %3105 = vmatpush1.xpose.msra.mxu0 %v3074
  %3106 = vmatprep.subr.mxu0 0.0
  %3107 = vmatpush1.xpose.msra.mxu0 %v3071
  %3108 = vmatprep.subr.mxu0 0.0
  %3109 = vmatpush1.xpose.msra.mxu0 %v3068
  %3110 = vmatprep.subr.mxu0 0.0
  %3111 = vmatpush1.xpose.msra.mxu0 %v3065
  %3112 = vmatprep.subr.mxu0 0.0
  %3113 = vmatpush1.xpose.msra.mxu0 %v3062
  %3114 = vmatprep.subr.mxu0 0.0
  %3115 = vmatpush2.xpose.msra.mxu0 0.0
  %3116 = vmatprep.subr.mxu0 0.0
  %3117 = vmatpush2.xpose.msra.mxu0 0.0
  %3118 = vmatprep.subr.mxu0 0.0
  %3119 = vmatpush2.xpose.msra.mxu0 0.0
  %3120 = vmatprep.subr.mxu0 0.0
  %3121 = vmatpush2.xpose.msra.mxu0 0.0
  %3122 = vmatprep.subr.mxu0 0.0
  %3123 = vmatpush2.xpose.msra.mxu0 0.0
  %3124 = vmatprep.subr.mxu0 0.0
  %3125 = vmatpush2.xpose.msra.mxu0 0.0
  %3126 = vmatprep.subr.mxu0 0.0
  %3127 = vmatpush2.xpose.msra.mxu0 0.0
  %3128 = vmatprep.subr.mxu0 0.0
  %3129 = vmatpush2.xpose.msra.mxu0 0.0
  %3130 = vmatprep.subr.mxu0 0.0
  %3131 = vmatpush2.xpose.msra.mxu0 0.0
  %3132 = vmatprep.subr.mxu0 0.0
  %3133 = vmatpush2.xpose.msra.mxu0 0.0
  %3134 = vmatprep.subr.mxu0 0.0
  %3135 = vmatpush2.xpose.msra.mxu0 0.0
  %3136 = vmatprep.subr.mxu0 0.0
  %3137 = vmatpush2.xpose.msra.mxu0 0.0
  %3138 = vmatprep.subr.mxu0 0.0
  %3139 = vmatpush2.xpose.msra.mxu0 0.0
  %3140 = vmatprep.subr.mxu0 0.0
  %3141 = vmatpush2.xpose.msra.mxu0 0.0
  %3142 = vmatprep.subr.mxu0 0.0
  %3143 = vmatpush2.xpose.msra.mxu0 0.0
  %3144 = vmatprep.subr.mxu0 0.0
  %3145 = vmatpush2.xpose.msra.mxu0 0.0
  %3146 = vmatprep.mubr.f32.mxu0 0.0
  %3147 = vmatmul.mubr.f32.gmra.mxu0 %v3041
  %v3148 = vpop.f32.mrf.mxu0
  %v3149 = vadd.f32 0.0, %v3148
  %v3150 = vpop.f32.mrf.mxu0
  %3151 = vmatprep.mubr.f32.mxu0 0.0
  %3152 = vmatmul.mubr.f32.gmra.mxu0 %v3044
  %v3153 = vpop.f32.mrf.mxu0
  %v3154 = vadd.f32 0.0, %v3153
  %v3155 = vpop.f32.mrf.mxu0
  %3156 = vmatprep.mubr.f32.mxu0 0.0
  %3157 = vmatmul.mubr.f32.gmra.mxu0 %v3047
  %v3158 = vpop.f32.mrf.mxu0
  %v3159 = vadd.f32 0.0, %v3158
  %v3160 = vpop.f32.mrf.mxu0
  %3161 = vmatprep.mubr.f32.mxu0 0.0
  %3162 = vmatmul.mubr.f32.gmra.mxu0 %v3050
  %v3163 = vpop.f32.mrf.mxu0
  %v3164 = vadd.f32 0.0, %v3163
  %v3165 = vpop.f32.mrf.mxu0
  %3166 = vmatprep.mubr.f32.mxu0 0.0
  %3167 = vmatmul.mubr.f32.gmra.mxu0 %v3053
  %v3168 = vpop.f32.mrf.mxu0
  %v3169 = vadd.f32 0.0, %v3168
  %v3170 = vpop.f32.mrf.mxu0
  %3171 = vmatprep.mubr.f32.mxu0 0.0
  %3172 = vmatmul.mubr.f32.gmra.mxu0 %v3056
  %v3173 = vpop.f32.mrf.mxu0
  %v3174 = vadd.f32 0.0, %v3173
  %v3175 = vpop.f32.mrf.mxu0
  %3176 = vmatprep.mubr.f32.mxu0 0.0
  %3177 = vmatmul.mubr.f32.gmra.mxu0 %v3059
  %v3178 = vpop.f32.mrf.mxu0
  %v3179 = vadd.f32 0.0, %v3178
  %v3180 = vpop.f32.mrf.mxu0
  %3181 = vdwg.mxu0
  %v3182 = vmul.f32 %v3149, 0.25
  %v3183 = vmul.f32 %v3154, 0.25
  %v3184 = vmul.f32 %v3159, 0.25
  %v3185 = vmul.f32 %v3164, 0.25
  %v3186 = vmul.f32 %v3169, 0.25
  %v3187 = vmul.f32 %v3174, 0.25
  %v3188 = vmul.f32 %v3179, 0.25
  %v3189 = vadd.f32 %v3182, %v55
  %v3190 = vadd.f32 %v3183, %v56
  %v3191 = vadd.f32 %v3184, %v57
  %v3192 = vadd.f32 %v3185, %v58
  %v3193 = vadd.f32 %v3186, %v59
  %v3194 = vadd.f32 %v3187, %v60
  %v3195 = vadd.f32 %v3188, %v61
  %v3196 = vsel %vm606, %v3189, -inf
  %3197 = vmax.xlane.f32.xlu0 %v3196
  %v3198 = vpop.xlane.xlu0 %3197
  %v3199 = vsel %vm606, %v3190, -inf
  %3200 = vmax.xlane.f32.xlu0 %v3199
  %v3201 = vpop.xlane.xlu0 %3200
  %v3202 = vsel %vm606, %v3191, -inf
  %3203 = vmax.xlane.f32.xlu0 %v3202
  %v3204 = vpop.xlane.xlu0 %3203
  %v3205 = vsel %vm606, %v3192, -inf
  %3206 = vmax.xlane.f32.xlu0 %v3205
  %v3207 = vpop.xlane.xlu0 %3206
  %v3208 = vsel %vm606, %v3193, -inf
  %3209 = vmax.xlane.f32.xlu0 %v3208
  %v3210 = vpop.xlane.xlu0 %3209
  %v3211 = vsel %vm606, %v3194, -inf
  %3212 = vmax.xlane.f32.xlu0 %v3211
  %v3213 = vpop.xlane.xlu0 %3212
  %v3214 = vsel %vm606, %v3195, -inf
  %3215 = vmax.xlane.f32.xlu0 %v3214
  %v3216 = vpop.xlane.xlu0 %3215
  %v3217 = vsub.f32 %v3189, %v3198
  %v3218 = vsub.f32 %v3190, %v3201
  %v3219 = vsub.f32 %v3191, %v3204
  %v3220 = vsub.f32 %v3192, %v3207
  %v3221 = vsub.f32 %v3193, %v3210
  %v3222 = vsub.f32 %v3194, %v3213
  %v3223 = vsub.f32 %v3195, %v3216
  %v3224 = vmul.f32 %v3217, 1.442695
  %v3225 = vpow.pop %v3224
  %v3226 = vmul.f32 %v3218, 1.442695
  %v3227 = vpow.pop %v3226
  %v3228 = vmul.f32 %v3219, 1.442695
  %v3229 = vpow.pop %v3228
  %v3230 = vmul.f32 %v3220, 1.442695
  %v3231 = vpow.pop %v3230
  %v3232 = vmul.f32 %v3221, 1.442695
  %v3233 = vpow.pop %v3232
  %v3234 = vmul.f32 %v3222, 1.442695
  %v3235 = vpow.pop %v3234
  %v3236 = vmul.f32 %v3223, 1.442695
  %v3237 = vpow.pop %v3236
  %v3238 = vsel %vm606, %v3225, 0.0
  %3239 = vadd.xlane.f32.xlu0 %v3238
  %v3240 = vpop.xlane.xlu0 %3239
  %v3241 = vsel %vm606, %v3227, 0.0
  %3242 = vadd.xlane.f32.xlu0 %v3241
  %v3243 = vpop.xlane.xlu0 %3242
  %v3244 = vsel %vm606, %v3229, 0.0
  %3245 = vadd.xlane.f32.xlu0 %v3244
  %v3246 = vpop.xlane.xlu0 %3245
  %v3247 = vsel %vm606, %v3231, 0.0
  %3248 = vadd.xlane.f32.xlu0 %v3247
  %v3249 = vpop.xlane.xlu0 %3248
  %v3250 = vsel %vm606, %v3233, 0.0
  %3251 = vadd.xlane.f32.xlu0 %v3250
  %v3252 = vpop.xlane.xlu0 %3251
  %v3253 = vsel %vm606, %v3235, 0.0
  %3254 = vadd.xlane.f32.xlu0 %v3253
  %v3255 = vpop.xlane.xlu0 %3254
  %v3256 = vsel %vm606, %v3237, 0.0
  %3257 = vadd.xlane.f32.xlu0 %v3256
  %v3258 = vpop.xlane.xlu0 %3257
  %v3259 = vrcp.pop %v3240
  %v3260 = vmul.f32 %v3225, %v3259
  %v3261 = vrcp.pop %v3243
  %v3262 = vmul.f32 %v3227, %v3261
  %v3263 = vrcp.pop %v3246
  %v3264 = vmul.f32 %v3229, %v3263
  %v3265 = vrcp.pop %v3249
  %v3266 = vmul.f32 %v3231, %v3265
  %v3267 = vrcp.pop %v3252
  %v3268 = vmul.f32 %v3233, %v3267
  %v3269 = vrcp.pop %v3255
  %v3270 = vmul.f32 %v3235, %v3269
  %v3271 = vrcp.pop %v3258
  %v3272 = vmul.f32 %v3237, %v3271
  %v3274 = vsel %vm606, %v3260, 0
  %v3277 = vsel %vm606, %v3262, 0
  %v3280 = vsel %vm606, %v3264, 0
  %v3283 = vsel %vm606, %v3266, 0
  %v3286 = vsel %vm606, %v3268, 0
  %v3289 = vsel %vm606, %v3270, 0
  %v3292 = vsel %vm606, %v3272, 0
  %3294 = vmatprep.subr.mxu0 0.0
  %3295 = vmatpush1.msra.mxu0 0.0
  %3296 = vmatprep.subr.mxu0 0.0
  %3297 = vmatpush1.msra.mxu0 0.0
  %3298 = vmatprep.subr.mxu0 0.0
  %3299 = vmatpush1.msra.mxu0 0.0
  %3300 = vmatprep.subr.mxu0 0.0
  %3301 = vmatpush1.msra.mxu0 0.0
  %3302 = vmatprep.subr.mxu0 0.0
  %3303 = vmatpush1.msra.mxu0 0.0
  %3304 = vmatprep.subr.mxu0 0.0
  %3305 = vmatpush1.msra.mxu0 0.0
  %3306 = vmatprep.subr.mxu0 0.0
  %3307 = vmatpush1.msra.mxu0 0.0
  %3308 = vmatprep.subr.mxu0 0.0
  %3309 = vmatpush1.msra.mxu0 0.0
  %3310 = vmatprep.subr.mxu0 0.0
  %3311 = vmatpush1.msra.mxu0 0.0
  %3312 = vmatprep.subr.mxu0 0.0
  %3313 = vmatpush1.msra.mxu0 %v3037
  %3314 = vmatprep.subr.mxu0 0.0
  %3315 = vmatpush1.msra.mxu0 %v3032
  %3316 = vmatprep.subr.mxu0 0.0
  %3317 = vmatpush1.msra.mxu0 %v3027
  %3318 = vmatprep.subr.mxu0 0.0
  %3319 = vmatpush1.msra.mxu0 %v3022
  %3320 = vmatprep.subr.mxu0 0.0
  %3321 = vmatpush1.msra.mxu0 %v3017
  %3322 = vmatprep.subr.mxu0 0.0
  %3323 = vmatpush1.msra.mxu0 %v3012
  %3324 = vmatprep.subr.mxu0 0.0
  %3325 = vmatpush1.msra.mxu0 %v3007
  %3326 = vmatprep.subr.mxu0 0.0
  %3327 = vmatpush2.msra.mxu0 0.0
  %3328 = vmatprep.subr.mxu0 0.0
  %3329 = vmatpush2.msra.mxu0 0.0
  %3330 = vmatprep.subr.mxu0 0.0
  %3331 = vmatpush2.msra.mxu0 0.0
  %3332 = vmatprep.subr.mxu0 0.0
  %3333 = vmatpush2.msra.mxu0 0.0
  %3334 = vmatprep.subr.mxu0 0.0
  %3335 = vmatpush2.msra.mxu0 0.0
  %3336 = vmatprep.subr.mxu0 0.0
  %3337 = vmatpush2.msra.mxu0 0.0
  %3338 = vmatprep.subr.mxu0 0.0
  %3339 = vmatpush2.msra.mxu0 0.0
  %3340 = vmatprep.subr.mxu0 0.0
  %3341 = vmatpush2.msra.mxu0 0.0
  %3342 = vmatprep.subr.mxu0 0.0
  %3343 = vmatpush2.msra.mxu0 0.0
  %3344 = vmatprep.subr.mxu0 0.0
  %3345 = vmatpush2.msra.mxu0 0.0
  %3346 = vmatprep.subr.mxu0 0.0
  %3347 = vmatpush2.msra.mxu0 0.0
  %3348 = vmatprep.subr.mxu0 0.0
  %3349 = vmatpush2.msra.mxu0 0.0
  %3350 = vmatprep.subr.mxu0 0.0
  %3351 = vmatpush2.msra.mxu0 0.0
  %3352 = vmatprep.subr.mxu0 0.0
  %3353 = vmatpush2.msra.mxu0 0.0
  %3354 = vmatprep.subr.mxu0 0.0
  %3355 = vmatpush2.msra.mxu0 0.0
  %3356 = vmatprep.subr.mxu0 0.0
  %3357 = vmatpush2.msra.mxu0 0.0
  %3358 = vmatprep.mubr.f32.mxu0 0.0
  %3359 = vmatmul.mubr.f32.gmra.mxu0 %v3274
  %v3360 = vpop.f32.mrf.mxu0
  %v3361 = vadd.f32 0.0, %v3360
  %v3362 = vpop.f32.mrf.mxu0
  %3363 = vmatprep.mubr.f32.mxu0 0.0
  %3364 = vmatmul.mubr.f32.gmra.mxu0 %v3277
  %v3365 = vpop.f32.mrf.mxu0
  %v3366 = vadd.f32 0.0, %v3365
  %v3367 = vpop.f32.mrf.mxu0
  %3368 = vmatprep.mubr.f32.mxu0 0.0
  %3369 = vmatmul.mubr.f32.gmra.mxu0 %v3280
  %v3370 = vpop.f32.mrf.mxu0
  %v3371 = vadd.f32 0.0, %v3370
  %v3372 = vpop.f32.mrf.mxu0
  %3373 = vmatprep.mubr.f32.mxu0 0.0
  %3374 = vmatmul.mubr.f32.gmra.mxu0 %v3283
  %v3375 = vpop.f32.mrf.mxu0
  %v3376 = vadd.f32 0.0, %v3375
  %v3377 = vpop.f32.mrf.mxu0
  %3378 = vmatprep.mubr.f32.mxu0 0.0
  %3379 = vmatmul.mubr.f32.gmra.mxu0 %v3286
  %v3380 = vpop.f32.mrf.mxu0
  %v3381 = vadd.f32 0.0, %v3380
  %v3382 = vpop.f32.mrf.mxu0
  %3383 = vmatprep.mubr.f32.mxu0 0.0
  %3384 = vmatmul.mubr.f32.gmra.mxu0 %v3289
  %v3385 = vpop.f32.mrf.mxu0
  %v3386 = vadd.f32 0.0, %v3385
  %v3387 = vpop.f32.mrf.mxu0
  %3388 = vmatprep.mubr.f32.mxu0 0.0
  %3389 = vmatmul.mubr.f32.gmra.mxu0 %v3292
  %v3390 = vpop.f32.mrf.mxu0
  %v3391 = vadd.f32 0.0, %v3390
  %v3392 = vpop.f32.mrf.mxu0
  %3393 = vdwg.mxu0
  %v3394 = vld [vmem:[%s4 + $0x30] sm:$0xff]
  %v3395 = vld [vmem:[%s4 + $0x38] sm:$0xff]
  %v3397 = vsel %vm449, %v3361, 0
  %v3400 = vsel %vm449, %v3366, 0
  %v3403 = vsel %vm449, %v3371, 0
  %v3406 = vsel %vm449, %v3376, 0
  %v3409 = vsel %vm449, %v3381, 0
  %v3412 = vsel %vm449, %v3386, 0
  %v3415 = vsel %vm449, %v3391, 0
  %3417 = vmatprep.subr.mxu0 0.0
  %3418 = vmatpush1.msra.mxu0 0.0
  %3419 = vmatprep.subr.mxu0 0.0
  %3420 = vmatpush1.msra.mxu0 0.0
  %3421 = vmatprep.subr.mxu0 0.0
  %3422 = vmatpush1.msra.mxu0 0.0
  %3423 = vmatprep.subr.mxu0 0.0
  %3424 = vmatpush1.msra.mxu0 0.0
  %3425 = vmatprep.subr.mxu0 0.0
  %3426 = vmatpush1.msra.mxu0 0.0
  %3427 = vmatprep.subr.mxu0 0.0
  %3428 = vmatpush1.msra.mxu0 0.0
  %3429 = vmatprep.subr.mxu0 0.0
  %3430 = vmatpush1.msra.mxu0 0.0
  %3431 = vmatprep.subr.mxu0 0.0
  %3432 = vmatpush1.msra.mxu0 0.0
  %3433 = vmatprep.subr.mxu0 0.0
  %3434 = vmatpush1.msra.mxu0 0.0
  %3435 = vmatprep.subr.mxu0 0.0
  %3436 = vmatpush1.msra.mxu0 0.0
  %3437 = vmatprep.subr.mxu0 0.0
  %3438 = vmatpush1.msra.mxu0 0.0
  %3439 = vmatprep.subr.mxu0 0.0
  %3440 = vmatpush1.msra.mxu0 0.0
  %3441 = vmatprep.subr.mxu0 0.0
  %3442 = vmatpush1.msra.mxu0 0.0
  %3443 = vmatprep.subr.mxu0 0.0
  %3444 = vmatpush1.msra.mxu0 0.0
  %3445 = vmatprep.subr.mxu0 0.0
  %3446 = vmatpush1.msra.mxu0 %v3395
  %3447 = vmatprep.subr.mxu0 0.0
  %3448 = vmatpush1.msra.mxu0 %v3394
  %3449 = vmatprep.subr.mxu0 0.0
  %3450 = vmatpush2.msra.mxu0 0.0
  %3451 = vmatprep.subr.mxu0 0.0
  %3452 = vmatpush2.msra.mxu0 0.0
  %3453 = vmatprep.subr.mxu0 0.0
  %3454 = vmatpush2.msra.mxu0 0.0
  %3455 = vmatprep.subr.mxu0 0.0
  %3456 = vmatpush2.msra.mxu0 0.0
  %3457 = vmatprep.subr.mxu0 0.0
  %3458 = vmatpush2.msra.mxu0 0.0
  %3459 = vmatprep.subr.mxu0 0.0
  %3460 = vmatpush2.msra.mxu0 0.0
  %3461 = vmatprep.subr.mxu0 0.0
  %3462 = vmatpush2.msra.mxu0 0.0
  %3463 = vmatprep.subr.mxu0 0.0
  %3464 = vmatpush2.msra.mxu0 0.0
  %3465 = vmatprep.subr.mxu0 0.0
  %3466 = vmatpush2.msra.mxu0 0.0
  %3467 = vmatprep.subr.mxu0 0.0
  %3468 = vmatpush2.msra.mxu0 0.0
  %3469 = vmatprep.subr.mxu0 0.0
  %3470 = vmatpush2.msra.mxu0 0.0
  %3471 = vmatprep.subr.mxu0 0.0
  %3472 = vmatpush2.msra.mxu0 0.0
  %3473 = vmatprep.subr.mxu0 0.0
  %3474 = vmatpush2.msra.mxu0 0.0
  %3475 = vmatprep.subr.mxu0 0.0
  %3476 = vmatpush2.msra.mxu0 0.0
  %3477 = vmatprep.subr.mxu0 0.0
  %3478 = vmatpush2.msra.mxu0 0.0
  %3479 = vmatprep.subr.mxu0 0.0
  %3480 = vmatpush2.msra.mxu0 0.0
  %3481 = vmatprep.mubr.f32.mxu0 0.0
  %3482 = vmatmul.mubr.f32.gmra.mxu0 %v3397
  %v3483 = vpop.f32.mrf.mxu0
  %v3484 = vadd.f32 0.0, %v3483
  %v3485 = vpop.f32.mrf.mxu0
  %3486 = vmatprep.mubr.f32.mxu0 0.0
  %3487 = vmatmul.mubr.f32.gmra.mxu0 %v3400
  %v3488 = vpop.f32.mrf.mxu0
  %v3489 = vadd.f32 0.0, %v3488
  %v3490 = vpop.f32.mrf.mxu0
  %3491 = vmatprep.mubr.f32.mxu0 0.0
  %3492 = vmatmul.mubr.f32.gmra.mxu0 %v3403
  %v3493 = vpop.f32.mrf.mxu0
  %v3494 = vadd.f32 0.0, %v3493
  %v3495 = vpop.f32.mrf.mxu0
  %3496 = vmatprep.mubr.f32.mxu0 0.0
  %3497 = vmatmul.mubr.f32.gmra.mxu0 %v3406
  %v3498 = vpop.f32.mrf.mxu0
  %v3499 = vadd.f32 0.0, %v3498
  %v3500 = vpop.f32.mrf.mxu0
  %3501 = vmatprep.mubr.f32.mxu0 0.0
  %3502 = vmatmul.mubr.f32.gmra.mxu0 %v3409
  %v3503 = vpop.f32.mrf.mxu0
  %v3504 = vadd.f32 0.0, %v3503
  %v3505 = vpop.f32.mrf.mxu0
  %3506 = vmatprep.mubr.f32.mxu0 0.0
  %3507 = vmatmul.mubr.f32.gmra.mxu0 %v3412
  %v3508 = vpop.f32.mrf.mxu0
  %v3509 = vadd.f32 0.0, %v3508
  %v3510 = vpop.f32.mrf.mxu0
  %3511 = vmatprep.mubr.f32.mxu0 0.0
  %3512 = vmatmul.mubr.f32.gmra.mxu0 %v3415
  %v3513 = vpop.f32.mrf.mxu0
  %v3514 = vadd.f32 0.0, %v3513
  %v3515 = vpop.f32.mrf.mxu0
  %3516 = vdwg.mxu0
  %v3517 = vadd.f32 %v2652, %v3484
  %v3518 = vadd.f32 %v2653, %v3489
  %v3519 = vadd.f32 %v2654, %v3494
  %v3520 = vadd.f32 %v2655, %v3499
  %v3521 = vadd.f32 %v2656, %v3504
  %v3522 = vadd.f32 %v2657, %v3509
  %v3523 = vadd.f32 %v2658, %v3514
  %v3524 = vld [vmem:[%s5] sm:$0x1]
  %v3526 = vlaneseq
  %v3527 = vshrl.u32 %v3526, 7
  %v3528 = vsub.s32 0, %v3527
  %v3529 = vrot.slane %v3524, %v3528
  %v3531 = vadd.f32 %v3517, %v3529
  %v3532 = vadd.f32 %v3518, %v3529
  %v3533 = vadd.f32 %v3519, %v3529
  %v3534 = vadd.f32 %v3520, %v3529
  %v3535 = vadd.f32 %v3521, %v3529
  %v3536 = vadd.f32 %v3522, %v3529
  %v3537 = vadd.f32 %v3523, %v3529
  %v3538 = vadd.f32 %v48, %v3531
  %v3539 = vadd.f32 %v49, %v3532
  %v3540 = vadd.f32 %v50, %v3533
  %v3541 = vadd.f32 %v51, %v3534
  %v3542 = vadd.f32 %v52, %v3535
  %v3543 = vadd.f32 %v53, %v3536
  %v3544 = vadd.f32 %v54, %v3537
  %v3545 = vld [vmem:[%s6] sm:$0x1]
  %v3546 = vld [vmem:[%s7] sm:$0x1]
  %v3547 = vsel %vm77, %v3538, 0.0
  %3548 = vadd.xlane.f32.xlu0 %v3547
  %v3549 = vpop.xlane.xlu0 %3548
  %v3550 = vsel %vm77, %v3539, 0.0
  %3551 = vadd.xlane.f32.xlu0 %v3550
  %v3552 = vpop.xlane.xlu0 %3551
  %v3553 = vsel %vm77, %v3540, 0.0
  %3554 = vadd.xlane.f32.xlu0 %v3553
  %v3555 = vpop.xlane.xlu0 %3554
  %v3556 = vsel %vm77, %v3541, 0.0
  %3557 = vadd.xlane.f32.xlu0 %v3556
  %v3558 = vpop.xlane.xlu0 %3557
  %v3559 = vsel %vm77, %v3542, 0.0
  %3560 = vadd.xlane.f32.xlu0 %v3559
  %v3561 = vpop.xlane.xlu0 %3560
  %v3562 = vsel %vm77, %v3543, 0.0
  %3563 = vadd.xlane.f32.xlu0 %v3562
  %v3564 = vpop.xlane.xlu0 %3563
  %v3565 = vsel %vm77, %v3544, 0.0
  %3566 = vadd.xlane.f32.xlu0 %v3565
  %v3567 = vpop.xlane.xlu0 %3566
  %v3568 = vrcp.pop 64.0
  %v3569 = vmul.f32 %v3549, %v3568
  %v3570 = vmul.f32 %v3552, %v3568
  %v3571 = vmul.f32 %v3555, %v3568
  %v3572 = vmul.f32 %v3558, %v3568
  %v3573 = vmul.f32 %v3561, %v3568
  %v3574 = vmul.f32 %v3564, %v3568
  %v3575 = vmul.f32 %v3567, %v3568
  %v3576 = vsub.f32 %v3538, %v3569
  %v3577 = vsub.f32 %v3539, %v3570
  %v3578 = vsub.f32 %v3540, %v3571
  %v3579 = vsub.f32 %v3541, %v3572
  %v3580 = vsub.f32 %v3542, %v3573
  %v3581 = vsub.f32 %v3543, %v3574
  %v3582 = vsub.f32 %v3544, %v3575
  %v3583 = vmul.f32 %v3576, %v3576
  %v3584 = vmul.f32 %v3577, %v3577
  %v3585 = vmul.f32 %v3578, %v3578
  %v3586 = vmul.f32 %v3579, %v3579
  %v3587 = vmul.f32 %v3580, %v3580
  %v3588 = vmul.f32 %v3581, %v3581
  %v3589 = vmul.f32 %v3582, %v3582
  %v3590 = vsel %vm77, %v3583, 0.0
  %3591 = vadd.xlane.f32.xlu0 %v3590
  %v3592 = vpop.xlane.xlu0 %3591
  %v3593 = vsel %vm77, %v3584, 0.0
  %3594 = vadd.xlane.f32.xlu0 %v3593
  %v3595 = vpop.xlane.xlu0 %3594
  %v3596 = vsel %vm77, %v3585, 0.0
  %3597 = vadd.xlane.f32.xlu0 %v3596
  %v3598 = vpop.xlane.xlu0 %3597
  %v3599 = vsel %vm77, %v3586, 0.0
  %3600 = vadd.xlane.f32.xlu0 %v3599
  %v3601 = vpop.xlane.xlu0 %3600
  %v3602 = vsel %vm77, %v3587, 0.0
  %3603 = vadd.xlane.f32.xlu0 %v3602
  %v3604 = vpop.xlane.xlu0 %3603
  %v3605 = vsel %vm77, %v3588, 0.0
  %3606 = vadd.xlane.f32.xlu0 %v3605
  %v3607 = vpop.xlane.xlu0 %3606
  %v3608 = vsel %vm77, %v3589, 0.0
  %3609 = vadd.xlane.f32.xlu0 %v3608
  %v3610 = vpop.xlane.xlu0 %3609
  %v3611 = vmul.f32 %v3592, %v3568
  %v3612 = vmul.f32 %v3595, %v3568
  %v3613 = vmul.f32 %v3598, %v3568
  %v3614 = vmul.f32 %v3601, %v3568
  %v3615 = vmul.f32 %v3604, %v3568
  %v3616 = vmul.f32 %v3607, %v3568
  %v3617 = vmul.f32 %v3610, %v3568
  %v3618 = vadd.f32 %v3611, 1e-05
  %v3619 = vadd.f32 %v3612, 1e-05
  %v3620 = vadd.f32 %v3613, 1e-05
  %v3621 = vadd.f32 %v3614, 1e-05
  %v3622 = vadd.f32 %v3615, 1e-05
  %v3623 = vadd.f32 %v3616, 1e-05
  %v3624 = vadd.f32 %v3617, 1e-05
  %v3625 = vrsqrt.pop %v3618
  %v3626 = vrsqrt.pop %v3619
  %v3627 = vrsqrt.pop %v3620
  %v3628 = vrsqrt.pop %v3621
  %v3629 = vrsqrt.pop %v3622
  %v3630 = vrsqrt.pop %v3623
  %v3631 = vrsqrt.pop %v3624
  %v3632 = vmul.f32 %v3576, %v3625
  %v3633 = vmul.f32 %v3577, %v3626
  %v3634 = vmul.f32 %v3578, %v3627
  %v3635 = vmul.f32 %v3579, %v3628
  %v3636 = vmul.f32 %v3580, %v3629
  %v3637 = vmul.f32 %v3581, %v3630
  %v3638 = vmul.f32 %v3582, %v3631
  %v3640 = vlaneseq
  %v3641 = vshrl.u32 %v3640, 7
  %v3642 = vsub.s32 0, %v3641
  %v3643 = vrot.slane %v3545, %v3642
  %v3645 = vmul.f32 %v3632, %v3643
  %v3646 = vmul.f32 %v3633, %v3643
  %v3647 = vmul.f32 %v3634, %v3643
  %v3648 = vmul.f32 %v3635, %v3643
  %v3649 = vmul.f32 %v3636, %v3643
  %v3650 = vmul.f32 %v3637, %v3643
  %v3651 = vmul.f32 %v3638, %v3643
  %v3653 = vlaneseq
  %v3654 = vshrl.u32 %v3653, 7
  %v3655 = vsub.s32 0, %v3654
  %v3656 = vrot.slane %v3546, %v3655
  %v3658 = vadd.f32 %v3645, %v3656
  %v3659 = vadd.f32 %v3646, %v3656
  %v3660 = vadd.f32 %v3647, %v3656
  %v3661 = vadd.f32 %v3648, %v3656
  %v3662 = vadd.f32 %v3649, %v3656
  %v3663 = vadd.f32 %v3650, %v3656
  %v3664 = vadd.f32 %v3651, %v3656
  %v3665 = vpack.c.bf16 %v3659, %v3658
  %v3666 = vpack.c.bf16 %v3661, %v3660
  %v3667 = vpack.c.bf16 %v3663, %v3662
  %v3668 = vpack.c.bf16 %v3664, %v3664
  %v3669 = vld [vmem:[%s8] sm:$0xff]
  %v3670 = vld [vmem:[%s8 + $0x8] sm:$0xff]
  %v3671 = vld [vmem:[%s8 + $0x10] sm:$0xff]
  %v3672 = vld [vmem:[%s8 + $0x18] sm:$0xff]
  %v3673 = vld [vmem:[%s8 + $0x20] sm:$0xff]
  %v3674 = vld [vmem:[%s8 + $0x28] sm:$0xff]
  %v3675 = vld [vmem:[%s8 + $0x30] sm:$0xff]
  %v3676 = vld [vmem:[%s8 + $0x38] sm:$0xff]
  %v3677 = vld [vmem:[%s8 + $0x40] sm:$0xff]
  %v3678 = vld [vmem:[%s8 + $0x48] sm:$0xff]
  %v3679 = vld [vmem:[%s8 + $0x50] sm:$0xff]
  %v3680 = vld [vmem:[%s8 + $0x58] sm:$0xff]
  %v3681 = vld [vmem:[%s8 + $0x60] sm:$0xff]
  %v3682 = vld [vmem:[%s8 + $0x68] sm:$0xff]
  %v3683 = vld [vmem:[%s8 + $0x70] sm:$0xff]
  %v3684 = vld [vmem:[%s8 + $0x78] sm:$0xff]
  %v3685 = vld [vmem:[%s8 + $0x80] sm:$0xff]
  %v3686 = vld [vmem:[%s8 + $0x88] sm:$0xff]
  %v3687 = vld [vmem:[%s8 + $0x90] sm:$0xff]
  %v3688 = vld [vmem:[%s8 + $0x98] sm:$0xff]
  %v3689 = vld [vmem:[%s8 + $0xa0] sm:$0xff]
  %v3690 = vld [vmem:[%s8 + $0xa8] sm:$0xff]
  %v3691 = vld [vmem:[%s8 + $0xb0] sm:$0xff]
  %v3692 = vld [vmem:[%s8 + $0xb8] sm:$0xff]
  %v3693 = vld [vmem:[%s8 + $0xc0] sm:$0xff]
  %v3694 = vld [vmem:[%s8 + $0xc8] sm:$0xff]
  %v3695 = vld [vmem:[%s8 + $0xd0] sm:$0xff]
  %v3696 = vld [vmem:[%s8 + $0xd8] sm:$0xff]
  %v3697 = vld [vmem:[%s8 + $0xe0] sm:$0xff]
  %v3698 = vld [vmem:[%s8 + $0xe8] sm:$0xff]
  %v3699 = vld [vmem:[%s8 + $0xf0] sm:$0xff]
  %v3700 = vld [vmem:[%s8 + $0xf8] sm:$0xff]
  %v3701 = vld [vmem:[%s8 + $0x100] sm:$0xff]
  %v3702 = vld [vmem:[%s8 + $0x108] sm:$0xff]
  %v3703 = vld [vmem:[%s8 + $0x110] sm:$0xff]
  %v3704 = vld [vmem:[%s8 + $0x118] sm:$0xff]
  %v3705 = vld [vmem:[%s8 + $0x120] sm:$0xff]
  %v3706 = vld [vmem:[%s8 + $0x128] sm:$0xff]
  %v3707 = vld [vmem:[%s8 + $0x130] sm:$0xff]
  %v3708 = vld [vmem:[%s8 + $0x138] sm:$0xff]
  %v3709 = vld [vmem:[%s8 + $0x140] sm:$0xff]
  %v3710 = vld [vmem:[%s8 + $0x148] sm:$0xff]
  %v3711 = vld [vmem:[%s8 + $0x150] sm:$0xff]
  %v3712 = vld [vmem:[%s8 + $0x158] sm:$0xff]
  %v3713 = vld [vmem:[%s8 + $0x160] sm:$0xff]
  %v3714 = vld [vmem:[%s8 + $0x168] sm:$0xff]
  %v3715 = vld [vmem:[%s8 + $0x170] sm:$0xff]
  %v3716 = vld [vmem:[%s8 + $0x178] sm:$0xff]
  %v3717 = vld [vmem:[%s8 + $0x180] sm:$0xff]
  %v3718 = vld [vmem:[%s8 + $0x188] sm:$0xff]
  %v3719 = vld [vmem:[%s8 + $0x190] sm:$0xff]
  %v3720 = vld [vmem:[%s8 + $0x198] sm:$0xff]
  %v3721 = vld [vmem:[%s8 + $0x1a0] sm:$0xff]
  %v3722 = vld [vmem:[%s8 + $0x1a8] sm:$0xff]
  %v3723 = vld [vmem:[%s8 + $0x1b0] sm:$0xff]
  %v3724 = vld [vmem:[%s8 + $0x1b8] sm:$0xff]
  %v3725 = vld [vmem:[%s8 + $0x1c0] sm:$0xff]
  %v3726 = vld [vmem:[%s8 + $0x1c8] sm:$0xff]
  %v3727 = vld [vmem:[%s8 + $0x1d0] sm:$0xff]
  %v3728 = vld [vmem:[%s8 + $0x1d8] sm:$0xff]
  %v3729 = vld [vmem:[%s8 + $0x1e0] sm:$0xff]
  %v3730 = vld [vmem:[%s8 + $0x1e8] sm:$0xff]
  %v3731 = vld [vmem:[%s8 + $0x1f0] sm:$0xff]
  %v3732 = vld [vmem:[%s8 + $0x1f8] sm:$0xff]
  %v3733 = vld [vmem:[%s9] sm:$0xff]
  %v3734 = vld [vmem:[%s9 + $0x8] sm:$0xff]
  %v3737 = vlaneseq
  %v3738 = vshrl.u32 %v3737, 7
  %v3739 = vsub.s32 0, %v3738
  %v3740 = vrot.slane %v3733, %v3739
  %v3741 = vlaneseq
  %v3742 = vshrl.u32 %v3741, 7
  %v3743 = vsub.s32 1, %v3742
  %v3744 = vrot.slane %v3733, %v3743
  %v3745 = vlaneseq
  %v3746 = vshrl.u32 %v3745, 7
  %v3747 = vsub.s32 2, %v3746
  %v3748 = vrot.slane %v3733, %v3747
  %v3749 = vlaneseq
  %v3750 = vshrl.u32 %v3749, 7
  %v3751 = vsub.s32 3, %v3750
  %v3752 = vrot.slane %v3733, %v3751
  %v3753 = vlaneseq
  %v3754 = vshrl.u32 %v3753, 7
  %v3755 = vsub.s32 4, %v3754
  %v3756 = vrot.slane %v3733, %v3755
  %v3757 = vlaneseq
  %v3758 = vshrl.u32 %v3757, 7
  %v3759 = vsub.s32 5, %v3758
  %v3760 = vrot.slane %v3733, %v3759
  %v3761 = vlaneseq
  %v3762 = vshrl.u32 %v3761, 7
  %v3763 = vsub.s32 6, %v3762
  %v3764 = vrot.slane %v3733, %v3763
  %v3765 = vlaneseq
  %v3766 = vshrl.u32 %v3765, 7
  %v3767 = vsub.s32 7, %v3766
  %v3768 = vrot.slane %v3733, %v3767
  %v3769 = vlaneseq
  %v3770 = vshrl.u32 %v3769, 7
  %v3771 = vsub.s32 0, %v3770
  %v3772 = vrot.slane %v3734, %v3771
  %v3773 = vlaneseq
  %v3774 = vshrl.u32 %v3773, 7
  %v3775 = vsub.s32 1, %v3774
  %v3776 = vrot.slane %v3734, %v3775
  %v3777 = vlaneseq
  %v3778 = vshrl.u32 %v3777, 7
  %v3779 = vsub.s32 2, %v3778
  %v3780 = vrot.slane %v3734, %v3779
  %v3781 = vlaneseq
  %v3782 = vshrl.u32 %v3781, 7
  %v3783 = vsub.s32 3, %v3782
  %v3784 = vrot.slane %v3734, %v3783
  %v3785 = vlaneseq
  %v3786 = vshrl.u32 %v3785, 7
  %v3787 = vsub.s32 4, %v3786
  %v3788 = vrot.slane %v3734, %v3787
  %v3789 = vlaneseq
  %v3790 = vshrl.u32 %v3789, 7
  %v3791 = vsub.s32 5, %v3790
  %v3792 = vrot.slane %v3734, %v3791
  %v3793 = vlaneseq
  %v3794 = vshrl.u32 %v3793, 7
  %v3795 = vsub.s32 6, %v3794
  %v3796 = vrot.slane %v3734, %v3795
  %v3797 = vlaneseq
  %v3798 = vshrl.u32 %v3797, 7
  %v3799 = vsub.s32 7, %v3798
  %v3800 = vrot.slane %v3734, %v3799
  %v3881 = vunpack.c.l.b16 %v3669
  %v3882 = vunpack.c.h.b16 %v3669
  %v3883 = vunpack.c.l.b16 %v3670
  %v3884 = vunpack.c.h.b16 %v3670
  %v3885 = vunpack.c.l.b16 %v3671
  %v3886 = vunpack.c.h.b16 %v3671
  %v3887 = vunpack.c.l.b16 %v3672
  %v3888 = vunpack.c.h.b16 %v3672
  %v3889 = vunpack.c.l.b16 %v3673
  %v3890 = vunpack.c.h.b16 %v3673
  %v3891 = vunpack.c.l.b16 %v3674
  %v3892 = vunpack.c.h.b16 %v3674
  %v3893 = vunpack.c.l.b16 %v3675
  %v3894 = vunpack.c.h.b16 %v3675
  %v3895 = vunpack.c.l.b16 %v3676
  %v3896 = vunpack.c.h.b16 %v3676
  %v3897 = vunpack.c.l.b16 %v3677
  %v3898 = vunpack.c.h.b16 %v3677
  %v3899 = vunpack.c.l.b16 %v3678
  %v3900 = vunpack.c.h.b16 %v3678
  %v3901 = vunpack.c.l.b16 %v3679
  %v3902 = vunpack.c.h.b16 %v3679
  %v3903 = vunpack.c.l.b16 %v3680
  %v3904 = vunpack.c.h.b16 %v3680
  %v3905 = vunpack.c.l.b16 %v3681
  %v3906 = vunpack.c.h.b16 %v3681
  %v3907 = vunpack.c.l.b16 %v3682
  %v3908 = vunpack.c.h.b16 %v3682
  %v3909 = vunpack.c.l.b16 %v3683
  %v3910 = vunpack.c.h.b16 %v3683
  %v3911 = vunpack.c.l.b16 %v3684
  %v3912 = vunpack.c.h.b16 %v3684
  %v3913 = vunpack.c.l.b16 %v3685
  %v3914 = vunpack.c.h.b16 %v3685
  %v3915 = vunpack.c.l.b16 %v3686
  %v3916 = vunpack.c.h.b16 %v3686
  %v3917 = vunpack.c.l.b16 %v3687
  %v3918 = vunpack.c.h.b16 %v3687
  %v3919 = vunpack.c.l.b16 %v3688
  %v3920 = vunpack.c.h.b16 %v3688
  %v3921 = vunpack.c.l.b16 %v3689
  %v3922 = vunpack.c.h.b16 %v3689
  %v3923 = vunpack.c.l.b16 %v3690
  %v3924 = vunpack.c.h.b16 %v3690
  %v3925 = vunpack.c.l.b16 %v3691
  %v3926 = vunpack.c.h.b16 %v3691
  %v3927 = vunpack.c.l.b16 %v3692
  %v3928 = vunpack.c.h.b16 %v3692
  %v3929 = vunpack.c.l.b16 %v3693
  %v3930 = vunpack.c.h.b16 %v3693
  %v3931 = vunpack.c.l.b16 %v3694
  %v3932 = vunpack.c.h.b16 %v3694
  %v3933 = vunpack.c.l.b16 %v3695
  %v3934 = vunpack.c.h.b16 %v3695
  %v3935 = vunpack.c.l.b16 %v3696
  %v3936 = vunpack.c.h.b16 %v3696
  %v3937 = vunpack.c.l.b16 %v3697
  %v3938 = vunpack.c.h.b16 %v3697
  %v3939 = vunpack.c.l.b16 %v3698
  %v3940 = vunpack.c.h.b16 %v3698
  %v3941 = vunpack.c.l.b16 %v3699
  %v3942 = vunpack.c.h.b16 %v3699
  %v3943 = vunpack.c.l.b16 %v3700
  %v3944 = vunpack.c.h.b16 %v3700
  %v3945 = vunpack.c.l.b16 %v3701
  %v3946 = vunpack.c.h.b16 %v3701
  %v3947 = vunpack.c.l.b16 %v3702
  %v3948 = vunpack.c.h.b16 %v3702
  %v3949 = vunpack.c.l.b16 %v3703
  %v3950 = vunpack.c.h.b16 %v3703
  %v3951 = vunpack.c.l.b16 %v3704
  %v3952 = vunpack.c.h.b16 %v3704
  %v3953 = vunpack.c.l.b16 %v3705
  %v3954 = vunpack.c.h.b16 %v3705
  %v3955 = vunpack.c.l.b16 %v3706
  %v3956 = vunpack.c.h.b16 %v3706
  %v3957 = vunpack.c.l.b16 %v3707
  %v3958 = vunpack.c.h.b16 %v3707
  %v3959 = vunpack.c.l.b16 %v3708
  %v3960 = vunpack.c.h.b16 %v3708
  %v3961 = vunpack.c.l.b16 %v3709
  %v3962 = vunpack.c.h.b16 %v3709
  %v3963 = vunpack.c.l.b16 %v3710
  %v3964 = vunpack.c.h.b16 %v3710
  %v3965 = vunpack.c.l.b16 %v3711
  %v3966 = vunpack.c.h.b16 %v3711
  %v3967 = vunpack.c.l.b16 %v3712
  %v3968 = vunpack.c.h.b16 %v3712
  %v3969 = vunpack.c.l.b16 %v3713
  %v3970 = vunpack.c.h.b16 %v3713
  %v3971 = vunpack.c.l.b16 %v3714
  %v3972 = vunpack.c.h.b16 %v3714
  %v3973 = vunpack.c.l.b16 %v3715
  %v3974 = vunpack.c.h.b16 %v3715
  %v3975 = vunpack.c.l.b16 %v3716
  %v3976 = vunpack.c.h.b16 %v3716
  %v3977 = vunpack.c.l.b16 %v3717
  %v3978 = vunpack.c.h.b16 %v3717
  %v3979 = vunpack.c.l.b16 %v3718
  %v3980 = vunpack.c.h.b16 %v3718
  %v3981 = vunpack.c.l.b16 %v3719
  %v3982 = vunpack.c.h.b16 %v3719
  %v3983 = vunpack.c.l.b16 %v3720
  %v3984 = vunpack.c.h.b16 %v3720
  %v3985 = vunpack.c.l.b16 %v3721
  %v3986 = vunpack.c.h.b16 %v3721
  %v3987 = vunpack.c.l.b16 %v3722
  %v3988 = vunpack.c.h.b16 %v3722
  %v3989 = vunpack.c.l.b16 %v3723
  %v3990 = vunpack.c.h.b16 %v3723
  %v3991 = vunpack.c.l.b16 %v3724
  %v3992 = vunpack.c.h.b16 %v3724
  %v3993 = vunpack.c.l.b16 %v3725
  %v3994 = vunpack.c.h.b16 %v3725
  %v3995 = vunpack.c.l.b16 %v3726
  %v3996 = vunpack.c.h.b16 %v3726
  %v3997 = vunpack.c.l.b16 %v3727
  %v3998 = vunpack.c.h.b16 %v3727
  %v3999 = vunpack.c.l.b16 %v3728
  %v4000 = vunpack.c.h.b16 %v3728
  %v4001 = vunpack.c.l.b16 %v3729
  %v4002 = vunpack.c.h.b16 %v3729
  %v4003 = vunpack.c.l.b16 %v3730
  %v4004 = vunpack.c.h.b16 %v3730
  %v4005 = vunpack.c.l.b16 %v3731
  %v4006 = vunpack.c.h.b16 %v3731
  %v4007 = vunpack.c.l.b16 %v3732
  %v4008 = vunpack.c.h.b16 %v3732
  %v4009 = vpack.c.b16 %v3897, %v3881
  %v4010 = vpack.c.b16 %v3898, %v3882
  %v4011 = vpack.c.b16 %v3899, %v3883
  %v4012 = vpack.c.b16 %v3900, %v3884
  %v4013 = vpack.c.b16 %v3901, %v3885
  %v4014 = vpack.c.b16 %v3902, %v3886
  %v4015 = vpack.c.b16 %v3903, %v3887
  %v4016 = vpack.c.b16 %v3904, %v3888
  %v4017 = vpack.c.b16 %v3905, %v3889
  %v4018 = vpack.c.b16 %v3906, %v3890
  %v4019 = vpack.c.b16 %v3907, %v3891
  %v4020 = vpack.c.b16 %v3908, %v3892
  %v4021 = vpack.c.b16 %v3909, %v3893
  %v4022 = vpack.c.b16 %v3910, %v3894
  %v4023 = vpack.c.b16 %v3911, %v3895
  %v4024 = vpack.c.b16 %v3912, %v3896
  %v4025 = vpack.c.b16 %v3929, %v3913
  %v4026 = vpack.c.b16 %v3930, %v3914
  %v4027 = vpack.c.b16 %v3931, %v3915
  %v4028 = vpack.c.b16 %v3932, %v3916
  %v4029 = vpack.c.b16 %v3933, %v3917
  %v4030 = vpack.c.b16 %v3934, %v3918
  %v4031 = vpack.c.b16 %v3935, %v3919
  %v4032 = vpack.c.b16 %v3936, %v3920
  %v4033 = vpack.c.b16 %v3937, %v3921
  %v4034 = vpack.c.b16 %v3938, %v3922
  %v4035 = vpack.c.b16 %v3939, %v3923
  %v4036 = vpack.c.b16 %v3940, %v3924
  %v4037 = vpack.c.b16 %v3941, %v3925
  %v4038 = vpack.c.b16 %v3942, %v3926
  %v4039 = vpack.c.b16 %v3943, %v3927
  %v4040 = vpack.c.b16 %v3944, %v3928
  %v4041 = vpack.c.b16 %v3961, %v3945
  %v4042 = vpack.c.b16 %v3962, %v3946
  %v4043 = vpack.c.b16 %v3963, %v3947
  %v4044 = vpack.c.b16 %v3964, %v3948
  %v4045 = vpack.c.b16 %v3965, %v3949
  %v4046 = vpack.c.b16 %v3966, %v3950
  %v4047 = vpack.c.b16 %v3967, %v3951
  %v4048 = vpack.c.b16 %v3968, %v3952
  %v4049 = vpack.c.b16 %v3969, %v3953
  %v4050 = vpack.c.b16 %v3970, %v3954
  %v4051 = vpack.c.b16 %v3971, %v3955
  %v4052 = vpack.c.b16 %v3972, %v3956
  %v4053 = vpack.c.b16 %v3973, %v3957
  %v4054 = vpack.c.b16 %v3974, %v3958
  %v4055 = vpack.c.b16 %v3975, %v3959
  %v4056 = vpack.c.b16 %v3976, %v3960
  %v4057 = vpack.c.b16 %v3993, %v3977
  %v4058 = vpack.c.b16 %v3994, %v3978
  %v4059 = vpack.c.b16 %v3995, %v3979
  %v4060 = vpack.c.b16 %v3996, %v3980
  %v4061 = vpack.c.b16 %v3997, %v3981
  %v4062 = vpack.c.b16 %v3998, %v3982
  %v4063 = vpack.c.b16 %v3999, %v3983
  %v4064 = vpack.c.b16 %v4000, %v3984
  %v4065 = vpack.c.b16 %v4001, %v3985
  %v4066 = vpack.c.b16 %v4002, %v3986
  %v4067 = vpack.c.b16 %v4003, %v3987
  %v4068 = vpack.c.b16 %v4004, %v3988
  %v4069 = vpack.c.b16 %v4005, %v3989
  %v4070 = vpack.c.b16 %v4006, %v3990
  %v4071 = vpack.c.b16 %v4007, %v3991
  %v4072 = vpack.c.b16 %v4008, %v3992
  %v4138 = vsel %vm77, %v3665, 0
  %v4141 = vsel %vm77, %v3666, 0
  %v4144 = vsel %vm77, %v3667, 0
  %v4147 = vsel %vm77, %v3668, 0
  %4149 = vmatprep.subr.bf16.mxu0 0
  %4150 = vmatpush1.bf16.msra.mxu0 0
  %4151 = vmatprep.subr.bf16.mxu0 0
  %4152 = vmatpush1.bf16.msra.mxu0 0
  %4153 = vmatprep.subr.bf16.mxu0 0
  %4154 = vmatpush1.bf16.msra.mxu0 0
  %4155 = vmatprep.subr.bf16.mxu0 0
  %4156 = vmatpush1.bf16.msra.mxu0 0
  %4157 = vmatprep.subr.bf16.mxu0 %v4058
  %4158 = vmatpush1.bf16.msra.mxu0 %v4057
  %4159 = vmatprep.subr.bf16.mxu0 %v4042
  %4160 = vmatpush1.bf16.msra.mxu0 %v4041
  %4161 = vmatprep.subr.bf16.mxu0 %v4026
  %4162 = vmatpush1.bf16.msra.mxu0 %v4025
  %4163 = vmatprep.subr.bf16.mxu0 %v4010
  %4164 = vmatpush1.bf16.msra.mxu0 %v4009
  %4165 = vmatprep.subr.bf16.mxu0 0
  %4166 = vmatpush2.bf16.msra.mxu0 0
  %4167 = vmatprep.subr.bf16.mxu0 0
  %4168 = vmatpush2.bf16.msra.mxu0 0
  %4169 = vmatprep.subr.bf16.mxu0 0
  %4170 = vmatpush2.bf16.msra.mxu0 0
  %4171 = vmatprep.subr.bf16.mxu0 0
  %4172 = vmatpush2.bf16.msra.mxu0 0
  %4173 = vmatprep.subr.bf16.mxu0 0
  %4174 = vmatpush2.bf16.msra.mxu0 0
  %4175 = vmatprep.subr.bf16.mxu0 0
  %4176 = vmatpush2.bf16.msra.mxu0 0
  %4177 = vmatprep.subr.bf16.mxu0 0
  %4178 = vmatpush2.bf16.msra.mxu0 0
  %4179 = vmatprep.subr.bf16.mxu0 0
  %4180 = vmatpush2.bf16.msra.mxu0 0
  %4181 = vmatprep.mubr.bf16.mxu0 0
  %4182 = vmatmul.mubr.bf16.gmra.mxu0 %v4138
  %v4183 = vpop.f32.mrf.mxu0
  %v4184 = vadd.f32 %v3740, %v4183
  %v4185 = vpop.f32.mrf.mxu0
  %v4186 = vadd.f32 %v3744, %v4185
  %v4187 = vpop.f32.mrf.mxu0
  %v4188 = vadd.f32 %v3740, %v4187
  %v4189 = vpop.f32.mrf.mxu0
  %v4190 = vadd.f32 %v3744, %v4189
  %4191 = vmatprep.mubr.bf16.mxu0 0
  %4192 = vmatmul.mubr.bf16.gmra.mxu0 %v4141
  %v4193 = vpop.f32.mrf.mxu0
  %v4194 = vadd.f32 %v3740, %v4193
  %v4195 = vpop.f32.mrf.mxu0
  %v4196 = vadd.f32 %v3744, %v4195
  %v4197 = vpop.f32.mrf.mxu0
  %v4198 = vadd.f32 %v3740, %v4197
  %v4199 = vpop.f32.mrf.mxu0
  %v4200 = vadd.f32 %v3744, %v4199
  %4201 = vmatprep.mubr.bf16.mxu0 0
  %4202 = vmatmul.mubr.bf16.gmra.mxu0 %v4144
  %v4203 = vpop.f32.mrf.mxu0
  %v4204 = vadd.f32 %v3740, %v4203
  %v4205 = vpop.f32.mrf.mxu0
  %v4206 = vadd.f32 %v3744, %v4205
  %v4207 = vpop.f32.mrf.mxu0
  %v4208 = vadd.f32 %v3740, %v4207
  %v4209 = vpop.f32.mrf.mxu0
  %v4210 = vadd.f32 %v3744, %v4209
  %4211 = vmatprep.mubr.bf16.mxu0 0
  %4212 = vmatmul.mubr.bf16.gmra.mxu0 %v4147
  %v4213 = vpop.f32.mrf.mxu0
  %v4214 = vadd.f32 %v3740, %v4213
  %v4215 = vpop.f32.mrf.mxu0
  %v4216 = vadd.f32 %v3744, %v4215
  %v4217 = vpop.f32.mrf.mxu0
  %v4218 = vpop.f32.mrf.mxu0
  %4219 = vdwg.mxu0
  %4220 = vmatprep.subr.bf16.mxu0 0
  %4221 = vmatpush1.bf16.msra.mxu0 0
  %4222 = vmatprep.subr.bf16.mxu0 0
  %4223 = vmatpush1.bf16.msra.mxu0 0
  %4224 = vmatprep.subr.bf16.mxu0 0
  %4225 = vmatpush1.bf16.msra.mxu0 0
  %4226 = vmatprep.subr.bf16.mxu0 0
  %4227 = vmatpush1.bf16.msra.mxu0 0
  %4228 = vmatprep.subr.bf16.mxu0 %v4060
  %4229 = vmatpush1.bf16.msra.mxu0 %v4059
  %4230 = vmatprep.subr.bf16.mxu0 %v4044
  %4231 = vmatpush1.bf16.msra.mxu0 %v4043
  %4232 = vmatprep.subr.bf16.mxu0 %v4028
  %4233 = vmatpush1.bf16.msra.mxu0 %v4027
  %4234 = vmatprep.subr.bf16.mxu0 %v4012
  %4235 = vmatpush1.bf16.msra.mxu0 %v4011
  %4236 = vmatprep.subr.bf16.mxu0 0
  %4237 = vmatpush2.bf16.msra.mxu0 0
  %4238 = vmatprep.subr.bf16.mxu0 0
  %4239 = vmatpush2.bf16.msra.mxu0 0
  %4240 = vmatprep.subr.bf16.mxu0 0
  %4241 = vmatpush2.bf16.msra.mxu0 0
  %4242 = vmatprep.subr.bf16.mxu0 0
  %4243 = vmatpush2.bf16.msra.mxu0 0
  %4244 = vmatprep.subr.bf16.mxu0 0
  %4245 = vmatpush2.bf16.msra.mxu0 0
  %4246 = vmatprep.subr.bf16.mxu0 0
  %4247 = vmatpush2.bf16.msra.mxu0 0
  %4248 = vmatprep.subr.bf16.mxu0 0
  %4249 = vmatpush2.bf16.msra.mxu0 0
  %4250 = vmatprep.subr.bf16.mxu0 0
  %4251 = vmatpush2.bf16.msra.mxu0 0
  %4252 = vmatprep.mubr.bf16.mxu0 0
  %4253 = vmatmul.mubr.bf16.gmra.mxu0 %v4138
  %v4254 = vpop.f32.mrf.mxu0
  %v4255 = vadd.f32 %v3748, %v4254
  %v4256 = vpop.f32.mrf.mxu0
  %v4257 = vadd.f32 %v3752, %v4256
  %v4258 = vpop.f32.mrf.mxu0
  %v4259 = vadd.f32 %v3748, %v4258
  %v4260 = vpop.f32.mrf.mxu0
  %v4261 = vadd.f32 %v3752, %v4260
  %4262 = vmatprep.mubr.bf16.mxu0 0
  %4263 = vmatmul.mubr.bf16.gmra.mxu0 %v4141
  %v4264 = vpop.f32.mrf.mxu0
  %v4265 = vadd.f32 %v3748, %v4264
  %v4266 = vpop.f32.mrf.mxu0
  %v4267 = vadd.f32 %v3752, %v4266
  %v4268 = vpop.f32.mrf.mxu0
  %v4269 = vadd.f32 %v3748, %v4268
  %v4270 = vpop.f32.mrf.mxu0
  %v4271 = vadd.f32 %v3752, %v4270
  %4272 = vmatprep.mubr.bf16.mxu0 0
  %4273 = vmatmul.mubr.bf16.gmra.mxu0 %v4144
  %v4274 = vpop.f32.mrf.mxu0
  %v4275 = vadd.f32 %v3748, %v4274
  %v4276 = vpop.f32.mrf.mxu0
  %v4277 = vadd.f32 %v3752, %v4276
  %v4278 = vpop.f32.mrf.mxu0
  %v4279 = vadd.f32 %v3748, %v4278
  %v4280 = vpop.f32.mrf.mxu0
  %v4281 = vadd.f32 %v3752, %v4280
  %4282 = vmatprep.mubr.bf16.mxu0 0
  %4283 = vmatmul.mubr.bf16.gmra.mxu0 %v4147
  %v4284 = vpop.f32.mrf.mxu0
  %v4285 = vadd.f32 %v3748, %v4284
  %v4286 = vpop.f32.mrf.mxu0
  %v4287 = vadd.f32 %v3752, %v4286
  %v4288 = vpop.f32.mrf.mxu0
  %v4289 = vpop.f32.mrf.mxu0
  %4290 = vdwg.mxu0
  %4291 = vmatprep.subr.bf16.mxu0 0
  %4292 = vmatpush1.bf16.msra.mxu0 0
  %4293 = vmatprep.subr.bf16.mxu0 0
  %4294 = vmatpush1.bf16.msra.mxu0 0
  %4295 = vmatprep.subr.bf16.mxu0 0
  %4296 = vmatpush1.bf16.msra.mxu0 0
  %4297 = vmatprep.subr.bf16.mxu0 0
  %4298 = vmatpush1.bf16.msra.mxu0 0
  %4299 = vmatprep.subr.bf16.mxu0 %v4062
  %4300 = vmatpush1.bf16.msra.mxu0 %v4061
  %4301 = vmatprep.subr.bf16.mxu0 %v4046
  %4302 = vmatpush1.bf16.msra.mxu0 %v4045
  %4303 = vmatprep.subr.bf16.mxu0 %v4030
  %4304 = vmatpush1.bf16.msra.mxu0 %v4029
  %4305 = vmatprep.subr.bf16.mxu0 %v4014
  %4306 = vmatpush1.bf16.msra.mxu0 %v4013
  %4307 = vmatprep.subr.bf16.mxu0 0
  %4308 = vmatpush2.bf16.msra.mxu0 0
  %4309 = vmatprep.subr.bf16.mxu0 0
  %4310 = vmatpush2.bf16.msra.mxu0 0
  %4311 = vmatprep.subr.bf16.mxu0 0
  %4312 = vmatpush2.bf16.msra.mxu0 0
  %4313 = vmatprep.subr.bf16.mxu0 0
  %4314 = vmatpush2.bf16.msra.mxu0 0
  %4315 = vmatprep.subr.bf16.mxu0 0
  %4316 = vmatpush2.bf16.msra.mxu0 0
  %4317 = vmatprep.subr.bf16.mxu0 0
  %4318 = vmatpush2.bf16.msra.mxu0 0
  %4319 = vmatprep.subr.bf16.mxu0 0
  %4320 = vmatpush2.bf16.msra.mxu0 0
  %4321 = vmatprep.subr.bf16.mxu0 0
  %4322 = vmatpush2.bf16.msra.mxu0 0
  %4323 = vmatprep.mubr.bf16.mxu0 0
  %4324 = vmatmul.mubr.bf16.gmra.mxu0 %v4138
  %v4325 = vpop.f32.mrf.mxu0
  %v4326 = vadd.f32 %v3756, %v4325
  %v4327 = vpop.f32.mrf.mxu0
  %v4328 = vadd.f32 %v3760, %v4327
  %v4329 = vpop.f32.mrf.mxu0
  %v4330 = vadd.f32 %v3756, %v4329
  %v4331 = vpop.f32.mrf.mxu0
  %v4332 = vadd.f32 %v3760, %v4331
  %4333 = vmatprep.mubr.bf16.mxu0 0
  %4334 = vmatmul.mubr.bf16.gmra.mxu0 %v4141
  %v4335 = vpop.f32.mrf.mxu0
  %v4336 = vadd.f32 %v3756, %v4335
  %v4337 = vpop.f32.mrf.mxu0
  %v4338 = vadd.f32 %v3760, %v4337
  %v4339 = vpop.f32.mrf.mxu0
  %v4340 = vadd.f32 %v3756, %v4339
  %v4341 = vpop.f32.mrf.mxu0
  %v4342 = vadd.f32 %v3760, %v4341
  %4343 = vmatprep.mubr.bf16.mxu0 0
  %4344 = vmatmul.mubr.bf16.gmra.mxu0 %v4144
  %v4345 = vpop.f32.mrf.mxu0
  %v4346 = vadd.f32 %v3756, %v4345
  %v4347 = vpop.f32.mrf.mxu0
  %v4348 = vadd.f32 %v3760, %v4347
  %v4349 = vpop.f32.mrf.mxu0
  %v4350 = vadd.f32 %v3756, %v4349
  %v4351 = vpop.f32.mrf.mxu0
  %v4352 = vadd.f32 %v3760, %v4351
  %4353 = vmatprep.mubr.bf16.mxu0 0
  %4354 = vmatmul.mubr.bf16.gmra.mxu0 %v4147
  %v4355 = vpop.f32.mrf.mxu0
  %v4356 = vadd.f32 %v3756, %v4355
  %v4357 = vpop.f32.mrf.mxu0
  %v4358 = vadd.f32 %v3760, %v4357
  %v4359 = vpop.f32.mrf.mxu0
  %v4360 = vpop.f32.mrf.mxu0
  %4361 = vdwg.mxu0
  %4362 = vmatprep.subr.bf16.mxu0 0
  %4363 = vmatpush1.bf16.msra.mxu0 0
  %4364 = vmatprep.subr.bf16.mxu0 0
  %4365 = vmatpush1.bf16.msra.mxu0 0
  %4366 = vmatprep.subr.bf16.mxu0 0
  %4367 = vmatpush1.bf16.msra.mxu0 0
  %4368 = vmatprep.subr.bf16.mxu0 0
  %4369 = vmatpush1.bf16.msra.mxu0 0
  %4370 = vmatprep.subr.bf16.mxu0 %v4064
  %4371 = vmatpush1.bf16.msra.mxu0 %v4063
  %4372 = vmatprep.subr.bf16.mxu0 %v4048
  %4373 = vmatpush1.bf16.msra.mxu0 %v4047
  %4374 = vmatprep.subr.bf16.mxu0 %v4032
  %4375 = vmatpush1.bf16.msra.mxu0 %v4031
  %4376 = vmatprep.subr.bf16.mxu0 %v4016
  %4377 = vmatpush1.bf16.msra.mxu0 %v4015
  %4378 = vmatprep.subr.bf16.mxu0 0
  %4379 = vmatpush2.bf16.msra.mxu0 0
  %4380 = vmatprep.subr.bf16.mxu0 0
  %4381 = vmatpush2.bf16.msra.mxu0 0
  %4382 = vmatprep.subr.bf16.mxu0 0
  %4383 = vmatpush2.bf16.msra.mxu0 0
  %4384 = vmatprep.subr.bf16.mxu0 0
  %4385 = vmatpush2.bf16.msra.mxu0 0
  %4386 = vmatprep.subr.bf16.mxu0 0
  %4387 = vmatpush2.bf16.msra.mxu0 0
  %4388 = vmatprep.subr.bf16.mxu0 0
  %4389 = vmatpush2.bf16.msra.mxu0 0
  %4390 = vmatprep.subr.bf16.mxu0 0
  %4391 = vmatpush2.bf16.msra.mxu0 0
  %4392 = vmatprep.subr.bf16.mxu0 0
  %4393 = vmatpush2.bf16.msra.mxu0 0
  %4394 = vmatprep.mubr.bf16.mxu0 0
  %4395 = vmatmul.mubr.bf16.gmra.mxu0 %v4138
  %v4396 = vpop.f32.mrf.mxu0
  %v4397 = vadd.f32 %v3764, %v4396
  %v4398 = vpop.f32.mrf.mxu0
  %v4399 = vadd.f32 %v3768, %v4398
  %v4400 = vpop.f32.mrf.mxu0
  %v4401 = vadd.f32 %v3764, %v4400
  %v4402 = vpop.f32.mrf.mxu0
  %v4403 = vadd.f32 %v3768, %v4402
  %4404 = vmatprep.mubr.bf16.mxu0 0
  %4405 = vmatmul.mubr.bf16.gmra.mxu0 %v4141
  %v4406 = vpop.f32.mrf.mxu0
  %v4407 = vadd.f32 %v3764, %v4406
  %v4408 = vpop.f32.mrf.mxu0
  %v4409 = vadd.f32 %v3768, %v4408
  %v4410 = vpop.f32.mrf.mxu0
  %v4411 = vadd.f32 %v3764, %v4410
  %v4412 = vpop.f32.mrf.mxu0
  %v4413 = vadd.f32 %v3768, %v4412
  %4414 = vmatprep.mubr.bf16.mxu0 0
  %4415 = vmatmul.mubr.bf16.gmra.mxu0 %v4144
  %v4416 = vpop.f32.mrf.mxu0
  %v4417 = vadd.f32 %v3764, %v4416
  %v4418 = vpop.f32.mrf.mxu0
  %v4419 = vadd.f32 %v3768, %v4418
  %v4420 = vpop.f32.mrf.mxu0
  %v4421 = vadd.f32 %v3764, %v4420
  %v4422 = vpop.f32.mrf.mxu0
  %v4423 = vadd.f32 %v3768, %v4422
  %4424 = vmatprep.mubr.bf16.mxu0 0
  %4425 = vmatmul.mubr.bf16.gmra.mxu0 %v4147
  %v4426 = vpop.f32.mrf.mxu0
  %v4427 = vadd.f32 %v3764, %v4426
  %v4428 = vpop.f32.mrf.mxu0
  %v4429 = vadd.f32 %v3768, %v4428
  %v4430 = vpop.f32.mrf.mxu0
  %v4431 = vpop.f32.mrf.mxu0
  %4432 = vdwg.mxu0
  %4433 = vmatprep.subr.bf16.mxu0 0
  %4434 = vmatpush1.bf16.msra.mxu0 0
  %4435 = vmatprep.subr.bf16.mxu0 0
  %4436 = vmatpush1.bf16.msra.mxu0 0
  %4437 = vmatprep.subr.bf16.mxu0 0
  %4438 = vmatpush1.bf16.msra.mxu0 0
  %4439 = vmatprep.subr.bf16.mxu0 0
  %4440 = vmatpush1.bf16.msra.mxu0 0
  %4441 = vmatprep.subr.bf16.mxu0 %v4066
  %4442 = vmatpush1.bf16.msra.mxu0 %v4065
  %4443 = vmatprep.subr.bf16.mxu0 %v4050
  %4444 = vmatpush1.bf16.msra.mxu0 %v4049
  %4445 = vmatprep.subr.bf16.mxu0 %v4034
  %4446 = vmatpush1.bf16.msra.mxu0 %v4033
  %4447 = vmatprep.subr.bf16.mxu0 %v4018
  %4448 = vmatpush1.bf16.msra.mxu0 %v4017
  %4449 = vmatprep.subr.bf16.mxu0 0
  %4450 = vmatpush2.bf16.msra.mxu0 0
  %4451 = vmatprep.subr.bf16.mxu0 0
  %4452 = vmatpush2.bf16.msra.mxu0 0
  %4453 = vmatprep.subr.bf16.mxu0 0
  %4454 = vmatpush2.bf16.msra.mxu0 0
  %4455 = vmatprep.subr.bf16.mxu0 0
  %4456 = vmatpush2.bf16.msra.mxu0 0
  %4457 = vmatprep.subr.bf16.mxu0 0
  %4458 = vmatpush2.bf16.msra.mxu0 0
  %4459 = vmatprep.subr.bf16.mxu0 0
  %4460 = vmatpush2.bf16.msra.mxu0 0
  %4461 = vmatprep.subr.bf16.mxu0 0
  %4462 = vmatpush2.bf16.msra.mxu0 0
  %4463 = vmatprep.subr.bf16.mxu0 0
  %4464 = vmatpush2.bf16.msra.mxu0 0
  %4465 = vmatprep.mubr.bf16.mxu0 0
  %4466 = vmatmul.mubr.bf16.gmra.mxu0 %v4138
  %v4467 = vpop.f32.mrf.mxu0
  %v4468 = vadd.f32 %v3772, %v4467
  %v4469 = vpop.f32.mrf.mxu0
  %v4470 = vadd.f32 %v3776, %v4469
  %v4471 = vpop.f32.mrf.mxu0
  %v4472 = vadd.f32 %v3772, %v4471
  %v4473 = vpop.f32.mrf.mxu0
  %v4474 = vadd.f32 %v3776, %v4473
  %4475 = vmatprep.mubr.bf16.mxu0 0
  %4476 = vmatmul.mubr.bf16.gmra.mxu0 %v4141
  %v4477 = vpop.f32.mrf.mxu0
  %v4478 = vadd.f32 %v3772, %v4477
  %v4479 = vpop.f32.mrf.mxu0
  %v4480 = vadd.f32 %v3776, %v4479
  %v4481 = vpop.f32.mrf.mxu0
  %v4482 = vadd.f32 %v3772, %v4481
  %v4483 = vpop.f32.mrf.mxu0
  %v4484 = vadd.f32 %v3776, %v4483
  %4485 = vmatprep.mubr.bf16.mxu0 0
  %4486 = vmatmul.mubr.bf16.gmra.mxu0 %v4144
  %v4487 = vpop.f32.mrf.mxu0
  %v4488 = vadd.f32 %v3772, %v4487
  %v4489 = vpop.f32.mrf.mxu0
  %v4490 = vadd.f32 %v3776, %v4489
  %v4491 = vpop.f32.mrf.mxu0
  %v4492 = vadd.f32 %v3772, %v4491
  %v4493 = vpop.f32.mrf.mxu0
  %v4494 = vadd.f32 %v3776, %v4493
  %4495 = vmatprep.mubr.bf16.mxu0 0
  %4496 = vmatmul.mubr.bf16.gmra.mxu0 %v4147
  %v4497 = vpop.f32.mrf.mxu0
  %v4498 = vadd.f32 %v3772, %v4497
  %v4499 = vpop.f32.mrf.mxu0
  %v4500 = vadd.f32 %v3776, %v4499
  %v4501 = vpop.f32.mrf.mxu0
  %v4502 = vpop.f32.mrf.mxu0
  %4503 = vdwg.mxu0
  %4504 = vmatprep.subr.bf16.mxu0 0
  %4505 = vmatpush1.bf16.msra.mxu0 0
  %4506 = vmatprep.subr.bf16.mxu0 0
  %4507 = vmatpush1.bf16.msra.mxu0 0
  %4508 = vmatprep.subr.bf16.mxu0 0
  %4509 = vmatpush1.bf16.msra.mxu0 0
  %4510 = vmatprep.subr.bf16.mxu0 0
  %4511 = vmatpush1.bf16.msra.mxu0 0
  %4512 = vmatprep.subr.bf16.mxu0 %v4068
  %4513 = vmatpush1.bf16.msra.mxu0 %v4067
  %4514 = vmatprep.subr.bf16.mxu0 %v4052
  %4515 = vmatpush1.bf16.msra.mxu0 %v4051
  %4516 = vmatprep.subr.bf16.mxu0 %v4036
  %4517 = vmatpush1.bf16.msra.mxu0 %v4035
  %4518 = vmatprep.subr.bf16.mxu0 %v4020
  %4519 = vmatpush1.bf16.msra.mxu0 %v4019
  %4520 = vmatprep.subr.bf16.mxu0 0
  %4521 = vmatpush2.bf16.msra.mxu0 0
  %4522 = vmatprep.subr.bf16.mxu0 0
  %4523 = vmatpush2.bf16.msra.mxu0 0
  %4524 = vmatprep.subr.bf16.mxu0 0
  %4525 = vmatpush2.bf16.msra.mxu0 0
  %4526 = vmatprep.subr.bf16.mxu0 0
  %4527 = vmatpush2.bf16.msra.mxu0 0
  %4528 = vmatprep.subr.bf16.mxu0 0
  %4529 = vmatpush2.bf16.msra.mxu0 0
  %4530 = vmatprep.subr.bf16.mxu0 0
  %4531 = vmatpush2.bf16.msra.mxu0 0
  %4532 = vmatprep.subr.bf16.mxu0 0
  %4533 = vmatpush2.bf16.msra.mxu0 0
  %4534 = vmatprep.subr.bf16.mxu0 0
  %4535 = vmatpush2.bf16.msra.mxu0 0
  %4536 = vmatprep.mubr.bf16.mxu0 0
  %4537 = vmatmul.mubr.bf16.gmra.mxu0 %v4138
  %v4538 = vpop.f32.mrf.mxu0
  %v4539 = vadd.f32 %v3780, %v4538
  %v4540 = vpop.f32.mrf.mxu0
  %v4541 = vadd.f32 %v3784, %v4540
  %v4542 = vpop.f32.mrf.mxu0
  %v4543 = vadd.f32 %v3780, %v4542
  %v4544 = vpop.f32.mrf.mxu0
  %v4545 = vadd.f32 %v3784, %v4544
  %4546 = vmatprep.mubr.bf16.mxu0 0
  %4547 = vmatmul.mubr.bf16.gmra.mxu0 %v4141
  %v4548 = vpop.f32.mrf.mxu0
  %v4549 = vadd.f32 %v3780, %v4548
  %v4550 = vpop.f32.mrf.mxu0
  %v4551 = vadd.f32 %v3784, %v4550
  %v4552 = vpop.f32.mrf.mxu0
  %v4553 = vadd.f32 %v3780, %v4552
  %v4554 = vpop.f32.mrf.mxu0
  %v4555 = vadd.f32 %v3784, %v4554
  %4556 = vmatprep.mubr.bf16.mxu0 0
  %4557 = vmatmul.mubr.bf16.gmra.mxu0 %v4144
  %v4558 = vpop.f32.mrf.mxu0
  %v4559 = vadd.f32 %v3780, %v4558
  %v4560 = vpop.f32.mrf.mxu0
  %v4561 = vadd.f32 %v3784, %v4560
  %v4562 = vpop.f32.mrf.mxu0
  %v4563 = vadd.f32 %v3780, %v4562
  %v4564 = vpop.f32.mrf.mxu0
  %v4565 = vadd.f32 %v3784, %v4564
  %4566 = vmatprep.mubr.bf16.mxu0 0
  %4567 = vmatmul.mubr.bf16.gmra.mxu0 %v4147
  %v4568 = vpop.f32.mrf.mxu0
  %v4569 = vadd.f32 %v3780, %v4568
  %v4570 = vpop.f32.mrf.mxu0
  %v4571 = vadd.f32 %v3784, %v4570
  %v4572 = vpop.f32.mrf.mxu0
  %v4573 = vpop.f32.mrf.mxu0
  %4574 = vdwg.mxu0
  %4575 = vmatprep.subr.bf16.mxu0 0
  %4576 = vmatpush1.bf16.msra.mxu0 0
  %4577 = vmatprep.subr.bf16.mxu0 0
  %4578 = vmatpush1.bf16.msra.mxu0 0
  %4579 = vmatprep.subr.bf16.mxu0 0
  %4580 = vmatpush1.bf16.msra.mxu0 0
  %4581 = vmatprep.subr.bf16.mxu0 0
  %4582 = vmatpush1.bf16.msra.mxu0 0
  %4583 = vmatprep.subr.bf16.mxu0 %v4070
  %4584 = vmatpush1.bf16.msra.mxu0 %v4069
  %4585 = vmatprep.subr.bf16.mxu0 %v4054
  %4586 = vmatpush1.bf16.msra.mxu0 %v4053
  %4587 = vmatprep.subr.bf16.mxu0 %v4038
  %4588 = vmatpush1.bf16.msra.mxu0 %v4037
  %4589 = vmatprep.subr.bf16.mxu0 %v4022
  %4590 = vmatpush1.bf16.msra.mxu0 %v4021
  %4591 = vmatprep.subr.bf16.mxu0 0
  %4592 = vmatpush2.bf16.msra.mxu0 0
  %4593 = vmatprep.subr.bf16.mxu0 0
  %4594 = vmatpush2.bf16.msra.mxu0 0
  %4595 = vmatprep.subr.bf16.mxu0 0
  %4596 = vmatpush2.bf16.msra.mxu0 0
  %4597 = vmatprep.subr.bf16.mxu0 0
  %4598 = vmatpush2.bf16.msra.mxu0 0
  %4599 = vmatprep.subr.bf16.mxu0 0
  %4600 = vmatpush2.bf16.msra.mxu0 0
  %4601 = vmatprep.subr.bf16.mxu0 0
  %4602 = vmatpush2.bf16.msra.mxu0 0
  %4603 = vmatprep.subr.bf16.mxu0 0
  %4604 = vmatpush2.bf16.msra.mxu0 0
  %4605 = vmatprep.subr.bf16.mxu0 0
  %4606 = vmatpush2.bf16.msra.mxu0 0
  %4607 = vmatprep.mubr.bf16.mxu0 0
  %4608 = vmatmul.mubr.bf16.gmra.mxu0 %v4138
  %v4609 = vpop.f32.mrf.mxu0
  %v4610 = vadd.f32 %v3788, %v4609
  %v4611 = vpop.f32.mrf.mxu0
  %v4612 = vadd.f32 %v3792, %v4611
  %v4613 = vpop.f32.mrf.mxu0
  %v4614 = vadd.f32 %v3788, %v4613
  %v4615 = vpop.f32.mrf.mxu0
  %v4616 = vadd.f32 %v3792, %v4615
  %4617 = vmatprep.mubr.bf16.mxu0 0
  %4618 = vmatmul.mubr.bf16.gmra.mxu0 %v4141
  %v4619 = vpop.f32.mrf.mxu0
  %v4620 = vadd.f32 %v3788, %v4619
  %v4621 = vpop.f32.mrf.mxu0
  %v4622 = vadd.f32 %v3792, %v4621
  %v4623 = vpop.f32.mrf.mxu0
  %v4624 = vadd.f32 %v3788, %v4623
  %v4625 = vpop.f32.mrf.mxu0
  %v4626 = vadd.f32 %v3792, %v4625
  %4627 = vmatprep.mubr.bf16.mxu0 0
  %4628 = vmatmul.mubr.bf16.gmra.mxu0 %v4144
  %v4629 = vpop.f32.mrf.mxu0
  %v4630 = vadd.f32 %v3788, %v4629
  %v4631 = vpop.f32.mrf.mxu0
  %v4632 = vadd.f32 %v3792, %v4631
  %v4633 = vpop.f32.mrf.mxu0
  %v4634 = vadd.f32 %v3788, %v4633
  %v4635 = vpop.f32.mrf.mxu0
  %v4636 = vadd.f32 %v3792, %v4635
  %4637 = vmatprep.mubr.bf16.mxu0 0
  %4638 = vmatmul.mubr.bf16.gmra.mxu0 %v4147
  %v4639 = vpop.f32.mrf.mxu0
  %v4640 = vadd.f32 %v3788, %v4639
  %v4641 = vpop.f32.mrf.mxu0
  %v4642 = vadd.f32 %v3792, %v4641
  %v4643 = vpop.f32.mrf.mxu0
  %v4644 = vpop.f32.mrf.mxu0
  %4645 = vdwg.mxu0
  %4646 = vmatprep.subr.bf16.mxu0 0
  %4647 = vmatpush1.bf16.msra.mxu0 0
  %4648 = vmatprep.subr.bf16.mxu0 0
  %4649 = vmatpush1.bf16.msra.mxu0 0
  %4650 = vmatprep.subr.bf16.mxu0 0
  %4651 = vmatpush1.bf16.msra.mxu0 0
  %4652 = vmatprep.subr.bf16.mxu0 0
  %4653 = vmatpush1.bf16.msra.mxu0 0
  %4654 = vmatprep.subr.bf16.mxu0 %v4072
  %4655 = vmatpush1.bf16.msra.mxu0 %v4071
  %4656 = vmatprep.subr.bf16.mxu0 %v4056
  %4657 = vmatpush1.bf16.msra.mxu0 %v4055
  %4658 = vmatprep.subr.bf16.mxu0 %v4040
  %4659 = vmatpush1.bf16.msra.mxu0 %v4039
  %4660 = vmatprep.subr.bf16.mxu0 %v4024
  %4661 = vmatpush1.bf16.msra.mxu0 %v4023
  %4662 = vmatprep.subr.bf16.mxu0 0
  %4663 = vmatpush2.bf16.msra.mxu0 0
  %4664 = vmatprep.subr.bf16.mxu0 0
  %4665 = vmatpush2.bf16.msra.mxu0 0
  %4666 = vmatprep.subr.bf16.mxu0 0
  %4667 = vmatpush2.bf16.msra.mxu0 0
  %4668 = vmatprep.subr.bf16.mxu0 0
  %4669 = vmatpush2.bf16.msra.mxu0 0
  %4670 = vmatprep.subr.bf16.mxu0 0
  %4671 = vmatpush2.bf16.msra.mxu0 0
  %4672 = vmatprep.subr.bf16.mxu0 0
  %4673 = vmatpush2.bf16.msra.mxu0 0
  %4674 = vmatprep.subr.bf16.mxu0 0
  %4675 = vmatpush2.bf16.msra.mxu0 0
  %4676 = vmatprep.subr.bf16.mxu0 0
  %4677 = vmatpush2.bf16.msra.mxu0 0
  %4678 = vmatprep.mubr.bf16.mxu0 0
  %4679 = vmatmul.mubr.bf16.gmra.mxu0 %v4138
  %v4680 = vpop.f32.mrf.mxu0
  %v4681 = vadd.f32 %v3796, %v4680
  %v4682 = vpop.f32.mrf.mxu0
  %v4683 = vadd.f32 %v3800, %v4682
  %v4684 = vpop.f32.mrf.mxu0
  %v4685 = vadd.f32 %v3796, %v4684
  %v4686 = vpop.f32.mrf.mxu0
  %v4687 = vadd.f32 %v3800, %v4686
  %4688 = vmatprep.mubr.bf16.mxu0 0
  %4689 = vmatmul.mubr.bf16.gmra.mxu0 %v4141
  %v4690 = vpop.f32.mrf.mxu0
  %v4691 = vadd.f32 %v3796, %v4690
  %v4692 = vpop.f32.mrf.mxu0
  %v4693 = vadd.f32 %v3800, %v4692
  %v4694 = vpop.f32.mrf.mxu0
  %v4695 = vadd.f32 %v3796, %v4694
  %v4696 = vpop.f32.mrf.mxu0
  %v4697 = vadd.f32 %v3800, %v4696
  %4698 = vmatprep.mubr.bf16.mxu0 0
  %4699 = vmatmul.mubr.bf16.gmra.mxu0 %v4144
  %v4700 = vpop.f32.mrf.mxu0
  %v4701 = vadd.f32 %v3796, %v4700
  %v4702 = vpop.f32.mrf.mxu0
  %v4703 = vadd.f32 %v3800, %v4702
  %v4704 = vpop.f32.mrf.mxu0
  %v4705 = vadd.f32 %v3796, %v4704
  %v4706 = vpop.f32.mrf.mxu0
  %v4707 = vadd.f32 %v3800, %v4706
  %4708 = vmatprep.mubr.bf16.mxu0 0
  %4709 = vmatmul.mubr.bf16.gmra.mxu0 %v4147
  %v4710 = vpop.f32.mrf.mxu0
  %v4711 = vadd.f32 %v3796, %v4710
  %v4712 = vpop.f32.mrf.mxu0
  %v4713 = vadd.f32 %v3800, %v4712
  %v4714 = vpop.f32.mrf.mxu0
  %v4715 = vpop.f32.mrf.mxu0
  %4716 = vdwg.mxu0
  %v4717 = vmax.f32 %v4184, 0.0
  %v4718 = vmax.f32 %v4186, 0.0
  %v4719 = vmax.f32 %v4255, 0.0
  %v4720 = vmax.f32 %v4257, 0.0
  %v4721 = vmax.f32 %v4326, 0.0
  %v4722 = vmax.f32 %v4328, 0.0
  %v4723 = vmax.f32 %v4397, 0.0
  %v4724 = vmax.f32 %v4399, 0.0
  %v4725 = vmax.f32 %v4468, 0.0
  %v4726 = vmax.f32 %v4470, 0.0
  %v4727 = vmax.f32 %v4539, 0.0
  %v4728 = vmax.f32 %v4541, 0.0
  %v4729 = vmax.f32 %v4610, 0.0
  %v4730 = vmax.f32 %v4612, 0.0
  %v4731 = vmax.f32 %v4681, 0.0
  %v4732 = vmax.f32 %v4683, 0.0
  %v4733 = vmax.f32 %v4188, 0.0
  %v4734 = vmax.f32 %v4190, 0.0
  %v4735 = vmax.f32 %v4259, 0.0
  %v4736 = vmax.f32 %v4261, 0.0
  %v4737 = vmax.f32 %v4330, 0.0
  %v4738 = vmax.f32 %v4332, 0.0
  %v4739 = vmax.f32 %v4401, 0.0
  %v4740 = vmax.f32 %v4403, 0.0
  %v4741 = vmax.f32 %v4472, 0.0
  %v4742 = vmax.f32 %v4474, 0.0
  %v4743 = vmax.f32 %v4543, 0.0
  %v4744 = vmax.f32 %v4545, 0.0
  %v4745 = vmax.f32 %v4614, 0.0
  %v4746 = vmax.f32 %v4616, 0.0
  %v4747 = vmax.f32 %v4685, 0.0
  %v4748 = vmax.f32 %v4687, 0.0
  %v4749 = vmax.f32 %v4194, 0.0
  %v4750 = vmax.f32 %v4196, 0.0
  %v4751 = vmax.f32 %v4265, 0.0
  %v4752 = vmax.f32 %v4267, 0.0
  %v4753 = vmax.f32 %v4336, 0.0
  %v4754 = vmax.f32 %v4338, 0.0
  %v4755 = vmax.f32 %v4407, 0.0
  %v4756 = vmax.f32 %v4409, 0.0
  %v4757 = vmax.f32 %v4478, 0.0
  %v4758 = vmax.f32 %v4480, 0.0
  %v4759 = vmax.f32 %v4549, 0.0
  %v4760 = vmax.f32 %v4551, 0.0
  %v4761 = vmax.f32 %v4620, 0.0
  %v4762 = vmax.f32 %v4622, 0.0
  %v4763 = vmax.f32 %v4691, 0.0
  %v4764 = vmax.f32 %v4693, 0.0
  %v4765 = vmax.f32 %v4198, 0.0
  %v4766 = vmax.f32 %v4200, 0.0
  %v4767 = vmax.f32 %v4269, 0.0
  %v4768 = vmax.f32 %v4271, 0.0
  %v4769 = vmax.f32 %v4340, 0.0
  %v4770 = vmax.f32 %v4342, 0.0
  %v4771 = vmax.f32 %v4411, 0.0
  %v4772 = vmax.f32 %v4413, 0.0
  %v4773 = vmax.f32 %v4482, 0.0
  %v4774 = vmax.f32 %v4484, 0.0
  %v4775 = vmax.f32 %v4553, 0.0
  %v4776 = vmax.f32 %v4555, 0.0
  %v4777 = vmax.f32 %v4624, 0.0
  %v4778 = vmax.f32 %v4626, 0.0
  %v4779 = vmax.f32 %v4695, 0.0
  %v4780 = vmax.f32 %v4697, 0.0
  %v4781 = vmax.f32 %v4204, 0.0
  %v4782 = vmax.f32 %v4206, 0.0
  %v4783 = vmax.f32 %v4275, 0.0
  %v4784 = vmax.f32 %v4277, 0.0
  %v4785 = vmax.f32 %v4346, 0.0
  %v4786 = vmax.f32 %v4348, 0.0
  %v4787 = vmax.f32 %v4417, 0.0
  %v4788 = vmax.f32 %v4419, 0.0
  %v4789 = vmax.f32 %v4488, 0.0
  %v4790 = vmax.f32 %v4490, 0.0
  %v4791 = vmax.f32 %v4559, 0.0
  %v4792 = vmax.f32 %v4561, 0.0
  %v4793 = vmax.f32 %v4630, 0.0
  %v4794 = vmax.f32 %v4632, 0.0
  %v4795 = vmax.f32 %v4701, 0.0
  %v4796 = vmax.f32 %v4703, 0.0
  %v4797 = vmax.f32 %v4208, 0.0
  %v4798 = vmax.f32 %v4210, 0.0
  %v4799 = vmax.f32 %v4279, 0.0
  %v4800 = vmax.f32 %v4281, 0.0
  %v4801 = vmax.f32 %v4350, 0.0
  %v4802 = vmax.f32 %v4352, 0.0
  %v4803 = vmax.f32 %v4421, 0.0
  %v4804 = vmax.f32 %v4423, 0.0
  %v4805 = vmax.f32 %v4492, 0.0
  %v4806 = vmax.f32 %v4494, 0.0
  %v4807 = vmax.f32 %v4563, 0.0
  %v4808 = vmax.f32 %v4565, 0.0
  %v4809 = vmax.f32 %v4634, 0.0
  %v4810 = vmax.f32 %v4636, 0.0
  %v4811 = vmax.f32 %v4705, 0.0
  %v4812 = vmax.f32 %v4707, 0.0
  %v4813 = vmax.f32 %v4214, 0.0
  %v4814 = vmax.f32 %v4216, 0.0
  %v4815 = vmax.f32 %v4285, 0.0
  %v4816 = vmax.f32 %v4287, 0.0
  %v4817 = vmax.f32 %v4356, 0.0
  %v4818 = vmax.f32 %v4358, 0.0
  %v4819 = vmax.f32 %v4427, 0.0
  %v4820 = vmax.f32 %v4429, 0.0
  %v4821 = vmax.f32 %v4498, 0.0
  %v4822 = vmax.f32 %v4500, 0.0
  %v4823 = vmax.f32 %v4569, 0.0
  %v4824 = vmax.f32 %v4571, 0.0
  %v4825 = vmax.f32 %v4640, 0.0
  %v4826 = vmax.f32 %v4642, 0.0
  %v4827 = vmax.f32 %v4711, 0.0
  %v4828 = vmax.f32 %v4713, 0.0
  %v4829 = vpack.c.bf16 %v4733, %v4717
  %v4830 = vpack.c.bf16 %v4734, %v4718
  %v4831 = vpack.c.bf16 %v4735, %v4719
  %v4832 = vpack.c.bf16 %v4736, %v4720
  %v4833 = vpack.c.bf16 %v4737, %v4721
  %v4834 = vpack.c.bf16 %v4738, %v4722
  %v4835 = vpack.c.bf16 %v4739, %v4723
  %v4836 = vpack.c.bf16 %v4740, %v4724
  %v4837 = vpack.c.bf16 %v4741, %v4725
  %v4838 = vpack.c.bf16 %v4742, %v4726
  %v4839 = vpack.c.bf16 %v4743, %v4727
  %v4840 = vpack.c.bf16 %v4744, %v4728
  %v4841 = vpack.c.bf16 %v4745, %v4729
  %v4842 = vpack.c.bf16 %v4746, %v4730
  %v4843 = vpack.c.bf16 %v4747, %v4731
  %v4844 = vpack.c.bf16 %v4748, %v4732
  %v4845 = vpack.c.bf16 %v4765, %v4749
  %v4846 = vpack.c.bf16 %v4766, %v4750
  %v4847 = vpack.c.bf16 %v4767, %v4751
  %v4848 = vpack.c.bf16 %v4768, %v4752
  %v4849 = vpack.c.bf16 %v4769, %v4753
  %v4850 = vpack.c.bf16 %v4770, %v4754
  %v4851 = vpack.c.bf16 %v4771, %v4755
  %v4852 = vpack.c.bf16 %v4772, %v4756
  %v4853 = vpack.c.bf16 %v4773, %v4757
  %v4854 = vpack.c.bf16 %v4774, %v4758
  %v4855 = vpack.c.bf16 %v4775, %v4759
  %v4856 = vpack.c.bf16 %v4776, %v4760
  %v4857 = vpack.c.bf16 %v4777, %v4761
  %v4858 = vpack.c.bf16 %v4778, %v4762
  %v4859 = vpack.c.bf16 %v4779, %v4763
  %v4860 = vpack.c.bf16 %v4780, %v4764
  %v4861 = vpack.c.bf16 %v4797, %v4781
  %v4862 = vpack.c.bf16 %v4798, %v4782
  %v4863 = vpack.c.bf16 %v4799, %v4783
  %v4864 = vpack.c.bf16 %v4800, %v4784
  %v4865 = vpack.c.bf16 %v4801, %v4785
  %v4866 = vpack.c.bf16 %v4802, %v4786
  %v4867 = vpack.c.bf16 %v4803, %v4787
  %v4868 = vpack.c.bf16 %v4804, %v4788
  %v4869 = vpack.c.bf16 %v4805, %v4789
  %v4870 = vpack.c.bf16 %v4806, %v4790
  %v4871 = vpack.c.bf16 %v4807, %v4791
  %v4872 = vpack.c.bf16 %v4808, %v4792
  %v4873 = vpack.c.bf16 %v4809, %v4793
  %v4874 = vpack.c.bf16 %v4810, %v4794
  %v4875 = vpack.c.bf16 %v4811, %v4795
  %v4876 = vpack.c.bf16 %v4812, %v4796
  %v4877 = vpack.c.bf16 %v4813, %v4813
  %v4878 = vpack.c.bf16 %v4814, %v4814
  %v4879 = vpack.c.bf16 %v4815, %v4815
  %v4880 = vpack.c.bf16 %v4816, %v4816
  %v4881 = vpack.c.bf16 %v4817, %v4817
  %v4882 = vpack.c.bf16 %v4818, %v4818
  %v4883 = vpack.c.bf16 %v4819, %v4819
  %v4884 = vpack.c.bf16 %v4820, %v4820
  %v4885 = vpack.c.bf16 %v4821, %v4821
  %v4886 = vpack.c.bf16 %v4822, %v4822
  %v4887 = vpack.c.bf16 %v4823, %v4823
  %v4888 = vpack.c.bf16 %v4824, %v4824
  %v4889 = vpack.c.bf16 %v4825, %v4825
  %v4890 = vpack.c.bf16 %v4826, %v4826
  %v4891 = vpack.c.bf16 %v4827, %v4827
  %v4892 = vpack.c.bf16 %v4828, %v4828
  %v4893 = vld [vmem:[%s10] sm:$0xf]
  %v4894 = vld [vmem:[%s10 + $0x4] sm:$0xf]
  %v4895 = vld [vmem:[%s10 + $0x8] sm:$0xf]
  %v4896 = vld [vmem:[%s10 + $0xc] sm:$0xf]
  %v4897 = vld [vmem:[%s10 + $0x10] sm:$0xf]
  %v4898 = vld [vmem:[%s10 + $0x14] sm:$0xf]
  %v4899 = vld [vmem:[%s10 + $0x18] sm:$0xf]
  %v4900 = vld [vmem:[%s10 + $0x1c] sm:$0xf]
  %v4901 = vld [vmem:[%s10 + $0x20] sm:$0xf]
  %v4902 = vld [vmem:[%s10 + $0x24] sm:$0xf]
  %v4903 = vld [vmem:[%s10 + $0x28] sm:$0xf]
  %v4904 = vld [vmem:[%s10 + $0x2c] sm:$0xf]
  %v4905 = vld [vmem:[%s10 + $0x30] sm:$0xf]
  %v4906 = vld [vmem:[%s10 + $0x34] sm:$0xf]
  %v4907 = vld [vmem:[%s10 + $0x38] sm:$0xf]
  %v4908 = vld [vmem:[%s10 + $0x3c] sm:$0xf]
  %v4909 = vld [vmem:[%s10 + $0x40] sm:$0xf]
  %v4910 = vld [vmem:[%s10 + $0x44] sm:$0xf]
  %v4911 = vld [vmem:[%s10 + $0x48] sm:$0xf]
  %v4912 = vld [vmem:[%s10 + $0x4c] sm:$0xf]
  %v4913 = vld [vmem:[%s10 + $0x50] sm:$0xf]
  %v4914 = vld [vmem:[%s10 + $0x54] sm:$0xf]
  %v4915 = vld [vmem:[%s10 + $0x58] sm:$0xf]
  %v4916 = vld [vmem:[%s10 + $0x5c] sm:$0xf]
  %v4917 = vld [vmem:[%s10 + $0x60] sm:$0xf]
  %v4918 = vld [vmem:[%s10 + $0x64] sm:$0xf]
  %v4919 = vld [vmem:[%s10 + $0x68] sm:$0xf]
  %v4920 = vld [vmem:[%s10 + $0x6c] sm:$0xf]
  %v4921 = vld [vmem:[%s10 + $0x70] sm:$0xf]
  %v4922 = vld [vmem:[%s10 + $0x74] sm:$0xf]
  %v4923 = vld [vmem:[%s10 + $0x78] sm:$0xf]
  %v4924 = vld [vmem:[%s10 + $0x7c] sm:$0xf]
  %v4925 = vld [vmem:[%s10 + $0x80] sm:$0xf]
  %v4926 = vld [vmem:[%s10 + $0x84] sm:$0xf]
  %v4927 = vld [vmem:[%s10 + $0x88] sm:$0xf]
  %v4928 = vld [vmem:[%s10 + $0x8c] sm:$0xf]
  %v4929 = vld [vmem:[%s10 + $0x90] sm:$0xf]
  %v4930 = vld [vmem:[%s10 + $0x94] sm:$0xf]
  %v4931 = vld [vmem:[%s10 + $0x98] sm:$0xf]
  %v4932 = vld [vmem:[%s10 + $0x9c] sm:$0xf]
  %v4933 = vld [vmem:[%s10 + $0xa0] sm:$0xf]
  %v4934 = vld [vmem:[%s10 + $0xa4] sm:$0xf]
  %v4935 = vld [vmem:[%s10 + $0xa8] sm:$0xf]
  %v4936 = vld [vmem:[%s10 + $0xac] sm:$0xf]
  %v4937 = vld [vmem:[%s10 + $0xb0] sm:$0xf]
  %v4938 = vld [vmem:[%s10 + $0xb4] sm:$0xf]
  %v4939 = vld [vmem:[%s10 + $0xb8] sm:$0xf]
  %v4940 = vld [vmem:[%s10 + $0xbc] sm:$0xf]
  %v4941 = vld [vmem:[%s10 + $0xc0] sm:$0xf]
  %v4942 = vld [vmem:[%s10 + $0xc4] sm:$0xf]
  %v4943 = vld [vmem:[%s10 + $0xc8] sm:$0xf]
  %v4944 = vld [vmem:[%s10 + $0xcc] sm:$0xf]
  %v4945 = vld [vmem:[%s10 + $0xd0] sm:$0xf]
  %v4946 = vld [vmem:[%s10 + $0xd4] sm:$0xf]
  %v4947 = vld [vmem:[%s10 + $0xd8] sm:$0xf]
  %v4948 = vld [vmem:[%s10 + $0xdc] sm:$0xf]
  %v4949 = vld [vmem:[%s10 + $0xe0] sm:$0xf]
  %v4950 = vld [vmem:[%s10 + $0xe4] sm:$0xf]
  %v4951 = vld [vmem:[%s10 + $0xe8] sm:$0xf]
  %v4952 = vld [vmem:[%s10 + $0xec] sm:$0xf]
  %v4953 = vld [vmem:[%s10 + $0xf0] sm:$0xf]
  %v4954 = vld [vmem:[%s10 + $0xf4] sm:$0xf]
  %v4955 = vld [vmem:[%s10 + $0xf8] sm:$0xf]
  %v4956 = vld [vmem:[%s10 + $0xfc] sm:$0xf]
  %v4957 = vld [vmem:[%s10 + $0x100] sm:$0xf]
  %v4958 = vld [vmem:[%s10 + $0x104] sm:$0xf]
  %v4959 = vld [vmem:[%s10 + $0x108] sm:$0xf]
  %v4960 = vld [vmem:[%s10 + $0x10c] sm:$0xf]
  %v4961 = vld [vmem:[%s10 + $0x110] sm:$0xf]
  %v4962 = vld [vmem:[%s10 + $0x114] sm:$0xf]
  %v4963 = vld [vmem:[%s10 + $0x118] sm:$0xf]
  %v4964 = vld [vmem:[%s10 + $0x11c] sm:$0xf]
  %v4965 = vld [vmem:[%s10 + $0x120] sm:$0xf]
  %v4966 = vld [vmem:[%s10 + $0x124] sm:$0xf]
  %v4967 = vld [vmem:[%s10 + $0x128] sm:$0xf]
  %v4968 = vld [vmem:[%s10 + $0x12c] sm:$0xf]
  %v4969 = vld [vmem:[%s10 + $0x130] sm:$0xf]
  %v4970 = vld [vmem:[%s10 + $0x134] sm:$0xf]
  %v4971 = vld [vmem:[%s10 + $0x138] sm:$0xf]
  %v4972 = vld [vmem:[%s10 + $0x13c] sm:$0xf]
  %v4973 = vld [vmem:[%s10 + $0x140] sm:$0xf]
  %v4974 = vld [vmem:[%s10 + $0x144] sm:$0xf]
  %v4975 = vld [vmem:[%s10 + $0x148] sm:$0xf]
  %v4976 = vld [vmem:[%s10 + $0x14c] sm:$0xf]
  %v4977 = vld [vmem:[%s10 + $0x150] sm:$0xf]
  %v4978 = vld [vmem:[%s10 + $0x154] sm:$0xf]
  %v4979 = vld [vmem:[%s10 + $0x158] sm:$0xf]
  %v4980 = vld [vmem:[%s10 + $0x15c] sm:$0xf]
  %v4981 = vld [vmem:[%s10 + $0x160] sm:$0xf]
  %v4982 = vld [vmem:[%s10 + $0x164] sm:$0xf]
  %v4983 = vld [vmem:[%s10 + $0x168] sm:$0xf]
  %v4984 = vld [vmem:[%s10 + $0x16c] sm:$0xf]
  %v4985 = vld [vmem:[%s10 + $0x170] sm:$0xf]
  %v4986 = vld [vmem:[%s10 + $0x174] sm:$0xf]
  %v4987 = vld [vmem:[%s10 + $0x178] sm:$0xf]
  %v4988 = vld [vmem:[%s10 + $0x17c] sm:$0xf]
  %v4989 = vld [vmem:[%s10 + $0x180] sm:$0xf]
  %v4990 = vld [vmem:[%s10 + $0x184] sm:$0xf]
  %v4991 = vld [vmem:[%s10 + $0x188] sm:$0xf]
  %v4992 = vld [vmem:[%s10 + $0x18c] sm:$0xf]
  %v4993 = vld [vmem:[%s10 + $0x190] sm:$0xf]
  %v4994 = vld [vmem:[%s10 + $0x194] sm:$0xf]
  %v4995 = vld [vmem:[%s10 + $0x198] sm:$0xf]
  %v4996 = vld [vmem:[%s10 + $0x19c] sm:$0xf]
  %v4997 = vld [vmem:[%s10 + $0x1a0] sm:$0xf]
  %v4998 = vld [vmem:[%s10 + $0x1a4] sm:$0xf]
  %v4999 = vld [vmem:[%s10 + $0x1a8] sm:$0xf]
  %v5000 = vld [vmem:[%s10 + $0x1ac] sm:$0xf]
  %v5001 = vld [vmem:[%s10 + $0x1b0] sm:$0xf]
  %v5002 = vld [vmem:[%s10 + $0x1b4] sm:$0xf]
  %v5003 = vld [vmem:[%s10 + $0x1b8] sm:$0xf]
  %v5004 = vld [vmem:[%s10 + $0x1bc] sm:$0xf]
  %v5005 = vld [vmem:[%s10 + $0x1c0] sm:$0xf]
  %v5006 = vld [vmem:[%s10 + $0x1c4] sm:$0xf]
  %v5007 = vld [vmem:[%s10 + $0x1c8] sm:$0xf]
  %v5008 = vld [vmem:[%s10 + $0x1cc] sm:$0xf]
  %v5009 = vld [vmem:[%s10 + $0x1d0] sm:$0xf]
  %v5010 = vld [vmem:[%s10 + $0x1d4] sm:$0xf]
  %v5011 = vld [vmem:[%s10 + $0x1d8] sm:$0xf]
  %v5012 = vld [vmem:[%s10 + $0x1dc] sm:$0xf]
  %v5013 = vld [vmem:[%s10 + $0x1e0] sm:$0xf]
  %v5014 = vld [vmem:[%s10 + $0x1e4] sm:$0xf]
  %v5015 = vld [vmem:[%s10 + $0x1e8] sm:$0xf]
  %v5016 = vld [vmem:[%s10 + $0x1ec] sm:$0xf]
  %v5017 = vld [vmem:[%s10 + $0x1f0] sm:$0xf]
  %v5018 = vld [vmem:[%s10 + $0x1f4] sm:$0xf]
  %v5019 = vld [vmem:[%s10 + $0x1f8] sm:$0xf]
  %v5020 = vld [vmem:[%s10 + $0x1fc] sm:$0xf]
  %v5021 = vld [vmem:[%s10 + $0x200] sm:$0xf]
  %v5022 = vld [vmem:[%s10 + $0x204] sm:$0xf]
  %v5023 = vld [vmem:[%s10 + $0x208] sm:$0xf]
  %v5024 = vld [vmem:[%s10 + $0x20c] sm:$0xf]
  %v5025 = vld [vmem:[%s10 + $0x210] sm:$0xf]
  %v5026 = vld [vmem:[%s10 + $0x214] sm:$0xf]
  %v5027 = vld [vmem:[%s10 + $0x218] sm:$0xf]
  %v5028 = vld [vmem:[%s10 + $0x21c] sm:$0xf]
  %v5029 = vld [vmem:[%s10 + $0x220] sm:$0xf]
  %v5030 = vld [vmem:[%s10 + $0x224] sm:$0xf]
  %v5031 = vld [vmem:[%s10 + $0x228] sm:$0xf]
  %v5032 = vld [vmem:[%s10 + $0x22c] sm:$0xf]
  %v5033 = vld [vmem:[%s10 + $0x230] sm:$0xf]
  %v5034 = vld [vmem:[%s10 + $0x234] sm:$0xf]
  %v5035 = vld [vmem:[%s10 + $0x238] sm:$0xf]
  %v5036 = vld [vmem:[%s10 + $0x23c] sm:$0xf]
  %v5037 = vld [vmem:[%s10 + $0x240] sm:$0xf]
  %v5038 = vld [vmem:[%s10 + $0x244] sm:$0xf]
  %v5039 = vld [vmem:[%s10 + $0x248] sm:$0xf]
  %v5040 = vld [vmem:[%s10 + $0x24c] sm:$0xf]
  %v5041 = vld [vmem:[%s10 + $0x250] sm:$0xf]
  %v5042 = vld [vmem:[%s10 + $0x254] sm:$0xf]
  %v5043 = vld [vmem:[%s10 + $0x258] sm:$0xf]
  %v5044 = vld [vmem:[%s10 + $0x25c] sm:$0xf]
  %v5045 = vld [vmem:[%s10 + $0x260] sm:$0xf]
  %v5046 = vld [vmem:[%s10 + $0x264] sm:$0xf]
  %v5047 = vld [vmem:[%s10 + $0x268] sm:$0xf]
  %v5048 = vld [vmem:[%s10 + $0x26c] sm:$0xf]
  %v5049 = vld [vmem:[%s10 + $0x270] sm:$0xf]
  %v5050 = vld [vmem:[%s10 + $0x274] sm:$0xf]
  %v5051 = vld [vmem:[%s10 + $0x278] sm:$0xf]
  %v5052 = vld [vmem:[%s10 + $0x27c] sm:$0xf]
  %v5053 = vld [vmem:[%s10 + $0x280] sm:$0xf]
  %v5054 = vld [vmem:[%s10 + $0x284] sm:$0xf]
  %v5055 = vld [vmem:[%s10 + $0x288] sm:$0xf]
  %v5056 = vld [vmem:[%s10 + $0x28c] sm:$0xf]
  %v5057 = vld [vmem:[%s10 + $0x290] sm:$0xf]
  %v5058 = vld [vmem:[%s10 + $0x294] sm:$0xf]
  %v5059 = vld [vmem:[%s10 + $0x298] sm:$0xf]
  %v5060 = vld [vmem:[%s10 + $0x29c] sm:$0xf]
  %v5061 = vld [vmem:[%s10 + $0x2a0] sm:$0xf]
  %v5062 = vld [vmem:[%s10 + $0x2a4] sm:$0xf]
  %v5063 = vld [vmem:[%s10 + $0x2a8] sm:$0xf]
  %v5064 = vld [vmem:[%s10 + $0x2ac] sm:$0xf]
  %v5065 = vld [vmem:[%s10 + $0x2b0] sm:$0xf]
  %v5066 = vld [vmem:[%s10 + $0x2b4] sm:$0xf]
  %v5067 = vld [vmem:[%s10 + $0x2b8] sm:$0xf]
  %v5068 = vld [vmem:[%s10 + $0x2bc] sm:$0xf]
  %v5069 = vld [vmem:[%s10 + $0x2c0] sm:$0xf]
  %v5070 = vld [vmem:[%s10 + $0x2c4] sm:$0xf]
  %v5071 = vld [vmem:[%s10 + $0x2c8] sm:$0xf]
  %v5072 = vld [vmem:[%s10 + $0x2cc] sm:$0xf]
  %v5073 = vld [vmem:[%s10 + $0x2d0] sm:$0xf]
  %v5074 = vld [vmem:[%s10 + $0x2d4] sm:$0xf]
  %v5075 = vld [vmem:[%s10 + $0x2d8] sm:$0xf]
  %v5076 = vld [vmem:[%s10 + $0x2dc] sm:$0xf]
  %v5077 = vld [vmem:[%s10 + $0x2e0] sm:$0xf]
  %v5078 = vld [vmem:[%s10 + $0x2e4] sm:$0xf]
  %v5079 = vld [vmem:[%s10 + $0x2e8] sm:$0xf]
  %v5080 = vld [vmem:[%s10 + $0x2ec] sm:$0xf]
  %v5081 = vld [vmem:[%s10 + $0x2f0] sm:$0xf]
  %v5082 = vld [vmem:[%s10 + $0x2f4] sm:$0xf]
  %v5083 = vld [vmem:[%s10 + $0x2f8] sm:$0xf]
  %v5084 = vld [vmem:[%s10 + $0x2fc] sm:$0xf]
  %v5085 = vld [vmem:[%s10 + $0x300] sm:$0xf]
  %v5086 = vld [vmem:[%s10 + $0x304] sm:$0xf]
  %v5087 = vld [vmem:[%s10 + $0x308] sm:$0xf]
  %v5088 = vld [vmem:[%s10 + $0x30c] sm:$0xf]
  %v5089 = vld [vmem:[%s10 + $0x310] sm:$0xf]
  %v5090 = vld [vmem:[%s10 + $0x314] sm:$0xf]
  %v5091 = vld [vmem:[%s10 + $0x318] sm:$0xf]
  %v5092 = vld [vmem:[%s10 + $0x31c] sm:$0xf]
  %v5093 = vld [vmem:[%s10 + $0x320] sm:$0xf]
  %v5094 = vld [vmem:[%s10 + $0x324] sm:$0xf]
  %v5095 = vld [vmem:[%s10 + $0x328] sm:$0xf]
  %v5096 = vld [vmem:[%s10 + $0x32c] sm:$0xf]
  %v5097 = vld [vmem:[%s10 + $0x330] sm:$0xf]
  %v5098 = vld [vmem:[%s10 + $0x334] sm:$0xf]
  %v5099 = vld [vmem:[%s10 + $0x338] sm:$0xf]
  %v5100 = vld [vmem:[%s10 + $0x33c] sm:$0xf]
  %v5101 = vld [vmem:[%s10 + $0x340] sm:$0xf]
  %v5102 = vld [vmem:[%s10 + $0x344] sm:$0xf]
  %v5103 = vld [vmem:[%s10 + $0x348] sm:$0xf]
  %v5104 = vld [vmem:[%s10 + $0x34c] sm:$0xf]
  %v5105 = vld [vmem:[%s10 + $0x350] sm:$0xf]
  %v5106 = vld [vmem:[%s10 + $0x354] sm:$0xf]
  %v5107 = vld [vmem:[%s10 + $0x358] sm:$0xf]
  %v5108 = vld [vmem:[%s10 + $0x35c] sm:$0xf]
  %v5109 = vld [vmem:[%s10 + $0x360] sm:$0xf]
  %v5110 = vld [vmem:[%s10 + $0x364] sm:$0xf]
  %v5111 = vld [vmem:[%s10 + $0x368] sm:$0xf]
  %v5112 = vld [vmem:[%s10 + $0x36c] sm:$0xf]
  %v5113 = vld [vmem:[%s10 + $0x370] sm:$0xf]
  %v5114 = vld [vmem:[%s10 + $0x374] sm:$0xf]
  %v5115 = vld [vmem:[%s10 + $0x378] sm:$0xf]
  %v5116 = vld [vmem:[%s10 + $0x37c] sm:$0xf]
  %v5117 = vld [vmem:[%s10 + $0x380] sm:$0xf]
  %v5118 = vld [vmem:[%s10 + $0x384] sm:$0xf]
  %v5119 = vld [vmem:[%s10 + $0x388] sm:$0xf]
  %v5120 = vld [vmem:[%s10 + $0x38c] sm:$0xf]
  %v5121 = vld [vmem:[%s10 + $0x390] sm:$0xf]
  %v5122 = vld [vmem:[%s10 + $0x394] sm:$0xf]
  %v5123 = vld [vmem:[%s10 + $0x398] sm:$0xf]
  %v5124 = vld [vmem:[%s10 + $0x39c] sm:$0xf]
  %v5125 = vld [vmem:[%s10 + $0x3a0] sm:$0xf]
  %v5126 = vld [vmem:[%s10 + $0x3a4] sm:$0xf]
  %v5127 = vld [vmem:[%s10 + $0x3a8] sm:$0xf]
  %v5128 = vld [vmem:[%s10 + $0x3ac] sm:$0xf]
  %v5129 = vld [vmem:[%s10 + $0x3b0] sm:$0xf]
  %v5130 = vld [vmem:[%s10 + $0x3b4] sm:$0xf]
  %v5131 = vld [vmem:[%s10 + $0x3b8] sm:$0xf]
  %v5132 = vld [vmem:[%s10 + $0x3bc] sm:$0xf]
  %v5133 = vld [vmem:[%s10 + $0x3c0] sm:$0xf]
  %v5134 = vld [vmem:[%s10 + $0x3c4] sm:$0xf]
  %v5135 = vld [vmem:[%s10 + $0x3c8] sm:$0xf]
  %v5136 = vld [vmem:[%s10 + $0x3cc] sm:$0xf]
  %v5137 = vld [vmem:[%s10 + $0x3d0] sm:$0xf]
  %v5138 = vld [vmem:[%s10 + $0x3d4] sm:$0xf]
  %v5139 = vld [vmem:[%s10 + $0x3d8] sm:$0xf]
  %v5140 = vld [vmem:[%s10 + $0x3dc] sm:$0xf]
  %v5141 = vld [vmem:[%s10 + $0x3e0] sm:$0xf]
  %v5142 = vld [vmem:[%s10 + $0x3e4] sm:$0xf]
  %v5143 = vld [vmem:[%s10 + $0x3e8] sm:$0xf]
  %v5144 = vld [vmem:[%s10 + $0x3ec] sm:$0xf]
  %v5145 = vld [vmem:[%s10 + $0x3f0] sm:$0xf]
  %v5146 = vld [vmem:[%s10 + $0x3f4] sm:$0xf]
  %v5147 = vld [vmem:[%s10 + $0x3f8] sm:$0xf]
  %v5148 = vld [vmem:[%s10 + $0x3fc] sm:$0xf]
  %v5149 = vld [vmem:[%s11] sm:$0x1]
  %v5151 = vlaneseq
  %v5152 = vshrl.u32 %v5151, 7
  %v5153 = vsub.s32 0, %v5152
  %v5154 = vrot.slane %v5149, %v5153
  %v5412 = vunpack.c.l.b16 %v4893
  %v5413 = vunpack.c.l.b16 %v4894
  %v5414 = vunpack.c.l.b16 %v4895
  %v5415 = vunpack.c.l.b16 %v4896
  %v5416 = vunpack.c.l.b16 %v4897
  %v5417 = vunpack.c.l.b16 %v4898
  %v5418 = vunpack.c.l.b16 %v4899
  %v5419 = vunpack.c.l.b16 %v4900
  %v5420 = vunpack.c.l.b16 %v4901
  %v5421 = vunpack.c.l.b16 %v4902
  %v5422 = vunpack.c.l.b16 %v4903
  %v5423 = vunpack.c.l.b16 %v4904
  %v5424 = vunpack.c.l.b16 %v4905
  %v5425 = vunpack.c.l.b16 %v4906
  %v5426 = vunpack.c.l.b16 %v4907
  %v5427 = vunpack.c.l.b16 %v4908
  %v5428 = vunpack.c.l.b16 %v4909
  %v5429 = vunpack.c.l.b16 %v4910
  %v5430 = vunpack.c.l.b16 %v4911
  %v5431 = vunpack.c.l.b16 %v4912
  %v5432 = vunpack.c.l.b16 %v4913
  %v5433 = vunpack.c.l.b16 %v4914
  %v5434 = vunpack.c.l.b16 %v4915
  %v5435 = vunpack.c.l.b16 %v4916
  %v5436 = vunpack.c.l.b16 %v4917
  %v5437 = vunpack.c.l.b16 %v4918
  %v5438 = vunpack.c.l.b16 %v4919
  %v5439 = vunpack.c.l.b16 %v4920
  %v5440 = vunpack.c.l.b16 %v4921
  %v5441 = vunpack.c.l.b16 %v4922
  %v5442 = vunpack.c.l.b16 %v4923
  %v5443 = vunpack.c.l.b16 %v4924
  %v5444 = vunpack.c.l.b16 %v4925
  %v5445 = vunpack.c.l.b16 %v4926
  %v5446 = vunpack.c.l.b16 %v4927
  %v5447 = vunpack.c.l.b16 %v4928
  %v5448 = vunpack.c.l.b16 %v4929
  %v5449 = vunpack.c.l.b16 %v4930
  %v5450 = vunpack.c.l.b16 %v4931
  %v5451 = vunpack.c.l.b16 %v4932
  %v5452 = vunpack.c.l.b16 %v4933
  %v5453 = vunpack.c.l.b16 %v4934
  %v5454 = vunpack.c.l.b16 %v4935
  %v5455 = vunpack.c.l.b16 %v4936
  %v5456 = vunpack.c.l.b16 %v4937
  %v5457 = vunpack.c.l.b16 %v4938
  %v5458 = vunpack.c.l.b16 %v4939
  %v5459 = vunpack.c.l.b16 %v4940
  %v5460 = vunpack.c.l.b16 %v4941
  %v5461 = vunpack.c.l.b16 %v4942
  %v5462 = vunpack.c.l.b16 %v4943
  %v5463 = vunpack.c.l.b16 %v4944
  %v5464 = vunpack.c.l.b16 %v4945
  %v5465 = vunpack.c.l.b16 %v4946
  %v5466 = vunpack.c.l.b16 %v4947
  %v5467 = vunpack.c.l.b16 %v4948
  %v5468 = vunpack.c.l.b16 %v4949
  %v5469 = vunpack.c.l.b16 %v4950
  %v5470 = vunpack.c.l.b16 %v4951
  %v5471 = vunpack.c.l.b16 %v4952
  %v5472 = vunpack.c.l.b16 %v4953
  %v5473 = vunpack.c.l.b16 %v4954
  %v5474 = vunpack.c.l.b16 %v4955
  %v5475 = vunpack.c.l.b16 %v4956
  %v5476 = vunpack.c.l.b16 %v4957
  %v5477 = vunpack.c.l.b16 %v4958
  %v5478 = vunpack.c.l.b16 %v4959
  %v5479 = vunpack.c.l.b16 %v4960
  %v5480 = vunpack.c.l.b16 %v4961
  %v5481 = vunpack.c.l.b16 %v4962
  %v5482 = vunpack.c.l.b16 %v4963
  %v5483 = vunpack.c.l.b16 %v4964
  %v5484 = vunpack.c.l.b16 %v4965
  %v5485 = vunpack.c.l.b16 %v4966
  %v5486 = vunpack.c.l.b16 %v4967
  %v5487 = vunpack.c.l.b16 %v4968
  %v5488 = vunpack.c.l.b16 %v4969
  %v5489 = vunpack.c.l.b16 %v4970
  %v5490 = vunpack.c.l.b16 %v4971
  %v5491 = vunpack.c.l.b16 %v4972
  %v5492 = vunpack.c.l.b16 %v4973
  %v5493 = vunpack.c.l.b16 %v4974
  %v5494 = vunpack.c.l.b16 %v4975
  %v5495 = vunpack.c.l.b16 %v4976
  %v5496 = vunpack.c.l.b16 %v4977
  %v5497 = vunpack.c.l.b16 %v4978
  %v5498 = vunpack.c.l.b16 %v4979
  %v5499 = vunpack.c.l.b16 %v4980
  %v5500 = vunpack.c.l.b16 %v4981
  %v5501 = vunpack.c.l.b16 %v4982
  %v5502 = vunpack.c.l.b16 %v4983
  %v5503 = vunpack.c.l.b16 %v4984
  %v5504 = vunpack.c.l.b16 %v4985
  %v5505 = vunpack.c.l.b16 %v4986
  %v5506 = vunpack.c.l.b16 %v4987
  %v5507 = vunpack.c.l.b16 %v4988
  %v5508 = vunpack.c.l.b16 %v4989
  %v5509 = vunpack.c.l.b16 %v4990
  %v5510 = vunpack.c.l.b16 %v4991
  %v5511 = vunpack.c.l.b16 %v4992
  %v5512 = vunpack.c.l.b16 %v4993
  %v5513 = vunpack.c.l.b16 %v4994
  %v5514 = vunpack.c.l.b16 %v4995
  %v5515 = vunpack.c.l.b16 %v4996
  %v5516 = vunpack.c.l.b16 %v4997
  %v5517 = vunpack.c.l.b16 %v4998
  %v5518 = vunpack.c.l.b16 %v4999
  %v5519 = vunpack.c.l.b16 %v5000
  %v5520 = vunpack.c.l.b16 %v5001
  %v5521 = vunpack.c.l.b16 %v5002
  %v5522 = vunpack.c.l.b16 %v5003
  %v5523 = vunpack.c.l.b16 %v5004
  %v5524 = vunpack.c.l.b16 %v5005
  %v5525 = vunpack.c.l.b16 %v5006
  %v5526 = vunpack.c.l.b16 %v5007
  %v5527 = vunpack.c.l.b16 %v5008
  %v5528 = vunpack.c.l.b16 %v5009
  %v5529 = vunpack.c.l.b16 %v5010
  %v5530 = vunpack.c.l.b16 %v5011
  %v5531 = vunpack.c.l.b16 %v5012
  %v5532 = vunpack.c.l.b16 %v5013
  %v5533 = vunpack.c.l.b16 %v5014
  %v5534 = vunpack.c.l.b16 %v5015
  %v5535 = vunpack.c.l.b16 %v5016
  %v5536 = vunpack.c.l.b16 %v5017
  %v5537 = vunpack.c.l.b16 %v5018
  %v5538 = vunpack.c.l.b16 %v5019
  %v5539 = vunpack.c.l.b16 %v5020
  %v5540 = vunpack.c.l.b16 %v5021
  %v5541 = vunpack.c.l.b16 %v5022
  %v5542 = vunpack.c.l.b16 %v5023
  %v5543 = vunpack.c.l.b16 %v5024
  %v5544 = vunpack.c.l.b16 %v5025
  %v5545 = vunpack.c.l.b16 %v5026
  %v5546 = vunpack.c.l.b16 %v5027
  %v5547 = vunpack.c.l.b16 %v5028
  %v5548 = vunpack.c.l.b16 %v5029
  %v5549 = vunpack.c.l.b16 %v5030
  %v5550 = vunpack.c.l.b16 %v5031
  %v5551 = vunpack.c.l.b16 %v5032
  %v5552 = vunpack.c.l.b16 %v5033
  %v5553 = vunpack.c.l.b16 %v5034
  %v5554 = vunpack.c.l.b16 %v5035
  %v5555 = vunpack.c.l.b16 %v5036
  %v5556 = vunpack.c.l.b16 %v5037
  %v5557 = vunpack.c.l.b16 %v5038
  %v5558 = vunpack.c.l.b16 %v5039
  %v5559 = vunpack.c.l.b16 %v5040
  %v5560 = vunpack.c.l.b16 %v5041
  %v5561 = vunpack.c.l.b16 %v5042
  %v5562 = vunpack.c.l.b16 %v5043
  %v5563 = vunpack.c.l.b16 %v5044
  %v5564 = vunpack.c.l.b16 %v5045
  %v5565 = vunpack.c.l.b16 %v5046
  %v5566 = vunpack.c.l.b16 %v5047
  %v5567 = vunpack.c.l.b16 %v5048
  %v5568 = vunpack.c.l.b16 %v5049
  %v5569 = vunpack.c.l.b16 %v5050
  %v5570 = vunpack.c.l.b16 %v5051
  %v5571 = vunpack.c.l.b16 %v5052
  %v5572 = vunpack.c.l.b16 %v5053
  %v5573 = vunpack.c.l.b16 %v5054
  %v5574 = vunpack.c.l.b16 %v5055
  %v5575 = vunpack.c.l.b16 %v5056
  %v5576 = vunpack.c.l.b16 %v5057
  %v5577 = vunpack.c.l.b16 %v5058
  %v5578 = vunpack.c.l.b16 %v5059
  %v5579 = vunpack.c.l.b16 %v5060
  %v5580 = vunpack.c.l.b16 %v5061
  %v5581 = vunpack.c.l.b16 %v5062
  %v5582 = vunpack.c.l.b16 %v5063
  %v5583 = vunpack.c.l.b16 %v5064
  %v5584 = vunpack.c.l.b16 %v5065
  %v5585 = vunpack.c.l.b16 %v5066
  %v5586 = vunpack.c.l.b16 %v5067
  %v5587 = vunpack.c.l.b16 %v5068
  %v5588 = vunpack.c.l.b16 %v5069
  %v5589 = vunpack.c.l.b16 %v5070
  %v5590 = vunpack.c.l.b16 %v5071
  %v5591 = vunpack.c.l.b16 %v5072
  %v5592 = vunpack.c.l.b16 %v5073
  %v5593 = vunpack.c.l.b16 %v5074
  %v5594 = vunpack.c.l.b16 %v5075
  %v5595 = vunpack.c.l.b16 %v5076
  %v5596 = vunpack.c.l.b16 %v5077
  %v5597 = vunpack.c.l.b16 %v5078
  %v5598 = vunpack.c.l.b16 %v5079
  %v5599 = vunpack.c.l.b16 %v5080
  %v5600 = vunpack.c.l.b16 %v5081
  %v5601 = vunpack.c.l.b16 %v5082
  %v5602 = vunpack.c.l.b16 %v5083
  %v5603 = vunpack.c.l.b16 %v5084
  %v5604 = vunpack.c.l.b16 %v5085
  %v5605 = vunpack.c.l.b16 %v5086
  %v5606 = vunpack.c.l.b16 %v5087
  %v5607 = vunpack.c.l.b16 %v5088
  %v5608 = vunpack.c.l.b16 %v5089
  %v5609 = vunpack.c.l.b16 %v5090
  %v5610 = vunpack.c.l.b16 %v5091
  %v5611 = vunpack.c.l.b16 %v5092
  %v5612 = vunpack.c.l.b16 %v5093
  %v5613 = vunpack.c.l.b16 %v5094
  %v5614 = vunpack.c.l.b16 %v5095
  %v5615 = vunpack.c.l.b16 %v5096
  %v5616 = vunpack.c.l.b16 %v5097
  %v5617 = vunpack.c.l.b16 %v5098
  %v5618 = vunpack.c.l.b16 %v5099
  %v5619 = vunpack.c.l.b16 %v5100
  %v5620 = vunpack.c.l.b16 %v5101
  %v5621 = vunpack.c.l.b16 %v5102
  %v5622 = vunpack.c.l.b16 %v5103
  %v5623 = vunpack.c.l.b16 %v5104
  %v5624 = vunpack.c.l.b16 %v5105
  %v5625 = vunpack.c.l.b16 %v5106
  %v5626 = vunpack.c.l.b16 %v5107
  %v5627 = vunpack.c.l.b16 %v5108
  %v5628 = vunpack.c.l.b16 %v5109
  %v5629 = vunpack.c.l.b16 %v5110
  %v5630 = vunpack.c.l.b16 %v5111
  %v5631 = vunpack.c.l.b16 %v5112
  %v5632 = vunpack.c.l.b16 %v5113
  %v5633 = vunpack.c.l.b16 %v5114
  %v5634 = vunpack.c.l.b16 %v5115
  %v5635 = vunpack.c.l.b16 %v5116
  %v5636 = vunpack.c.l.b16 %v5117
  %v5637 = vunpack.c.l.b16 %v5118
  %v5638 = vunpack.c.l.b16 %v5119
  %v5639 = vunpack.c.l.b16 %v5120
  %v5640 = vunpack.c.l.b16 %v5121
  %v5641 = vunpack.c.l.b16 %v5122
  %v5642 = vunpack.c.l.b16 %v5123
  %v5643 = vunpack.c.l.b16 %v5124
  %v5644 = vunpack.c.l.b16 %v5125
  %v5645 = vunpack.c.l.b16 %v5126
  %v5646 = vunpack.c.l.b16 %v5127
  %v5647 = vunpack.c.l.b16 %v5128
  %v5648 = vunpack.c.l.b16 %v5129
  %v5649 = vunpack.c.l.b16 %v5130
  %v5650 = vunpack.c.l.b16 %v5131
  %v5651 = vunpack.c.l.b16 %v5132
  %v5652 = vunpack.c.l.b16 %v5133
  %v5653 = vunpack.c.l.b16 %v5134
  %v5654 = vunpack.c.l.b16 %v5135
  %v5655 = vunpack.c.l.b16 %v5136
  %v5656 = vunpack.c.l.b16 %v5137
  %v5657 = vunpack.c.l.b16 %v5138
  %v5658 = vunpack.c.l.b16 %v5139
  %v5659 = vunpack.c.l.b16 %v5140
  %v5660 = vunpack.c.l.b16 %v5141
  %v5661 = vunpack.c.l.b16 %v5142
  %v5662 = vunpack.c.l.b16 %v5143
  %v5663 = vunpack.c.l.b16 %v5144
  %v5664 = vunpack.c.l.b16 %v5145
  %v5665 = vunpack.c.l.b16 %v5146
  %v5666 = vunpack.c.l.b16 %v5147
  %v5667 = vunpack.c.l.b16 %v5148
  %v5668 = vpack.c.b16 %v5413, %v5412
  %v5669 = vpack.c.b16 %v5415, %v5414
  %v5670 = vpack.c.b16 %v5417, %v5416
  %v5671 = vpack.c.b16 %v5419, %v5418
  %v5672 = vpack.c.b16 %v5421, %v5420
  %v5673 = vpack.c.b16 %v5423, %v5422
  %v5674 = vpack.c.b16 %v5425, %v5424
  %v5675 = vpack.c.b16 %v5427, %v5426
  %v5676 = vpack.c.b16 %v5429, %v5428
  %v5677 = vpack.c.b16 %v5431, %v5430
  %v5678 = vpack.c.b16 %v5433, %v5432
  %v5679 = vpack.c.b16 %v5435, %v5434
  %v5680 = vpack.c.b16 %v5437, %v5436
  %v5681 = vpack.c.b16 %v5439, %v5438
  %v5682 = vpack.c.b16 %v5441, %v5440
  %v5683 = vpack.c.b16 %v5443, %v5442
  %v5684 = vpack.c.b16 %v5445, %v5444
  %v5685 = vpack.c.b16 %v5447, %v5446
  %v5686 = vpack.c.b16 %v5449, %v5448
  %v5687 = vpack.c.b16 %v5451, %v5450
  %v5688 = vpack.c.b16 %v5453, %v5452
  %v5689 = vpack.c.b16 %v5455, %v5454
  %v5690 = vpack.c.b16 %v5457, %v5456
  %v5691 = vpack.c.b16 %v5459, %v5458
  %v5692 = vpack.c.b16 %v5461, %v5460
  %v5693 = vpack.c.b16 %v5463, %v5462
  %v5694 = vpack.c.b16 %v5465, %v5464
  %v5695 = vpack.c.b16 %v5467, %v5466
  %v5696 = vpack.c.b16 %v5469, %v5468
  %v5697 = vpack.c.b16 %v5471, %v5470
  %v5698 = vpack.c.b16 %v5473, %v5472
  %v5699 = vpack.c.b16 %v5475, %v5474
  %v5700 = vpack.c.b16 %v5477, %v5476
  %v5701 = vpack.c.b16 %v5479, %v5478
  %v5702 = vpack.c.b16 %v5481, %v5480
  %v5703 = vpack.c.b16 %v5483, %v5482
  %v5704 = vpack.c.b16 %v5485, %v5484
  %v5705 = vpack.c.b16 %v5487, %v5486
  %v5706 = vpack.c.b16 %v5489, %v5488
  %v5707 = vpack.c.b16 %v5491, %v5490
  %v5708 = vpack.c.b16 %v5493, %v5492
  %v5709 = vpack.c.b16 %v5495, %v5494
  %v5710 = vpack.c.b16 %v5497, %v5496
  %v5711 = vpack.c.b16 %v5499, %v5498
  %v5712 = vpack.c.b16 %v5501, %v5500
  %v5713 = vpack.c.b16 %v5503, %v5502
  %v5714 = vpack.c.b16 %v5505, %v5504
  %v5715 = vpack.c.b16 %v5507, %v5506
  %v5716 = vpack.c.b16 %v5509, %v5508
  %v5717 = vpack.c.b16 %v5511, %v5510
  %v5718 = vpack.c.b16 %v5513, %v5512
  %v5719 = vpack.c.b16 %v5515, %v5514
  %v5720 = vpack.c.b16 %v5517, %v5516
  %v5721 = vpack.c.b16 %v5519, %v5518
  %v5722 = vpack.c.b16 %v5521, %v5520
  %v5723 = vpack.c.b16 %v5523, %v5522
  %v5724 = vpack.c.b16 %v5525, %v5524
  %v5725 = vpack.c.b16 %v5527, %v5526
  %v5726 = vpack.c.b16 %v5529, %v5528
  %v5727 = vpack.c.b16 %v5531, %v5530
  %v5728 = vpack.c.b16 %v5533, %v5532
  %v5729 = vpack.c.b16 %v5535, %v5534
  %v5730 = vpack.c.b16 %v5537, %v5536
  %v5731 = vpack.c.b16 %v5539, %v5538
  %v5732 = vpack.c.b16 %v5541, %v5540
  %v5733 = vpack.c.b16 %v5543, %v5542
  %v5734 = vpack.c.b16 %v5545, %v5544
  %v5735 = vpack.c.b16 %v5547, %v5546
  %v5736 = vpack.c.b16 %v5549, %v5548
  %v5737 = vpack.c.b16 %v5551, %v5550
  %v5738 = vpack.c.b16 %v5553, %v5552
  %v5739 = vpack.c.b16 %v5555, %v5554
  %v5740 = vpack.c.b16 %v5557, %v5556
  %v5741 = vpack.c.b16 %v5559, %v5558
  %v5742 = vpack.c.b16 %v5561, %v5560
  %v5743 = vpack.c.b16 %v5563, %v5562
  %v5744 = vpack.c.b16 %v5565, %v5564
  %v5745 = vpack.c.b16 %v5567, %v5566
  %v5746 = vpack.c.b16 %v5569, %v5568
  %v5747 = vpack.c.b16 %v5571, %v5570
  %v5748 = vpack.c.b16 %v5573, %v5572
  %v5749 = vpack.c.b16 %v5575, %v5574
  %v5750 = vpack.c.b16 %v5577, %v5576
  %v5751 = vpack.c.b16 %v5579, %v5578
  %v5752 = vpack.c.b16 %v5581, %v5580
  %v5753 = vpack.c.b16 %v5583, %v5582
  %v5754 = vpack.c.b16 %v5585, %v5584
  %v5755 = vpack.c.b16 %v5587, %v5586
  %v5756 = vpack.c.b16 %v5589, %v5588
  %v5757 = vpack.c.b16 %v5591, %v5590
  %v5758 = vpack.c.b16 %v5593, %v5592
  %v5759 = vpack.c.b16 %v5595, %v5594
  %v5760 = vpack.c.b16 %v5597, %v5596
  %v5761 = vpack.c.b16 %v5599, %v5598
  %v5762 = vpack.c.b16 %v5601, %v5600
  %v5763 = vpack.c.b16 %v5603, %v5602
  %v5764 = vpack.c.b16 %v5605, %v5604
  %v5765 = vpack.c.b16 %v5607, %v5606
  %v5766 = vpack.c.b16 %v5609, %v5608
  %v5767 = vpack.c.b16 %v5611, %v5610
  %v5768 = vpack.c.b16 %v5613, %v5612
  %v5769 = vpack.c.b16 %v5615, %v5614
  %v5770 = vpack.c.b16 %v5617, %v5616
  %v5771 = vpack.c.b16 %v5619, %v5618
  %v5772 = vpack.c.b16 %v5621, %v5620
  %v5773 = vpack.c.b16 %v5623, %v5622
  %v5774 = vpack.c.b16 %v5625, %v5624
  %v5775 = vpack.c.b16 %v5627, %v5626
  %v5776 = vpack.c.b16 %v5629, %v5628
  %v5777 = vpack.c.b16 %v5631, %v5630
  %v5778 = vpack.c.b16 %v5633, %v5632
  %v5779 = vpack.c.b16 %v5635, %v5634
  %v5780 = vpack.c.b16 %v5637, %v5636
  %v5781 = vpack.c.b16 %v5639, %v5638
  %v5782 = vpack.c.b16 %v5641, %v5640
  %v5783 = vpack.c.b16 %v5643, %v5642
  %v5784 = vpack.c.b16 %v5645, %v5644
  %v5785 = vpack.c.b16 %v5647, %v5646
  %v5786 = vpack.c.b16 %v5649, %v5648
  %v5787 = vpack.c.b16 %v5651, %v5650
  %v5788 = vpack.c.b16 %v5653, %v5652
  %v5789 = vpack.c.b16 %v5655, %v5654
  %v5790 = vpack.c.b16 %v5657, %v5656
  %v5791 = vpack.c.b16 %v5659, %v5658
  %v5792 = vpack.c.b16 %v5661, %v5660
  %v5793 = vpack.c.b16 %v5663, %v5662
  %v5794 = vpack.c.b16 %v5665, %v5664
  %v5795 = vpack.c.b16 %v5667, %v5666
  %5924 = vmatprep.subr.bf16.mxu0 0
  %5925 = vmatpush1.bf16.msra.mxu0 %v5675
  %5926 = vmatprep.subr.bf16.mxu0 0
  %5927 = vmatpush1.bf16.msra.mxu0 %v5674
  %5928 = vmatprep.subr.bf16.mxu0 0
  %5929 = vmatpush1.bf16.msra.mxu0 %v5673
  %5930 = vmatprep.subr.bf16.mxu0 0
  %5931 = vmatpush1.bf16.msra.mxu0 %v5672
  %5932 = vmatprep.subr.bf16.mxu0 0
  %5933 = vmatpush1.bf16.msra.mxu0 %v5671
  %5934 = vmatprep.subr.bf16.mxu0 0
  %5935 = vmatpush1.bf16.msra.mxu0 %v5670
  %5936 = vmatprep.subr.bf16.mxu0 0
  %5937 = vmatpush1.bf16.msra.mxu0 %v5669
  %5938 = vmatprep.subr.bf16.mxu0 0
  %5939 = vmatpush1.bf16.msra.mxu0 %v5668
  %5940 = vmatprep.subr.bf16.mxu0 0
  %5941 = vmatpush2.bf16.msra.mxu0 %v5683
  %5942 = vmatprep.subr.bf16.mxu0 0
  %5943 = vmatpush2.bf16.msra.mxu0 %v5682
  %5944 = vmatprep.subr.bf16.mxu0 0
  %5945 = vmatpush2.bf16.msra.mxu0 %v5681
  %5946 = vmatprep.subr.bf16.mxu0 0
  %5947 = vmatpush2.bf16.msra.mxu0 %v5680
  %5948 = vmatprep.subr.bf16.mxu0 0
  %5949 = vmatpush2.bf16.msra.mxu0 %v5679
  %5950 = vmatprep.subr.bf16.mxu0 0
  %5951 = vmatpush2.bf16.msra.mxu0 %v5678
  %5952 = vmatprep.subr.bf16.mxu0 0
  %5953 = vmatpush2.bf16.msra.mxu0 %v5677
  %5954 = vmatprep.subr.bf16.mxu0 0
  %5955 = vmatpush2.bf16.msra.mxu0 %v5676
  %5956 = vmatprep.mubr.bf16.mxu0 %v4830
  %5957 = vmatmul.mubr.bf16.gmra.mxu0 %v4829
  %v5958 = vpop.f32.mrf.mxu0
  %v5959 = vadd.f32 %v5154, %v5958
  %v5960 = vpop.f32.mrf.mxu0
  %v5961 = vpop.f32.mrf.mxu0
  %v5962 = vadd.f32 %v5154, %v5961
  %v5963 = vpop.f32.mrf.mxu0
  %5964 = vmatprep.mubr.bf16.mxu0 %v4846
  %5965 = vmatmul.mubr.bf16.gmra.mxu0 %v4845
  %v5966 = vpop.f32.mrf.mxu0
  %v5967 = vadd.f32 %v5154, %v5966
  %v5968 = vpop.f32.mrf.mxu0
  %v5969 = vpop.f32.mrf.mxu0
  %v5970 = vadd.f32 %v5154, %v5969
  %v5971 = vpop.f32.mrf.mxu0
  %5972 = vmatprep.mubr.bf16.mxu0 %v4862
  %5973 = vmatmul.mubr.bf16.gmra.mxu0 %v4861
  %v5974 = vpop.f32.mrf.mxu0
  %v5975 = vadd.f32 %v5154, %v5974
  %v5976 = vpop.f32.mrf.mxu0
  %v5977 = vpop.f32.mrf.mxu0
  %v5978 = vadd.f32 %v5154, %v5977
  %v5979 = vpop.f32.mrf.mxu0
  %5980 = vmatprep.mubr.bf16.mxu0 %v4878
  %5981 = vmatmul.mubr.bf16.gmra.mxu0 %v4877
  %v5982 = vpop.f32.mrf.mxu0
  %v5983 = vadd.f32 %v5154, %v5982
  %v5984 = vpop.f32.mrf.mxu0
  %v5985 = vpop.f32.mrf.mxu0
  %v5986 = vpop.f32.mrf.mxu0
  %5987 = vdwg.mxu0
  %5988 = vmatprep.subr.bf16.mxu0 0
  %5989 = vmatpush1.bf16.msra.mxu0 %v5691
  %5990 = vmatprep.subr.bf16.mxu0 0
  %5991 = vmatpush1.bf16.msra.mxu0 %v5690
  %5992 = vmatprep.subr.bf16.mxu0 0
  %5993 = vmatpush1.bf16.msra.mxu0 %v5689
  %5994 = vmatprep.subr.bf16.mxu0 0
  %5995 = vmatpush1.bf16.msra.mxu0 %v5688
  %5996 = vmatprep.subr.bf16.mxu0 0
  %5997 = vmatpush1.bf16.msra.mxu0 %v5687
  %5998 = vmatprep.subr.bf16.mxu0 0
  %5999 = vmatpush1.bf16.msra.mxu0 %v5686
  %6000 = vmatprep.subr.bf16.mxu0 0
  %6001 = vmatpush1.bf16.msra.mxu0 %v5685
  %6002 = vmatprep.subr.bf16.mxu0 0
  %6003 = vmatpush1.bf16.msra.mxu0 %v5684
  %6004 = vmatprep.subr.bf16.mxu0 0
  %6005 = vmatpush2.bf16.msra.mxu0 %v5699
  %6006 = vmatprep.subr.bf16.mxu0 0
  %6007 = vmatpush2.bf16.msra.mxu0 %v5698
  %6008 = vmatprep.subr.bf16.mxu0 0
  %6009 = vmatpush2.bf16.msra.mxu0 %v5697
  %6010 = vmatprep.subr.bf16.mxu0 0
  %6011 = vmatpush2.bf16.msra.mxu0 %v5696
  %6012 = vmatprep.subr.bf16.mxu0 0
  %6013 = vmatpush2.bf16.msra.mxu0 %v5695
  %6014 = vmatprep.subr.bf16.mxu0 0
  %6015 = vmatpush2.bf16.msra.mxu0 %v5694
  %6016 = vmatprep.subr.bf16.mxu0 0
  %6017 = vmatpush2.bf16.msra.mxu0 %v5693
  %6018 = vmatprep.subr.bf16.mxu0 0
  %6019 = vmatpush2.bf16.msra.mxu0 %v5692
  %6020 = vmatprep.mubr.bf16.mxu0 %v4832
  %6021 = vmatmul.mubr.bf16.gmra.mxu0 %v4831
  %v6022 = vpop.f32.mrf.mxu0
  %v6023 = vadd.f32 %v5959, %v6022
  %v6024 = vpop.f32.mrf.mxu0
  %v6025 = vpop.f32.mrf.mxu0
  %v6026 = vadd.f32 %v5962, %v6025
  %v6027 = vpop.f32.mrf.mxu0
  %6028 = vmatprep.mubr.bf16.mxu0 %v4848
  %6029 = vmatmul.mubr.bf16.gmra.mxu0 %v4847
  %v6030 = vpop.f32.mrf.mxu0
  %v6031 = vadd.f32 %v5967, %v6030
  %v6032 = vpop.f32.mrf.mxu0
  %v6033 = vpop.f32.mrf.mxu0
  %v6034 = vadd.f32 %v5970, %v6033
  %v6035 = vpop.f32.mrf.mxu0
  %6036 = vmatprep.mubr.bf16.mxu0 %v4864
  %6037 = vmatmul.mubr.bf16.gmra.mxu0 %v4863
  %v6038 = vpop.f32.mrf.mxu0
  %v6039 = vadd.f32 %v5975, %v6038
  %v6040 = vpop.f32.mrf.mxu0
  %v6041 = vpop.f32.mrf.mxu0
  %v6042 = vadd.f32 %v5978, %v6041
  %v6043 = vpop.f32.mrf.mxu0
  %6044 = vmatprep.mubr.bf16.mxu0 %v4880
  %6045 = vmatmul.mubr.bf16.gmra.mxu0 %v4879
  %v6046 = vpop.f32.mrf.mxu0
  %v6047 = vadd.f32 %v5983, %v6046
  %v6048 = vpop.f32.mrf.mxu0
  %v6049 = vpop.f32.mrf.mxu0
  %v6050 = vpop.f32.mrf.mxu0
  %6051 = vdwg.mxu0
  %6052 = vmatprep.subr.bf16.mxu0 0
  %6053 = vmatpush1.bf16.msra.mxu0 %v5707
  %6054 = vmatprep.subr.bf16.mxu0 0
  %6055 = vmatpush1.bf16.msra.mxu0 %v5706
  %6056 = vmatprep.subr.bf16.mxu0 0
  %6057 = vmatpush1.bf16.msra.mxu0 %v5705
  %6058 = vmatprep.subr.bf16.mxu0 0
  %6059 = vmatpush1.bf16.msra.mxu0 %v5704
  %6060 = vmatprep.subr.bf16.mxu0 0
  %6061 = vmatpush1.bf16.msra.mxu0 %v5703
  %6062 = vmatprep.subr.bf16.mxu0 0
  %6063 = vmatpush1.bf16.msra.mxu0 %v5702
  %6064 = vmatprep.subr.bf16.mxu0 0
  %6065 = vmatpush1.bf16.msra.mxu0 %v5701
  %6066 = vmatprep.subr.bf16.mxu0 0
  %6067 = vmatpush1.bf16.msra.mxu0 %v5700
  %6068 = vmatprep.subr.bf16.mxu0 0
  %6069 = vmatpush2.bf16.msra.mxu0 %v5715
  %6070 = vmatprep.subr.bf16.mxu0 0
  %6071 = vmatpush2.bf16.msra.mxu0 %v5714
  %6072 = vmatprep.subr.bf16.mxu0 0
  %6073 = vmatpush2.bf16.msra.mxu0 %v5713
  %6074 = vmatprep.subr.bf16.mxu0 0
  %6075 = vmatpush2.bf16.msra.mxu0 %v5712
  %6076 = vmatprep.subr.bf16.mxu0 0
  %6077 = vmatpush2.bf16.msra.mxu0 %v5711
  %6078 = vmatprep.subr.bf16.mxu0 0
  %6079 = vmatpush2.bf16.msra.mxu0 %v5710
  %6080 = vmatprep.subr.bf16.mxu0 0
  %6081 = vmatpush2.bf16.msra.mxu0 %v5709
  %6082 = vmatprep.subr.bf16.mxu0 0
  %6083 = vmatpush2.bf16.msra.mxu0 %v5708
  %6084 = vmatprep.mubr.bf16.mxu0 %v4834
  %6085 = vmatmul.mubr.bf16.gmra.mxu0 %v4833
  %v6086 = vpop.f32.mrf.mxu0
  %v6087 = vadd.f32 %v6023, %v6086
  %v6088 = vpop.f32.mrf.mxu0
  %v6089 = vpop.f32.mrf.mxu0
  %v6090 = vadd.f32 %v6026, %v6089
  %v6091 = vpop.f32.mrf.mxu0
  %6092 = vmatprep.mubr.bf16.mxu0 %v4850
  %6093 = vmatmul.mubr.bf16.gmra.mxu0 %v4849
  %v6094 = vpop.f32.mrf.mxu0
  %v6095 = vadd.f32 %v6031, %v6094
  %v6096 = vpop.f32.mrf.mxu0
  %v6097 = vpop.f32.mrf.mxu0
  %v6098 = vadd.f32 %v6034, %v6097
  %v6099 = vpop.f32.mrf.mxu0
  %6100 = vmatprep.mubr.bf16.mxu0 %v4866
  %6101 = vmatmul.mubr.bf16.gmra.mxu0 %v4865
  %v6102 = vpop.f32.mrf.mxu0
  %v6103 = vadd.f32 %v6039, %v6102
  %v6104 = vpop.f32.mrf.mxu0
  %v6105 = vpop.f32.mrf.mxu0
  %v6106 = vadd.f32 %v6042, %v6105
  %v6107 = vpop.f32.mrf.mxu0
  %6108 = vmatprep.mubr.bf16.mxu0 %v4882
  %6109 = vmatmul.mubr.bf16.gmra.mxu0 %v4881
  %v6110 = vpop.f32.mrf.mxu0
  %v6111 = vadd.f32 %v6047, %v6110
  %v6112 = vpop.f32.mrf.mxu0
  %v6113 = vpop.f32.mrf.mxu0
  %v6114 = vpop.f32.mrf.mxu0
  %6115 = vdwg.mxu0
  %6116 = vmatprep.subr.bf16.mxu0 0
  %6117 = vmatpush1.bf16.msra.mxu0 %v5723
  %6118 = vmatprep.subr.bf16.mxu0 0
  %6119 = vmatpush1.bf16.msra.mxu0 %v5722
  %6120 = vmatprep.subr.bf16.mxu0 0
  %6121 = vmatpush1.bf16.msra.mxu0 %v5721
  %6122 = vmatprep.subr.bf16.mxu0 0
  %6123 = vmatpush1.bf16.msra.mxu0 %v5720
  %6124 = vmatprep.subr.bf16.mxu0 0
  %6125 = vmatpush1.bf16.msra.mxu0 %v5719
  %6126 = vmatprep.subr.bf16.mxu0 0
  %6127 = vmatpush1.bf16.msra.mxu0 %v5718
  %6128 = vmatprep.subr.bf16.mxu0 0
  %6129 = vmatpush1.bf16.msra.mxu0 %v5717
  %6130 = vmatprep.subr.bf16.mxu0 0
  %6131 = vmatpush1.bf16.msra.mxu0 %v5716
  %6132 = vmatprep.subr.bf16.mxu0 0
  %6133 = vmatpush2.bf16.msra.mxu0 %v5731
  %6134 = vmatprep.subr.bf16.mxu0 0
  %6135 = vmatpush2.bf16.msra.mxu0 %v5730
  %6136 = vmatprep.subr.bf16.mxu0 0
  %6137 = vmatpush2.bf16.msra.mxu0 %v5729
  %6138 = vmatprep.subr.bf16.mxu0 0
  %6139 = vmatpush2.bf16.msra.mxu0 %v5728
  %6140 = vmatprep.subr.bf16.mxu0 0
  %6141 = vmatpush2.bf16.msra.mxu0 %v5727
  %6142 = vmatprep.subr.bf16.mxu0 0
  %6143 = vmatpush2.bf16.msra.mxu0 %v5726
  %6144 = vmatprep.subr.bf16.mxu0 0
  %6145 = vmatpush2.bf16.msra.mxu0 %v5725
  %6146 = vmatprep.subr.bf16.mxu0 0
  %6147 = vmatpush2.bf16.msra.mxu0 %v5724
  %6148 = vmatprep.mubr.bf16.mxu0 %v4836
  %6149 = vmatmul.mubr.bf16.gmra.mxu0 %v4835
  %v6150 = vpop.f32.mrf.mxu0
  %v6151 = vadd.f32 %v6087, %v6150
  %v6152 = vpop.f32.mrf.mxu0
  %v6153 = vpop.f32.mrf.mxu0
  %v6154 = vadd.f32 %v6090, %v6153
  %v6155 = vpop.f32.mrf.mxu0
  %6156 = vmatprep.mubr.bf16.mxu0 %v4852
  %6157 = vmatmul.mubr.bf16.gmra.mxu0 %v4851
  %v6158 = vpop.f32.mrf.mxu0
  %v6159 = vadd.f32 %v6095, %v6158
  %v6160 = vpop.f32.mrf.mxu0
  %v6161 = vpop.f32.mrf.mxu0
  %v6162 = vadd.f32 %v6098, %v6161
  %v6163 = vpop.f32.mrf.mxu0
  %6164 = vmatprep.mubr.bf16.mxu0 %v4868
  %6165 = vmatmul.mubr.bf16.gmra.mxu0 %v4867
  %v6166 = vpop.f32.mrf.mxu0
  %v6167 = vadd.f32 %v6103, %v6166
  %v6168 = vpop.f32.mrf.mxu0
  %v6169 = vpop.f32.mrf.mxu0
  %v6170 = vadd.f32 %v6106, %v6169
  %v6171 = vpop.f32.mrf.mxu0
  %6172 = vmatprep.mubr.bf16.mxu0 %v4884
  %6173 = vmatmul.mubr.bf16.gmra.mxu0 %v4883
  %v6174 = vpop.f32.mrf.mxu0
  %v6175 = vadd.f32 %v6111, %v6174
  %v6176 = vpop.f32.mrf.mxu0
  %v6177 = vpop.f32.mrf.mxu0
  %v6178 = vpop.f32.mrf.mxu0
  %6179 = vdwg.mxu0
  %6180 = vmatprep.subr.bf16.mxu0 0
  %6181 = vmatpush1.bf16.msra.mxu0 %v5739
  %6182 = vmatprep.subr.bf16.mxu0 0
  %6183 = vmatpush1.bf16.msra.mxu0 %v5738
  %6184 = vmatprep.subr.bf16.mxu0 0
  %6185 = vmatpush1.bf16.msra.mxu0 %v5737
  %6186 = vmatprep.subr.bf16.mxu0 0
  %6187 = vmatpush1.bf16.msra.mxu0 %v5736
  %6188 = vmatprep.subr.bf16.mxu0 0
  %6189 = vmatpush1.bf16.msra.mxu0 %v5735
  %6190 = vmatprep.subr.bf16.mxu0 0
  %6191 = vmatpush1.bf16.msra.mxu0 %v5734
  %6192 = vmatprep.subr.bf16.mxu0 0
  %6193 = vmatpush1.bf16.msra.mxu0 %v5733
  %6194 = vmatprep.subr.bf16.mxu0 0
  %6195 = vmatpush1.bf16.msra.mxu0 %v5732
  %6196 = vmatprep.subr.bf16.mxu0 0
  %6197 = vmatpush2.bf16.msra.mxu0 %v5747
  %6198 = vmatprep.subr.bf16.mxu0 0
  %6199 = vmatpush2.bf16.msra.mxu0 %v5746
  %6200 = vmatprep.subr.bf16.mxu0 0
  %6201 = vmatpush2.bf16.msra.mxu0 %v5745
  %6202 = vmatprep.subr.bf16.mxu0 0
  %6203 = vmatpush2.bf16.msra.mxu0 %v5744
  %6204 = vmatprep.subr.bf16.mxu0 0
  %6205 = vmatpush2.bf16.msra.mxu0 %v5743
  %6206 = vmatprep.subr.bf16.mxu0 0
  %6207 = vmatpush2.bf16.msra.mxu0 %v5742
  %6208 = vmatprep.subr.bf16.mxu0 0
  %6209 = vmatpush2.bf16.msra.mxu0 %v5741
  %6210 = vmatprep.subr.bf16.mxu0 0
  %6211 = vmatpush2.bf16.msra.mxu0 %v5740
  %6212 = vmatprep.mubr.bf16.mxu0 %v4838
  %6213 = vmatmul.mubr.bf16.gmra.mxu0 %v4837
  %v6214 = vpop.f32.mrf.mxu0
  %v6215 = vadd.f32 %v6151, %v6214
  %v6216 = vpop.f32.mrf.mxu0
  %v6217 = vpop.f32.mrf.mxu0
  %v6218 = vadd.f32 %v6154, %v6217
  %v6219 = vpop.f32.mrf.mxu0
  %6220 = vmatprep.mubr.bf16.mxu0 %v4854
  %6221 = vmatmul.mubr.bf16.gmra.mxu0 %v4853
  %v6222 = vpop.f32.mrf.mxu0
  %v6223 = vadd.f32 %v6159, %v6222
  %v6224 = vpop.f32.mrf.mxu0
  %v6225 = vpop.f32.mrf.mxu0
  %v6226 = vadd.f32 %v6162, %v6225
  %v6227 = vpop.f32.mrf.mxu0
  %6228 = vmatprep.mubr.bf16.mxu0 %v4870
  %6229 = vmatmul.mubr.bf16.gmra.mxu0 %v4869
  %v6230 = vpop.f32.mrf.mxu0
  %v6231 = vadd.f32 %v6167, %v6230
  %v6232 = vpop.f32.mrf.mxu0
  %v6233 = vpop.f32.mrf.mxu0
  %v6234 = vadd.f32 %v6170, %v6233
  %v6235 = vpop.f32.mrf.mxu0
  %6236 = vmatprep.mubr.bf16.mxu0 %v4886
  %6237 = vmatmul.mubr.bf16.gmra.mxu0 %v4885
  %v6238 = vpop.f32.mrf.mxu0
  %v6239 = vadd.f32 %v6175, %v6238
  %v6240 = vpop.f32.mrf.mxu0
  %v6241 = vpop.f32.mrf.mxu0
  %v6242 = vpop.f32.mrf.mxu0
  %6243 = vdwg.mxu0
  %6244 = vmatprep.subr.bf16.mxu0 0
  %6245 = vmatpush1.bf16.msra.mxu0 %v5755
  %6246 = vmatprep.subr.bf16.mxu0 0
  %6247 = vmatpush1.bf16.msra.mxu0 %v5754
  %6248 = vmatprep.subr.bf16.mxu0 0
  %6249 = vmatpush1.bf16.msra.mxu0 %v5753
  %6250 = vmatprep.subr.bf16.mxu0 0
  %6251 = vmatpush1.bf16.msra.mxu0 %v5752
  %6252 = vmatprep.subr.bf16.mxu0 0
  %6253 = vmatpush1.bf16.msra.mxu0 %v5751
  %6254 = vmatprep.subr.bf16.mxu0 0
  %6255 = vmatpush1.bf16.msra.mxu0 %v5750
  %6256 = vmatprep.subr.bf16.mxu0 0
  %6257 = vmatpush1.bf16.msra.mxu0 %v5749
  %6258 = vmatprep.subr.bf16.mxu0 0
  %6259 = vmatpush1.bf16.msra.mxu0 %v5748
  %6260 = vmatprep.subr.bf16.mxu0 0
  %6261 = vmatpush2.bf16.msra.mxu0 %v5763
  %6262 = vmatprep.subr.bf16.mxu0 0
  %6263 = vmatpush2.bf16.msra.mxu0 %v5762
  %6264 = vmatprep.subr.bf16.mxu0 0
  %6265 = vmatpush2.bf16.msra.mxu0 %v5761
  %6266 = vmatprep.subr.bf16.mxu0 0
  %6267 = vmatpush2.bf16.msra.mxu0 %v5760
  %6268 = vmatprep.subr.bf16.mxu0 0
  %6269 = vmatpush2.bf16.msra.mxu0 %v5759
  %6270 = vmatprep.subr.bf16.mxu0 0
  %6271 = vmatpush2.bf16.msra.mxu0 %v5758
  %6272 = vmatprep.subr.bf16.mxu0 0
  %6273 = vmatpush2.bf16.msra.mxu0 %v5757
  %6274 = vmatprep.subr.bf16.mxu0 0
  %6275 = vmatpush2.bf16.msra.mxu0 %v5756
  %6276 = vmatprep.mubr.bf16.mxu0 %v4840
  %6277 = vmatmul.mubr.bf16.gmra.mxu0 %v4839
  %v6278 = vpop.f32.mrf.mxu0
  %v6279 = vadd.f32 %v6215, %v6278
  %v6280 = vpop.f32.mrf.mxu0
  %v6281 = vpop.f32.mrf.mxu0
  %v6282 = vadd.f32 %v6218, %v6281
  %v6283 = vpop.f32.mrf.mxu0
  %6284 = vmatprep.mubr.bf16.mxu0 %v4856
  %6285 = vmatmul.mubr.bf16.gmra.mxu0 %v4855
  %v6286 = vpop.f32.mrf.mxu0
  %v6287 = vadd.f32 %v6223, %v6286
  %v6288 = vpop.f32.mrf.mxu0
  %v6289 = vpop.f32.mrf.mxu0
  %v6290 = vadd.f32 %v6226, %v6289
  %v6291 = vpop.f32.mrf.mxu0
  %6292 = vmatprep.mubr.bf16.mxu0 %v4872
  %6293 = vmatmul.mubr.bf16.gmra.mxu0 %v4871
  %v6294 = vpop.f32.mrf.mxu0
  %v6295 = vadd.f32 %v6231, %v6294
  %v6296 = vpop.f32.mrf.mxu0
  %v6297 = vpop.f32.mrf.mxu0
  %v6298 = vadd.f32 %v6234, %v6297
  %v6299 = vpop.f32.mrf.mxu0
  %6300 = vmatprep.mubr.bf16.mxu0 %v4888
  %6301 = vmatmul.mubr.bf16.gmra.mxu0 %v4887
  %v6302 = vpop.f32.mrf.mxu0
  %v6303 = vadd.f32 %v6239, %v6302
  %v6304 = vpop.f32.mrf.mxu0
  %v6305 = vpop.f32.mrf.mxu0
  %v6306 = vpop.f32.mrf.mxu0
  %6307 = vdwg.mxu0
  %6308 = vmatprep.subr.bf16.mxu0 0
  %6309 = vmatpush1.bf16.msra.mxu0 %v5771
  %6310 = vmatprep.subr.bf16.mxu0 0
  %6311 = vmatpush1.bf16.msra.mxu0 %v5770
  %6312 = vmatprep.subr.bf16.mxu0 0
  %6313 = vmatpush1.bf16.msra.mxu0 %v5769
  %6314 = vmatprep.subr.bf16.mxu0 0
  %6315 = vmatpush1.bf16.msra.mxu0 %v5768
  %6316 = vmatprep.subr.bf16.mxu0 0
  %6317 = vmatpush1.bf16.msra.mxu0 %v5767
  %6318 = vmatprep.subr.bf16.mxu0 0
  %6319 = vmatpush1.bf16.msra.mxu0 %v5766
  %6320 = vmatprep.subr.bf16.mxu0 0
  %6321 = vmatpush1.bf16.msra.mxu0 %v5765
  %6322 = vmatprep.subr.bf16.mxu0 0
  %6323 = vmatpush1.bf16.msra.mxu0 %v5764
  %6324 = vmatprep.subr.bf16.mxu0 0
  %6325 = vmatpush2.bf16.msra.mxu0 %v5779
  %6326 = vmatprep.subr.bf16.mxu0 0
  %6327 = vmatpush2.bf16.msra.mxu0 %v5778
  %6328 = vmatprep.subr.bf16.mxu0 0
  %6329 = vmatpush2.bf16.msra.mxu0 %v5777
  %6330 = vmatprep.subr.bf16.mxu0 0
  %6331 = vmatpush2.bf16.msra.mxu0 %v5776
  %6332 = vmatprep.subr.bf16.mxu0 0
  %6333 = vmatpush2.bf16.msra.mxu0 %v5775
  %6334 = vmatprep.subr.bf16.mxu0 0
  %6335 = vmatpush2.bf16.msra.mxu0 %v5774
  %6336 = vmatprep.subr.bf16.mxu0 0
  %6337 = vmatpush2.bf16.msra.mxu0 %v5773
  %6338 = vmatprep.subr.bf16.mxu0 0
  %6339 = vmatpush2.bf16.msra.mxu0 %v5772
  %6340 = vmatprep.mubr.bf16.mxu0 %v4842
  %6341 = vmatmul.mubr.bf16.gmra.mxu0 %v4841
  %v6342 = vpop.f32.mrf.mxu0
  %v6343 = vadd.f32 %v6279, %v6342
  %v6344 = vpop.f32.mrf.mxu0
  %v6345 = vpop.f32.mrf.mxu0
  %v6346 = vadd.f32 %v6282, %v6345
  %v6347 = vpop.f32.mrf.mxu0
  %6348 = vmatprep.mubr.bf16.mxu0 %v4858
  %6349 = vmatmul.mubr.bf16.gmra.mxu0 %v4857
  %v6350 = vpop.f32.mrf.mxu0
  %v6351 = vadd.f32 %v6287, %v6350
  %v6352 = vpop.f32.mrf.mxu0
  %v6353 = vpop.f32.mrf.mxu0
  %v6354 = vadd.f32 %v6290, %v6353
  %v6355 = vpop.f32.mrf.mxu0
  %6356 = vmatprep.mubr.bf16.mxu0 %v4874
  %6357 = vmatmul.mubr.bf16.gmra.mxu0 %v4873
  %v6358 = vpop.f32.mrf.mxu0
  %v6359 = vadd.f32 %v6295, %v6358
  %v6360 = vpop.f32.mrf.mxu0
  %v6361 = vpop.f32.mrf.mxu0
  %v6362 = vadd.f32 %v6298, %v6361
  %v6363 = vpop.f32.mrf.mxu0
  %6364 = vmatprep.mubr.bf16.mxu0 %v4890
  %6365 = vmatmul.mubr.bf16.gmra.mxu0 %v4889
  %v6366 = vpop.f32.mrf.mxu0
  %v6367 = vadd.f32 %v6303, %v6366
  %v6368 = vpop.f32.mrf.mxu0
  %v6369 = vpop.f32.mrf.mxu0
  %v6370 = vpop.f32.mrf.mxu0
  %6371 = vdwg.mxu0
  %6372 = vmatprep.subr.bf16.mxu0 0
  %6373 = vmatpush1.bf16.msra.mxu0 %v5787
  %6374 = vmatprep.subr.bf16.mxu0 0
  %6375 = vmatpush1.bf16.msra.mxu0 %v5786
  %6376 = vmatprep.subr.bf16.mxu0 0
  %6377 = vmatpush1.bf16.msra.mxu0 %v5785
  %6378 = vmatprep.subr.bf16.mxu0 0
  %6379 = vmatpush1.bf16.msra.mxu0 %v5784
  %6380 = vmatprep.subr.bf16.mxu0 0
  %6381 = vmatpush1.bf16.msra.mxu0 %v5783
  %6382 = vmatprep.subr.bf16.mxu0 0
  %6383 = vmatpush1.bf16.msra.mxu0 %v5782
  %6384 = vmatprep.subr.bf16.mxu0 0
  %6385 = vmatpush1.bf16.msra.mxu0 %v5781
  %6386 = vmatprep.subr.bf16.mxu0 0
  %6387 = vmatpush1.bf16.msra.mxu0 %v5780
  %6388 = vmatprep.subr.bf16.mxu0 0
  %6389 = vmatpush2.bf16.msra.mxu0 %v5795
  %6390 = vmatprep.subr.bf16.mxu0 0
  %6391 = vmatpush2.bf16.msra.mxu0 %v5794
  %6392 = vmatprep.subr.bf16.mxu0 0
  %6393 = vmatpush2.bf16.msra.mxu0 %v5793
  %6394 = vmatprep.subr.bf16.mxu0 0
  %6395 = vmatpush2.bf16.msra.mxu0 %v5792
  %6396 = vmatprep.subr.bf16.mxu0 0
  %6397 = vmatpush2.bf16.msra.mxu0 %v5791
  %6398 = vmatprep.subr.bf16.mxu0 0
  %6399 = vmatpush2.bf16.msra.mxu0 %v5790
  %6400 = vmatprep.subr.bf16.mxu0 0
  %6401 = vmatpush2.bf16.msra.mxu0 %v5789
  %6402 = vmatprep.subr.bf16.mxu0 0
  %6403 = vmatpush2.bf16.msra.mxu0 %v5788
  %6404 = vmatprep.mubr.bf16.mxu0 %v4844
  %6405 = vmatmul.mubr.bf16.gmra.mxu0 %v4843
  %v6406 = vpop.f32.mrf.mxu0
  %v6407 = vadd.f32 %v6343, %v6406
  %v6408 = vpop.f32.mrf.mxu0
  %v6409 = vpop.f32.mrf.mxu0
  %v6410 = vadd.f32 %v6346, %v6409
  %v6411 = vpop.f32.mrf.mxu0
  %6412 = vmatprep.mubr.bf16.mxu0 %v4860
  %6413 = vmatmul.mubr.bf16.gmra.mxu0 %v4859
  %v6414 = vpop.f32.mrf.mxu0
  %v6415 = vadd.f32 %v6351, %v6414
  %v6416 = vpop.f32.mrf.mxu0
  %v6417 = vpop.f32.mrf.mxu0
  %v6418 = vadd.f32 %v6354, %v6417
  %v6419 = vpop.f32.mrf.mxu0
  %6420 = vmatprep.mubr.bf16.mxu0 %v4876
  %6421 = vmatmul.mubr.bf16.gmra.mxu0 %v4875
  %v6422 = vpop.f32.mrf.mxu0
  %v6423 = vadd.f32 %v6359, %v6422
  %v6424 = vpop.f32.mrf.mxu0
  %v6425 = vpop.f32.mrf.mxu0
  %v6426 = vadd.f32 %v6362, %v6425
  %v6427 = vpop.f32.mrf.mxu0
  %6428 = vmatprep.mubr.bf16.mxu0 %v4892
  %6429 = vmatmul.mubr.bf16.gmra.mxu0 %v4891
  %v6430 = vpop.f32.mrf.mxu0
  %v6431 = vadd.f32 %v6367, %v6430
  %v6432 = vpop.f32.mrf.mxu0
  %v6433 = vpop.f32.mrf.mxu0
  %v6434 = vpop.f32.mrf.mxu0
  %6435 = vdwg.mxu0
  %v6436 = vadd.f32 %v3658, %v6407
  %v6437 = vadd.f32 %v3659, %v6410
  %v6438 = vadd.f32 %v3660, %v6415
  %v6439 = vadd.f32 %v3661, %v6418
  %v6440 = vadd.f32 %v3662, %v6423
  %v6441 = vadd.f32 %v3663, %v6426
  %v6442 = vadd.f32 %v3664, %v6431
  %v6443 = vld [vmem:[%s12] sm:$0x1]
  %v6444 = vld [vmem:[%s13] sm:$0x1]
  %v6445 = vsel %vm77, %v6436, 0.0
  %6446 = vadd.xlane.f32.xlu0 %v6445
  %v6447 = vpop.xlane.xlu0 %6446
  %v6448 = vsel %vm77, %v6437, 0.0
  %6449 = vadd.xlane.f32.xlu0 %v6448
  %v6450 = vpop.xlane.xlu0 %6449
  %v6451 = vsel %vm77, %v6438, 0.0
  %6452 = vadd.xlane.f32.xlu0 %v6451
  %v6453 = vpop.xlane.xlu0 %6452
  %v6454 = vsel %vm77, %v6439, 0.0
  %6455 = vadd.xlane.f32.xlu0 %v6454
  %v6456 = vpop.xlane.xlu0 %6455
  %v6457 = vsel %vm77, %v6440, 0.0
  %6458 = vadd.xlane.f32.xlu0 %v6457
  %v6459 = vpop.xlane.xlu0 %6458
  %v6460 = vsel %vm77, %v6441, 0.0
  %6461 = vadd.xlane.f32.xlu0 %v6460
  %v6462 = vpop.xlane.xlu0 %6461
  %v6463 = vsel %vm77, %v6442, 0.0
  %6464 = vadd.xlane.f32.xlu0 %v6463
  %v6465 = vpop.xlane.xlu0 %6464
  %v6466 = vmul.f32 %v6447, %v3568
  %v6467 = vmul.f32 %v6450, %v3568
  %v6468 = vmul.f32 %v6453, %v3568
  %v6469 = vmul.f32 %v6456, %v3568
  %v6470 = vmul.f32 %v6459, %v3568
  %v6471 = vmul.f32 %v6462, %v3568
  %v6472 = vmul.f32 %v6465, %v3568
  %v6473 = vsub.f32 %v6436, %v6466
  %v6474 = vsub.f32 %v6437, %v6467
  %v6475 = vsub.f32 %v6438, %v6468
  %v6476 = vsub.f32 %v6439, %v6469
  %v6477 = vsub.f32 %v6440, %v6470
  %v6478 = vsub.f32 %v6441, %v6471
  %v6479 = vsub.f32 %v6442, %v6472
  %v6480 = vmul.f32 %v6473, %v6473
  %v6481 = vmul.f32 %v6474, %v6474
  %v6482 = vmul.f32 %v6475, %v6475
  %v6483 = vmul.f32 %v6476, %v6476
  %v6484 = vmul.f32 %v6477, %v6477
  %v6485 = vmul.f32 %v6478, %v6478
  %v6486 = vmul.f32 %v6479, %v6479
  %v6487 = vsel %vm77, %v6480, 0.0
  %6488 = vadd.xlane.f32.xlu0 %v6487
  %v6489 = vpop.xlane.xlu0 %6488
  %v6490 = vsel %vm77, %v6481, 0.0
  %6491 = vadd.xlane.f32.xlu0 %v6490
  %v6492 = vpop.xlane.xlu0 %6491
  %v6493 = vsel %vm77, %v6482, 0.0
  %6494 = vadd.xlane.f32.xlu0 %v6493
  %v6495 = vpop.xlane.xlu0 %6494
  %v6496 = vsel %vm77, %v6483, 0.0
  %6497 = vadd.xlane.f32.xlu0 %v6496
  %v6498 = vpop.xlane.xlu0 %6497
  %v6499 = vsel %vm77, %v6484, 0.0
  %6500 = vadd.xlane.f32.xlu0 %v6499
  %v6501 = vpop.xlane.xlu0 %6500
  %v6502 = vsel %vm77, %v6485, 0.0
  %6503 = vadd.xlane.f32.xlu0 %v6502
  %v6504 = vpop.xlane.xlu0 %6503
  %v6505 = vsel %vm77, %v6486, 0.0
  %6506 = vadd.xlane.f32.xlu0 %v6505
  %v6507 = vpop.xlane.xlu0 %6506
  %v6508 = vmul.f32 %v6489, %v3568
  %v6509 = vmul.f32 %v6492, %v3568
  %v6510 = vmul.f32 %v6495, %v3568
  %v6511 = vmul.f32 %v6498, %v3568
  %v6512 = vmul.f32 %v6501, %v3568
  %v6513 = vmul.f32 %v6504, %v3568
  %v6514 = vmul.f32 %v6507, %v3568
  %v6515 = vadd.f32 %v6508, 1e-05
  %v6516 = vadd.f32 %v6509, 1e-05
  %v6517 = vadd.f32 %v6510, 1e-05
  %v6518 = vadd.f32 %v6511, 1e-05
  %v6519 = vadd.f32 %v6512, 1e-05
  %v6520 = vadd.f32 %v6513, 1e-05
  %v6521 = vadd.f32 %v6514, 1e-05
  %v6522 = vrsqrt.pop %v6515
  %v6523 = vrsqrt.pop %v6516
  %v6524 = vrsqrt.pop %v6517
  %v6525 = vrsqrt.pop %v6518
  %v6526 = vrsqrt.pop %v6519
  %v6527 = vrsqrt.pop %v6520
  %v6528 = vrsqrt.pop %v6521
  %v6529 = vmul.f32 %v6473, %v6522
  %v6530 = vmul.f32 %v6474, %v6523
  %v6531 = vmul.f32 %v6475, %v6524
  %v6532 = vmul.f32 %v6476, %v6525
  %v6533 = vmul.f32 %v6477, %v6526
  %v6534 = vmul.f32 %v6478, %v6527
  %v6535 = vmul.f32 %v6479, %v6528
  %v6537 = vlaneseq
  %v6538 = vshrl.u32 %v6537, 7
  %v6539 = vsub.s32 0, %v6538
  %v6540 = vrot.slane %v6443, %v6539
  %v6542 = vmul.f32 %v6529, %v6540
  %v6543 = vmul.f32 %v6530, %v6540
  %v6544 = vmul.f32 %v6531, %v6540
  %v6545 = vmul.f32 %v6532, %v6540
  %v6546 = vmul.f32 %v6533, %v6540
  %v6547 = vmul.f32 %v6534, %v6540
  %v6548 = vmul.f32 %v6535, %v6540
  %v6550 = vlaneseq
  %v6551 = vshrl.u32 %v6550, 7
  %v6552 = vsub.s32 0, %v6551
  %v6553 = vrot.slane %v6444, %v6552
  %v6555 = vadd.f32 %v6542, %v6553
  %v6556 = vadd.f32 %v6543, %v6553
  %v6557 = vadd.f32 %v6544, %v6553
  %v6558 = vadd.f32 %v6545, %v6553
  %v6559 = vadd.f32 %v6546, %v6553
  %v6560 = vadd.f32 %v6547, %v6553
  %v6561 = vadd.f32 %v6548, %v6553
  %s6562 = scalar_lea.vmem %s2, 128
  %v6563 = vld [vmem:[%s6562] sm:$0xff]
  %v6564 = vld [vmem:[%s6562 + $0x10] sm:$0xff]
  %v6565 = vld [vmem:[%s6562 + $0x20] sm:$0xff]
  %v6566 = vld [vmem:[%s6562 + $0x30] sm:$0xff]
  %v6567 = vld [vmem:[%s6562 + $0x40] sm:$0xff]
  %v6568 = vld [vmem:[%s6562 + $0x50] sm:$0xff]
  %v6569 = vld [vmem:[%s6562 + $0x60] sm:$0xff]
  %v6570 = vld [vmem:[%s6562 + $0x70] sm:$0xff]
  %s6571 = scalar_lea.vmem %s3, 2
  %v6572 = vld [vmem:[%s6571] sm:$0x1]
  %v6574 = vlaneseq
  %v6575 = vshrl.u32 %v6574, 7
  %v6576 = vsub.s32 0, %v6575
  %v6577 = vrot.slane %v6572, %v6576
  %v6580 = vsel %vm77, %v6555, 0
  %v6583 = vsel %vm77, %v6556, 0
  %v6586 = vsel %vm77, %v6557, 0
  %v6589 = vsel %vm77, %v6558, 0
  %v6592 = vsel %vm77, %v6559, 0
  %v6595 = vsel %vm77, %v6560, 0
  %v6598 = vsel %vm77, %v6561, 0
  %6600 = vmatprep.subr.mxu0 0.0
  %6601 = vmatpush1.msra.mxu0 0.0
  %6602 = vmatprep.subr.mxu0 0.0
  %6603 = vmatpush1.msra.mxu0 0.0
  %6604 = vmatprep.subr.mxu0 0.0
  %6605 = vmatpush1.msra.mxu0 0.0
  %6606 = vmatprep.subr.mxu0 0.0
  %6607 = vmatpush1.msra.mxu0 0.0
  %6608 = vmatprep.subr.mxu0 0.0
  %6609 = vmatpush1.msra.mxu0 0.0
  %6610 = vmatprep.subr.mxu0 0.0
  %6611 = vmatpush1.msra.mxu0 0.0
  %6612 = vmatprep.subr.mxu0 0.0
  %6613 = vmatpush1.msra.mxu0 0.0
  %6614 = vmatprep.subr.mxu0 0.0
  %6615 = vmatpush1.msra.mxu0 0.0
  %6616 = vmatprep.subr.mxu0 0.0
  %6617 = vmatpush1.msra.mxu0 %v6570
  %6618 = vmatprep.subr.mxu0 0.0
  %6619 = vmatpush1.msra.mxu0 %v6569
  %6620 = vmatprep.subr.mxu0 0.0
  %6621 = vmatpush1.msra.mxu0 %v6568
  %6622 = vmatprep.subr.mxu0 0.0
  %6623 = vmatpush1.msra.mxu0 %v6567
  %6624 = vmatprep.subr.mxu0 0.0
  %6625 = vmatpush1.msra.mxu0 %v6566
  %6626 = vmatprep.subr.mxu0 0.0
  %6627 = vmatpush1.msra.mxu0 %v6565
  %6628 = vmatprep.subr.mxu0 0.0
  %6629 = vmatpush1.msra.mxu0 %v6564
  %6630 = vmatprep.subr.mxu0 0.0
  %6631 = vmatpush1.msra.mxu0 %v6563
  %6632 = vmatprep.subr.mxu0 0.0
  %6633 = vmatpush2.msra.mxu0 0.0
  %6634 = vmatprep.subr.mxu0 0.0
  %6635 = vmatpush2.msra.mxu0 0.0
  %6636 = vmatprep.subr.mxu0 0.0
  %6637 = vmatpush2.msra.mxu0 0.0
  %6638 = vmatprep.subr.mxu0 0.0
  %6639 = vmatpush2.msra.mxu0 0.0
  %6640 = vmatprep.subr.mxu0 0.0
  %6641 = vmatpush2.msra.mxu0 0.0
  %6642 = vmatprep.subr.mxu0 0.0
  %6643 = vmatpush2.msra.mxu0 0.0
  %6644 = vmatprep.subr.mxu0 0.0
  %6645 = vmatpush2.msra.mxu0 0.0
  %6646 = vmatprep.subr.mxu0 0.0
  %6647 = vmatpush2.msra.mxu0 0.0
  %6648 = vmatprep.subr.mxu0 0.0
  %6649 = vmatpush2.msra.mxu0 0.0
  %6650 = vmatprep.subr.mxu0 0.0
  %6651 = vmatpush2.msra.mxu0 0.0
  %6652 = vmatprep.subr.mxu0 0.0
  %6653 = vmatpush2.msra.mxu0 0.0
  %6654 = vmatprep.subr.mxu0 0.0
  %6655 = vmatpush2.msra.mxu0 0.0
  %6656 = vmatprep.subr.mxu0 0.0
  %6657 = vmatpush2.msra.mxu0 0.0
  %6658 = vmatprep.subr.mxu0 0.0
  %6659 = vmatpush2.msra.mxu0 0.0
  %6660 = vmatprep.subr.mxu0 0.0
  %6661 = vmatpush2.msra.mxu0 0.0
  %6662 = vmatprep.subr.mxu0 0.0
  %6663 = vmatpush2.msra.mxu0 0.0
  %6664 = vmatprep.mubr.f32.mxu0 0.0
  %6665 = vmatmul.mubr.f32.gmra.mxu0 %v6580
  %v6666 = vpop.f32.mrf.mxu0
  %v6667 = vadd.f32 %v6577, %v6666
  %v6668 = vpop.f32.mrf.mxu0
  %6669 = vmatprep.mubr.f32.mxu0 0.0
  %6670 = vmatmul.mubr.f32.gmra.mxu0 %v6583
  %v6671 = vpop.f32.mrf.mxu0
  %v6672 = vadd.f32 %v6577, %v6671
  %v6673 = vpop.f32.mrf.mxu0
  %6674 = vmatprep.mubr.f32.mxu0 0.0
  %6675 = vmatmul.mubr.f32.gmra.mxu0 %v6586
  %v6676 = vpop.f32.mrf.mxu0
  %v6677 = vadd.f32 %v6577, %v6676
  %v6678 = vpop.f32.mrf.mxu0
  %6679 = vmatprep.mubr.f32.mxu0 0.0
  %6680 = vmatmul.mubr.f32.gmra.mxu0 %v6589
  %v6681 = vpop.f32.mrf.mxu0
  %v6682 = vadd.f32 %v6577, %v6681
  %v6683 = vpop.f32.mrf.mxu0
  %6684 = vmatprep.mubr.f32.mxu0 0.0
  %6685 = vmatmul.mubr.f32.gmra.mxu0 %v6592
  %v6686 = vpop.f32.mrf.mxu0
  %v6687 = vadd.f32 %v6577, %v6686
  %v6688 = vpop.f32.mrf.mxu0
  %6689 = vmatprep.mubr.f32.mxu0 0.0
  %6690 = vmatmul.mubr.f32.gmra.mxu0 %v6595
  %v6691 = vpop.f32.mrf.mxu0
  %v6692 = vadd.f32 %v6577, %v6691
  %v6693 = vpop.f32.mrf.mxu0
  %6694 = vmatprep.mubr.f32.mxu0 0.0
  %6695 = vmatmul.mubr.f32.gmra.mxu0 %v6598
  %v6696 = vpop.f32.mrf.mxu0
  %v6697 = vadd.f32 %v6577, %v6696
  %v6698 = vpop.f32.mrf.mxu0
  %6699 = vdwg.mxu0
  %6708 = vrot.lane.b32.xlu0 %v6563, 64
  %v6709 = vpop.permute.xlu0 %6708
  %6710 = vrot.lane.b32.xlu0 %v6564, 64
  %v6711 = vpop.permute.xlu0 %6710
  %6712 = vrot.lane.b32.xlu0 %v6565, 64
  %v6713 = vpop.permute.xlu0 %6712
  %6714 = vrot.lane.b32.xlu0 %v6566, 64
  %v6715 = vpop.permute.xlu0 %6714
  %6716 = vrot.lane.b32.xlu0 %v6567, 64
  %v6717 = vpop.permute.xlu0 %6716
  %6718 = vrot.lane.b32.xlu0 %v6568, 64
  %v6719 = vpop.permute.xlu0 %6718
  %6720 = vrot.lane.b32.xlu0 %v6569, 64
  %v6721 = vpop.permute.xlu0 %6720
  %6722 = vrot.lane.b32.xlu0 %v6570, 64
  %v6723 = vpop.permute.xlu0 %6722
  %6732 = vrot.lane.b32.xlu0 %v6577, 64
  %v6733 = vpop.permute.xlu0 %6732
  %6735 = vmatprep.subr.mxu0 0.0
  %6736 = vmatpush1.msra.mxu0 0.0
  %6737 = vmatprep.subr.mxu0 0.0
  %6738 = vmatpush1.msra.mxu0 0.0
  %6739 = vmatprep.subr.mxu0 0.0
  %6740 = vmatpush1.msra.mxu0 0.0
  %6741 = vmatprep.subr.mxu0 0.0
  %6742 = vmatpush1.msra.mxu0 0.0
  %6743 = vmatprep.subr.mxu0 0.0
  %6744 = vmatpush1.msra.mxu0 0.0
  %6745 = vmatprep.subr.mxu0 0.0
  %6746 = vmatpush1.msra.mxu0 0.0
  %6747 = vmatprep.subr.mxu0 0.0
  %6748 = vmatpush1.msra.mxu0 0.0
  %6749 = vmatprep.subr.mxu0 0.0
  %6750 = vmatpush1.msra.mxu0 0.0
  %6751 = vmatprep.subr.mxu0 0.0
  %6752 = vmatpush1.msra.mxu0 %v6723
  %6753 = vmatprep.subr.mxu0 0.0
  %6754 = vmatpush1.msra.mxu0 %v6721
  %6755 = vmatprep.subr.mxu0 0.0
  %6756 = vmatpush1.msra.mxu0 %v6719
  %6757 = vmatprep.subr.mxu0 0.0
  %6758 = vmatpush1.msra.mxu0 %v6717
  %6759 = vmatprep.subr.mxu0 0.0
  %6760 = vmatpush1.msra.mxu0 %v6715
  %6761 = vmatprep.subr.mxu0 0.0
  %6762 = vmatpush1.msra.mxu0 %v6713
  %6763 = vmatprep.subr.mxu0 0.0
  %6764 = vmatpush1.msra.mxu0 %v6711
  %6765 = vmatprep.subr.mxu0 0.0
  %6766 = vmatpush1.msra.mxu0 %v6709
  %6767 = vmatprep.subr.mxu0 0.0
  %6768 = vmatpush2.msra.mxu0 0.0
  %6769 = vmatprep.subr.mxu0 0.0
  %6770 = vmatpush2.msra.mxu0 0.0
  %6771 = vmatprep.subr.mxu0 0.0
  %6772 = vmatpush2.msra.mxu0 0.0
  %6773 = vmatprep.subr.mxu0 0.0
  %6774 = vmatpush2.msra.mxu0 0.0
  %6775 = vmatprep.subr.mxu0 0.0
  %6776 = vmatpush2.msra.mxu0 0.0
  %6777 = vmatprep.subr.mxu0 0.0
  %6778 = vmatpush2.msra.mxu0 0.0
  %6779 = vmatprep.subr.mxu0 0.0
  %6780 = vmatpush2.msra.mxu0 0.0
  %6781 = vmatprep.subr.mxu0 0.0
  %6782 = vmatpush2.msra.mxu0 0.0
  %6783 = vmatprep.subr.mxu0 0.0
  %6784 = vmatpush2.msra.mxu0 0.0
  %6785 = vmatprep.subr.mxu0 0.0
  %6786 = vmatpush2.msra.mxu0 0.0
  %6787 = vmatprep.subr.mxu0 0.0
  %6788 = vmatpush2.msra.mxu0 0.0
  %6789 = vmatprep.subr.mxu0 0.0
  %6790 = vmatpush2.msra.mxu0 0.0
  %6791 = vmatprep.subr.mxu0 0.0
  %6792 = vmatpush2.msra.mxu0 0.0
  %6793 = vmatprep.subr.mxu0 0.0
  %6794 = vmatpush2.msra.mxu0 0.0
  %6795 = vmatprep.subr.mxu0 0.0
  %6796 = vmatpush2.msra.mxu0 0.0
  %6797 = vmatprep.subr.mxu0 0.0
  %6798 = vmatpush2.msra.mxu0 0.0
  %6799 = vmatprep.mubr.f32.mxu0 0.0
  %6800 = vmatmul.mubr.f32.gmra.mxu0 %v6580
  %v6801 = vpop.f32.mrf.mxu0
  %v6802 = vadd.f32 %v6733, %v6801
  %v6803 = vpop.f32.mrf.mxu0
  %6804 = vmatprep.mubr.f32.mxu0 0.0
  %6805 = vmatmul.mubr.f32.gmra.mxu0 %v6583
  %v6806 = vpop.f32.mrf.mxu0
  %v6807 = vadd.f32 %v6733, %v6806
  %v6808 = vpop.f32.mrf.mxu0
  %6809 = vmatprep.mubr.f32.mxu0 0.0
  %6810 = vmatmul.mubr.f32.gmra.mxu0 %v6586
  %v6811 = vpop.f32.mrf.mxu0
  %v6812 = vadd.f32 %v6733, %v6811
  %v6813 = vpop.f32.mrf.mxu0
  %6814 = vmatprep.mubr.f32.mxu0 0.0
  %6815 = vmatmul.mubr.f32.gmra.mxu0 %v6589
  %v6816 = vpop.f32.mrf.mxu0
  %v6817 = vadd.f32 %v6733, %v6816
  %v6818 = vpop.f32.mrf.mxu0
  %6819 = vmatprep.mubr.f32.mxu0 0.0
  %6820 = vmatmul.mubr.f32.gmra.mxu0 %v6592
  %v6821 = vpop.f32.mrf.mxu0
  %v6822 = vadd.f32 %v6733, %v6821
  %v6823 = vpop.f32.mrf.mxu0
  %6824 = vmatprep.mubr.f32.mxu0 0.0
  %6825 = vmatmul.mubr.f32.gmra.mxu0 %v6595
  %v6826 = vpop.f32.mrf.mxu0
  %v6827 = vadd.f32 %v6733, %v6826
  %v6828 = vpop.f32.mrf.mxu0
  %6829 = vmatprep.mubr.f32.mxu0 0.0
  %6830 = vmatmul.mubr.f32.gmra.mxu0 %v6598
  %v6831 = vpop.f32.mrf.mxu0
  %v6832 = vadd.f32 %v6733, %v6831
  %v6833 = vpop.f32.mrf.mxu0
  %6834 = vdwg.mxu0
  %v6835 = vld [vmem:[%s6562 + $0x8] sm:$0xff]
  %v6836 = vld [vmem:[%s6562 + $0x18] sm:$0xff]
  %v6837 = vld [vmem:[%s6562 + $0x28] sm:$0xff]
  %v6838 = vld [vmem:[%s6562 + $0x38] sm:$0xff]
  %v6839 = vld [vmem:[%s6562 + $0x48] sm:$0xff]
  %v6840 = vld [vmem:[%s6562 + $0x58] sm:$0xff]
  %v6841 = vld [vmem:[%s6562 + $0x68] sm:$0xff]
  %v6842 = vld [vmem:[%s6562 + $0x78] sm:$0xff]
  %v6843 = vld [vmem:[%s6571 + $0x1] sm:$0x1]
  %v6845 = vlaneseq
  %v6846 = vshrl.u32 %v6845, 7
  %v6847 = vsub.s32 0, %v6846
  %v6848 = vrot.slane %v6843, %v6847
  %6850 = vmatprep.subr.mxu0 0.0
  %6851 = vmatpush1.msra.mxu0 0.0
  %6852 = vmatprep.subr.mxu0 0.0
  %6853 = vmatpush1.msra.mxu0 0.0
  %6854 = vmatprep.subr.mxu0 0.0
  %6855 = vmatpush1.msra.mxu0 0.0
  %6856 = vmatprep.subr.mxu0 0.0
  %6857 = vmatpush1.msra.mxu0 0.0
  %6858 = vmatprep.subr.mxu0 0.0
  %6859 = vmatpush1.msra.mxu0 0.0
  %6860 = vmatprep.subr.mxu0 0.0
  %6861 = vmatpush1.msra.mxu0 0.0
  %6862 = vmatprep.subr.mxu0 0.0
  %6863 = vmatpush1.msra.mxu0 0.0
  %6864 = vmatprep.subr.mxu0 0.0
  %6865 = vmatpush1.msra.mxu0 0.0
  %6866 = vmatprep.subr.mxu0 0.0
  %6867 = vmatpush1.msra.mxu0 %v6842
  %6868 = vmatprep.subr.mxu0 0.0
  %6869 = vmatpush1.msra.mxu0 %v6841
  %6870 = vmatprep.subr.mxu0 0.0
  %6871 = vmatpush1.msra.mxu0 %v6840
  %6872 = vmatprep.subr.mxu0 0.0
  %6873 = vmatpush1.msra.mxu0 %v6839
  %6874 = vmatprep.subr.mxu0 0.0
  %6875 = vmatpush1.msra.mxu0 %v6838
  %6876 = vmatprep.subr.mxu0 0.0
  %6877 = vmatpush1.msra.mxu0 %v6837
  %6878 = vmatprep.subr.mxu0 0.0
  %6879 = vmatpush1.msra.mxu0 %v6836
  %6880 = vmatprep.subr.mxu0 0.0
  %6881 = vmatpush1.msra.mxu0 %v6835
  %6882 = vmatprep.subr.mxu0 0.0
  %6883 = vmatpush2.msra.mxu0 0.0
  %6884 = vmatprep.subr.mxu0 0.0
  %6885 = vmatpush2.msra.mxu0 0.0
  %6886 = vmatprep.subr.mxu0 0.0
  %6887 = vmatpush2.msra.mxu0 0.0
  %6888 = vmatprep.subr.mxu0 0.0
  %6889 = vmatpush2.msra.mxu0 0.0
  %6890 = vmatprep.subr.mxu0 0.0
  %6891 = vmatpush2.msra.mxu0 0.0
  %6892 = vmatprep.subr.mxu0 0.0
  %6893 = vmatpush2.msra.mxu0 0.0
  %6894 = vmatprep.subr.mxu0 0.0
  %6895 = vmatpush2.msra.mxu0 0.0
  %6896 = vmatprep.subr.mxu0 0.0
  %6897 = vmatpush2.msra.mxu0 0.0
  %6898 = vmatprep.subr.mxu0 0.0
  %6899 = vmatpush2.msra.mxu0 0.0
  %6900 = vmatprep.subr.mxu0 0.0
  %6901 = vmatpush2.msra.mxu0 0.0
  %6902 = vmatprep.subr.mxu0 0.0
  %6903 = vmatpush2.msra.mxu0 0.0
  %6904 = vmatprep.subr.mxu0 0.0
  %6905 = vmatpush2.msra.mxu0 0.0
  %6906 = vmatprep.subr.mxu0 0.0
  %6907 = vmatpush2.msra.mxu0 0.0
  %6908 = vmatprep.subr.mxu0 0.0
  %6909 = vmatpush2.msra.mxu0 0.0
  %6910 = vmatprep.subr.mxu0 0.0
  %6911 = vmatpush2.msra.mxu0 0.0
  %6912 = vmatprep.subr.mxu0 0.0
  %6913 = vmatpush2.msra.mxu0 0.0
  %6914 = vmatprep.mubr.f32.mxu0 0.0
  %6915 = vmatmul.mubr.f32.gmra.mxu0 %v6580
  %v6916 = vpop.f32.mrf.mxu0
  %v6917 = vadd.f32 %v6848, %v6916
  %v6918 = vpop.f32.mrf.mxu0
  %6919 = vmatprep.mubr.f32.mxu0 0.0
  %6920 = vmatmul.mubr.f32.gmra.mxu0 %v6583
  %v6921 = vpop.f32.mrf.mxu0
  %v6922 = vadd.f32 %v6848, %v6921
  %v6923 = vpop.f32.mrf.mxu0
  %6924 = vmatprep.mubr.f32.mxu0 0.0
  %6925 = vmatmul.mubr.f32.gmra.mxu0 %v6586
  %v6926 = vpop.f32.mrf.mxu0
  %v6927 = vadd.f32 %v6848, %v6926
  %v6928 = vpop.f32.mrf.mxu0
  %6929 = vmatprep.mubr.f32.mxu0 0.0
  %6930 = vmatmul.mubr.f32.gmra.mxu0 %v6589
  %v6931 = vpop.f32.mrf.mxu0
  %v6932 = vadd.f32 %v6848, %v6931
  %v6933 = vpop.f32.mrf.mxu0
  %6934 = vmatprep.mubr.f32.mxu0 0.0
  %6935 = vmatmul.mubr.f32.gmra.mxu0 %v6592
  %v6936 = vpop.f32.mrf.mxu0
  %v6937 = vadd.f32 %v6848, %v6936
  %v6938 = vpop.f32.mrf.mxu0
  %6939 = vmatprep.mubr.f32.mxu0 0.0
  %6940 = vmatmul.mubr.f32.gmra.mxu0 %v6595
  %v6941 = vpop.f32.mrf.mxu0
  %v6942 = vadd.f32 %v6848, %v6941
  %v6943 = vpop.f32.mrf.mxu0
  %6944 = vmatprep.mubr.f32.mxu0 0.0
  %6945 = vmatmul.mubr.f32.gmra.mxu0 %v6598
  %v6946 = vpop.f32.mrf.mxu0
  %v6947 = vadd.f32 %v6848, %v6946
  %v6948 = vpop.f32.mrf.mxu0
  %6949 = vdwg.mxu0
  %v6951 = vsel %vm449, %v6667, 0
  %v6954 = vsel %vm449, %v6672, 0
  %v6957 = vsel %vm449, %v6677, 0
  %v6960 = vsel %vm449, %v6682, 0
  %v6963 = vsel %vm449, %v6687, 0
  %v6966 = vsel %vm449, %v6692, 0
  %v6969 = vsel %vm449, %v6697, 0
  %v6972 = vsel %vm449, %v6802, 0
  %v6975 = vsel %vm449, %v6807, 0
  %v6978 = vsel %vm449, %v6812, 0
  %v6981 = vsel %vm449, %v6817, 0
  %v6984 = vsel %vm449, %v6822, 0
  %v6987 = vsel %vm449, %v6827, 0
  %v6990 = vsel %vm449, %v6832, 0
  %6992 = vmatprep.subr.mxu0 0.0
  %6993 = vmatpush1.xpose.msra.mxu0 0.0
  %6994 = vmatprep.subr.mxu0 0.0
  %6995 = vmatpush1.xpose.msra.mxu0 0.0
  %6996 = vmatprep.subr.mxu0 0.0
  %6997 = vmatpush1.xpose.msra.mxu0 0.0
  %6998 = vmatprep.subr.mxu0 0.0
  %6999 = vmatpush1.xpose.msra.mxu0 0.0
  %7000 = vmatprep.subr.mxu0 0.0
  %7001 = vmatpush1.xpose.msra.mxu0 0.0
  %7002 = vmatprep.subr.mxu0 0.0
  %7003 = vmatpush1.xpose.msra.mxu0 0.0
  %7004 = vmatprep.subr.mxu0 0.0
  %7005 = vmatpush1.xpose.msra.mxu0 0.0
  %7006 = vmatprep.subr.mxu0 0.0
  %7007 = vmatpush1.xpose.msra.mxu0 0.0
  %7008 = vmatprep.subr.mxu0 0.0
  %7009 = vmatpush1.xpose.msra.mxu0 0.0
  %7010 = vmatprep.subr.mxu0 0.0
  %7011 = vmatpush1.xpose.msra.mxu0 %v6990
  %7012 = vmatprep.subr.mxu0 0.0
  %7013 = vmatpush1.xpose.msra.mxu0 %v6987
  %7014 = vmatprep.subr.mxu0 0.0
  %7015 = vmatpush1.xpose.msra.mxu0 %v6984
  %7016 = vmatprep.subr.mxu0 0.0
  %7017 = vmatpush1.xpose.msra.mxu0 %v6981
  %7018 = vmatprep.subr.mxu0 0.0
  %7019 = vmatpush1.xpose.msra.mxu0 %v6978
  %7020 = vmatprep.subr.mxu0 0.0
  %7021 = vmatpush1.xpose.msra.mxu0 %v6975
  %7022 = vmatprep.subr.mxu0 0.0
  %7023 = vmatpush1.xpose.msra.mxu0 %v6972
  %7024 = vmatprep.subr.mxu0 0.0
  %7025 = vmatpush2.xpose.msra.mxu0 0.0
  %7026 = vmatprep.subr.mxu0 0.0
  %7027 = vmatpush2.xpose.msra.mxu0 0.0
  %7028 = vmatprep.subr.mxu0 0.0
  %7029 = vmatpush2.xpose.msra.mxu0 0.0
  %7030 = vmatprep.subr.mxu0 0.0
  %7031 = vmatpush2.xpose.msra.mxu0 0.0
  %7032 = vmatprep.subr.mxu0 0.0
  %7033 = vmatpush2.xpose.msra.mxu0 0.0
  %7034 = vmatprep.subr.mxu0 0.0
  %7035 = vmatpush2.xpose.msra.mxu0 0.0
  %7036 = vmatprep.subr.mxu0 0.0
  %7037 = vmatpush2.xpose.msra.mxu0 0.0
  %7038 = vmatprep.subr.mxu0 0.0
  %7039 = vmatpush2.xpose.msra.mxu0 0.0
  %7040 = vmatprep.subr.mxu0 0.0
  %7041 = vmatpush2.xpose.msra.mxu0 0.0
  %7042 = vmatprep.subr.mxu0 0.0
  %7043 = vmatpush2.xpose.msra.mxu0 0.0
  %7044 = vmatprep.subr.mxu0 0.0
  %7045 = vmatpush2.xpose.msra.mxu0 0.0
  %7046 = vmatprep.subr.mxu0 0.0
  %7047 = vmatpush2.xpose.msra.mxu0 0.0
  %7048 = vmatprep.subr.mxu0 0.0
  %7049 = vmatpush2.xpose.msra.mxu0 0.0
  %7050 = vmatprep.subr.mxu0 0.0
  %7051 = vmatpush2.xpose.msra.mxu0 0.0
  %7052 = vmatprep.subr.mxu0 0.0
  %7053 = vmatpush2.xpose.msra.mxu0 0.0
  %7054 = vmatprep.subr.mxu0 0.0
  %7055 = vmatpush2.xpose.msra.mxu0 0.0
  %7056 = vmatprep.mubr.f32.mxu0 0.0
  %7057 = vmatmul.mubr.f32.gmra.mxu0 %v6951
  %v7058 = vpop.f32.mrf.mxu0
  %v7059 = vadd.f32 0.0, %v7058
  %v7060 = vpop.f32.mrf.mxu0
  %7061 = vmatprep.mubr.f32.mxu0 0.0
  %7062 = vmatmul.mubr.f32.gmra.mxu0 %v6954
  %v7063 = vpop.f32.mrf.mxu0
  %v7064 = vadd.f32 0.0, %v7063
  %v7065 = vpop.f32.mrf.mxu0
  %7066 = vmatprep.mubr.f32.mxu0 0.0
  %7067 = vmatmul.mubr.f32.gmra.mxu0 %v6957
  %v7068 = vpop.f32.mrf.mxu0
  %v7069 = vadd.f32 0.0, %v7068
  %v7070 = vpop.f32.mrf.mxu0
  %7071 = vmatprep.mubr.f32.mxu0 0.0
  %7072 = vmatmul.mubr.f32.gmra.mxu0 %v6960
  %v7073 = vpop.f32.mrf.mxu0
  %v7074 = vadd.f32 0.0, %v7073
  %v7075 = vpop.f32.mrf.mxu0
  %7076 = vmatprep.mubr.f32.mxu0 0.0
  %7077 = vmatmul.mubr.f32.gmra.mxu0 %v6963
  %v7078 = vpop.f32.mrf.mxu0
  %v7079 = vadd.f32 0.0, %v7078
  %v7080 = vpop.f32.mrf.mxu0
  %7081 = vmatprep.mubr.f32.mxu0 0.0
  %7082 = vmatmul.mubr.f32.gmra.mxu0 %v6966
  %v7083 = vpop.f32.mrf.mxu0
  %v7084 = vadd.f32 0.0, %v7083
  %v7085 = vpop.f32.mrf.mxu0
  %7086 = vmatprep.mubr.f32.mxu0 0.0
  %7087 = vmatmul.mubr.f32.gmra.mxu0 %v6969
  %v7088 = vpop.f32.mrf.mxu0
  %v7089 = vadd.f32 0.0, %v7088
  %v7090 = vpop.f32.mrf.mxu0
  %7091 = vdwg.mxu0
  %v7092 = vmul.f32 %v7059, 0.25
  %v7093 = vmul.f32 %v7064, 0.25
  %v7094 = vmul.f32 %v7069, 0.25
  %v7095 = vmul.f32 %v7074, 0.25
  %v7096 = vmul.f32 %v7079, 0.25
  %v7097 = vmul.f32 %v7084, 0.25
  %v7098 = vmul.f32 %v7089, 0.25
  %v7099 = vadd.f32 %v7092, %v55
  %v7100 = vadd.f32 %v7093, %v56
  %v7101 = vadd.f32 %v7094, %v57
  %v7102 = vadd.f32 %v7095, %v58
  %v7103 = vadd.f32 %v7096, %v59
  %v7104 = vadd.f32 %v7097, %v60
  %v7105 = vadd.f32 %v7098, %v61
  %v7106 = vsel %vm606, %v7099, -inf
  %7107 = vmax.xlane.f32.xlu0 %v7106
  %v7108 = vpop.xlane.xlu0 %7107
  %v7109 = vsel %vm606, %v7100, -inf
  %7110 = vmax.xlane.f32.xlu0 %v7109
  %v7111 = vpop.xlane.xlu0 %7110
  %v7112 = vsel %vm606, %v7101, -inf
  %7113 = vmax.xlane.f32.xlu0 %v7112
  %v7114 = vpop.xlane.xlu0 %7113
  %v7115 = vsel %vm606, %v7102, -inf
  %7116 = vmax.xlane.f32.xlu0 %v7115
  %v7117 = vpop.xlane.xlu0 %7116
  %v7118 = vsel %vm606, %v7103, -inf
  %7119 = vmax.xlane.f32.xlu0 %v7118
  %v7120 = vpop.xlane.xlu0 %7119
  %v7121 = vsel %vm606, %v7104, -inf
  %7122 = vmax.xlane.f32.xlu0 %v7121
  %v7123 = vpop.xlane.xlu0 %7122
  %v7124 = vsel %vm606, %v7105, -inf
  %7125 = vmax.xlane.f32.xlu0 %v7124
  %v7126 = vpop.xlane.xlu0 %7125
  %v7127 = vsub.f32 %v7099, %v7108
  %v7128 = vsub.f32 %v7100, %v7111
  %v7129 = vsub.f32 %v7101, %v7114
  %v7130 = vsub.f32 %v7102, %v7117
  %v7131 = vsub.f32 %v7103, %v7120
  %v7132 = vsub.f32 %v7104, %v7123
  %v7133 = vsub.f32 %v7105, %v7126
  %v7134 = vmul.f32 %v7127, 1.442695
  %v7135 = vpow.pop %v7134
  %v7136 = vmul.f32 %v7128, 1.442695
  %v7137 = vpow.pop %v7136
  %v7138 = vmul.f32 %v7129, 1.442695
  %v7139 = vpow.pop %v7138
  %v7140 = vmul.f32 %v7130, 1.442695
  %v7141 = vpow.pop %v7140
  %v7142 = vmul.f32 %v7131, 1.442695
  %v7143 = vpow.pop %v7142
  %v7144 = vmul.f32 %v7132, 1.442695
  %v7145 = vpow.pop %v7144
  %v7146 = vmul.f32 %v7133, 1.442695
  %v7147 = vpow.pop %v7146
  %v7148 = vsel %vm606, %v7135, 0.0
  %7149 = vadd.xlane.f32.xlu0 %v7148
  %v7150 = vpop.xlane.xlu0 %7149
  %v7151 = vsel %vm606, %v7137, 0.0
  %7152 = vadd.xlane.f32.xlu0 %v7151
  %v7153 = vpop.xlane.xlu0 %7152
  %v7154 = vsel %vm606, %v7139, 0.0
  %7155 = vadd.xlane.f32.xlu0 %v7154
  %v7156 = vpop.xlane.xlu0 %7155
  %v7157 = vsel %vm606, %v7141, 0.0
  %7158 = vadd.xlane.f32.xlu0 %v7157
  %v7159 = vpop.xlane.xlu0 %7158
  %v7160 = vsel %vm606, %v7143, 0.0
  %7161 = vadd.xlane.f32.xlu0 %v7160
  %v7162 = vpop.xlane.xlu0 %7161
  %v7163 = vsel %vm606, %v7145, 0.0
  %7164 = vadd.xlane.f32.xlu0 %v7163
  %v7165 = vpop.xlane.xlu0 %7164
  %v7166 = vsel %vm606, %v7147, 0.0
  %7167 = vadd.xlane.f32.xlu0 %v7166
  %v7168 = vpop.xlane.xlu0 %7167
  %v7169 = vrcp.pop %v7150
  %v7170 = vmul.f32 %v7135, %v7169
  %v7171 = vrcp.pop %v7153
  %v7172 = vmul.f32 %v7137, %v7171
  %v7173 = vrcp.pop %v7156
  %v7174 = vmul.f32 %v7139, %v7173
  %v7175 = vrcp.pop %v7159
  %v7176 = vmul.f32 %v7141, %v7175
  %v7177 = vrcp.pop %v7162
  %v7178 = vmul.f32 %v7143, %v7177
  %v7179 = vrcp.pop %v7165
  %v7180 = vmul.f32 %v7145, %v7179
  %v7181 = vrcp.pop %v7168
  %v7182 = vmul.f32 %v7147, %v7181
  %v7184 = vsel %vm606, %v7170, 0
  %v7187 = vsel %vm606, %v7172, 0
  %v7190 = vsel %vm606, %v7174, 0
  %v7193 = vsel %vm606, %v7176, 0
  %v7196 = vsel %vm606, %v7178, 0
  %v7199 = vsel %vm606, %v7180, 0
  %v7202 = vsel %vm606, %v7182, 0
  %7204 = vmatprep.subr.mxu0 0.0
  %7205 = vmatpush1.msra.mxu0 0.0
  %7206 = vmatprep.subr.mxu0 0.0
  %7207 = vmatpush1.msra.mxu0 0.0
  %7208 = vmatprep.subr.mxu0 0.0
  %7209 = vmatpush1.msra.mxu0 0.0
  %7210 = vmatprep.subr.mxu0 0.0
  %7211 = vmatpush1.msra.mxu0 0.0
  %7212 = vmatprep.subr.mxu0 0.0
  %7213 = vmatpush1.msra.mxu0 0.0
  %7214 = vmatprep.subr.mxu0 0.0
  %7215 = vmatpush1.msra.mxu0 0.0
  %7216 = vmatprep.subr.mxu0 0.0
  %7217 = vmatpush1.msra.mxu0 0.0
  %7218 = vmatprep.subr.mxu0 0.0
  %7219 = vmatpush1.msra.mxu0 0.0
  %7220 = vmatprep.subr.mxu0 0.0
  %7221 = vmatpush1.msra.mxu0 0.0
  %7222 = vmatprep.subr.mxu0 0.0
  %7223 = vmatpush1.msra.mxu0 %v6947
  %7224 = vmatprep.subr.mxu0 0.0
  %7225 = vmatpush1.msra.mxu0 %v6942
  %7226 = vmatprep.subr.mxu0 0.0
  %7227 = vmatpush1.msra.mxu0 %v6937
  %7228 = vmatprep.subr.mxu0 0.0
  %7229 = vmatpush1.msra.mxu0 %v6932
  %7230 = vmatprep.subr.mxu0 0.0
  %7231 = vmatpush1.msra.mxu0 %v6927
  %7232 = vmatprep.subr.mxu0 0.0
  %7233 = vmatpush1.msra.mxu0 %v6922
  %7234 = vmatprep.subr.mxu0 0.0
  %7235 = vmatpush1.msra.mxu0 %v6917
  %7236 = vmatprep.subr.mxu0 0.0
  %7237 = vmatpush2.msra.mxu0 0.0
  %7238 = vmatprep.subr.mxu0 0.0
  %7239 = vmatpush2.msra.mxu0 0.0
  %7240 = vmatprep.subr.mxu0 0.0
  %7241 = vmatpush2.msra.mxu0 0.0
  %7242 = vmatprep.subr.mxu0 0.0
  %7243 = vmatpush2.msra.mxu0 0.0
  %7244 = vmatprep.subr.mxu0 0.0
  %7245 = vmatpush2.msra.mxu0 0.0
  %7246 = vmatprep.subr.mxu0 0.0
  %7247 = vmatpush2.msra.mxu0 0.0
  %7248 = vmatprep.subr.mxu0 0.0
  %7249 = vmatpush2.msra.mxu0 0.0
  %7250 = vmatprep.subr.mxu0 0.0
  %7251 = vmatpush2.msra.mxu0 0.0
  %7252 = vmatprep.subr.mxu0 0.0
  %7253 = vmatpush2.msra.mxu0 0.0
  %7254 = vmatprep.subr.mxu0 0.0
  %7255 = vmatpush2.msra.mxu0 0.0
  %7256 = vmatprep.subr.mxu0 0.0
  %7257 = vmatpush2.msra.mxu0 0.0
  %7258 = vmatprep.subr.mxu0 0.0
  %7259 = vmatpush2.msra.mxu0 0.0
  %7260 = vmatprep.subr.mxu0 0.0
  %7261 = vmatpush2.msra.mxu0 0.0
  %7262 = vmatprep.subr.mxu0 0.0
  %7263 = vmatpush2.msra.mxu0 0.0
  %7264 = vmatprep.subr.mxu0 0.0
  %7265 = vmatpush2.msra.mxu0 0.0
  %7266 = vmatprep.subr.mxu0 0.0
  %7267 = vmatpush2.msra.mxu0 0.0
  %7268 = vmatprep.mubr.f32.mxu0 0.0
  %7269 = vmatmul.mubr.f32.gmra.mxu0 %v7184
  %v7270 = vpop.f32.mrf.mxu0
  %v7271 = vadd.f32 0.0, %v7270
  %v7272 = vpop.f32.mrf.mxu0
  %7273 = vmatprep.mubr.f32.mxu0 0.0
  %7274 = vmatmul.mubr.f32.gmra.mxu0 %v7187
  %v7275 = vpop.f32.mrf.mxu0
  %v7276 = vadd.f32 0.0, %v7275
  %v7277 = vpop.f32.mrf.mxu0
  %7278 = vmatprep.mubr.f32.mxu0 0.0
  %7279 = vmatmul.mubr.f32.gmra.mxu0 %v7190
  %v7280 = vpop.f32.mrf.mxu0
  %v7281 = vadd.f32 0.0, %v7280
  %v7282 = vpop.f32.mrf.mxu0
  %7283 = vmatprep.mubr.f32.mxu0 0.0
  %7284 = vmatmul.mubr.f32.gmra.mxu0 %v7193
  %v7285 = vpop.f32.mrf.mxu0
  %v7286 = vadd.f32 0.0, %v7285
  %v7287 = vpop.f32.mrf.mxu0
  %7288 = vmatprep.mubr.f32.mxu0 0.0
  %7289 = vmatmul.mubr.f32.gmra.mxu0 %v7196
  %v7290 = vpop.f32.mrf.mxu0
  %v7291 = vadd.f32 0.0, %v7290
  %v7292 = vpop.f32.mrf.mxu0
  %7293 = vmatprep.mubr.f32.mxu0 0.0
  %7294 = vmatmul.mubr.f32.gmra.mxu0 %v7199
  %v7295 = vpop.f32.mrf.mxu0
  %v7296 = vadd.f32 0.0, %v7295
  %v7297 = vpop.f32.mrf.mxu0
  %7298 = vmatprep.mubr.f32.mxu0 0.0
  %7299 = vmatmul.mubr.f32.gmra.mxu0 %v7202
  %v7300 = vpop.f32.mrf.mxu0
  %v7301 = vadd.f32 0.0, %v7300
  %v7302 = vpop.f32.mrf.mxu0
  %7303 = vdwg.mxu0
  %s7304 = scalar_lea.vmem %s4, 64
  %v7305 = vld [vmem:[%s7304] sm:$0xff]
  %v7306 = vld [vmem:[%s7304 + $0x8] sm:$0xff]
  %7307 = vrot.lane.b32.xlu0 %v6563, 112
  %v7308 = vpop.permute.xlu0 %7307
  %7309 = vrot.lane.b32.xlu0 %v6564, 112
  %v7310 = vpop.permute.xlu0 %7309
  %7311 = vrot.lane.b32.xlu0 %v6565, 112
  %v7312 = vpop.permute.xlu0 %7311
  %7313 = vrot.lane.b32.xlu0 %v6566, 112
  %v7314 = vpop.permute.xlu0 %7313
  %7315 = vrot.lane.b32.xlu0 %v6567, 112
  %v7316 = vpop.permute.xlu0 %7315
  %7317 = vrot.lane.b32.xlu0 %v6568, 112
  %v7318 = vpop.permute.xlu0 %7317
  %7319 = vrot.lane.b32.xlu0 %v6569, 112
  %v7320 = vpop.permute.xlu0 %7319
  %7321 = vrot.lane.b32.xlu0 %v6570, 112
  %v7322 = vpop.permute.xlu0 %7321
  %7331 = vrot.lane.b32.xlu0 %v6577, 112
  %v7332 = vpop.permute.xlu0 %7331
  %7334 = vmatprep.subr.mxu0 0.0
  %7335 = vmatpush1.msra.mxu0 0.0
  %7336 = vmatprep.subr.mxu0 0.0
  %7337 = vmatpush1.msra.mxu0 0.0
  %7338 = vmatprep.subr.mxu0 0.0
  %7339 = vmatpush1.msra.mxu0 0.0
  %7340 = vmatprep.subr.mxu0 0.0
  %7341 = vmatpush1.msra.mxu0 0.0
  %7342 = vmatprep.subr.mxu0 0.0
  %7343 = vmatpush1.msra.mxu0 0.0
  %7344 = vmatprep.subr.mxu0 0.0
  %7345 = vmatpush1.msra.mxu0 0.0
  %7346 = vmatprep.subr.mxu0 0.0
  %7347 = vmatpush1.msra.mxu0 0.0
  %7348 = vmatprep.subr.mxu0 0.0
  %7349 = vmatpush1.msra.mxu0 0.0
  %7350 = vmatprep.subr.mxu0 0.0
  %7351 = vmatpush1.msra.mxu0 %v7322
  %7352 = vmatprep.subr.mxu0 0.0
  %7353 = vmatpush1.msra.mxu0 %v7320
  %7354 = vmatprep.subr.mxu0 0.0
  %7355 = vmatpush1.msra.mxu0 %v7318
  %7356 = vmatprep.subr.mxu0 0.0
  %7357 = vmatpush1.msra.mxu0 %v7316
  %7358 = vmatprep.subr.mxu0 0.0
  %7359 = vmatpush1.msra.mxu0 %v7314
  %7360 = vmatprep.subr.mxu0 0.0
  %7361 = vmatpush1.msra.mxu0 %v7312
  %7362 = vmatprep.subr.mxu0 0.0
  %7363 = vmatpush1.msra.mxu0 %v7310
  %7364 = vmatprep.subr.mxu0 0.0
  %7365 = vmatpush1.msra.mxu0 %v7308
  %7366 = vmatprep.subr.mxu0 0.0
  %7367 = vmatpush2.msra.mxu0 0.0
  %7368 = vmatprep.subr.mxu0 0.0
  %7369 = vmatpush2.msra.mxu0 0.0
  %7370 = vmatprep.subr.mxu0 0.0
  %7371 = vmatpush2.msra.mxu0 0.0
  %7372 = vmatprep.subr.mxu0 0.0
  %7373 = vmatpush2.msra.mxu0 0.0
  %7374 = vmatprep.subr.mxu0 0.0
  %7375 = vmatpush2.msra.mxu0 0.0
  %7376 = vmatprep.subr.mxu0 0.0
  %7377 = vmatpush2.msra.mxu0 0.0
  %7378 = vmatprep.subr.mxu0 0.0
  %7379 = vmatpush2.msra.mxu0 0.0
  %7380 = vmatprep.subr.mxu0 0.0
  %7381 = vmatpush2.msra.mxu0 0.0
  %7382 = vmatprep.subr.mxu0 0.0
  %7383 = vmatpush2.msra.mxu0 0.0
  %7384 = vmatprep.subr.mxu0 0.0
  %7385 = vmatpush2.msra.mxu0 0.0
  %7386 = vmatprep.subr.mxu0 0.0
  %7387 = vmatpush2.msra.mxu0 0.0
  %7388 = vmatprep.subr.mxu0 0.0
  %7389 = vmatpush2.msra.mxu0 0.0
  %7390 = vmatprep.subr.mxu0 0.0
  %7391 = vmatpush2.msra.mxu0 0.0
  %7392 = vmatprep.subr.mxu0 0.0
  %7393 = vmatpush2.msra.mxu0 0.0
  %7394 = vmatprep.subr.mxu0 0.0
  %7395 = vmatpush2.msra.mxu0 0.0
  %7396 = vmatprep.subr.mxu0 0.0
  %7397 = vmatpush2.msra.mxu0 0.0
  %7398 = vmatprep.mubr.f32.mxu0 0.0
  %7399 = vmatmul.mubr.f32.gmra.mxu0 %v6580
  %v7400 = vpop.f32.mrf.mxu0
  %v7401 = vadd.f32 %v7332, %v7400
  %v7402 = vpop.f32.mrf.mxu0
  %7403 = vmatprep.mubr.f32.mxu0 0.0
  %7404 = vmatmul.mubr.f32.gmra.mxu0 %v6583
  %v7405 = vpop.f32.mrf.mxu0
  %v7406 = vadd.f32 %v7332, %v7405
  %v7407 = vpop.f32.mrf.mxu0
  %7408 = vmatprep.mubr.f32.mxu0 0.0
  %7409 = vmatmul.mubr.f32.gmra.mxu0 %v6586
  %v7410 = vpop.f32.mrf.mxu0
  %v7411 = vadd.f32 %v7332, %v7410
  %v7412 = vpop.f32.mrf.mxu0
  %7413 = vmatprep.mubr.f32.mxu0 0.0
  %7414 = vmatmul.mubr.f32.gmra.mxu0 %v6589
  %v7415 = vpop.f32.mrf.mxu0
  %v7416 = vadd.f32 %v7332, %v7415
  %v7417 = vpop.f32.mrf.mxu0
  %7418 = vmatprep.mubr.f32.mxu0 0.0
  %7419 = vmatmul.mubr.f32.gmra.mxu0 %v6592
  %v7420 = vpop.f32.mrf.mxu0
  %v7421 = vadd.f32 %v7332, %v7420
  %v7422 = vpop.f32.mrf.mxu0
  %7423 = vmatprep.mubr.f32.mxu0 0.0
  %7424 = vmatmul.mubr.f32.gmra.mxu0 %v6595
  %v7425 = vpop.f32.mrf.mxu0
  %v7426 = vadd.f32 %v7332, %v7425
  %v7427 = vpop.f32.mrf.mxu0
  %7428 = vmatprep.mubr.f32.mxu0 0.0
  %7429 = vmatmul.mubr.f32.gmra.mxu0 %v6598
  %v7430 = vpop.f32.mrf.mxu0
  %v7431 = vadd.f32 %v7332, %v7430
  %v7432 = vpop.f32.mrf.mxu0
  %7433 = vdwg.mxu0
  %7434 = vrot.lane.b32.xlu0 %v6563, 48
  %v7435 = vpop.permute.xlu0 %7434
  %7436 = vrot.lane.b32.xlu0 %v6564, 48
  %v7437 = vpop.permute.xlu0 %7436
  %7438 = vrot.lane.b32.xlu0 %v6565, 48
  %v7439 = vpop.permute.xlu0 %7438
  %7440 = vrot.lane.b32.xlu0 %v6566, 48
  %v7441 = vpop.permute.xlu0 %7440
  %7442 = vrot.lane.b32.xlu0 %v6567, 48
  %v7443 = vpop.permute.xlu0 %7442
  %7444 = vrot.lane.b32.xlu0 %v6568, 48
  %v7445 = vpop.permute.xlu0 %7444
  %7446 = vrot.lane.b32.xlu0 %v6569, 48
  %v7447 = vpop.permute.xlu0 %7446
  %7448 = vrot.lane.b32.xlu0 %v6570, 48
  %v7449 = vpop.permute.xlu0 %7448
  %7458 = vrot.lane.b32.xlu0 %v6577, 48
  %v7459 = vpop.permute.xlu0 %7458
  %7461 = vmatprep.subr.mxu0 0.0
  %7462 = vmatpush1.msra.mxu0 0.0
  %7463 = vmatprep.subr.mxu0 0.0
  %7464 = vmatpush1.msra.mxu0 0.0
  %7465 = vmatprep.subr.mxu0 0.0
  %7466 = vmatpush1.msra.mxu0 0.0
  %7467 = vmatprep.subr.mxu0 0.0
  %7468 = vmatpush1.msra.mxu0 0.0
  %7469 = vmatprep.subr.mxu0 0.0
  %7470 = vmatpush1.msra.mxu0 0.0
  %7471 = vmatprep.subr.mxu0 0.0
  %7472 = vmatpush1.msra.mxu0 0.0
  %7473 = vmatprep.subr.mxu0 0.0
  %7474 = vmatpush1.msra.mxu0 0.0
  %7475 = vmatprep.subr.mxu0 0.0
  %7476 = vmatpush1.msra.mxu0 0.0
  %7477 = vmatprep.subr.mxu0 0.0
  %7478 = vmatpush1.msra.mxu0 %v7449
  %7479 = vmatprep.subr.mxu0 0.0
  %7480 = vmatpush1.msra.mxu0 %v7447
  %7481 = vmatprep.subr.mxu0 0.0
  %7482 = vmatpush1.msra.mxu0 %v7445
  %7483 = vmatprep.subr.mxu0 0.0
  %7484 = vmatpush1.msra.mxu0 %v7443
  %7485 = vmatprep.subr.mxu0 0.0
  %7486 = vmatpush1.msra.mxu0 %v7441
  %7487 = vmatprep.subr.mxu0 0.0
  %7488 = vmatpush1.msra.mxu0 %v7439
  %7489 = vmatprep.subr.mxu0 0.0
  %7490 = vmatpush1.msra.mxu0 %v7437
  %7491 = vmatprep.subr.mxu0 0.0
  %7492 = vmatpush1.msra.mxu0 %v7435
  %7493 = vmatprep.subr.mxu0 0.0
  %7494 = vmatpush2.msra.mxu0 0.0
  %7495 = vmatprep.subr.mxu0 0.0
  %7496 = vmatpush2.msra.mxu0 0.0
  %7497 = vmatprep.subr.mxu0 0.0
  %7498 = vmatpush2.msra.mxu0 0.0
  %7499 = vmatprep.subr.mxu0 0.0
  %7500 = vmatpush2.msra.mxu0 0.0
  %7501 = vmatprep.subr.mxu0 0.0
  %7502 = vmatpush2.msra.mxu0 0.0
  %7503 = vmatprep.subr.mxu0 0.0
  %7504 = vmatpush2.msra.mxu0 0.0
  %7505 = vmatprep.subr.mxu0 0.0
  %7506 = vmatpush2.msra.mxu0 0.0
  %7507 = vmatprep.subr.mxu0 0.0
  %7508 = vmatpush2.msra.mxu0 0.0
  %7509 = vmatprep.subr.mxu0 0.0
  %7510 = vmatpush2.msra.mxu0 0.0
  %7511 = vmatprep.subr.mxu0 0.0
  %7512 = vmatpush2.msra.mxu0 0.0
  %7513 = vmatprep.subr.mxu0 0.0
  %7514 = vmatpush2.msra.mxu0 0.0
  %7515 = vmatprep.subr.mxu0 0.0
  %7516 = vmatpush2.msra.mxu0 0.0
  %7517 = vmatprep.subr.mxu0 0.0
  %7518 = vmatpush2.msra.mxu0 0.0
  %7519 = vmatprep.subr.mxu0 0.0
  %7520 = vmatpush2.msra.mxu0 0.0
  %7521 = vmatprep.subr.mxu0 0.0
  %7522 = vmatpush2.msra.mxu0 0.0
  %7523 = vmatprep.subr.mxu0 0.0
  %7524 = vmatpush2.msra.mxu0 0.0
  %7525 = vmatprep.mubr.f32.mxu0 0.0
  %7526 = vmatmul.mubr.f32.gmra.mxu0 %v6580
  %v7527 = vpop.f32.mrf.mxu0
  %v7528 = vadd.f32 %v7459, %v7527
  %v7529 = vpop.f32.mrf.mxu0
  %7530 = vmatprep.mubr.f32.mxu0 0.0
  %7531 = vmatmul.mubr.f32.gmra.mxu0 %v6583
  %v7532 = vpop.f32.mrf.mxu0
  %v7533 = vadd.f32 %v7459, %v7532
  %v7534 = vpop.f32.mrf.mxu0
  %7535 = vmatprep.mubr.f32.mxu0 0.0
  %7536 = vmatmul.mubr.f32.gmra.mxu0 %v6586
  %v7537 = vpop.f32.mrf.mxu0
  %v7538 = vadd.f32 %v7459, %v7537
  %v7539 = vpop.f32.mrf.mxu0
  %7540 = vmatprep.mubr.f32.mxu0 0.0
  %7541 = vmatmul.mubr.f32.gmra.mxu0 %v6589
  %v7542 = vpop.f32.mrf.mxu0
  %v7543 = vadd.f32 %v7459, %v7542
  %v7544 = vpop.f32.mrf.mxu0
  %7545 = vmatprep.mubr.f32.mxu0 0.0
  %7546 = vmatmul.mubr.f32.gmra.mxu0 %v6592
  %v7547 = vpop.f32.mrf.mxu0
  %v7548 = vadd.f32 %v7459, %v7547
  %v7549 = vpop.f32.mrf.mxu0
  %7550 = vmatprep.mubr.f32.mxu0 0.0
  %7551 = vmatmul.mubr.f32.gmra.mxu0 %v6595
  %v7552 = vpop.f32.mrf.mxu0
  %v7553 = vadd.f32 %v7459, %v7552
  %v7554 = vpop.f32.mrf.mxu0
  %7555 = vmatprep.mubr.f32.mxu0 0.0
  %7556 = vmatmul.mubr.f32.gmra.mxu0 %v6598
  %v7557 = vpop.f32.mrf.mxu0
  %v7558 = vadd.f32 %v7459, %v7557
  %v7559 = vpop.f32.mrf.mxu0
  %7560 = vdwg.mxu0
  %7569 = vrot.lane.b32.xlu0 %v6835, 112
  %v7570 = vpop.permute.xlu0 %7569
  %7571 = vrot.lane.b32.xlu0 %v6836, 112
  %v7572 = vpop.permute.xlu0 %7571
  %7573 = vrot.lane.b32.xlu0 %v6837, 112
  %v7574 = vpop.permute.xlu0 %7573
  %7575 = vrot.lane.b32.xlu0 %v6838, 112
  %v7576 = vpop.permute.xlu0 %7575
  %7577 = vrot.lane.b32.xlu0 %v6839, 112
  %v7578 = vpop.permute.xlu0 %7577
  %7579 = vrot.lane.b32.xlu0 %v6840, 112
  %v7580 = vpop.permute.xlu0 %7579
  %7581 = vrot.lane.b32.xlu0 %v6841, 112
  %v7582 = vpop.permute.xlu0 %7581
  %7583 = vrot.lane.b32.xlu0 %v6842, 112
  %v7584 = vpop.permute.xlu0 %7583
  %7593 = vrot.lane.b32.xlu0 %v6848, 112
  %v7594 = vpop.permute.xlu0 %7593
  %7596 = vmatprep.subr.mxu0 0.0
  %7597 = vmatpush1.msra.mxu0 0.0
  %7598 = vmatprep.subr.mxu0 0.0
  %7599 = vmatpush1.msra.mxu0 0.0
  %7600 = vmatprep.subr.mxu0 0.0
  %7601 = vmatpush1.msra.mxu0 0.0
  %7602 = vmatprep.subr.mxu0 0.0
  %7603 = vmatpush1.msra.mxu0 0.0
  %7604 = vmatprep.subr.mxu0 0.0
  %7605 = vmatpush1.msra.mxu0 0.0
  %7606 = vmatprep.subr.mxu0 0.0
  %7607 = vmatpush1.msra.mxu0 0.0
  %7608 = vmatprep.subr.mxu0 0.0
  %7609 = vmatpush1.msra.mxu0 0.0
  %7610 = vmatprep.subr.mxu0 0.0
  %7611 = vmatpush1.msra.mxu0 0.0
  %7612 = vmatprep.subr.mxu0 0.0
  %7613 = vmatpush1.msra.mxu0 %v7584
  %7614 = vmatprep.subr.mxu0 0.0
  %7615 = vmatpush1.msra.mxu0 %v7582
  %7616 = vmatprep.subr.mxu0 0.0
  %7617 = vmatpush1.msra.mxu0 %v7580
  %7618 = vmatprep.subr.mxu0 0.0
  %7619 = vmatpush1.msra.mxu0 %v7578
  %7620 = vmatprep.subr.mxu0 0.0
  %7621 = vmatpush1.msra.mxu0 %v7576
  %7622 = vmatprep.subr.mxu0 0.0
  %7623 = vmatpush1.msra.mxu0 %v7574
  %7624 = vmatprep.subr.mxu0 0.0
  %7625 = vmatpush1.msra.mxu0 %v7572
  %7626 = vmatprep.subr.mxu0 0.0
  %7627 = vmatpush1.msra.mxu0 %v7570
  %7628 = vmatprep.subr.mxu0 0.0
  %7629 = vmatpush2.msra.mxu0 0.0
  %7630 = vmatprep.subr.mxu0 0.0
  %7631 = vmatpush2.msra.mxu0 0.0
  %7632 = vmatprep.subr.mxu0 0.0
  %7633 = vmatpush2.msra.mxu0 0.0
  %7634 = vmatprep.subr.mxu0 0.0
  %7635 = vmatpush2.msra.mxu0 0.0
  %7636 = vmatprep.subr.mxu0 0.0
  %7637 = vmatpush2.msra.mxu0 0.0
  %7638 = vmatprep.subr.mxu0 0.0
  %7639 = vmatpush2.msra.mxu0 0.0
  %7640 = vmatprep.subr.mxu0 0.0
  %7641 = vmatpush2.msra.mxu0 0.0
  %7642 = vmatprep.subr.mxu0 0.0
  %7643 = vmatpush2.msra.mxu0 0.0
  %7644 = vmatprep.subr.mxu0 0.0
  %7645 = vmatpush2.msra.mxu0 0.0
  %7646 = vmatprep.subr.mxu0 0.0
  %7647 = vmatpush2.msra.mxu0 0.0
  %7648 = vmatprep.subr.mxu0 0.0
  %7649 = vmatpush2.msra.mxu0 0.0
  %7650 = vmatprep.subr.mxu0 0.0
  %7651 = vmatpush2.msra.mxu0 0.0
  %7652 = vmatprep.subr.mxu0 0.0
  %7653 = vmatpush2.msra.mxu0 0.0
  %7654 = vmatprep.subr.mxu0 0.0
  %7655 = vmatpush2.msra.mxu0 0.0
  %7656 = vmatprep.subr.mxu0 0.0
  %7657 = vmatpush2.msra.mxu0 0.0
  %7658 = vmatprep.subr.mxu0 0.0
  %7659 = vmatpush2.msra.mxu0 0.0
  %7660 = vmatprep.mubr.f32.mxu0 0.0
  %7661 = vmatmul.mubr.f32.gmra.mxu0 %v6580
  %v7662 = vpop.f32.mrf.mxu0
  %v7663 = vadd.f32 %v7594, %v7662
  %v7664 = vpop.f32.mrf.mxu0
  %7665 = vmatprep.mubr.f32.mxu0 0.0
  %7666 = vmatmul.mubr.f32.gmra.mxu0 %v6583
  %v7667 = vpop.f32.mrf.mxu0
  %v7668 = vadd.f32 %v7594, %v7667
  %v7669 = vpop.f32.mrf.mxu0
  %7670 = vmatprep.mubr.f32.mxu0 0.0
  %7671 = vmatmul.mubr.f32.gmra.mxu0 %v6586
  %v7672 = vpop.f32.mrf.mxu0
  %v7673 = vadd.f32 %v7594, %v7672
  %v7674 = vpop.f32.mrf.mxu0
  %7675 = vmatprep.mubr.f32.mxu0 0.0
  %7676 = vmatmul.mubr.f32.gmra.mxu0 %v6589
  %v7677 = vpop.f32.mrf.mxu0
  %v7678 = vadd.f32 %v7594, %v7677
  %v7679 = vpop.f32.mrf.mxu0
  %7680 = vmatprep.mubr.f32.mxu0 0.0
  %7681 = vmatmul.mubr.f32.gmra.mxu0 %v6592
  %v7682 = vpop.f32.mrf.mxu0
  %v7683 = vadd.f32 %v7594, %v7682
  %v7684 = vpop.f32.mrf.mxu0
  %7685 = vmatprep.mubr.f32.mxu0 0.0
  %7686 = vmatmul.mubr.f32.gmra.mxu0 %v6595
  %v7687 = vpop.f32.mrf.mxu0
  %v7688 = vadd.f32 %v7594, %v7687
  %v7689 = vpop.f32.mrf.mxu0
  %7690 = vmatprep.mubr.f32.mxu0 0.0
  %7691 = vmatmul.mubr.f32.gmra.mxu0 %v6598
  %v7692 = vpop.f32.mrf.mxu0
  %v7693 = vadd.f32 %v7594, %v7692
  %v7694 = vpop.f32.mrf.mxu0
  %7695 = vdwg.mxu0
  %v7697 = vsel %vm449, %v7401, 0
  %v7700 = vsel %vm449, %v7406, 0
  %v7703 = vsel %vm449, %v7411, 0
  %v7706 = vsel %vm449, %v7416, 0
  %v7709 = vsel %vm449, %v7421, 0
  %v7712 = vsel %vm449, %v7426, 0
  %v7715 = vsel %vm449, %v7431, 0
  %v7718 = vsel %vm449, %v7528, 0
  %v7721 = vsel %vm449, %v7533, 0
  %v7724 = vsel %vm449, %v7538, 0
  %v7727 = vsel %vm449, %v7543, 0
  %v7730 = vsel %vm449, %v7548, 0
  %v7733 = vsel %vm449, %v7553, 0
  %v7736 = vsel %vm449, %v7558, 0
  %7738 = vmatprep.subr.mxu0 0.0
  %7739 = vmatpush1.xpose.msra.mxu0 0.0
  %7740 = vmatprep.subr.mxu0 0.0
  %7741 = vmatpush1.xpose.msra.mxu0 0.0
  %7742 = vmatprep.subr.mxu0 0.0
  %7743 = vmatpush1.xpose.msra.mxu0 0.0
  %7744 = vmatprep.subr.mxu0 0.0
  %7745 = vmatpush1.xpose.msra.mxu0 0.0
  %7746 = vmatprep.subr.mxu0 0.0
  %7747 = vmatpush1.xpose.msra.mxu0 0.0
  %7748 = vmatprep.subr.mxu0 0.0
  %7749 = vmatpush1.xpose.msra.mxu0 0.0
  %7750 = vmatprep.subr.mxu0 0.0
  %7751 = vmatpush1.xpose.msra.mxu0 0.0
  %7752 = vmatprep.subr.mxu0 0.0
  %7753 = vmatpush1.xpose.msra.mxu0 0.0
  %7754 = vmatprep.subr.mxu0 0.0
  %7755 = vmatpush1.xpose.msra.mxu0 0.0
  %7756 = vmatprep.subr.mxu0 0.0
  %7757 = vmatpush1.xpose.msra.mxu0 %v7736
  %7758 = vmatprep.subr.mxu0 0.0
  %7759 = vmatpush1.xpose.msra.mxu0 %v7733
  %7760 = vmatprep.subr.mxu0 0.0
  %7761 = vmatpush1.xpose.msra.mxu0 %v7730
  %7762 = vmatprep.subr.mxu0 0.0
  %7763 = vmatpush1.xpose.msra.mxu0 %v7727
  %7764 = vmatprep.subr.mxu0 0.0
  %7765 = vmatpush1.xpose.msra.mxu0 %v7724
  %7766 = vmatprep.subr.mxu0 0.0
  %7767 = vmatpush1.xpose.msra.mxu0 %v7721
  %7768 = vmatprep.subr.mxu0 0.0
  %7769 = vmatpush1.xpose.msra.mxu0 %v7718
  %7770 = vmatprep.subr.mxu0 0.0
  %7771 = vmatpush2.xpose.msra.mxu0 0.0
  %7772 = vmatprep.subr.mxu0 0.0
  %7773 = vmatpush2.xpose.msra.mxu0 0.0
  %7774 = vmatprep.subr.mxu0 0.0
  %7775 = vmatpush2.xpose.msra.mxu0 0.0
  %7776 = vmatprep.subr.mxu0 0.0
  %7777 = vmatpush2.xpose.msra.mxu0 0.0
  %7778 = vmatprep.subr.mxu0 0.0
  %7779 = vmatpush2.xpose.msra.mxu0 0.0
  %7780 = vmatprep.subr.mxu0 0.0
  %7781 = vmatpush2.xpose.msra.mxu0 0.0
  %7782 = vmatprep.subr.mxu0 0.0
  %7783 = vmatpush2.xpose.msra.mxu0 0.0
  %7784 = vmatprep.subr.mxu0 0.0
  %7785 = vmatpush2.xpose.msra.mxu0 0.0
  %7786 = vmatprep.subr.mxu0 0.0
  %7787 = vmatpush2.xpose.msra.mxu0 0.0
  %7788 = vmatprep.subr.mxu0 0.0
  %7789 = vmatpush2.xpose.msra.mxu0 0.0
  %7790 = vmatprep.subr.mxu0 0.0
  %7791 = vmatpush2.xpose.msra.mxu0 0.0
  %7792 = vmatprep.subr.mxu0 0.0
  %7793 = vmatpush2.xpose.msra.mxu0 0.0
  %7794 = vmatprep.subr.mxu0 0.0
  %7795 = vmatpush2.xpose.msra.mxu0 0.0
  %7796 = vmatprep.subr.mxu0 0.0
  %7797 = vmatpush2.xpose.msra.mxu0 0.0
  %7798 = vmatprep.subr.mxu0 0.0
  %7799 = vmatpush2.xpose.msra.mxu0 0.0
  %7800 = vmatprep.subr.mxu0 0.0
  %7801 = vmatpush2.xpose.msra.mxu0 0.0
  %7802 = vmatprep.mubr.f32.mxu0 0.0
  %7803 = vmatmul.mubr.f32.gmra.mxu0 %v7697
  %v7804 = vpop.f32.mrf.mxu0
  %v7805 = vadd.f32 0.0, %v7804
  %v7806 = vpop.f32.mrf.mxu0
  %7807 = vmatprep.mubr.f32.mxu0 0.0
  %7808 = vmatmul.mubr.f32.gmra.mxu0 %v7700
  %v7809 = vpop.f32.mrf.mxu0
  %v7810 = vadd.f32 0.0, %v7809
  %v7811 = vpop.f32.mrf.mxu0
  %7812 = vmatprep.mubr.f32.mxu0 0.0
  %7813 = vmatmul.mubr.f32.gmra.mxu0 %v7703
  %v7814 = vpop.f32.mrf.mxu0
  %v7815 = vadd.f32 0.0, %v7814
  %v7816 = vpop.f32.mrf.mxu0
  %7817 = vmatprep.mubr.f32.mxu0 0.0
  %7818 = vmatmul.mubr.f32.gmra.mxu0 %v7706
  %v7819 = vpop.f32.mrf.mxu0
  %v7820 = vadd.f32 0.0, %v7819
  %v7821 = vpop.f32.mrf.mxu0
  %7822 = vmatprep.mubr.f32.mxu0 0.0
  %7823 = vmatmul.mubr.f32.gmra.mxu0 %v7709
  %v7824 = vpop.f32.mrf.mxu0
  %v7825 = vadd.f32 0.0, %v7824
  %v7826 = vpop.f32.mrf.mxu0
  %7827 = vmatprep.mubr.f32.mxu0 0.0
  %7828 = vmatmul.mubr.f32.gmra.mxu0 %v7712
  %v7829 = vpop.f32.mrf.mxu0
  %v7830 = vadd.f32 0.0, %v7829
  %v7831 = vpop.f32.mrf.mxu0
  %7832 = vmatprep.mubr.f32.mxu0 0.0
  %7833 = vmatmul.mubr.f32.gmra.mxu0 %v7715
  %v7834 = vpop.f32.mrf.mxu0
  %v7835 = vadd.f32 0.0, %v7834
  %v7836 = vpop.f32.mrf.mxu0
  %7837 = vdwg.mxu0
  %v7838 = vmul.f32 %v7805, 0.25
  %v7839 = vmul.f32 %v7810, 0.25
  %v7840 = vmul.f32 %v7815, 0.25
  %v7841 = vmul.f32 %v7820, 0.25
  %v7842 = vmul.f32 %v7825, 0.25
  %v7843 = vmul.f32 %v7830, 0.25
  %v7844 = vmul.f32 %v7835, 0.25
  %v7845 = vadd.f32 %v7838, %v55
  %v7846 = vadd.f32 %v7839, %v56
  %v7847 = vadd.f32 %v7840, %v57
  %v7848 = vadd.f32 %v7841, %v58
  %v7849 = vadd.f32 %v7842, %v59
  %v7850 = vadd.f32 %v7843, %v60
  %v7851 = vadd.f32 %v7844, %v61
  %v7852 = vsel %vm606, %v7845, -inf
  %7853 = vmax.xlane.f32.xlu0 %v7852
  %v7854 = vpop.xlane.xlu0 %7853
  %v7855 = vsel %vm606, %v7846, -inf
  %7856 = vmax.xlane.f32.xlu0 %v7855
  %v7857 = vpop.xlane.xlu0 %7856
  %v7858 = vsel %vm606, %v7847, -inf
  %7859 = vmax.xlane.f32.xlu0 %v7858
  %v7860 = vpop.xlane.xlu0 %7859
  %v7861 = vsel %vm606, %v7848, -inf
  %7862 = vmax.xlane.f32.xlu0 %v7861
  %v7863 = vpop.xlane.xlu0 %7862
  %v7864 = vsel %vm606, %v7849, -inf
  %7865 = vmax.xlane.f32.xlu0 %v7864
  %v7866 = vpop.xlane.xlu0 %7865
  %v7867 = vsel %vm606, %v7850, -inf
  %7868 = vmax.xlane.f32.xlu0 %v7867
  %v7869 = vpop.xlane.xlu0 %7868
  %v7870 = vsel %vm606, %v7851, -inf
  %7871 = vmax.xlane.f32.xlu0 %v7870
  %v7872 = vpop.xlane.xlu0 %7871
  %v7873 = vsub.f32 %v7845, %v7854
  %v7874 = vsub.f32 %v7846, %v7857
  %v7875 = vsub.f32 %v7847, %v7860
  %v7876 = vsub.f32 %v7848, %v7863
  %v7877 = vsub.f32 %v7849, %v7866
  %v7878 = vsub.f32 %v7850, %v7869
  %v7879 = vsub.f32 %v7851, %v7872
  %v7880 = vmul.f32 %v7873, 1.442695
  %v7881 = vpow.pop %v7880
  %v7882 = vmul.f32 %v7874, 1.442695
  %v7883 = vpow.pop %v7882
  %v7884 = vmul.f32 %v7875, 1.442695
  %v7885 = vpow.pop %v7884
  %v7886 = vmul.f32 %v7876, 1.442695
  %v7887 = vpow.pop %v7886
  %v7888 = vmul.f32 %v7877, 1.442695
  %v7889 = vpow.pop %v7888
  %v7890 = vmul.f32 %v7878, 1.442695
  %v7891 = vpow.pop %v7890
  %v7892 = vmul.f32 %v7879, 1.442695
  %v7893 = vpow.pop %v7892
  %v7894 = vsel %vm606, %v7881, 0.0
  %7895 = vadd.xlane.f32.xlu0 %v7894
  %v7896 = vpop.xlane.xlu0 %7895
  %v7897 = vsel %vm606, %v7883, 0.0
  %7898 = vadd.xlane.f32.xlu0 %v7897
  %v7899 = vpop.xlane.xlu0 %7898
  %v7900 = vsel %vm606, %v7885, 0.0
  %7901 = vadd.xlane.f32.xlu0 %v7900
  %v7902 = vpop.xlane.xlu0 %7901
  %v7903 = vsel %vm606, %v7887, 0.0
  %7904 = vadd.xlane.f32.xlu0 %v7903
  %v7905 = vpop.xlane.xlu0 %7904
  %v7906 = vsel %vm606, %v7889, 0.0
  %7907 = vadd.xlane.f32.xlu0 %v7906
  %v7908 = vpop.xlane.xlu0 %7907
  %v7909 = vsel %vm606, %v7891, 0.0
  %7910 = vadd.xlane.f32.xlu0 %v7909
  %v7911 = vpop.xlane.xlu0 %7910
  %v7912 = vsel %vm606, %v7893, 0.0
  %7913 = vadd.xlane.f32.xlu0 %v7912
  %v7914 = vpop.xlane.xlu0 %7913
  %v7915 = vrcp.pop %v7896
  %v7916 = vmul.f32 %v7881, %v7915
  %v7917 = vrcp.pop %v7899
  %v7918 = vmul.f32 %v7883, %v7917
  %v7919 = vrcp.pop %v7902
  %v7920 = vmul.f32 %v7885, %v7919
  %v7921 = vrcp.pop %v7905
  %v7922 = vmul.f32 %v7887, %v7921
  %v7923 = vrcp.pop %v7908
  %v7924 = vmul.f32 %v7889, %v7923
  %v7925 = vrcp.pop %v7911
  %v7926 = vmul.f32 %v7891, %v7925
  %v7927 = vrcp.pop %v7914
  %v7928 = vmul.f32 %v7893, %v7927
  %v7930 = vsel %vm606, %v7916, 0
  %v7933 = vsel %vm606, %v7918, 0
  %v7936 = vsel %vm606, %v7920, 0
  %v7939 = vsel %vm606, %v7922, 0
  %v7942 = vsel %vm606, %v7924, 0
  %v7945 = vsel %vm606, %v7926, 0
  %v7948 = vsel %vm606, %v7928, 0
  %7950 = vmatprep.subr.mxu0 0.0
  %7951 = vmatpush1.msra.mxu0 0.0
  %7952 = vmatprep.subr.mxu0 0.0
  %7953 = vmatpush1.msra.mxu0 0.0
  %7954 = vmatprep.subr.mxu0 0.0
  %7955 = vmatpush1.msra.mxu0 0.0
  %7956 = vmatprep.subr.mxu0 0.0
  %7957 = vmatpush1.msra.mxu0 0.0
  %7958 = vmatprep.subr.mxu0 0.0
  %7959 = vmatpush1.msra.mxu0 0.0
  %7960 = vmatprep.subr.mxu0 0.0
  %7961 = vmatpush1.msra.mxu0 0.0
  %7962 = vmatprep.subr.mxu0 0.0
  %7963 = vmatpush1.msra.mxu0 0.0
  %7964 = vmatprep.subr.mxu0 0.0
  %7965 = vmatpush1.msra.mxu0 0.0
  %7966 = vmatprep.subr.mxu0 0.0
  %7967 = vmatpush1.msra.mxu0 0.0
  %7968 = vmatprep.subr.mxu0 0.0
  %7969 = vmatpush1.msra.mxu0 %v7693
  %7970 = vmatprep.subr.mxu0 0.0
  %7971 = vmatpush1.msra.mxu0 %v7688
  %7972 = vmatprep.subr.mxu0 0.0
  %7973 = vmatpush1.msra.mxu0 %v7683
  %7974 = vmatprep.subr.mxu0 0.0
  %7975 = vmatpush1.msra.mxu0 %v7678
  %7976 = vmatprep.subr.mxu0 0.0
  %7977 = vmatpush1.msra.mxu0 %v7673
  %7978 = vmatprep.subr.mxu0 0.0
  %7979 = vmatpush1.msra.mxu0 %v7668
  %7980 = vmatprep.subr.mxu0 0.0
  %7981 = vmatpush1.msra.mxu0 %v7663
  %7982 = vmatprep.subr.mxu0 0.0
  %7983 = vmatpush2.msra.mxu0 0.0
  %7984 = vmatprep.subr.mxu0 0.0
  %7985 = vmatpush2.msra.mxu0 0.0
  %7986 = vmatprep.subr.mxu0 0.0
  %7987 = vmatpush2.msra.mxu0 0.0
  %7988 = vmatprep.subr.mxu0 0.0
  %7989 = vmatpush2.msra.mxu0 0.0
  %7990 = vmatprep.subr.mxu0 0.0
  %7991 = vmatpush2.msra.mxu0 0.0
  %7992 = vmatprep.subr.mxu0 0.0
  %7993 = vmatpush2.msra.mxu0 0.0
  %7994 = vmatprep.subr.mxu0 0.0
  %7995 = vmatpush2.msra.mxu0 0.0
  %7996 = vmatprep.subr.mxu0 0.0
  %7997 = vmatpush2.msra.mxu0 0.0
  %7998 = vmatprep.subr.mxu0 0.0
  %7999 = vmatpush2.msra.mxu0 0.0
  %8000 = vmatprep.subr.mxu0 0.0
  %8001 = vmatpush2.msra.mxu0 0.0
  %8002 = vmatprep.subr.mxu0 0.0
  %8003 = vmatpush2.msra.mxu0 0.0
  %8004 = vmatprep.subr.mxu0 0.0
  %8005 = vmatpush2.msra.mxu0 0.0
  %8006 = vmatprep.subr.mxu0 0.0
  %8007 = vmatpush2.msra.mxu0 0.0
  %8008 = vmatprep.subr.mxu0 0.0
  %8009 = vmatpush2.msra.mxu0 0.0
  %8010 = vmatprep.subr.mxu0 0.0
  %8011 = vmatpush2.msra.mxu0 0.0
  %8012 = vmatprep.subr.mxu0 0.0
  %8013 = vmatpush2.msra.mxu0 0.0
  %8014 = vmatprep.mubr.f32.mxu0 0.0
  %8015 = vmatmul.mubr.f32.gmra.mxu0 %v7930
  %v8016 = vpop.f32.mrf.mxu0
  %v8017 = vadd.f32 0.0, %v8016
  %v8018 = vpop.f32.mrf.mxu0
  %8019 = vmatprep.mubr.f32.mxu0 0.0
  %8020 = vmatmul.mubr.f32.gmra.mxu0 %v7933
  %v8021 = vpop.f32.mrf.mxu0
  %v8022 = vadd.f32 0.0, %v8021
  %v8023 = vpop.f32.mrf.mxu0
  %8024 = vmatprep.mubr.f32.mxu0 0.0
  %8025 = vmatmul.mubr.f32.gmra.mxu0 %v7936
  %v8026 = vpop.f32.mrf.mxu0
  %v8027 = vadd.f32 0.0, %v8026
  %v8028 = vpop.f32.mrf.mxu0
  %8029 = vmatprep.mubr.f32.mxu0 0.0
  %8030 = vmatmul.mubr.f32.gmra.mxu0 %v7939
  %v8031 = vpop.f32.mrf.mxu0
  %v8032 = vadd.f32 0.0, %v8031
  %v8033 = vpop.f32.mrf.mxu0
  %8034 = vmatprep.mubr.f32.mxu0 0.0
  %8035 = vmatmul.mubr.f32.gmra.mxu0 %v7942
  %v8036 = vpop.f32.mrf.mxu0
  %v8037 = vadd.f32 0.0, %v8036
  %v8038 = vpop.f32.mrf.mxu0
  %8039 = vmatprep.mubr.f32.mxu0 0.0
  %8040 = vmatmul.mubr.f32.gmra.mxu0 %v7945
  %v8041 = vpop.f32.mrf.mxu0
  %v8042 = vadd.f32 0.0, %v8041
  %v8043 = vpop.f32.mrf.mxu0
  %8044 = vmatprep.mubr.f32.mxu0 0.0
  %8045 = vmatmul.mubr.f32.gmra.mxu0 %v7948
  %v8046 = vpop.f32.mrf.mxu0
  %v8047 = vadd.f32 0.0, %v8046
  %v8048 = vpop.f32.mrf.mxu0
  %8049 = vdwg.mxu0
  %v8050 = vld [vmem:[%s7304 + $0x10] sm:$0xff]
  %v8051 = vld [vmem:[%s7304 + $0x18] sm:$0xff]
  %v8053 = vsel %vm449, %v8017, 0
  %v8056 = vsel %vm449, %v8022, 0
  %v8059 = vsel %vm449, %v8027, 0
  %v8062 = vsel %vm449, %v8032, 0
  %v8065 = vsel %vm449, %v8037, 0
  %v8068 = vsel %vm449, %v8042, 0
  %v8071 = vsel %vm449, %v8047, 0
  %8073 = vmatprep.subr.mxu0 0.0
  %8074 = vmatpush1.msra.mxu0 0.0
  %8075 = vmatprep.subr.mxu0 0.0
  %8076 = vmatpush1.msra.mxu0 0.0
  %8077 = vmatprep.subr.mxu0 0.0
  %8078 = vmatpush1.msra.mxu0 0.0
  %8079 = vmatprep.subr.mxu0 0.0
  %8080 = vmatpush1.msra.mxu0 0.0
  %8081 = vmatprep.subr.mxu0 0.0
  %8082 = vmatpush1.msra.mxu0 0.0
  %8083 = vmatprep.subr.mxu0 0.0
  %8084 = vmatpush1.msra.mxu0 0.0
  %8085 = vmatprep.subr.mxu0 0.0
  %8086 = vmatpush1.msra.mxu0 0.0
  %8087 = vmatprep.subr.mxu0 0.0
  %8088 = vmatpush1.msra.mxu0 0.0
  %8089 = vmatprep.subr.mxu0 0.0
  %8090 = vmatpush1.msra.mxu0 0.0
  %8091 = vmatprep.subr.mxu0 0.0
  %8092 = vmatpush1.msra.mxu0 0.0
  %8093 = vmatprep.subr.mxu0 0.0
  %8094 = vmatpush1.msra.mxu0 0.0
  %8095 = vmatprep.subr.mxu0 0.0
  %8096 = vmatpush1.msra.mxu0 0.0
  %8097 = vmatprep.subr.mxu0 0.0
  %8098 = vmatpush1.msra.mxu0 0.0
  %8099 = vmatprep.subr.mxu0 0.0
  %8100 = vmatpush1.msra.mxu0 0.0
  %8101 = vmatprep.subr.mxu0 0.0
  %8102 = vmatpush1.msra.mxu0 %v8051
  %8103 = vmatprep.subr.mxu0 0.0
  %8104 = vmatpush1.msra.mxu0 %v8050
  %8105 = vmatprep.subr.mxu0 0.0
  %8106 = vmatpush2.msra.mxu0 0.0
  %8107 = vmatprep.subr.mxu0 0.0
  %8108 = vmatpush2.msra.mxu0 0.0
  %8109 = vmatprep.subr.mxu0 0.0
  %8110 = vmatpush2.msra.mxu0 0.0
  %8111 = vmatprep.subr.mxu0 0.0
  %8112 = vmatpush2.msra.mxu0 0.0
  %8113 = vmatprep.subr.mxu0 0.0
  %8114 = vmatpush2.msra.mxu0 0.0
  %8115 = vmatprep.subr.mxu0 0.0
  %8116 = vmatpush2.msra.mxu0 0.0
  %8117 = vmatprep.subr.mxu0 0.0
  %8118 = vmatpush2.msra.mxu0 0.0
  %8119 = vmatprep.subr.mxu0 0.0
  %8120 = vmatpush2.msra.mxu0 0.0
  %8121 = vmatprep.subr.mxu0 0.0
  %8122 = vmatpush2.msra.mxu0 0.0
  %8123 = vmatprep.subr.mxu0 0.0
  %8124 = vmatpush2.msra.mxu0 0.0
  %8125 = vmatprep.subr.mxu0 0.0
  %8126 = vmatpush2.msra.mxu0 0.0
  %8127 = vmatprep.subr.mxu0 0.0
  %8128 = vmatpush2.msra.mxu0 0.0
  %8129 = vmatprep.subr.mxu0 0.0
  %8130 = vmatpush2.msra.mxu0 0.0
  %8131 = vmatprep.subr.mxu0 0.0
  %8132 = vmatpush2.msra.mxu0 0.0
  %8133 = vmatprep.subr.mxu0 0.0
  %8134 = vmatpush2.msra.mxu0 0.0
  %8135 = vmatprep.subr.mxu0 0.0
  %8136 = vmatpush2.msra.mxu0 0.0
  %8137 = vmatprep.mubr.f32.mxu0 0.0
  %8138 = vmatmul.mubr.f32.gmra.mxu0 %v8053
  %v8139 = vpop.f32.mrf.mxu0
  %v8140 = vadd.f32 0.0, %v8139
  %v8141 = vpop.f32.mrf.mxu0
  %8142 = vmatprep.mubr.f32.mxu0 0.0
  %8143 = vmatmul.mubr.f32.gmra.mxu0 %v8056
  %v8144 = vpop.f32.mrf.mxu0
  %v8145 = vadd.f32 0.0, %v8144
  %v8146 = vpop.f32.mrf.mxu0
  %8147 = vmatprep.mubr.f32.mxu0 0.0
  %8148 = vmatmul.mubr.f32.gmra.mxu0 %v8059
  %v8149 = vpop.f32.mrf.mxu0
  %v8150 = vadd.f32 0.0, %v8149
  %v8151 = vpop.f32.mrf.mxu0
  %8152 = vmatprep.mubr.f32.mxu0 0.0
  %8153 = vmatmul.mubr.f32.gmra.mxu0 %v8062
  %v8154 = vpop.f32.mrf.mxu0
  %v8155 = vadd.f32 0.0, %v8154
  %v8156 = vpop.f32.mrf.mxu0
  %8157 = vmatprep.mubr.f32.mxu0 0.0
  %8158 = vmatmul.mubr.f32.gmra.mxu0 %v8065
  %v8159 = vpop.f32.mrf.mxu0
  %v8160 = vadd.f32 0.0, %v8159
  %v8161 = vpop.f32.mrf.mxu0
  %8162 = vmatprep.mubr.f32.mxu0 0.0
  %8163 = vmatmul.mubr.f32.gmra.mxu0 %v8068
  %v8164 = vpop.f32.mrf.mxu0
  %v8165 = vadd.f32 0.0, %v8164
  %v8166 = vpop.f32.mrf.mxu0
  %8167 = vmatprep.mubr.f32.mxu0 0.0
  %8168 = vmatmul.mubr.f32.gmra.mxu0 %v8071
  %v8169 = vpop.f32.mrf.mxu0
  %v8170 = vadd.f32 0.0, %v8169
  %v8171 = vpop.f32.mrf.mxu0
  %8172 = vdwg.mxu0
  %v8174 = vsel %vm449, %v7271, 0
  %v8177 = vsel %vm449, %v7276, 0
  %v8180 = vsel %vm449, %v7281, 0
  %v8183 = vsel %vm449, %v7286, 0
  %v8186 = vsel %vm449, %v7291, 0
  %v8189 = vsel %vm449, %v7296, 0
  %v8192 = vsel %vm449, %v7301, 0
  %8194 = vmatprep.subr.mxu0 0.0
  %8195 = vmatpush1.msra.mxu0 0.0
  %8196 = vmatprep.subr.mxu0 0.0
  %8197 = vmatpush1.msra.mxu0 0.0
  %8198 = vmatprep.subr.mxu0 0.0
  %8199 = vmatpush1.msra.mxu0 0.0
  %8200 = vmatprep.subr.mxu0 0.0
  %8201 = vmatpush1.msra.mxu0 0.0
  %8202 = vmatprep.subr.mxu0 0.0
  %8203 = vmatpush1.msra.mxu0 0.0
  %8204 = vmatprep.subr.mxu0 0.0
  %8205 = vmatpush1.msra.mxu0 0.0
  %8206 = vmatprep.subr.mxu0 0.0
  %8207 = vmatpush1.msra.mxu0 0.0
  %8208 = vmatprep.subr.mxu0 0.0
  %8209 = vmatpush1.msra.mxu0 0.0
  %8210 = vmatprep.subr.mxu0 0.0
  %8211 = vmatpush1.msra.mxu0 0.0
  %8212 = vmatprep.subr.mxu0 0.0
  %8213 = vmatpush1.msra.mxu0 0.0
  %8214 = vmatprep.subr.mxu0 0.0
  %8215 = vmatpush1.msra.mxu0 0.0
  %8216 = vmatprep.subr.mxu0 0.0
  %8217 = vmatpush1.msra.mxu0 0.0
  %8218 = vmatprep.subr.mxu0 0.0
  %8219 = vmatpush1.msra.mxu0 0.0
  %8220 = vmatprep.subr.mxu0 0.0
  %8221 = vmatpush1.msra.mxu0 0.0
  %8222 = vmatprep.subr.mxu0 0.0
  %8223 = vmatpush1.msra.mxu0 %v7306
  %8224 = vmatprep.subr.mxu0 0.0
  %8225 = vmatpush1.msra.mxu0 %v7305
  %8226 = vmatprep.subr.mxu0 0.0
  %8227 = vmatpush2.msra.mxu0 0.0
  %8228 = vmatprep.subr.mxu0 0.0
  %8229 = vmatpush2.msra.mxu0 0.0
  %8230 = vmatprep.subr.mxu0 0.0
  %8231 = vmatpush2.msra.mxu0 0.0
  %8232 = vmatprep.subr.mxu0 0.0
  %8233 = vmatpush2.msra.mxu0 0.0
  %8234 = vmatprep.subr.mxu0 0.0
  %8235 = vmatpush2.msra.mxu0 0.0
  %8236 = vmatprep.subr.mxu0 0.0
  %8237 = vmatpush2.msra.mxu0 0.0
  %8238 = vmatprep.subr.mxu0 0.0
  %8239 = vmatpush2.msra.mxu0 0.0
  %8240 = vmatprep.subr.mxu0 0.0
  %8241 = vmatpush2.msra.mxu0 0.0
  %8242 = vmatprep.subr.mxu0 0.0
  %8243 = vmatpush2.msra.mxu0 0.0
  %8244 = vmatprep.subr.mxu0 0.0
  %8245 = vmatpush2.msra.mxu0 0.0
  %8246 = vmatprep.subr.mxu0 0.0
  %8247 = vmatpush2.msra.mxu0 0.0
  %8248 = vmatprep.subr.mxu0 0.0
  %8249 = vmatpush2.msra.mxu0 0.0
  %8250 = vmatprep.subr.mxu0 0.0
  %8251 = vmatpush2.msra.mxu0 0.0
  %8252 = vmatprep.subr.mxu0 0.0
  %8253 = vmatpush2.msra.mxu0 0.0
  %8254 = vmatprep.subr.mxu0 0.0
  %8255 = vmatpush2.msra.mxu0 0.0
  %8256 = vmatprep.subr.mxu0 0.0
  %8257 = vmatpush2.msra.mxu0 0.0
  %8258 = vmatprep.mubr.f32.mxu0 0.0
  %8259 = vmatmul.mubr.f32.gmra.mxu0 %v8174
  %v8260 = vpop.f32.mrf.mxu0
  %v8261 = vadd.f32 %v8140, %v8260
  %v8262 = vpop.f32.mrf.mxu0
  %8263 = vmatprep.mubr.f32.mxu0 0.0
  %8264 = vmatmul.mubr.f32.gmra.mxu0 %v8177
  %v8265 = vpop.f32.mrf.mxu0
  %v8266 = vadd.f32 %v8145, %v8265
  %v8267 = vpop.f32.mrf.mxu0
  %8268 = vmatprep.mubr.f32.mxu0 0.0
  %8269 = vmatmul.mubr.f32.gmra.mxu0 %v8180
  %v8270 = vpop.f32.mrf.mxu0
  %v8271 = vadd.f32 %v8150, %v8270
  %v8272 = vpop.f32.mrf.mxu0
  %8273 = vmatprep.mubr.f32.mxu0 0.0
  %8274 = vmatmul.mubr.f32.gmra.mxu0 %v8183
  %v8275 = vpop.f32.mrf.mxu0
  %v8276 = vadd.f32 %v8155, %v8275
  %v8277 = vpop.f32.mrf.mxu0
  %8278 = vmatprep.mubr.f32.mxu0 0.0
  %8279 = vmatmul.mubr.f32.gmra.mxu0 %v8186
  %v8280 = vpop.f32.mrf.mxu0
  %v8281 = vadd.f32 %v8160, %v8280
  %v8282 = vpop.f32.mrf.mxu0
  %8283 = vmatprep.mubr.f32.mxu0 0.0
  %8284 = vmatmul.mubr.f32.gmra.mxu0 %v8189
  %v8285 = vpop.f32.mrf.mxu0
  %v8286 = vadd.f32 %v8165, %v8285
  %v8287 = vpop.f32.mrf.mxu0
  %8288 = vmatprep.mubr.f32.mxu0 0.0
  %8289 = vmatmul.mubr.f32.gmra.mxu0 %v8192
  %v8290 = vpop.f32.mrf.mxu0
  %v8291 = vadd.f32 %v8170, %v8290
  %v8292 = vpop.f32.mrf.mxu0
  %8293 = vdwg.mxu0
  %8294 = vrot.lane.b32.xlu0 %v6563, 96
  %v8295 = vpop.permute.xlu0 %8294
  %8296 = vrot.lane.b32.xlu0 %v6564, 96
  %v8297 = vpop.permute.xlu0 %8296
  %8298 = vrot.lane.b32.xlu0 %v6565, 96
  %v8299 = vpop.permute.xlu0 %8298
  %8300 = vrot.lane.b32.xlu0 %v6566, 96
  %v8301 = vpop.permute.xlu0 %8300
  %8302 = vrot.lane.b32.xlu0 %v6567, 96
  %v8303 = vpop.permute.xlu0 %8302
  %8304 = vrot.lane.b32.xlu0 %v6568, 96
  %v8305 = vpop.permute.xlu0 %8304
  %8306 = vrot.lane.b32.xlu0 %v6569, 96
  %v8307 = vpop.permute.xlu0 %8306
  %8308 = vrot.lane.b32.xlu0 %v6570, 96
  %v8309 = vpop.permute.xlu0 %8308
  %8318 = vrot.lane.b32.xlu0 %v6577, 96
  %v8319 = vpop.permute.xlu0 %8318
  %8321 = vmatprep.subr.mxu0 0.0
  %8322 = vmatpush1.msra.mxu0 0.0
  %8323 = vmatprep.subr.mxu0 0.0
  %8324 = vmatpush1.msra.mxu0 0.0
  %8325 = vmatprep.subr.mxu0 0.0
  %8326 = vmatpush1.msra.mxu0 0.0
  %8327 = vmatprep.subr.mxu0 0.0
  %8328 = vmatpush1.msra.mxu0 0.0
  %8329 = vmatprep.subr.mxu0 0.0
  %8330 = vmatpush1.msra.mxu0 0.0
  %8331 = vmatprep.subr.mxu0 0.0
  %8332 = vmatpush1.msra.mxu0 0.0
  %8333 = vmatprep.subr.mxu0 0.0
  %8334 = vmatpush1.msra.mxu0 0.0
  %8335 = vmatprep.subr.mxu0 0.0
  %8336 = vmatpush1.msra.mxu0 0.0
  %8337 = vmatprep.subr.mxu0 0.0
  %8338 = vmatpush1.msra.mxu0 %v8309
  %8339 = vmatprep.subr.mxu0 0.0
  %8340 = vmatpush1.msra.mxu0 %v8307
  %8341 = vmatprep.subr.mxu0 0.0
  %8342 = vmatpush1.msra.mxu0 %v8305
  %8343 = vmatprep.subr.mxu0 0.0
  %8344 = vmatpush1.msra.mxu0 %v8303
  %8345 = vmatprep.subr.mxu0 0.0
  %8346 = vmatpush1.msra.mxu0 %v8301
  %8347 = vmatprep.subr.mxu0 0.0
  %8348 = vmatpush1.msra.mxu0 %v8299
  %8349 = vmatprep.subr.mxu0 0.0
  %8350 = vmatpush1.msra.mxu0 %v8297
  %8351 = vmatprep.subr.mxu0 0.0
  %8352 = vmatpush1.msra.mxu0 %v8295
  %8353 = vmatprep.subr.mxu0 0.0
  %8354 = vmatpush2.msra.mxu0 0.0
  %8355 = vmatprep.subr.mxu0 0.0
  %8356 = vmatpush2.msra.mxu0 0.0
  %8357 = vmatprep.subr.mxu0 0.0
  %8358 = vmatpush2.msra.mxu0 0.0
  %8359 = vmatprep.subr.mxu0 0.0
  %8360 = vmatpush2.msra.mxu0 0.0
  %8361 = vmatprep.subr.mxu0 0.0
  %8362 = vmatpush2.msra.mxu0 0.0
  %8363 = vmatprep.subr.mxu0 0.0
  %8364 = vmatpush2.msra.mxu0 0.0
  %8365 = vmatprep.subr.mxu0 0.0
  %8366 = vmatpush2.msra.mxu0 0.0
  %8367 = vmatprep.subr.mxu0 0.0
  %8368 = vmatpush2.msra.mxu0 0.0
  %8369 = vmatprep.subr.mxu0 0.0
  %8370 = vmatpush2.msra.mxu0 0.0
  %8371 = vmatprep.subr.mxu0 0.0
  %8372 = vmatpush2.msra.mxu0 0.0
  %8373 = vmatprep.subr.mxu0 0.0
  %8374 = vmatpush2.msra.mxu0 0.0
  %8375 = vmatprep.subr.mxu0 0.0
  %8376 = vmatpush2.msra.mxu0 0.0
  %8377 = vmatprep.subr.mxu0 0.0
  %8378 = vmatpush2.msra.mxu0 0.0
  %8379 = vmatprep.subr.mxu0 0.0
  %8380 = vmatpush2.msra.mxu0 0.0
  %8381 = vmatprep.subr.mxu0 0.0
  %8382 = vmatpush2.msra.mxu0 0.0
  %8383 = vmatprep.subr.mxu0 0.0
  %8384 = vmatpush2.msra.mxu0 0.0
  %8385 = vmatprep.mubr.f32.mxu0 0.0
  %8386 = vmatmul.mubr.f32.gmra.mxu0 %v6580
  %v8387 = vpop.f32.mrf.mxu0
  %v8388 = vadd.f32 %v8319, %v8387
  %v8389 = vpop.f32.mrf.mxu0
  %8390 = vmatprep.mubr.f32.mxu0 0.0
  %8391 = vmatmul.mubr.f32.gmra.mxu0 %v6583
  %v8392 = vpop.f32.mrf.mxu0
  %v8393 = vadd.f32 %v8319, %v8392
  %v8394 = vpop.f32.mrf.mxu0
  %8395 = vmatprep.mubr.f32.mxu0 0.0
  %8396 = vmatmul.mubr.f32.gmra.mxu0 %v6586
  %v8397 = vpop.f32.mrf.mxu0
  %v8398 = vadd.f32 %v8319, %v8397
  %v8399 = vpop.f32.mrf.mxu0
  %8400 = vmatprep.mubr.f32.mxu0 0.0
  %8401 = vmatmul.mubr.f32.gmra.mxu0 %v6589
  %v8402 = vpop.f32.mrf.mxu0
  %v8403 = vadd.f32 %v8319, %v8402
  %v8404 = vpop.f32.mrf.mxu0
  %8405 = vmatprep.mubr.f32.mxu0 0.0
  %8406 = vmatmul.mubr.f32.gmra.mxu0 %v6592
  %v8407 = vpop.f32.mrf.mxu0
  %v8408 = vadd.f32 %v8319, %v8407
  %v8409 = vpop.f32.mrf.mxu0
  %8410 = vmatprep.mubr.f32.mxu0 0.0
  %8411 = vmatmul.mubr.f32.gmra.mxu0 %v6595
  %v8412 = vpop.f32.mrf.mxu0
  %v8413 = vadd.f32 %v8319, %v8412
  %v8414 = vpop.f32.mrf.mxu0
  %8415 = vmatprep.mubr.f32.mxu0 0.0
  %8416 = vmatmul.mubr.f32.gmra.mxu0 %v6598
  %v8417 = vpop.f32.mrf.mxu0
  %v8418 = vadd.f32 %v8319, %v8417
  %v8419 = vpop.f32.mrf.mxu0
  %8420 = vdwg.mxu0
  %8421 = vrot.lane.b32.xlu0 %v6563, 32
  %v8422 = vpop.permute.xlu0 %8421
  %8423 = vrot.lane.b32.xlu0 %v6564, 32
  %v8424 = vpop.permute.xlu0 %8423
  %8425 = vrot.lane.b32.xlu0 %v6565, 32
  %v8426 = vpop.permute.xlu0 %8425
  %8427 = vrot.lane.b32.xlu0 %v6566, 32
  %v8428 = vpop.permute.xlu0 %8427
  %8429 = vrot.lane.b32.xlu0 %v6567, 32
  %v8430 = vpop.permute.xlu0 %8429
  %8431 = vrot.lane.b32.xlu0 %v6568, 32
  %v8432 = vpop.permute.xlu0 %8431
  %8433 = vrot.lane.b32.xlu0 %v6569, 32
  %v8434 = vpop.permute.xlu0 %8433
  %8435 = vrot.lane.b32.xlu0 %v6570, 32
  %v8436 = vpop.permute.xlu0 %8435
  %8445 = vrot.lane.b32.xlu0 %v6577, 32
  %v8446 = vpop.permute.xlu0 %8445
  %8448 = vmatprep.subr.mxu0 0.0
  %8449 = vmatpush1.msra.mxu0 0.0
  %8450 = vmatprep.subr.mxu0 0.0
  %8451 = vmatpush1.msra.mxu0 0.0
  %8452 = vmatprep.subr.mxu0 0.0
  %8453 = vmatpush1.msra.mxu0 0.0
  %8454 = vmatprep.subr.mxu0 0.0
  %8455 = vmatpush1.msra.mxu0 0.0
  %8456 = vmatprep.subr.mxu0 0.0
  %8457 = vmatpush1.msra.mxu0 0.0
  %8458 = vmatprep.subr.mxu0 0.0
  %8459 = vmatpush1.msra.mxu0 0.0
  %8460 = vmatprep.subr.mxu0 0.0
  %8461 = vmatpush1.msra.mxu0 0.0
  %8462 = vmatprep.subr.mxu0 0.0
  %8463 = vmatpush1.msra.mxu0 0.0
  %8464 = vmatprep.subr.mxu0 0.0
  %8465 = vmatpush1.msra.mxu0 %v8436
  %8466 = vmatprep.subr.mxu0 0.0
  %8467 = vmatpush1.msra.mxu0 %v8434
  %8468 = vmatprep.subr.mxu0 0.0
  %8469 = vmatpush1.msra.mxu0 %v8432
  %8470 = vmatprep.subr.mxu0 0.0
  %8471 = vmatpush1.msra.mxu0 %v8430
  %8472 = vmatprep.subr.mxu0 0.0
  %8473 = vmatpush1.msra.mxu0 %v8428
  %8474 = vmatprep.subr.mxu0 0.0
  %8475 = vmatpush1.msra.mxu0 %v8426
  %8476 = vmatprep.subr.mxu0 0.0
  %8477 = vmatpush1.msra.mxu0 %v8424
  %8478 = vmatprep.subr.mxu0 0.0
  %8479 = vmatpush1.msra.mxu0 %v8422
  %8480 = vmatprep.subr.mxu0 0.0
  %8481 = vmatpush2.msra.mxu0 0.0
  %8482 = vmatprep.subr.mxu0 0.0
  %8483 = vmatpush2.msra.mxu0 0.0
  %8484 = vmatprep.subr.mxu0 0.0
  %8485 = vmatpush2.msra.mxu0 0.0
  %8486 = vmatprep.subr.mxu0 0.0
  %8487 = vmatpush2.msra.mxu0 0.0
  %8488 = vmatprep.subr.mxu0 0.0
  %8489 = vmatpush2.msra.mxu0 0.0
  %8490 = vmatprep.subr.mxu0 0.0
  %8491 = vmatpush2.msra.mxu0 0.0
  %8492 = vmatprep.subr.mxu0 0.0
  %8493 = vmatpush2.msra.mxu0 0.0
  %8494 = vmatprep.subr.mxu0 0.0
  %8495 = vmatpush2.msra.mxu0 0.0
  %8496 = vmatprep.subr.mxu0 0.0
  %8497 = vmatpush2.msra.mxu0 0.0
  %8498 = vmatprep.subr.mxu0 0.0
  %8499 = vmatpush2.msra.mxu0 0.0
  %8500 = vmatprep.subr.mxu0 0.0
  %8501 = vmatpush2.msra.mxu0 0.0
  %8502 = vmatprep.subr.mxu0 0.0
  %8503 = vmatpush2.msra.mxu0 0.0
  %8504 = vmatprep.subr.mxu0 0.0
  %8505 = vmatpush2.msra.mxu0 0.0
  %8506 = vmatprep.subr.mxu0 0.0
  %8507 = vmatpush2.msra.mxu0 0.0
  %8508 = vmatprep.subr.mxu0 0.0
  %8509 = vmatpush2.msra.mxu0 0.0
  %8510 = vmatprep.subr.mxu0 0.0
  %8511 = vmatpush2.msra.mxu0 0.0
  %8512 = vmatprep.mubr.f32.mxu0 0.0
  %8513 = vmatmul.mubr.f32.gmra.mxu0 %v6580
  %v8514 = vpop.f32.mrf.mxu0
  %v8515 = vadd.f32 %v8446, %v8514
  %v8516 = vpop.f32.mrf.mxu0
  %8517 = vmatprep.mubr.f32.mxu0 0.0
  %8518 = vmatmul.mubr.f32.gmra.mxu0 %v6583
  %v8519 = vpop.f32.mrf.mxu0
  %v8520 = vadd.f32 %v8446, %v8519
  %v8521 = vpop.f32.mrf.mxu0
  %8522 = vmatprep.mubr.f32.mxu0 0.0
  %8523 = vmatmul.mubr.f32.gmra.mxu0 %v6586
  %v8524 = vpop.f32.mrf.mxu0
  %v8525 = vadd.f32 %v8446, %v8524
  %v8526 = vpop.f32.mrf.mxu0
  %8527 = vmatprep.mubr.f32.mxu0 0.0
  %8528 = vmatmul.mubr.f32.gmra.mxu0 %v6589
  %v8529 = vpop.f32.mrf.mxu0
  %v8530 = vadd.f32 %v8446, %v8529
  %v8531 = vpop.f32.mrf.mxu0
  %8532 = vmatprep.mubr.f32.mxu0 0.0
  %8533 = vmatmul.mubr.f32.gmra.mxu0 %v6592
  %v8534 = vpop.f32.mrf.mxu0
  %v8535 = vadd.f32 %v8446, %v8534
  %v8536 = vpop.f32.mrf.mxu0
  %8537 = vmatprep.mubr.f32.mxu0 0.0
  %8538 = vmatmul.mubr.f32.gmra.mxu0 %v6595
  %v8539 = vpop.f32.mrf.mxu0
  %v8540 = vadd.f32 %v8446, %v8539
  %v8541 = vpop.f32.mrf.mxu0
  %8542 = vmatprep.mubr.f32.mxu0 0.0
  %8543 = vmatmul.mubr.f32.gmra.mxu0 %v6598
  %v8544 = vpop.f32.mrf.mxu0
  %v8545 = vadd.f32 %v8446, %v8544
  %v8546 = vpop.f32.mrf.mxu0
  %8547 = vdwg.mxu0
  %8548 = vrot.lane.b32.xlu0 %v6835, 96
  %v8549 = vpop.permute.xlu0 %8548
  %8550 = vrot.lane.b32.xlu0 %v6836, 96
  %v8551 = vpop.permute.xlu0 %8550
  %8552 = vrot.lane.b32.xlu0 %v6837, 96
  %v8553 = vpop.permute.xlu0 %8552
  %8554 = vrot.lane.b32.xlu0 %v6838, 96
  %v8555 = vpop.permute.xlu0 %8554
  %8556 = vrot.lane.b32.xlu0 %v6839, 96
  %v8557 = vpop.permute.xlu0 %8556
  %8558 = vrot.lane.b32.xlu0 %v6840, 96
  %v8559 = vpop.permute.xlu0 %8558
  %8560 = vrot.lane.b32.xlu0 %v6841, 96
  %v8561 = vpop.permute.xlu0 %8560
  %8562 = vrot.lane.b32.xlu0 %v6842, 96
  %v8563 = vpop.permute.xlu0 %8562
  %8572 = vrot.lane.b32.xlu0 %v6848, 96
  %v8573 = vpop.permute.xlu0 %8572
  %8575 = vmatprep.subr.mxu0 0.0
  %8576 = vmatpush1.msra.mxu0 0.0
  %8577 = vmatprep.subr.mxu0 0.0
  %8578 = vmatpush1.msra.mxu0 0.0
  %8579 = vmatprep.subr.mxu0 0.0
  %8580 = vmatpush1.msra.mxu0 0.0
  %8581 = vmatprep.subr.mxu0 0.0
  %8582 = vmatpush1.msra.mxu0 0.0
  %8583 = vmatprep.subr.mxu0 0.0
  %8584 = vmatpush1.msra.mxu0 0.0
  %8585 = vmatprep.subr.mxu0 0.0
  %8586 = vmatpush1.msra.mxu0 0.0
  %8587 = vmatprep.subr.mxu0 0.0
  %8588 = vmatpush1.msra.mxu0 0.0
  %8589 = vmatprep.subr.mxu0 0.0
  %8590 = vmatpush1.msra.mxu0 0.0
  %8591 = vmatprep.subr.mxu0 0.0
  %8592 = vmatpush1.msra.mxu0 %v8563
  %8593 = vmatprep.subr.mxu0 0.0
  %8594 = vmatpush1.msra.mxu0 %v8561
  %8595 = vmatprep.subr.mxu0 0.0
  %8596 = vmatpush1.msra.mxu0 %v8559
  %8597 = vmatprep.subr.mxu0 0.0
  %8598 = vmatpush1.msra.mxu0 %v8557
  %8599 = vmatprep.subr.mxu0 0.0
  %8600 = vmatpush1.msra.mxu0 %v8555
  %8601 = vmatprep.subr.mxu0 0.0
  %8602 = vmatpush1.msra.mxu0 %v8553
  %8603 = vmatprep.subr.mxu0 0.0
  %8604 = vmatpush1.msra.mxu0 %v8551
  %8605 = vmatprep.subr.mxu0 0.0
  %8606 = vmatpush1.msra.mxu0 %v8549
  %8607 = vmatprep.subr.mxu0 0.0
  %8608 = vmatpush2.msra.mxu0 0.0
  %8609 = vmatprep.subr.mxu0 0.0
  %8610 = vmatpush2.msra.mxu0 0.0
  %8611 = vmatprep.subr.mxu0 0.0
  %8612 = vmatpush2.msra.mxu0 0.0
  %8613 = vmatprep.subr.mxu0 0.0
  %8614 = vmatpush2.msra.mxu0 0.0
  %8615 = vmatprep.subr.mxu0 0.0
  %8616 = vmatpush2.msra.mxu0 0.0
  %8617 = vmatprep.subr.mxu0 0.0
  %8618 = vmatpush2.msra.mxu0 0.0
  %8619 = vmatprep.subr.mxu0 0.0
  %8620 = vmatpush2.msra.mxu0 0.0
  %8621 = vmatprep.subr.mxu0 0.0
  %8622 = vmatpush2.msra.mxu0 0.0
  %8623 = vmatprep.subr.mxu0 0.0
  %8624 = vmatpush2.msra.mxu0 0.0
  %8625 = vmatprep.subr.mxu0 0.0
  %8626 = vmatpush2.msra.mxu0 0.0
  %8627 = vmatprep.subr.mxu0 0.0
  %8628 = vmatpush2.msra.mxu0 0.0
  %8629 = vmatprep.subr.mxu0 0.0
  %8630 = vmatpush2.msra.mxu0 0.0
  %8631 = vmatprep.subr.mxu0 0.0
  %8632 = vmatpush2.msra.mxu0 0.0
  %8633 = vmatprep.subr.mxu0 0.0
  %8634 = vmatpush2.msra.mxu0 0.0
  %8635 = vmatprep.subr.mxu0 0.0
  %8636 = vmatpush2.msra.mxu0 0.0
  %8637 = vmatprep.subr.mxu0 0.0
  %8638 = vmatpush2.msra.mxu0 0.0
  %8639 = vmatprep.mubr.f32.mxu0 0.0
  %8640 = vmatmul.mubr.f32.gmra.mxu0 %v6580
  %v8641 = vpop.f32.mrf.mxu0
  %v8642 = vadd.f32 %v8573, %v8641
  %v8643 = vpop.f32.mrf.mxu0
  %8644 = vmatprep.mubr.f32.mxu0 0.0
  %8645 = vmatmul.mubr.f32.gmra.mxu0 %v6583
  %v8646 = vpop.f32.mrf.mxu0
  %v8647 = vadd.f32 %v8573, %v8646
  %v8648 = vpop.f32.mrf.mxu0
  %8649 = vmatprep.mubr.f32.mxu0 0.0
  %8650 = vmatmul.mubr.f32.gmra.mxu0 %v6586
  %v8651 = vpop.f32.mrf.mxu0
  %v8652 = vadd.f32 %v8573, %v8651
  %v8653 = vpop.f32.mrf.mxu0
  %8654 = vmatprep.mubr.f32.mxu0 0.0
  %8655 = vmatmul.mubr.f32.gmra.mxu0 %v6589
  %v8656 = vpop.f32.mrf.mxu0
  %v8657 = vadd.f32 %v8573, %v8656
  %v8658 = vpop.f32.mrf.mxu0
  %8659 = vmatprep.mubr.f32.mxu0 0.0
  %8660 = vmatmul.mubr.f32.gmra.mxu0 %v6592
  %v8661 = vpop.f32.mrf.mxu0
  %v8662 = vadd.f32 %v8573, %v8661
  %v8663 = vpop.f32.mrf.mxu0
  %8664 = vmatprep.mubr.f32.mxu0 0.0
  %8665 = vmatmul.mubr.f32.gmra.mxu0 %v6595
  %v8666 = vpop.f32.mrf.mxu0
  %v8667 = vadd.f32 %v8573, %v8666
  %v8668 = vpop.f32.mrf.mxu0
  %8669 = vmatprep.mubr.f32.mxu0 0.0
  %8670 = vmatmul.mubr.f32.gmra.mxu0 %v6598
  %v8671 = vpop.f32.mrf.mxu0
  %v8672 = vadd.f32 %v8573, %v8671
  %v8673 = vpop.f32.mrf.mxu0
  %8674 = vdwg.mxu0
  %v8676 = vsel %vm449, %v8388, 0
  %v8679 = vsel %vm449, %v8393, 0
  %v8682 = vsel %vm449, %v8398, 0
  %v8685 = vsel %vm449, %v8403, 0
  %v8688 = vsel %vm449, %v8408, 0
  %v8691 = vsel %vm449, %v8413, 0
  %v8694 = vsel %vm449, %v8418, 0
  %v8697 = vsel %vm449, %v8515, 0
  %v8700 = vsel %vm449, %v8520, 0
  %v8703 = vsel %vm449, %v8525, 0
  %v8706 = vsel %vm449, %v8530, 0
  %v8709 = vsel %vm449, %v8535, 0
  %v8712 = vsel %vm449, %v8540, 0
  %v8715 = vsel %vm449, %v8545, 0
  %8717 = vmatprep.subr.mxu0 0.0
  %8718 = vmatpush1.xpose.msra.mxu0 0.0
  %8719 = vmatprep.subr.mxu0 0.0
  %8720 = vmatpush1.xpose.msra.mxu0 0.0
  %8721 = vmatprep.subr.mxu0 0.0
  %8722 = vmatpush1.xpose.msra.mxu0 0.0
  %8723 = vmatprep.subr.mxu0 0.0
  %8724 = vmatpush1.xpose.msra.mxu0 0.0
  %8725 = vmatprep.subr.mxu0 0.0
  %8726 = vmatpush1.xpose.msra.mxu0 0.0
  %8727 = vmatprep.subr.mxu0 0.0
  %8728 = vmatpush1.xpose.msra.mxu0 0.0
  %8729 = vmatprep.subr.mxu0 0.0
  %8730 = vmatpush1.xpose.msra.mxu0 0.0
  %8731 = vmatprep.subr.mxu0 0.0
  %8732 = vmatpush1.xpose.msra.mxu0 0.0
  %8733 = vmatprep.subr.mxu0 0.0
  %8734 = vmatpush1.xpose.msra.mxu0 0.0
  %8735 = vmatprep.subr.mxu0 0.0
  %8736 = vmatpush1.xpose.msra.mxu0 %v8715
  %8737 = vmatprep.subr.mxu0 0.0
  %8738 = vmatpush1.xpose.msra.mxu0 %v8712
  %8739 = vmatprep.subr.mxu0 0.0
  %8740 = vmatpush1.xpose.msra.mxu0 %v8709
  %8741 = vmatprep.subr.mxu0 0.0
  %8742 = vmatpush1.xpose.msra.mxu0 %v8706
  %8743 = vmatprep.subr.mxu0 0.0
  %8744 = vmatpush1.xpose.msra.mxu0 %v8703
  %8745 = vmatprep.subr.mxu0 0.0
  %8746 = vmatpush1.xpose.msra.mxu0 %v8700
  %8747 = vmatprep.subr.mxu0 0.0
  %8748 = vmatpush1.xpose.msra.mxu0 %v8697
  %8749 = vmatprep.subr.mxu0 0.0
  %8750 = vmatpush2.xpose.msra.mxu0 0.0
  %8751 = vmatprep.subr.mxu0 0.0
  %8752 = vmatpush2.xpose.msra.mxu0 0.0
  %8753 = vmatprep.subr.mxu0 0.0
  %8754 = vmatpush2.xpose.msra.mxu0 0.0
  %8755 = vmatprep.subr.mxu0 0.0
  %8756 = vmatpush2.xpose.msra.mxu0 0.0
  %8757 = vmatprep.subr.mxu0 0.0
  %8758 = vmatpush2.xpose.msra.mxu0 0.0
  %8759 = vmatprep.subr.mxu0 0.0
  %8760 = vmatpush2.xpose.msra.mxu0 0.0
  %8761 = vmatprep.subr.mxu0 0.0
  %8762 = vmatpush2.xpose.msra.mxu0 0.0
  %8763 = vmatprep.subr.mxu0 0.0
  %8764 = vmatpush2.xpose.msra.mxu0 0.0
  %8765 = vmatprep.subr.mxu0 0.0
  %8766 = vmatpush2.xpose.msra.mxu0 0.0
  %8767 = vmatprep.subr.mxu0 0.0
  %8768 = vmatpush2.xpose.msra.mxu0 0.0
  %8769 = vmatprep.subr.mxu0 0.0
  %8770 = vmatpush2.xpose.msra.mxu0 0.0
  %8771 = vmatprep.subr.mxu0 0.0
  %8772 = vmatpush2.xpose.msra.mxu0 0.0
  %8773 = vmatprep.subr.mxu0 0.0
  %8774 = vmatpush2.xpose.msra.mxu0 0.0
  %8775 = vmatprep.subr.mxu0 0.0
  %8776 = vmatpush2.xpose.msra.mxu0 0.0
  %8777 = vmatprep.subr.mxu0 0.0
  %8778 = vmatpush2.xpose.msra.mxu0 0.0
  %8779 = vmatprep.subr.mxu0 0.0
  %8780 = vmatpush2.xpose.msra.mxu0 0.0
  %8781 = vmatprep.mubr.f32.mxu0 0.0
  %8782 = vmatmul.mubr.f32.gmra.mxu0 %v8676
  %v8783 = vpop.f32.mrf.mxu0
  %v8784 = vadd.f32 0.0, %v8783
  %v8785 = vpop.f32.mrf.mxu0
  %8786 = vmatprep.mubr.f32.mxu0 0.0
  %8787 = vmatmul.mubr.f32.gmra.mxu0 %v8679
  %v8788 = vpop.f32.mrf.mxu0
  %v8789 = vadd.f32 0.0, %v8788
  %v8790 = vpop.f32.mrf.mxu0
  %8791 = vmatprep.mubr.f32.mxu0 0.0
  %8792 = vmatmul.mubr.f32.gmra.mxu0 %v8682
  %v8793 = vpop.f32.mrf.mxu0
  %v8794 = vadd.f32 0.0, %v8793
  %v8795 = vpop.f32.mrf.mxu0
  %8796 = vmatprep.mubr.f32.mxu0 0.0
  %8797 = vmatmul.mubr.f32.gmra.mxu0 %v8685
  %v8798 = vpop.f32.mrf.mxu0
  %v8799 = vadd.f32 0.0, %v8798
  %v8800 = vpop.f32.mrf.mxu0
  %8801 = vmatprep.mubr.f32.mxu0 0.0
  %8802 = vmatmul.mubr.f32.gmra.mxu0 %v8688
  %v8803 = vpop.f32.mrf.mxu0
  %v8804 = vadd.f32 0.0, %v8803
  %v8805 = vpop.f32.mrf.mxu0
  %8806 = vmatprep.mubr.f32.mxu0 0.0
  %8807 = vmatmul.mubr.f32.gmra.mxu0 %v8691
  %v8808 = vpop.f32.mrf.mxu0
  %v8809 = vadd.f32 0.0, %v8808
  %v8810 = vpop.f32.mrf.mxu0
  %8811 = vmatprep.mubr.f32.mxu0 0.0
  %8812 = vmatmul.mubr.f32.gmra.mxu0 %v8694
  %v8813 = vpop.f32.mrf.mxu0
  %v8814 = vadd.f32 0.0, %v8813
  %v8815 = vpop.f32.mrf.mxu0
  %8816 = vdwg.mxu0
  %v8817 = vmul.f32 %v8784, 0.25
  %v8818 = vmul.f32 %v8789, 0.25
  %v8819 = vmul.f32 %v8794, 0.25
  %v8820 = vmul.f32 %v8799, 0.25
  %v8821 = vmul.f32 %v8804, 0.25
  %v8822 = vmul.f32 %v8809, 0.25
  %v8823 = vmul.f32 %v8814, 0.25
  %v8824 = vadd.f32 %v8817, %v55
  %v8825 = vadd.f32 %v8818, %v56
  %v8826 = vadd.f32 %v8819, %v57
  %v8827 = vadd.f32 %v8820, %v58
  %v8828 = vadd.f32 %v8821, %v59
  %v8829 = vadd.f32 %v8822, %v60
  %v8830 = vadd.f32 %v8823, %v61
  %v8831 = vsel %vm606, %v8824, -inf
  %8832 = vmax.xlane.f32.xlu0 %v8831
  %v8833 = vpop.xlane.xlu0 %8832
  %v8834 = vsel %vm606, %v8825, -inf
  %8835 = vmax.xlane.f32.xlu0 %v8834
  %v8836 = vpop.xlane.xlu0 %8835
  %v8837 = vsel %vm606, %v8826, -inf
  %8838 = vmax.xlane.f32.xlu0 %v8837
  %v8839 = vpop.xlane.xlu0 %8838
  %v8840 = vsel %vm606, %v8827, -inf
  %8841 = vmax.xlane.f32.xlu0 %v8840
  %v8842 = vpop.xlane.xlu0 %8841
  %v8843 = vsel %vm606, %v8828, -inf
  %8844 = vmax.xlane.f32.xlu0 %v8843
  %v8845 = vpop.xlane.xlu0 %8844
  %v8846 = vsel %vm606, %v8829, -inf
  %8847 = vmax.xlane.f32.xlu0 %v8846
  %v8848 = vpop.xlane.xlu0 %8847
  %v8849 = vsel %vm606, %v8830, -inf
  %8850 = vmax.xlane.f32.xlu0 %v8849
  %v8851 = vpop.xlane.xlu0 %8850
  %v8852 = vsub.f32 %v8824, %v8833
  %v8853 = vsub.f32 %v8825, %v8836
  %v8854 = vsub.f32 %v8826, %v8839
  %v8855 = vsub.f32 %v8827, %v8842
  %v8856 = vsub.f32 %v8828, %v8845
  %v8857 = vsub.f32 %v8829, %v8848
  %v8858 = vsub.f32 %v8830, %v8851
  %v8859 = vmul.f32 %v8852, 1.442695
  %v8860 = vpow.pop %v8859
  %v8861 = vmul.f32 %v8853, 1.442695
  %v8862 = vpow.pop %v8861
  %v8863 = vmul.f32 %v8854, 1.442695
  %v8864 = vpow.pop %v8863
  %v8865 = vmul.f32 %v8855, 1.442695
  %v8866 = vpow.pop %v8865
  %v8867 = vmul.f32 %v8856, 1.442695
  %v8868 = vpow.pop %v8867
  %v8869 = vmul.f32 %v8857, 1.442695
  %v8870 = vpow.pop %v8869
  %v8871 = vmul.f32 %v8858, 1.442695
  %v8872 = vpow.pop %v8871
  %v8873 = vsel %vm606, %v8860, 0.0
  %8874 = vadd.xlane.f32.xlu0 %v8873
  %v8875 = vpop.xlane.xlu0 %8874
  %v8876 = vsel %vm606, %v8862, 0.0
  %8877 = vadd.xlane.f32.xlu0 %v8876
  %v8878 = vpop.xlane.xlu0 %8877
  %v8879 = vsel %vm606, %v8864, 0.0
  %8880 = vadd.xlane.f32.xlu0 %v8879
  %v8881 = vpop.xlane.xlu0 %8880
  %v8882 = vsel %vm606, %v8866, 0.0
  %8883 = vadd.xlane.f32.xlu0 %v8882
  %v8884 = vpop.xlane.xlu0 %8883
  %v8885 = vsel %vm606, %v8868, 0.0
  %8886 = vadd.xlane.f32.xlu0 %v8885
  %v8887 = vpop.xlane.xlu0 %8886
  %v8888 = vsel %vm606, %v8870, 0.0
  %8889 = vadd.xlane.f32.xlu0 %v8888
  %v8890 = vpop.xlane.xlu0 %8889
  %v8891 = vsel %vm606, %v8872, 0.0
  %8892 = vadd.xlane.f32.xlu0 %v8891
  %v8893 = vpop.xlane.xlu0 %8892
  %v8894 = vrcp.pop %v8875
  %v8895 = vmul.f32 %v8860, %v8894
  %v8896 = vrcp.pop %v8878
  %v8897 = vmul.f32 %v8862, %v8896
  %v8898 = vrcp.pop %v8881
  %v8899 = vmul.f32 %v8864, %v8898
  %v8900 = vrcp.pop %v8884
  %v8901 = vmul.f32 %v8866, %v8900
  %v8902 = vrcp.pop %v8887
  %v8903 = vmul.f32 %v8868, %v8902
  %v8904 = vrcp.pop %v8890
  %v8905 = vmul.f32 %v8870, %v8904
  %v8906 = vrcp.pop %v8893
  %v8907 = vmul.f32 %v8872, %v8906
  %v8909 = vsel %vm606, %v8895, 0
  %v8912 = vsel %vm606, %v8897, 0
  %v8915 = vsel %vm606, %v8899, 0
  %v8918 = vsel %vm606, %v8901, 0
  %v8921 = vsel %vm606, %v8903, 0
  %v8924 = vsel %vm606, %v8905, 0
  %v8927 = vsel %vm606, %v8907, 0
  %8929 = vmatprep.subr.mxu0 0.0
  %8930 = vmatpush1.msra.mxu0 0.0
  %8931 = vmatprep.subr.mxu0 0.0
  %8932 = vmatpush1.msra.mxu0 0.0
  %8933 = vmatprep.subr.mxu0 0.0
  %8934 = vmatpush1.msra.mxu0 0.0
  %8935 = vmatprep.subr.mxu0 0.0
  %8936 = vmatpush1.msra.mxu0 0.0
  %8937 = vmatprep.subr.mxu0 0.0
  %8938 = vmatpush1.msra.mxu0 0.0
  %8939 = vmatprep.subr.mxu0 0.0
  %8940 = vmatpush1.msra.mxu0 0.0
  %8941 = vmatprep.subr.mxu0 0.0
  %8942 = vmatpush1.msra.mxu0 0.0
  %8943 = vmatprep.subr.mxu0 0.0
  %8944 = vmatpush1.msra.mxu0 0.0
  %8945 = vmatprep.subr.mxu0 0.0
  %8946 = vmatpush1.msra.mxu0 0.0
  %8947 = vmatprep.subr.mxu0 0.0
  %8948 = vmatpush1.msra.mxu0 %v8672
  %8949 = vmatprep.subr.mxu0 0.0
  %8950 = vmatpush1.msra.mxu0 %v8667
  %8951 = vmatprep.subr.mxu0 0.0
  %8952 = vmatpush1.msra.mxu0 %v8662
  %8953 = vmatprep.subr.mxu0 0.0
  %8954 = vmatpush1.msra.mxu0 %v8657
  %8955 = vmatprep.subr.mxu0 0.0
  %8956 = vmatpush1.msra.mxu0 %v8652
  %8957 = vmatprep.subr.mxu0 0.0
  %8958 = vmatpush1.msra.mxu0 %v8647
  %8959 = vmatprep.subr.mxu0 0.0
  %8960 = vmatpush1.msra.mxu0 %v8642
  %8961 = vmatprep.subr.mxu0 0.0
  %8962 = vmatpush2.msra.mxu0 0.0
  %8963 = vmatprep.subr.mxu0 0.0
  %8964 = vmatpush2.msra.mxu0 0.0
  %8965 = vmatprep.subr.mxu0 0.0
  %8966 = vmatpush2.msra.mxu0 0.0
  %8967 = vmatprep.subr.mxu0 0.0
  %8968 = vmatpush2.msra.mxu0 0.0
  %8969 = vmatprep.subr.mxu0 0.0
  %8970 = vmatpush2.msra.mxu0 0.0
  %8971 = vmatprep.subr.mxu0 0.0
  %8972 = vmatpush2.msra.mxu0 0.0
  %8973 = vmatprep.subr.mxu0 0.0
  %8974 = vmatpush2.msra.mxu0 0.0
  %8975 = vmatprep.subr.mxu0 0.0
  %8976 = vmatpush2.msra.mxu0 0.0
  %8977 = vmatprep.subr.mxu0 0.0
  %8978 = vmatpush2.msra.mxu0 0.0
  %8979 = vmatprep.subr.mxu0 0.0
  %8980 = vmatpush2.msra.mxu0 0.0
  %8981 = vmatprep.subr.mxu0 0.0
  %8982 = vmatpush2.msra.mxu0 0.0
  %8983 = vmatprep.subr.mxu0 0.0
  %8984 = vmatpush2.msra.mxu0 0.0
  %8985 = vmatprep.subr.mxu0 0.0
  %8986 = vmatpush2.msra.mxu0 0.0
  %8987 = vmatprep.subr.mxu0 0.0
  %8988 = vmatpush2.msra.mxu0 0.0
  %8989 = vmatprep.subr.mxu0 0.0
  %8990 = vmatpush2.msra.mxu0 0.0
  %8991 = vmatprep.subr.mxu0 0.0
  %8992 = vmatpush2.msra.mxu0 0.0
  %8993 = vmatprep.mubr.f32.mxu0 0.0
  %8994 = vmatmul.mubr.f32.gmra.mxu0 %v8909
  %v8995 = vpop.f32.mrf.mxu0
  %v8996 = vadd.f32 0.0, %v8995
  %v8997 = vpop.f32.mrf.mxu0
  %8998 = vmatprep.mubr.f32.mxu0 0.0
  %8999 = vmatmul.mubr.f32.gmra.mxu0 %v8912
  %v9000 = vpop.f32.mrf.mxu0
  %v9001 = vadd.f32 0.0, %v9000
  %v9002 = vpop.f32.mrf.mxu0
  %9003 = vmatprep.mubr.f32.mxu0 0.0
  %9004 = vmatmul.mubr.f32.gmra.mxu0 %v8915
  %v9005 = vpop.f32.mrf.mxu0
  %v9006 = vadd.f32 0.0, %v9005
  %v9007 = vpop.f32.mrf.mxu0
  %9008 = vmatprep.mubr.f32.mxu0 0.0
  %9009 = vmatmul.mubr.f32.gmra.mxu0 %v8918
  %v9010 = vpop.f32.mrf.mxu0
  %v9011 = vadd.f32 0.0, %v9010
  %v9012 = vpop.f32.mrf.mxu0
  %9013 = vmatprep.mubr.f32.mxu0 0.0
  %9014 = vmatmul.mubr.f32.gmra.mxu0 %v8921
  %v9015 = vpop.f32.mrf.mxu0
  %v9016 = vadd.f32 0.0, %v9015
  %v9017 = vpop.f32.mrf.mxu0
  %9018 = vmatprep.mubr.f32.mxu0 0.0
  %9019 = vmatmul.mubr.f32.gmra.mxu0 %v8924
  %v9020 = vpop.f32.mrf.mxu0
  %v9021 = vadd.f32 0.0, %v9020
  %v9022 = vpop.f32.mrf.mxu0
  %9023 = vmatprep.mubr.f32.mxu0 0.0
  %9024 = vmatmul.mubr.f32.gmra.mxu0 %v8927
  %v9025 = vpop.f32.mrf.mxu0
  %v9026 = vadd.f32 0.0, %v9025
  %v9027 = vpop.f32.mrf.mxu0
  %9028 = vdwg.mxu0
  %v9029 = vld [vmem:[%s7304 + $0x20] sm:$0xff]
  %v9030 = vld [vmem:[%s7304 + $0x28] sm:$0xff]
  %v9032 = vsel %vm449, %v8996, 0
  %v9035 = vsel %vm449, %v9001, 0
  %v9038 = vsel %vm449, %v9006, 0
  %v9041 = vsel %vm449, %v9011, 0
  %v9044 = vsel %vm449, %v9016, 0
  %v9047 = vsel %vm449, %v9021, 0
  %v9050 = vsel %vm449, %v9026, 0
  %9052 = vmatprep.subr.mxu0 0.0
  %9053 = vmatpush1.msra.mxu0 0.0
  %9054 = vmatprep.subr.mxu0 0.0
  %9055 = vmatpush1.msra.mxu0 0.0
  %9056 = vmatprep.subr.mxu0 0.0
  %9057 = vmatpush1.msra.mxu0 0.0
  %9058 = vmatprep.subr.mxu0 0.0
  %9059 = vmatpush1.msra.mxu0 0.0
  %9060 = vmatprep.subr.mxu0 0.0
  %9061 = vmatpush1.msra.mxu0 0.0
  %9062 = vmatprep.subr.mxu0 0.0
  %9063 = vmatpush1.msra.mxu0 0.0
  %9064 = vmatprep.subr.mxu0 0.0
  %9065 = vmatpush1.msra.mxu0 0.0
  %9066 = vmatprep.subr.mxu0 0.0
  %9067 = vmatpush1.msra.mxu0 0.0
  %9068 = vmatprep.subr.mxu0 0.0
  %9069 = vmatpush1.msra.mxu0 0.0
  %9070 = vmatprep.subr.mxu0 0.0
  %9071 = vmatpush1.msra.mxu0 0.0
  %9072 = vmatprep.subr.mxu0 0.0
  %9073 = vmatpush1.msra.mxu0 0.0
  %9074 = vmatprep.subr.mxu0 0.0
  %9075 = vmatpush1.msra.mxu0 0.0
  %9076 = vmatprep.subr.mxu0 0.0
  %9077 = vmatpush1.msra.mxu0 0.0
  %9078 = vmatprep.subr.mxu0 0.0
  %9079 = vmatpush1.msra.mxu0 0.0
  %9080 = vmatprep.subr.mxu0 0.0
  %9081 = vmatpush1.msra.mxu0 %v9030
  %9082 = vmatprep.subr.mxu0 0.0
  %9083 = vmatpush1.msra.mxu0 %v9029
  %9084 = vmatprep.subr.mxu0 0.0
  %9085 = vmatpush2.msra.mxu0 0.0
  %9086 = vmatprep.subr.mxu0 0.0
  %9087 = vmatpush2.msra.mxu0 0.0
  %9088 = vmatprep.subr.mxu0 0.0
  %9089 = vmatpush2.msra.mxu0 0.0
  %9090 = vmatprep.subr.mxu0 0.0
  %9091 = vmatpush2.msra.mxu0 0.0
  %9092 = vmatprep.subr.mxu0 0.0
  %9093 = vmatpush2.msra.mxu0 0.0
  %9094 = vmatprep.subr.mxu0 0.0
  %9095 = vmatpush2.msra.mxu0 0.0
  %9096 = vmatprep.subr.mxu0 0.0
  %9097 = vmatpush2.msra.mxu0 0.0
  %9098 = vmatprep.subr.mxu0 0.0
  %9099 = vmatpush2.msra.mxu0 0.0
  %9100 = vmatprep.subr.mxu0 0.0
  %9101 = vmatpush2.msra.mxu0 0.0
  %9102 = vmatprep.subr.mxu0 0.0
  %9103 = vmatpush2.msra.mxu0 0.0
  %9104 = vmatprep.subr.mxu0 0.0
  %9105 = vmatpush2.msra.mxu0 0.0
  %9106 = vmatprep.subr.mxu0 0.0
  %9107 = vmatpush2.msra.mxu0 0.0
  %9108 = vmatprep.subr.mxu0 0.0
  %9109 = vmatpush2.msra.mxu0 0.0
  %9110 = vmatprep.subr.mxu0 0.0
  %9111 = vmatpush2.msra.mxu0 0.0
  %9112 = vmatprep.subr.mxu0 0.0
  %9113 = vmatpush2.msra.mxu0 0.0
  %9114 = vmatprep.subr.mxu0 0.0
  %9115 = vmatpush2.msra.mxu0 0.0
  %9116 = vmatprep.mubr.f32.mxu0 0.0
  %9117 = vmatmul.mubr.f32.gmra.mxu0 %v9032
  %v9118 = vpop.f32.mrf.mxu0
  %v9119 = vadd.f32 0.0, %v9118
  %v9120 = vpop.f32.mrf.mxu0
  %9121 = vmatprep.mubr.f32.mxu0 0.0
  %9122 = vmatmul.mubr.f32.gmra.mxu0 %v9035
  %v9123 = vpop.f32.mrf.mxu0
  %v9124 = vadd.f32 0.0, %v9123
  %v9125 = vpop.f32.mrf.mxu0
  %9126 = vmatprep.mubr.f32.mxu0 0.0
  %9127 = vmatmul.mubr.f32.gmra.mxu0 %v9038
  %v9128 = vpop.f32.mrf.mxu0
  %v9129 = vadd.f32 0.0, %v9128
  %v9130 = vpop.f32.mrf.mxu0
  %9131 = vmatprep.mubr.f32.mxu0 0.0
  %9132 = vmatmul.mubr.f32.gmra.mxu0 %v9041
  %v9133 = vpop.f32.mrf.mxu0
  %v9134 = vadd.f32 0.0, %v9133
  %v9135 = vpop.f32.mrf.mxu0
  %9136 = vmatprep.mubr.f32.mxu0 0.0
  %9137 = vmatmul.mubr.f32.gmra.mxu0 %v9044
  %v9138 = vpop.f32.mrf.mxu0
  %v9139 = vadd.f32 0.0, %v9138
  %v9140 = vpop.f32.mrf.mxu0
  %9141 = vmatprep.mubr.f32.mxu0 0.0
  %9142 = vmatmul.mubr.f32.gmra.mxu0 %v9047
  %v9143 = vpop.f32.mrf.mxu0
  %v9144 = vadd.f32 0.0, %v9143
  %v9145 = vpop.f32.mrf.mxu0
  %9146 = vmatprep.mubr.f32.mxu0 0.0
  %9147 = vmatmul.mubr.f32.gmra.mxu0 %v9050
  %v9148 = vpop.f32.mrf.mxu0
  %v9149 = vadd.f32 0.0, %v9148
  %v9150 = vpop.f32.mrf.mxu0
  %9151 = vdwg.mxu0
  %v9152 = vadd.f32 %v8261, %v9119
  %v9153 = vadd.f32 %v8266, %v9124
  %v9154 = vadd.f32 %v8271, %v9129
  %v9155 = vadd.f32 %v8276, %v9134
  %v9156 = vadd.f32 %v8281, %v9139
  %v9157 = vadd.f32 %v8286, %v9144
  %v9158 = vadd.f32 %v8291, %v9149
  %9159 = vrot.lane.b32.xlu0 %v6563, 80
  %v9160 = vpop.permute.xlu0 %9159
  %9161 = vrot.lane.b32.xlu0 %v6564, 80
  %v9162 = vpop.permute.xlu0 %9161
  %9163 = vrot.lane.b32.xlu0 %v6565, 80
  %v9164 = vpop.permute.xlu0 %9163
  %9165 = vrot.lane.b32.xlu0 %v6566, 80
  %v9166 = vpop.permute.xlu0 %9165
  %9167 = vrot.lane.b32.xlu0 %v6567, 80
  %v9168 = vpop.permute.xlu0 %9167
  %9169 = vrot.lane.b32.xlu0 %v6568, 80
  %v9170 = vpop.permute.xlu0 %9169
  %9171 = vrot.lane.b32.xlu0 %v6569, 80
  %v9172 = vpop.permute.xlu0 %9171
  %9173 = vrot.lane.b32.xlu0 %v6570, 80
  %v9174 = vpop.permute.xlu0 %9173
  %9183 = vrot.lane.b32.xlu0 %v6577, 80
  %v9184 = vpop.permute.xlu0 %9183
  %9186 = vmatprep.subr.mxu0 0.0
  %9187 = vmatpush1.msra.mxu0 0.0
  %9188 = vmatprep.subr.mxu0 0.0
  %9189 = vmatpush1.msra.mxu0 0.0
  %9190 = vmatprep.subr.mxu0 0.0
  %9191 = vmatpush1.msra.mxu0 0.0
  %9192 = vmatprep.subr.mxu0 0.0
  %9193 = vmatpush1.msra.mxu0 0.0
  %9194 = vmatprep.subr.mxu0 0.0
  %9195 = vmatpush1.msra.mxu0 0.0
  %9196 = vmatprep.subr.mxu0 0.0
  %9197 = vmatpush1.msra.mxu0 0.0
  %9198 = vmatprep.subr.mxu0 0.0
  %9199 = vmatpush1.msra.mxu0 0.0
  %9200 = vmatprep.subr.mxu0 0.0
  %9201 = vmatpush1.msra.mxu0 0.0
  %9202 = vmatprep.subr.mxu0 0.0
  %9203 = vmatpush1.msra.mxu0 %v9174
  %9204 = vmatprep.subr.mxu0 0.0
  %9205 = vmatpush1.msra.mxu0 %v9172
  %9206 = vmatprep.subr.mxu0 0.0
  %9207 = vmatpush1.msra.mxu0 %v9170
  %9208 = vmatprep.subr.mxu0 0.0
  %9209 = vmatpush1.msra.mxu0 %v9168
  %9210 = vmatprep.subr.mxu0 0.0
  %9211 = vmatpush1.msra.mxu0 %v9166
  %9212 = vmatprep.subr.mxu0 0.0
  %9213 = vmatpush1.msra.mxu0 %v9164
  %9214 = vmatprep.subr.mxu0 0.0
  %9215 = vmatpush1.msra.mxu0 %v9162
  %9216 = vmatprep.subr.mxu0 0.0
  %9217 = vmatpush1.msra.mxu0 %v9160
  %9218 = vmatprep.subr.mxu0 0.0
  %9219 = vmatpush2.msra.mxu0 0.0
  %9220 = vmatprep.subr.mxu0 0.0
  %9221 = vmatpush2.msra.mxu0 0.0
  %9222 = vmatprep.subr.mxu0 0.0
  %9223 = vmatpush2.msra.mxu0 0.0
  %9224 = vmatprep.subr.mxu0 0.0
  %9225 = vmatpush2.msra.mxu0 0.0
  %9226 = vmatprep.subr.mxu0 0.0
  %9227 = vmatpush2.msra.mxu0 0.0
  %9228 = vmatprep.subr.mxu0 0.0
  %9229 = vmatpush2.msra.mxu0 0.0
  %9230 = vmatprep.subr.mxu0 0.0
  %9231 = vmatpush2.msra.mxu0 0.0
  %9232 = vmatprep.subr.mxu0 0.0
  %9233 = vmatpush2.msra.mxu0 0.0
  %9234 = vmatprep.subr.mxu0 0.0
  %9235 = vmatpush2.msra.mxu0 0.0
  %9236 = vmatprep.subr.mxu0 0.0
  %9237 = vmatpush2.msra.mxu0 0.0
  %9238 = vmatprep.subr.mxu0 0.0
  %9239 = vmatpush2.msra.mxu0 0.0
  %9240 = vmatprep.subr.mxu0 0.0
  %9241 = vmatpush2.msra.mxu0 0.0
  %9242 = vmatprep.subr.mxu0 0.0
  %9243 = vmatpush2.msra.mxu0 0.0
  %9244 = vmatprep.subr.mxu0 0.0
  %9245 = vmatpush2.msra.mxu0 0.0
  %9246 = vmatprep.subr.mxu0 0.0
  %9247 = vmatpush2.msra.mxu0 0.0
  %9248 = vmatprep.subr.mxu0 0.0
  %9249 = vmatpush2.msra.mxu0 0.0
  %9250 = vmatprep.mubr.f32.mxu0 0.0
  %9251 = vmatmul.mubr.f32.gmra.mxu0 %v6580
  %v9252 = vpop.f32.mrf.mxu0
  %v9253 = vadd.f32 %v9184, %v9252
  %v9254 = vpop.f32.mrf.mxu0
  %9255 = vmatprep.mubr.f32.mxu0 0.0
  %9256 = vmatmul.mubr.f32.gmra.mxu0 %v6583
  %v9257 = vpop.f32.mrf.mxu0
  %v9258 = vadd.f32 %v9184, %v9257
  %v9259 = vpop.f32.mrf.mxu0
  %9260 = vmatprep.mubr.f32.mxu0 0.0
  %9261 = vmatmul.mubr.f32.gmra.mxu0 %v6586
  %v9262 = vpop.f32.mrf.mxu0
  %v9263 = vadd.f32 %v9184, %v9262
  %v9264 = vpop.f32.mrf.mxu0
  %9265 = vmatprep.mubr.f32.mxu0 0.0
  %9266 = vmatmul.mubr.f32.gmra.mxu0 %v6589
  %v9267 = vpop.f32.mrf.mxu0
  %v9268 = vadd.f32 %v9184, %v9267
  %v9269 = vpop.f32.mrf.mxu0
  %9270 = vmatprep.mubr.f32.mxu0 0.0
  %9271 = vmatmul.mubr.f32.gmra.mxu0 %v6592
  %v9272 = vpop.f32.mrf.mxu0
  %v9273 = vadd.f32 %v9184, %v9272
  %v9274 = vpop.f32.mrf.mxu0
  %9275 = vmatprep.mubr.f32.mxu0 0.0
  %9276 = vmatmul.mubr.f32.gmra.mxu0 %v6595
  %v9277 = vpop.f32.mrf.mxu0
  %v9278 = vadd.f32 %v9184, %v9277
  %v9279 = vpop.f32.mrf.mxu0
  %9280 = vmatprep.mubr.f32.mxu0 0.0
  %9281 = vmatmul.mubr.f32.gmra.mxu0 %v6598
  %v9282 = vpop.f32.mrf.mxu0
  %v9283 = vadd.f32 %v9184, %v9282
  %v9284 = vpop.f32.mrf.mxu0
  %9285 = vdwg.mxu0
  %9286 = vrot.lane.b32.xlu0 %v6563, 16
  %v9287 = vpop.permute.xlu0 %9286
  %9288 = vrot.lane.b32.xlu0 %v6564, 16
  %v9289 = vpop.permute.xlu0 %9288
  %9290 = vrot.lane.b32.xlu0 %v6565, 16
  %v9291 = vpop.permute.xlu0 %9290
  %9292 = vrot.lane.b32.xlu0 %v6566, 16
  %v9293 = vpop.permute.xlu0 %9292
  %9294 = vrot.lane.b32.xlu0 %v6567, 16
  %v9295 = vpop.permute.xlu0 %9294
  %9296 = vrot.lane.b32.xlu0 %v6568, 16
  %v9297 = vpop.permute.xlu0 %9296
  %9298 = vrot.lane.b32.xlu0 %v6569, 16
  %v9299 = vpop.permute.xlu0 %9298
  %9300 = vrot.lane.b32.xlu0 %v6570, 16
  %v9301 = vpop.permute.xlu0 %9300
  %9310 = vrot.lane.b32.xlu0 %v6577, 16
  %v9311 = vpop.permute.xlu0 %9310
  %9313 = vmatprep.subr.mxu0 0.0
  %9314 = vmatpush1.msra.mxu0 0.0
  %9315 = vmatprep.subr.mxu0 0.0
  %9316 = vmatpush1.msra.mxu0 0.0
  %9317 = vmatprep.subr.mxu0 0.0
  %9318 = vmatpush1.msra.mxu0 0.0
  %9319 = vmatprep.subr.mxu0 0.0
  %9320 = vmatpush1.msra.mxu0 0.0
  %9321 = vmatprep.subr.mxu0 0.0
  %9322 = vmatpush1.msra.mxu0 0.0
  %9323 = vmatprep.subr.mxu0 0.0
  %9324 = vmatpush1.msra.mxu0 0.0
  %9325 = vmatprep.subr.mxu0 0.0
  %9326 = vmatpush1.msra.mxu0 0.0
  %9327 = vmatprep.subr.mxu0 0.0
  %9328 = vmatpush1.msra.mxu0 0.0
  %9329 = vmatprep.subr.mxu0 0.0
  %9330 = vmatpush1.msra.mxu0 %v9301
  %9331 = vmatprep.subr.mxu0 0.0
  %9332 = vmatpush1.msra.mxu0 %v9299
  %9333 = vmatprep.subr.mxu0 0.0
  %9334 = vmatpush1.msra.mxu0 %v9297
  %9335 = vmatprep.subr.mxu0 0.0
  %9336 = vmatpush1.msra.mxu0 %v9295
  %9337 = vmatprep.subr.mxu0 0.0
  %9338 = vmatpush1.msra.mxu0 %v9293
  %9339 = vmatprep.subr.mxu0 0.0
  %9340 = vmatpush1.msra.mxu0 %v9291
  %9341 = vmatprep.subr.mxu0 0.0
  %9342 = vmatpush1.msra.mxu0 %v9289
  %9343 = vmatprep.subr.mxu0 0.0
  %9344 = vmatpush1.msra.mxu0 %v9287
  %9345 = vmatprep.subr.mxu0 0.0
  %9346 = vmatpush2.msra.mxu0 0.0
  %9347 = vmatprep.subr.mxu0 0.0
  %9348 = vmatpush2.msra.mxu0 0.0
  %9349 = vmatprep.subr.mxu0 0.0
  %9350 = vmatpush2.msra.mxu0 0.0
  %9351 = vmatprep.subr.mxu0 0.0
  %9352 = vmatpush2.msra.mxu0 0.0
  %9353 = vmatprep.subr.mxu0 0.0
  %9354 = vmatpush2.msra.mxu0 0.0
  %9355 = vmatprep.subr.mxu0 0.0
  %9356 = vmatpush2.msra.mxu0 0.0
  %9357 = vmatprep.subr.mxu0 0.0
  %9358 = vmatpush2.msra.mxu0 0.0
  %9359 = vmatprep.subr.mxu0 0.0
  %9360 = vmatpush2.msra.mxu0 0.0
  %9361 = vmatprep.subr.mxu0 0.0
  %9362 = vmatpush2.msra.mxu0 0.0
  %9363 = vmatprep.subr.mxu0 0.0
  %9364 = vmatpush2.msra.mxu0 0.0
  %9365 = vmatprep.subr.mxu0 0.0
  %9366 = vmatpush2.msra.mxu0 0.0
  %9367 = vmatprep.subr.mxu0 0.0
  %9368 = vmatpush2.msra.mxu0 0.0
  %9369 = vmatprep.subr.mxu0 0.0
  %9370 = vmatpush2.msra.mxu0 0.0
  %9371 = vmatprep.subr.mxu0 0.0
  %9372 = vmatpush2.msra.mxu0 0.0
  %9373 = vmatprep.subr.mxu0 0.0
  %9374 = vmatpush2.msra.mxu0 0.0
  %9375 = vmatprep.subr.mxu0 0.0
  %9376 = vmatpush2.msra.mxu0 0.0
  %9377 = vmatprep.mubr.f32.mxu0 0.0
  %9378 = vmatmul.mubr.f32.gmra.mxu0 %v6580
  %v9379 = vpop.f32.mrf.mxu0
  %v9380 = vadd.f32 %v9311, %v9379
  %v9381 = vpop.f32.mrf.mxu0
  %9382 = vmatprep.mubr.f32.mxu0 0.0
  %9383 = vmatmul.mubr.f32.gmra.mxu0 %v6583
  %v9384 = vpop.f32.mrf.mxu0
  %v9385 = vadd.f32 %v9311, %v9384
  %v9386 = vpop.f32.mrf.mxu0
  %9387 = vmatprep.mubr.f32.mxu0 0.0
  %9388 = vmatmul.mubr.f32.gmra.mxu0 %v6586
  %v9389 = vpop.f32.mrf.mxu0
  %v9390 = vadd.f32 %v9311, %v9389
  %v9391 = vpop.f32.mrf.mxu0
  %9392 = vmatprep.mubr.f32.mxu0 0.0
  %9393 = vmatmul.mubr.f32.gmra.mxu0 %v6589
  %v9394 = vpop.f32.mrf.mxu0
  %v9395 = vadd.f32 %v9311, %v9394
  %v9396 = vpop.f32.mrf.mxu0
  %9397 = vmatprep.mubr.f32.mxu0 0.0
  %9398 = vmatmul.mubr.f32.gmra.mxu0 %v6592
  %v9399 = vpop.f32.mrf.mxu0
  %v9400 = vadd.f32 %v9311, %v9399
  %v9401 = vpop.f32.mrf.mxu0
  %9402 = vmatprep.mubr.f32.mxu0 0.0
  %9403 = vmatmul.mubr.f32.gmra.mxu0 %v6595
  %v9404 = vpop.f32.mrf.mxu0
  %v9405 = vadd.f32 %v9311, %v9404
  %v9406 = vpop.f32.mrf.mxu0
  %9407 = vmatprep.mubr.f32.mxu0 0.0
  %9408 = vmatmul.mubr.f32.gmra.mxu0 %v6598
  %v9409 = vpop.f32.mrf.mxu0
  %v9410 = vadd.f32 %v9311, %v9409
  %v9411 = vpop.f32.mrf.mxu0
  %9412 = vdwg.mxu0
  %9413 = vrot.lane.b32.xlu0 %v6835, 80
  %v9414 = vpop.permute.xlu0 %9413
  %9415 = vrot.lane.b32.xlu0 %v6836, 80
  %v9416 = vpop.permute.xlu0 %9415
  %9417 = vrot.lane.b32.xlu0 %v6837, 80
  %v9418 = vpop.permute.xlu0 %9417
  %9419 = vrot.lane.b32.xlu0 %v6838, 80
  %v9420 = vpop.permute.xlu0 %9419
  %9421 = vrot.lane.b32.xlu0 %v6839, 80
  %v9422 = vpop.permute.xlu0 %9421
  %9423 = vrot.lane.b32.xlu0 %v6840, 80
  %v9424 = vpop.permute.xlu0 %9423
  %9425 = vrot.lane.b32.xlu0 %v6841, 80
  %v9426 = vpop.permute.xlu0 %9425
  %9427 = vrot.lane.b32.xlu0 %v6842, 80
  %v9428 = vpop.permute.xlu0 %9427
  %9437 = vrot.lane.b32.xlu0 %v6848, 80
  %v9438 = vpop.permute.xlu0 %9437
  %9440 = vmatprep.subr.mxu0 0.0
  %9441 = vmatpush1.msra.mxu0 0.0
  %9442 = vmatprep.subr.mxu0 0.0
  %9443 = vmatpush1.msra.mxu0 0.0
  %9444 = vmatprep.subr.mxu0 0.0
  %9445 = vmatpush1.msra.mxu0 0.0
  %9446 = vmatprep.subr.mxu0 0.0
  %9447 = vmatpush1.msra.mxu0 0.0
  %9448 = vmatprep.subr.mxu0 0.0
  %9449 = vmatpush1.msra.mxu0 0.0
  %9450 = vmatprep.subr.mxu0 0.0
  %9451 = vmatpush1.msra.mxu0 0.0
  %9452 = vmatprep.subr.mxu0 0.0
  %9453 = vmatpush1.msra.mxu0 0.0
  %9454 = vmatprep.subr.mxu0 0.0
  %9455 = vmatpush1.msra.mxu0 0.0
  %9456 = vmatprep.subr.mxu0 0.0
  %9457 = vmatpush1.msra.mxu0 %v9428
  %9458 = vmatprep.subr.mxu0 0.0
  %9459 = vmatpush1.msra.mxu0 %v9426
  %9460 = vmatprep.subr.mxu0 0.0
  %9461 = vmatpush1.msra.mxu0 %v9424
  %9462 = vmatprep.subr.mxu0 0.0
  %9463 = vmatpush1.msra.mxu0 %v9422
  %9464 = vmatprep.subr.mxu0 0.0
  %9465 = vmatpush1.msra.mxu0 %v9420
  %9466 = vmatprep.subr.mxu0 0.0
  %9467 = vmatpush1.msra.mxu0 %v9418
  %9468 = vmatprep.subr.mxu0 0.0
  %9469 = vmatpush1.msra.mxu0 %v9416
  %9470 = vmatprep.subr.mxu0 0.0
  %9471 = vmatpush1.msra.mxu0 %v9414
  %9472 = vmatprep.subr.mxu0 0.0
  %9473 = vmatpush2.msra.mxu0 0.0
  %9474 = vmatprep.subr.mxu0 0.0
  %9475 = vmatpush2.msra.mxu0 0.0
  %9476 = vmatprep.subr.mxu0 0.0
  %9477 = vmatpush2.msra.mxu0 0.0
  %9478 = vmatprep.subr.mxu0 0.0
  %9479 = vmatpush2.msra.mxu0 0.0
  %9480 = vmatprep.subr.mxu0 0.0
  %9481 = vmatpush2.msra.mxu0 0.0
  %9482 = vmatprep.subr.mxu0 0.0
  %9483 = vmatpush2.msra.mxu0 0.0
  %9484 = vmatprep.subr.mxu0 0.0
  %9485 = vmatpush2.msra.mxu0 0.0
  %9486 = vmatprep.subr.mxu0 0.0
  %9487 = vmatpush2.msra.mxu0 0.0
  %9488 = vmatprep.subr.mxu0 0.0
  %9489 = vmatpush2.msra.mxu0 0.0
  %9490 = vmatprep.subr.mxu0 0.0
  %9491 = vmatpush2.msra.mxu0 0.0
  %9492 = vmatprep.subr.mxu0 0.0
  %9493 = vmatpush2.msra.mxu0 0.0
  %9494 = vmatprep.subr.mxu0 0.0
  %9495 = vmatpush2.msra.mxu0 0.0
  %9496 = vmatprep.subr.mxu0 0.0
  %9497 = vmatpush2.msra.mxu0 0.0
  %9498 = vmatprep.subr.mxu0 0.0
  %9499 = vmatpush2.msra.mxu0 0.0
  %9500 = vmatprep.subr.mxu0 0.0
  %9501 = vmatpush2.msra.mxu0 0.0
  %9502 = vmatprep.subr.mxu0 0.0
  %9503 = vmatpush2.msra.mxu0 0.0
  %9504 = vmatprep.mubr.f32.mxu0 0.0
  %9505 = vmatmul.mubr.f32.gmra.mxu0 %v6580
  %v9506 = vpop.f32.mrf.mxu0
  %v9507 = vadd.f32 %v9438, %v9506
  %v9508 = vpop.f32.mrf.mxu0
  %9509 = vmatprep.mubr.f32.mxu0 0.0
  %9510 = vmatmul.mubr.f32.gmra.mxu0 %v6583
  %v9511 = vpop.f32.mrf.mxu0
  %v9512 = vadd.f32 %v9438, %v9511
  %v9513 = vpop.f32.mrf.mxu0
  %9514 = vmatprep.mubr.f32.mxu0 0.0
  %9515 = vmatmul.mubr.f32.gmra.mxu0 %v6586
  %v9516 = vpop.f32.mrf.mxu0
  %v9517 = vadd.f32 %v9438, %v9516
  %v9518 = vpop.f32.mrf.mxu0
  %9519 = vmatprep.mubr.f32.mxu0 0.0
  %9520 = vmatmul.mubr.f32.gmra.mxu0 %v6589
  %v9521 = vpop.f32.mrf.mxu0
  %v9522 = vadd.f32 %v9438, %v9521
  %v9523 = vpop.f32.mrf.mxu0
  %9524 = vmatprep.mubr.f32.mxu0 0.0
  %9525 = vmatmul.mubr.f32.gmra.mxu0 %v6592
  %v9526 = vpop.f32.mrf.mxu0
  %v9527 = vadd.f32 %v9438, %v9526
  %v9528 = vpop.f32.mrf.mxu0
  %9529 = vmatprep.mubr.f32.mxu0 0.0
  %9530 = vmatmul.mubr.f32.gmra.mxu0 %v6595
  %v9531 = vpop.f32.mrf.mxu0
  %v9532 = vadd.f32 %v9438, %v9531
  %v9533 = vpop.f32.mrf.mxu0
  %9534 = vmatprep.mubr.f32.mxu0 0.0
  %9535 = vmatmul.mubr.f32.gmra.mxu0 %v6598
  %v9536 = vpop.f32.mrf.mxu0
  %v9537 = vadd.f32 %v9438, %v9536
  %v9538 = vpop.f32.mrf.mxu0
  %9539 = vdwg.mxu0
  %v9541 = vsel %vm449, %v9253, 0
  %v9544 = vsel %vm449, %v9258, 0
  %v9547 = vsel %vm449, %v9263, 0
  %v9550 = vsel %vm449, %v9268, 0
  %v9553 = vsel %vm449, %v9273, 0
  %v9556 = vsel %vm449, %v9278, 0
  %v9559 = vsel %vm449, %v9283, 0
  %v9562 = vsel %vm449, %v9380, 0
  %v9565 = vsel %vm449, %v9385, 0
  %v9568 = vsel %vm449, %v9390, 0
  %v9571 = vsel %vm449, %v9395, 0
  %v9574 = vsel %vm449, %v9400, 0
  %v9577 = vsel %vm449, %v9405, 0
  %v9580 = vsel %vm449, %v9410, 0
  %9582 = vmatprep.subr.mxu0 0.0
  %9583 = vmatpush1.xpose.msra.mxu0 0.0
  %9584 = vmatprep.subr.mxu0 0.0
  %9585 = vmatpush1.xpose.msra.mxu0 0.0
  %9586 = vmatprep.subr.mxu0 0.0
  %9587 = vmatpush1.xpose.msra.mxu0 0.0
  %9588 = vmatprep.subr.mxu0 0.0
  %9589 = vmatpush1.xpose.msra.mxu0 0.0
  %9590 = vmatprep.subr.mxu0 0.0
  %9591 = vmatpush1.xpose.msra.mxu0 0.0
  %9592 = vmatprep.subr.mxu0 0.0
  %9593 = vmatpush1.xpose.msra.mxu0 0.0
  %9594 = vmatprep.subr.mxu0 0.0
  %9595 = vmatpush1.xpose.msra.mxu0 0.0
  %9596 = vmatprep.subr.mxu0 0.0
  %9597 = vmatpush1.xpose.msra.mxu0 0.0
  %9598 = vmatprep.subr.mxu0 0.0
  %9599 = vmatpush1.xpose.msra.mxu0 0.0
  %9600 = vmatprep.subr.mxu0 0.0
  %9601 = vmatpush1.xpose.msra.mxu0 %v9580
  %9602 = vmatprep.subr.mxu0 0.0
  %9603 = vmatpush1.xpose.msra.mxu0 %v9577
  %9604 = vmatprep.subr.mxu0 0.0
  %9605 = vmatpush1.xpose.msra.mxu0 %v9574
  %9606 = vmatprep.subr.mxu0 0.0
  %9607 = vmatpush1.xpose.msra.mxu0 %v9571
  %9608 = vmatprep.subr.mxu0 0.0
  %9609 = vmatpush1.xpose.msra.mxu0 %v9568
  %9610 = vmatprep.subr.mxu0 0.0
  %9611 = vmatpush1.xpose.msra.mxu0 %v9565
  %9612 = vmatprep.subr.mxu0 0.0
  %9613 = vmatpush1.xpose.msra.mxu0 %v9562
  %9614 = vmatprep.subr.mxu0 0.0
  %9615 = vmatpush2.xpose.msra.mxu0 0.0
  %9616 = vmatprep.subr.mxu0 0.0
  %9617 = vmatpush2.xpose.msra.mxu0 0.0
  %9618 = vmatprep.subr.mxu0 0.0
  %9619 = vmatpush2.xpose.msra.mxu0 0.0
  %9620 = vmatprep.subr.mxu0 0.0
  %9621 = vmatpush2.xpose.msra.mxu0 0.0
  %9622 = vmatprep.subr.mxu0 0.0
  %9623 = vmatpush2.xpose.msra.mxu0 0.0
  %9624 = vmatprep.subr.mxu0 0.0
  %9625 = vmatpush2.xpose.msra.mxu0 0.0
  %9626 = vmatprep.subr.mxu0 0.0
  %9627 = vmatpush2.xpose.msra.mxu0 0.0
  %9628 = vmatprep.subr.mxu0 0.0
  %9629 = vmatpush2.xpose.msra.mxu0 0.0
  %9630 = vmatprep.subr.mxu0 0.0
  %9631 = vmatpush2.xpose.msra.mxu0 0.0
  %9632 = vmatprep.subr.mxu0 0.0
  %9633 = vmatpush2.xpose.msra.mxu0 0.0
  %9634 = vmatprep.subr.mxu0 0.0
  %9635 = vmatpush2.xpose.msra.mxu0 0.0
  %9636 = vmatprep.subr.mxu0 0.0
  %9637 = vmatpush2.xpose.msra.mxu0 0.0
  %9638 = vmatprep.subr.mxu0 0.0
  %9639 = vmatpush2.xpose.msra.mxu0 0.0
  %9640 = vmatprep.subr.mxu0 0.0
  %9641 = vmatpush2.xpose.msra.mxu0 0.0
  %9642 = vmatprep.subr.mxu0 0.0
  %9643 = vmatpush2.xpose.msra.mxu0 0.0
  %9644 = vmatprep.subr.mxu0 0.0
  %9645 = vmatpush2.xpose.msra.mxu0 0.0
  %9646 = vmatprep.mubr.f32.mxu0 0.0
  %9647 = vmatmul.mubr.f32.gmra.mxu0 %v9541
  %v9648 = vpop.f32.mrf.mxu0
  %v9649 = vadd.f32 0.0, %v9648
  %v9650 = vpop.f32.mrf.mxu0
  %9651 = vmatprep.mubr.f32.mxu0 0.0
  %9652 = vmatmul.mubr.f32.gmra.mxu0 %v9544
  %v9653 = vpop.f32.mrf.mxu0
  %v9654 = vadd.f32 0.0, %v9653
  %v9655 = vpop.f32.mrf.mxu0
  %9656 = vmatprep.mubr.f32.mxu0 0.0
  %9657 = vmatmul.mubr.f32.gmra.mxu0 %v9547
  %v9658 = vpop.f32.mrf.mxu0
  %v9659 = vadd.f32 0.0, %v9658
  %v9660 = vpop.f32.mrf.mxu0
  %9661 = vmatprep.mubr.f32.mxu0 0.0
  %9662 = vmatmul.mubr.f32.gmra.mxu0 %v9550
  %v9663 = vpop.f32.mrf.mxu0
  %v9664 = vadd.f32 0.0, %v9663
  %v9665 = vpop.f32.mrf.mxu0
  %9666 = vmatprep.mubr.f32.mxu0 0.0
  %9667 = vmatmul.mubr.f32.gmra.mxu0 %v9553
  %v9668 = vpop.f32.mrf.mxu0
  %v9669 = vadd.f32 0.0, %v9668
  %v9670 = vpop.f32.mrf.mxu0
  %9671 = vmatprep.mubr.f32.mxu0 0.0
  %9672 = vmatmul.mubr.f32.gmra.mxu0 %v9556
  %v9673 = vpop.f32.mrf.mxu0
  %v9674 = vadd.f32 0.0, %v9673
  %v9675 = vpop.f32.mrf.mxu0
  %9676 = vmatprep.mubr.f32.mxu0 0.0
  %9677 = vmatmul.mubr.f32.gmra.mxu0 %v9559
  %v9678 = vpop.f32.mrf.mxu0
  %v9679 = vadd.f32 0.0, %v9678
  %v9680 = vpop.f32.mrf.mxu0
  %9681 = vdwg.mxu0
  %v9682 = vmul.f32 %v9649, 0.25
  %v9683 = vmul.f32 %v9654, 0.25
  %v9684 = vmul.f32 %v9659, 0.25
  %v9685 = vmul.f32 %v9664, 0.25
  %v9686 = vmul.f32 %v9669, 0.25
  %v9687 = vmul.f32 %v9674, 0.25
  %v9688 = vmul.f32 %v9679, 0.25
  %v9689 = vadd.f32 %v9682, %v55
  %v9690 = vadd.f32 %v9683, %v56
  %v9691 = vadd.f32 %v9684, %v57
  %v9692 = vadd.f32 %v9685, %v58
  %v9693 = vadd.f32 %v9686, %v59
  %v9694 = vadd.f32 %v9687, %v60
  %v9695 = vadd.f32 %v9688, %v61
  %v9696 = vsel %vm606, %v9689, -inf
  %9697 = vmax.xlane.f32.xlu0 %v9696
  %v9698 = vpop.xlane.xlu0 %9697
  %v9699 = vsel %vm606, %v9690, -inf
  %9700 = vmax.xlane.f32.xlu0 %v9699
  %v9701 = vpop.xlane.xlu0 %9700
  %v9702 = vsel %vm606, %v9691, -inf
  %9703 = vmax.xlane.f32.xlu0 %v9702
  %v9704 = vpop.xlane.xlu0 %9703
  %v9705 = vsel %vm606, %v9692, -inf
  %9706 = vmax.xlane.f32.xlu0 %v9705
  %v9707 = vpop.xlane.xlu0 %9706
  %v9708 = vsel %vm606, %v9693, -inf
  %9709 = vmax.xlane.f32.xlu0 %v9708
  %v9710 = vpop.xlane.xlu0 %9709
  %v9711 = vsel %vm606, %v9694, -inf
  %9712 = vmax.xlane.f32.xlu0 %v9711
  %v9713 = vpop.xlane.xlu0 %9712
  %v9714 = vsel %vm606, %v9695, -inf
  %9715 = vmax.xlane.f32.xlu0 %v9714
  %v9716 = vpop.xlane.xlu0 %9715
  %v9717 = vsub.f32 %v9689, %v9698
  %v9718 = vsub.f32 %v9690, %v9701
  %v9719 = vsub.f32 %v9691, %v9704
  %v9720 = vsub.f32 %v9692, %v9707
  %v9721 = vsub.f32 %v9693, %v9710
  %v9722 = vsub.f32 %v9694, %v9713
  %v9723 = vsub.f32 %v9695, %v9716
  %v9724 = vmul.f32 %v9717, 1.442695
  %v9725 = vpow.pop %v9724
  %v9726 = vmul.f32 %v9718, 1.442695
  %v9727 = vpow.pop %v9726
  %v9728 = vmul.f32 %v9719, 1.442695
  %v9729 = vpow.pop %v9728
  %v9730 = vmul.f32 %v9720, 1.442695
  %v9731 = vpow.pop %v9730
  %v9732 = vmul.f32 %v9721, 1.442695
  %v9733 = vpow.pop %v9732
  %v9734 = vmul.f32 %v9722, 1.442695
  %v9735 = vpow.pop %v9734
  %v9736 = vmul.f32 %v9723, 1.442695
  %v9737 = vpow.pop %v9736
  %v9738 = vsel %vm606, %v9725, 0.0
  %9739 = vadd.xlane.f32.xlu0 %v9738
  %v9740 = vpop.xlane.xlu0 %9739
  %v9741 = vsel %vm606, %v9727, 0.0
  %9742 = vadd.xlane.f32.xlu0 %v9741
  %v9743 = vpop.xlane.xlu0 %9742
  %v9744 = vsel %vm606, %v9729, 0.0
  %9745 = vadd.xlane.f32.xlu0 %v9744
  %v9746 = vpop.xlane.xlu0 %9745
  %v9747 = vsel %vm606, %v9731, 0.0
  %9748 = vadd.xlane.f32.xlu0 %v9747
  %v9749 = vpop.xlane.xlu0 %9748
  %v9750 = vsel %vm606, %v9733, 0.0
  %9751 = vadd.xlane.f32.xlu0 %v9750
  %v9752 = vpop.xlane.xlu0 %9751
  %v9753 = vsel %vm606, %v9735, 0.0
  %9754 = vadd.xlane.f32.xlu0 %v9753
  %v9755 = vpop.xlane.xlu0 %9754
  %v9756 = vsel %vm606, %v9737, 0.0
  %9757 = vadd.xlane.f32.xlu0 %v9756
  %v9758 = vpop.xlane.xlu0 %9757
  %v9759 = vrcp.pop %v9740
  %v9760 = vmul.f32 %v9725, %v9759
  %v9761 = vrcp.pop %v9743
  %v9762 = vmul.f32 %v9727, %v9761
  %v9763 = vrcp.pop %v9746
  %v9764 = vmul.f32 %v9729, %v9763
  %v9765 = vrcp.pop %v9749
  %v9766 = vmul.f32 %v9731, %v9765
  %v9767 = vrcp.pop %v9752
  %v9768 = vmul.f32 %v9733, %v9767
  %v9769 = vrcp.pop %v9755
  %v9770 = vmul.f32 %v9735, %v9769
  %v9771 = vrcp.pop %v9758
  %v9772 = vmul.f32 %v9737, %v9771
  %v9774 = vsel %vm606, %v9760, 0
  %v9777 = vsel %vm606, %v9762, 0
  %v9780 = vsel %vm606, %v9764, 0
  %v9783 = vsel %vm606, %v9766, 0
  %v9786 = vsel %vm606, %v9768, 0
  %v9789 = vsel %vm606, %v9770, 0
  %v9792 = vsel %vm606, %v9772, 0
  %9794 = vmatprep.subr.mxu0 0.0
  %9795 = vmatpush1.msra.mxu0 0.0
  %9796 = vmatprep.subr.mxu0 0.0
  %9797 = vmatpush1.msra.mxu0 0.0
  %9798 = vmatprep.subr.mxu0 0.0
  %9799 = vmatpush1.msra.mxu0 0.0
  %9800 = vmatprep.subr.mxu0 0.0
  %9801 = vmatpush1.msra.mxu0 0.0
  %9802 = vmatprep.subr.mxu0 0.0
  %9803 = vmatpush1.msra.mxu0 0.0
  %9804 = vmatprep.subr.mxu0 0.0
  %9805 = vmatpush1.msra.mxu0 0.0
  %9806 = vmatprep.subr.mxu0 0.0
  %9807 = vmatpush1.msra.mxu0 0.0
  %9808 = vmatprep.subr.mxu0 0.0
  %9809 = vmatpush1.msra.mxu0 0.0
  %9810 = vmatprep.subr.mxu0 0.0
  %9811 = vmatpush1.msra.mxu0 0.0
  %9812 = vmatprep.subr.mxu0 0.0
  %9813 = vmatpush1.msra.mxu0 %v9537
  %9814 = vmatprep.subr.mxu0 0.0
  %9815 = vmatpush1.msra.mxu0 %v9532
  %9816 = vmatprep.subr.mxu0 0.0
  %9817 = vmatpush1.msra.mxu0 %v9527
  %9818 = vmatprep.subr.mxu0 0.0
  %9819 = vmatpush1.msra.mxu0 %v9522
  %9820 = vmatprep.subr.mxu0 0.0
  %9821 = vmatpush1.msra.mxu0 %v9517
  %9822 = vmatprep.subr.mxu0 0.0
  %9823 = vmatpush1.msra.mxu0 %v9512
  %9824 = vmatprep.subr.mxu0 0.0
  %9825 = vmatpush1.msra.mxu0 %v9507
  %9826 = vmatprep.subr.mxu0 0.0
  %9827 = vmatpush2.msra.mxu0 0.0
  %9828 = vmatprep.subr.mxu0 0.0
  %9829 = vmatpush2.msra.mxu0 0.0
  %9830 = vmatprep.subr.mxu0 0.0
  %9831 = vmatpush2.msra.mxu0 0.0
  %9832 = vmatprep.subr.mxu0 0.0
  %9833 = vmatpush2.msra.mxu0 0.0
  %9834 = vmatprep.subr.mxu0 0.0
  %9835 = vmatpush2.msra.mxu0 0.0
  %9836 = vmatprep.subr.mxu0 0.0
  %9837 = vmatpush2.msra.mxu0 0.0
  %9838 = vmatprep.subr.mxu0 0.0
  %9839 = vmatpush2.msra.mxu0 0.0
  %9840 = vmatprep.subr.mxu0 0.0
  %9841 = vmatpush2.msra.mxu0 0.0
  %9842 = vmatprep.subr.mxu0 0.0
  %9843 = vmatpush2.msra.mxu0 0.0
  %9844 = vmatprep.subr.mxu0 0.0
  %9845 = vmatpush2.msra.mxu0 0.0
  %9846 = vmatprep.subr.mxu0 0.0
  %9847 = vmatpush2.msra.mxu0 0.0
  %9848 = vmatprep.subr.mxu0 0.0
  %9849 = vmatpush2.msra.mxu0 0.0
  %9850 = vmatprep.subr.mxu0 0.0
  %9851 = vmatpush2.msra.mxu0 0.0
  %9852 = vmatprep.subr.mxu0 0.0
  %9853 = vmatpush2.msra.mxu0 0.0
  %9854 = vmatprep.subr.mxu0 0.0
  %9855 = vmatpush2.msra.mxu0 0.0
  %9856 = vmatprep.subr.mxu0 0.0
  %9857 = vmatpush2.msra.mxu0 0.0
  %9858 = vmatprep.mubr.f32.mxu0 0.0
  %9859 = vmatmul.mubr.f32.gmra.mxu0 %v9774
  %v9860 = vpop.f32.mrf.mxu0
  %v9861 = vadd.f32 0.0, %v9860
  %v9862 = vpop.f32.mrf.mxu0
  %9863 = vmatprep.mubr.f32.mxu0 0.0
  %9864 = vmatmul.mubr.f32.gmra.mxu0 %v9777
  %v9865 = vpop.f32.mrf.mxu0
  %v9866 = vadd.f32 0.0, %v9865
  %v9867 = vpop.f32.mrf.mxu0
  %9868 = vmatprep.mubr.f32.mxu0 0.0
  %9869 = vmatmul.mubr.f32.gmra.mxu0 %v9780
  %v9870 = vpop.f32.mrf.mxu0
  %v9871 = vadd.f32 0.0, %v9870
  %v9872 = vpop.f32.mrf.mxu0
  %9873 = vmatprep.mubr.f32.mxu0 0.0
  %9874 = vmatmul.mubr.f32.gmra.mxu0 %v9783
  %v9875 = vpop.f32.mrf.mxu0
  %v9876 = vadd.f32 0.0, %v9875
  %v9877 = vpop.f32.mrf.mxu0
  %9878 = vmatprep.mubr.f32.mxu0 0.0
  %9879 = vmatmul.mubr.f32.gmra.mxu0 %v9786
  %v9880 = vpop.f32.mrf.mxu0
  %v9881 = vadd.f32 0.0, %v9880
  %v9882 = vpop.f32.mrf.mxu0
  %9883 = vmatprep.mubr.f32.mxu0 0.0
  %9884 = vmatmul.mubr.f32.gmra.mxu0 %v9789
  %v9885 = vpop.f32.mrf.mxu0
  %v9886 = vadd.f32 0.0, %v9885
  %v9887 = vpop.f32.mrf.mxu0
  %9888 = vmatprep.mubr.f32.mxu0 0.0
  %9889 = vmatmul.mubr.f32.gmra.mxu0 %v9792
  %v9890 = vpop.f32.mrf.mxu0
  %v9891 = vadd.f32 0.0, %v9890
  %v9892 = vpop.f32.mrf.mxu0
  %9893 = vdwg.mxu0
  %v9894 = vld [vmem:[%s7304 + $0x30] sm:$0xff]
  %v9895 = vld [vmem:[%s7304 + $0x38] sm:$0xff]
  %v9897 = vsel %vm449, %v9861, 0
  %v9900 = vsel %vm449, %v9866, 0
  %v9903 = vsel %vm449, %v9871, 0
  %v9906 = vsel %vm449, %v9876, 0
  %v9909 = vsel %vm449, %v9881, 0
  %v9912 = vsel %vm449, %v9886, 0
  %v9915 = vsel %vm449, %v9891, 0
  %9917 = vmatprep.subr.mxu0 0.0
  %9918 = vmatpush1.msra.mxu0 0.0
  %9919 = vmatprep.subr.mxu0 0.0
  %9920 = vmatpush1.msra.mxu0 0.0
  %9921 = vmatprep.subr.mxu0 0.0
  %9922 = vmatpush1.msra.mxu0 0.0
  %9923 = vmatprep.subr.mxu0 0.0
  %9924 = vmatpush1.msra.mxu0 0.0
  %9925 = vmatprep.subr.mxu0 0.0
  %9926 = vmatpush1.msra.mxu0 0.0
  %9927 = vmatprep.subr.mxu0 0.0
  %9928 = vmatpush1.msra.mxu0 0.0
  %9929 = vmatprep.subr.mxu0 0.0
  %9930 = vmatpush1.msra.mxu0 0.0
  %9931 = vmatprep.subr.mxu0 0.0
  %9932 = vmatpush1.msra.mxu0 0.0
  %9933 = vmatprep.subr.mxu0 0.0
  %9934 = vmatpush1.msra.mxu0 0.0
  %9935 = vmatprep.subr.mxu0 0.0
  %9936 = vmatpush1.msra.mxu0 0.0
  %9937 = vmatprep.subr.mxu0 0.0
  %9938 = vmatpush1.msra.mxu0 0.0
  %9939 = vmatprep.subr.mxu0 0.0
  %9940 = vmatpush1.msra.mxu0 0.0
  %9941 = vmatprep.subr.mxu0 0.0
  %9942 = vmatpush1.msra.mxu0 0.0
  %9943 = vmatprep.subr.mxu0 0.0
  %9944 = vmatpush1.msra.mxu0 0.0
  %9945 = vmatprep.subr.mxu0 0.0
  %9946 = vmatpush1.msra.mxu0 %v9895
  %9947 = vmatprep.subr.mxu0 0.0
  %9948 = vmatpush1.msra.mxu0 %v9894
  %9949 = vmatprep.subr.mxu0 0.0
  %9950 = vmatpush2.msra.mxu0 0.0
  %9951 = vmatprep.subr.mxu0 0.0
  %9952 = vmatpush2.msra.mxu0 0.0
  %9953 = vmatprep.subr.mxu0 0.0
  %9954 = vmatpush2.msra.mxu0 0.0
  %9955 = vmatprep.subr.mxu0 0.0
  %9956 = vmatpush2.msra.mxu0 0.0
  %9957 = vmatprep.subr.mxu0 0.0
  %9958 = vmatpush2.msra.mxu0 0.0
  %9959 = vmatprep.subr.mxu0 0.0
  %9960 = vmatpush2.msra.mxu0 0.0
  %9961 = vmatprep.subr.mxu0 0.0
  %9962 = vmatpush2.msra.mxu0 0.0
  %9963 = vmatprep.subr.mxu0 0.0
  %9964 = vmatpush2.msra.mxu0 0.0
  %9965 = vmatprep.subr.mxu0 0.0
  %9966 = vmatpush2.msra.mxu0 0.0
  %9967 = vmatprep.subr.mxu0 0.0
  %9968 = vmatpush2.msra.mxu0 0.0
  %9969 = vmatprep.subr.mxu0 0.0
  %9970 = vmatpush2.msra.mxu0 0.0
  %9971 = vmatprep.subr.mxu0 0.0
  %9972 = vmatpush2.msra.mxu0 0.0
  %9973 = vmatprep.subr.mxu0 0.0
  %9974 = vmatpush2.msra.mxu0 0.0
  %9975 = vmatprep.subr.mxu0 0.0
  %9976 = vmatpush2.msra.mxu0 0.0
  %9977 = vmatprep.subr.mxu0 0.0
  %9978 = vmatpush2.msra.mxu0 0.0
  %9979 = vmatprep.subr.mxu0 0.0
  %9980 = vmatpush2.msra.mxu0 0.0
  %9981 = vmatprep.mubr.f32.mxu0 0.0
  %9982 = vmatmul.mubr.f32.gmra.mxu0 %v9897
  %v9983 = vpop.f32.mrf.mxu0
  %v9984 = vadd.f32 0.0, %v9983
  %v9985 = vpop.f32.mrf.mxu0
  %9986 = vmatprep.mubr.f32.mxu0 0.0
  %9987 = vmatmul.mubr.f32.gmra.mxu0 %v9900
  %v9988 = vpop.f32.mrf.mxu0
  %v9989 = vadd.f32 0.0, %v9988
  %v9990 = vpop.f32.mrf.mxu0
  %9991 = vmatprep.mubr.f32.mxu0 0.0
  %9992 = vmatmul.mubr.f32.gmra.mxu0 %v9903
  %v9993 = vpop.f32.mrf.mxu0
  %v9994 = vadd.f32 0.0, %v9993
  %v9995 = vpop.f32.mrf.mxu0
  %9996 = vmatprep.mubr.f32.mxu0 0.0
  %9997 = vmatmul.mubr.f32.gmra.mxu0 %v9906
  %v9998 = vpop.f32.mrf.mxu0
  %v9999 = vadd.f32 0.0, %v9998
  %v10000 = vpop.f32.mrf.mxu0
  %10001 = vmatprep.mubr.f32.mxu0 0.0
  %10002 = vmatmul.mubr.f32.gmra.mxu0 %v9909
  %v10003 = vpop.f32.mrf.mxu0
  %v10004 = vadd.f32 0.0, %v10003
  %v10005 = vpop.f32.mrf.mxu0
  %10006 = vmatprep.mubr.f32.mxu0 0.0
  %10007 = vmatmul.mubr.f32.gmra.mxu0 %v9912
  %v10008 = vpop.f32.mrf.mxu0
  %v10009 = vadd.f32 0.0, %v10008
  %v10010 = vpop.f32.mrf.mxu0
  %10011 = vmatprep.mubr.f32.mxu0 0.0
  %10012 = vmatmul.mubr.f32.gmra.mxu0 %v9915
  %v10013 = vpop.f32.mrf.mxu0
  %v10014 = vadd.f32 0.0, %v10013
  %v10015 = vpop.f32.mrf.mxu0
  %10016 = vdwg.mxu0
  %v10017 = vadd.f32 %v9152, %v9984
  %v10018 = vadd.f32 %v9153, %v9989
  %v10019 = vadd.f32 %v9154, %v9994
  %v10020 = vadd.f32 %v9155, %v9999
  %v10021 = vadd.f32 %v9156, %v10004
  %v10022 = vadd.f32 %v9157, %v10009
  %v10023 = vadd.f32 %v9158, %v10014
  %s10024 = scalar_lea.vmem %s5, 1
  %v10025 = vld [vmem:[%s10024] sm:$0x1]
  %v10027 = vlaneseq
  %v10028 = vshrl.u32 %v10027, 7
  %v10029 = vsub.s32 0, %v10028
  %v10030 = vrot.slane %v10025, %v10029
  %v10032 = vadd.f32 %v10017, %v10030
  %v10033 = vadd.f32 %v10018, %v10030
  %v10034 = vadd.f32 %v10019, %v10030
  %v10035 = vadd.f32 %v10020, %v10030
  %v10036 = vadd.f32 %v10021, %v10030
  %v10037 = vadd.f32 %v10022, %v10030
  %v10038 = vadd.f32 %v10023, %v10030
  %v10039 = vadd.f32 %v6555, %v10032
  %v10040 = vadd.f32 %v6556, %v10033
  %v10041 = vadd.f32 %v6557, %v10034
  %v10042 = vadd.f32 %v6558, %v10035
  %v10043 = vadd.f32 %v6559, %v10036
  %v10044 = vadd.f32 %v6560, %v10037
  %v10045 = vadd.f32 %v6561, %v10038
  %s10046 = scalar_lea.vmem %s6, 1
  %v10047 = vld [vmem:[%s10046] sm:$0x1]
  %s10048 = scalar_lea.vmem %s7, 1
  %v10049 = vld [vmem:[%s10048] sm:$0x1]
  %v10050 = vsel %vm77, %v10039, 0.0
  %10051 = vadd.xlane.f32.xlu0 %v10050
  %v10052 = vpop.xlane.xlu0 %10051
  %v10053 = vsel %vm77, %v10040, 0.0
  %10054 = vadd.xlane.f32.xlu0 %v10053
  %v10055 = vpop.xlane.xlu0 %10054
  %v10056 = vsel %vm77, %v10041, 0.0
  %10057 = vadd.xlane.f32.xlu0 %v10056
  %v10058 = vpop.xlane.xlu0 %10057
  %v10059 = vsel %vm77, %v10042, 0.0
  %10060 = vadd.xlane.f32.xlu0 %v10059
  %v10061 = vpop.xlane.xlu0 %10060
  %v10062 = vsel %vm77, %v10043, 0.0
  %10063 = vadd.xlane.f32.xlu0 %v10062
  %v10064 = vpop.xlane.xlu0 %10063
  %v10065 = vsel %vm77, %v10044, 0.0
  %10066 = vadd.xlane.f32.xlu0 %v10065
  %v10067 = vpop.xlane.xlu0 %10066
  %v10068 = vsel %vm77, %v10045, 0.0
  %10069 = vadd.xlane.f32.xlu0 %v10068
  %v10070 = vpop.xlane.xlu0 %10069
  %v10071 = vmul.f32 %v10052, %v3568
  %v10072 = vmul.f32 %v10055, %v3568
  %v10073 = vmul.f32 %v10058, %v3568
  %v10074 = vmul.f32 %v10061, %v3568
  %v10075 = vmul.f32 %v10064, %v3568
  %v10076 = vmul.f32 %v10067, %v3568
  %v10077 = vmul.f32 %v10070, %v3568
  %v10078 = vsub.f32 %v10039, %v10071
  %v10079 = vsub.f32 %v10040, %v10072
  %v10080 = vsub.f32 %v10041, %v10073
  %v10081 = vsub.f32 %v10042, %v10074
  %v10082 = vsub.f32 %v10043, %v10075
  %v10083 = vsub.f32 %v10044, %v10076
  %v10084 = vsub.f32 %v10045, %v10077
  %v10085 = vmul.f32 %v10078, %v10078
  %v10086 = vmul.f32 %v10079, %v10079
  %v10087 = vmul.f32 %v10080, %v10080
  %v10088 = vmul.f32 %v10081, %v10081
  %v10089 = vmul.f32 %v10082, %v10082
  %v10090 = vmul.f32 %v10083, %v10083
  %v10091 = vmul.f32 %v10084, %v10084
  %v10092 = vsel %vm77, %v10085, 0.0
  %10093 = vadd.xlane.f32.xlu0 %v10092
  %v10094 = vpop.xlane.xlu0 %10093
  %v10095 = vsel %vm77, %v10086, 0.0
  %10096 = vadd.xlane.f32.xlu0 %v10095
  %v10097 = vpop.xlane.xlu0 %10096
  %v10098 = vsel %vm77, %v10087, 0.0
  %10099 = vadd.xlane.f32.xlu0 %v10098
  %v10100 = vpop.xlane.xlu0 %10099
  %v10101 = vsel %vm77, %v10088, 0.0
  %10102 = vadd.xlane.f32.xlu0 %v10101
  %v10103 = vpop.xlane.xlu0 %10102
  %v10104 = vsel %vm77, %v10089, 0.0
  %10105 = vadd.xlane.f32.xlu0 %v10104
  %v10106 = vpop.xlane.xlu0 %10105
  %v10107 = vsel %vm77, %v10090, 0.0
  %10108 = vadd.xlane.f32.xlu0 %v10107
  %v10109 = vpop.xlane.xlu0 %10108
  %v10110 = vsel %vm77, %v10091, 0.0
  %10111 = vadd.xlane.f32.xlu0 %v10110
  %v10112 = vpop.xlane.xlu0 %10111
  %v10113 = vmul.f32 %v10094, %v3568
  %v10114 = vmul.f32 %v10097, %v3568
  %v10115 = vmul.f32 %v10100, %v3568
  %v10116 = vmul.f32 %v10103, %v3568
  %v10117 = vmul.f32 %v10106, %v3568
  %v10118 = vmul.f32 %v10109, %v3568
  %v10119 = vmul.f32 %v10112, %v3568
  %v10120 = vadd.f32 %v10113, 1e-05
  %v10121 = vadd.f32 %v10114, 1e-05
  %v10122 = vadd.f32 %v10115, 1e-05
  %v10123 = vadd.f32 %v10116, 1e-05
  %v10124 = vadd.f32 %v10117, 1e-05
  %v10125 = vadd.f32 %v10118, 1e-05
  %v10126 = vadd.f32 %v10119, 1e-05
  %v10127 = vrsqrt.pop %v10120
  %v10128 = vrsqrt.pop %v10121
  %v10129 = vrsqrt.pop %v10122
  %v10130 = vrsqrt.pop %v10123
  %v10131 = vrsqrt.pop %v10124
  %v10132 = vrsqrt.pop %v10125
  %v10133 = vrsqrt.pop %v10126
  %v10134 = vmul.f32 %v10078, %v10127
  %v10135 = vmul.f32 %v10079, %v10128
  %v10136 = vmul.f32 %v10080, %v10129
  %v10137 = vmul.f32 %v10081, %v10130
  %v10138 = vmul.f32 %v10082, %v10131
  %v10139 = vmul.f32 %v10083, %v10132
  %v10140 = vmul.f32 %v10084, %v10133
  %v10142 = vlaneseq
  %v10143 = vshrl.u32 %v10142, 7
  %v10144 = vsub.s32 0, %v10143
  %v10145 = vrot.slane %v10047, %v10144
  %v10147 = vmul.f32 %v10134, %v10145
  %v10148 = vmul.f32 %v10135, %v10145
  %v10149 = vmul.f32 %v10136, %v10145
  %v10150 = vmul.f32 %v10137, %v10145
  %v10151 = vmul.f32 %v10138, %v10145
  %v10152 = vmul.f32 %v10139, %v10145
  %v10153 = vmul.f32 %v10140, %v10145
  %v10155 = vlaneseq
  %v10156 = vshrl.u32 %v10155, 7
  %v10157 = vsub.s32 0, %v10156
  %v10158 = vrot.slane %v10049, %v10157
  %v10160 = vadd.f32 %v10147, %v10158
  %v10161 = vadd.f32 %v10148, %v10158
  %v10162 = vadd.f32 %v10149, %v10158
  %v10163 = vadd.f32 %v10150, %v10158
  %v10164 = vadd.f32 %v10151, %v10158
  %v10165 = vadd.f32 %v10152, %v10158
  %v10166 = vadd.f32 %v10153, %v10158
  %v10167 = vpack.c.bf16 %v10161, %v10160
  %v10168 = vpack.c.bf16 %v10163, %v10162
  %v10169 = vpack.c.bf16 %v10165, %v10164
  %v10170 = vpack.c.bf16 %v10166, %v10166
  %s10171 = scalar_lea.vmem %s8, 512
  %v10172 = vld [vmem:[%s10171] sm:$0xff]
  %v10173 = vld [vmem:[%s10171 + $0x8] sm:$0xff]
  %v10174 = vld [vmem:[%s10171 + $0x10] sm:$0xff]
  %v10175 = vld [vmem:[%s10171 + $0x18] sm:$0xff]
  %v10176 = vld [vmem:[%s10171 + $0x20] sm:$0xff]
  %v10177 = vld [vmem:[%s10171 + $0x28] sm:$0xff]
  %v10178 = vld [vmem:[%s10171 + $0x30] sm:$0xff]
  %v10179 = vld [vmem:[%s10171 + $0x38] sm:$0xff]
  %v10180 = vld [vmem:[%s10171 + $0x40] sm:$0xff]
  %v10181 = vld [vmem:[%s10171 + $0x48] sm:$0xff]
  %v10182 = vld [vmem:[%s10171 + $0x50] sm:$0xff]
  %v10183 = vld [vmem:[%s10171 + $0x58] sm:$0xff]
  %v10184 = vld [vmem:[%s10171 + $0x60] sm:$0xff]
  %v10185 = vld [vmem:[%s10171 + $0x68] sm:$0xff]
  %v10186 = vld [vmem:[%s10171 + $0x70] sm:$0xff]
  %v10187 = vld [vmem:[%s10171 + $0x78] sm:$0xff]
  %v10188 = vld [vmem:[%s10171 + $0x80] sm:$0xff]
  %v10189 = vld [vmem:[%s10171 + $0x88] sm:$0xff]
  %v10190 = vld [vmem:[%s10171 + $0x90] sm:$0xff]
  %v10191 = vld [vmem:[%s10171 + $0x98] sm:$0xff]
  %v10192 = vld [vmem:[%s10171 + $0xa0] sm:$0xff]
  %v10193 = vld [vmem:[%s10171 + $0xa8] sm:$0xff]
  %v10194 = vld [vmem:[%s10171 + $0xb0] sm:$0xff]
  %v10195 = vld [vmem:[%s10171 + $0xb8] sm:$0xff]
  %v10196 = vld [vmem:[%s10171 + $0xc0] sm:$0xff]
  %v10197 = vld [vmem:[%s10171 + $0xc8] sm:$0xff]
  %v10198 = vld [vmem:[%s10171 + $0xd0] sm:$0xff]
  %v10199 = vld [vmem:[%s10171 + $0xd8] sm:$0xff]
  %v10200 = vld [vmem:[%s10171 + $0xe0] sm:$0xff]
  %v10201 = vld [vmem:[%s10171 + $0xe8] sm:$0xff]
  %v10202 = vld [vmem:[%s10171 + $0xf0] sm:$0xff]
  %v10203 = vld [vmem:[%s10171 + $0xf8] sm:$0xff]
  %v10204 = vld [vmem:[%s10171 + $0x100] sm:$0xff]
  %v10205 = vld [vmem:[%s10171 + $0x108] sm:$0xff]
  %v10206 = vld [vmem:[%s10171 + $0x110] sm:$0xff]
  %v10207 = vld [vmem:[%s10171 + $0x118] sm:$0xff]
  %v10208 = vld [vmem:[%s10171 + $0x120] sm:$0xff]
  %v10209 = vld [vmem:[%s10171 + $0x128] sm:$0xff]
  %v10210 = vld [vmem:[%s10171 + $0x130] sm:$0xff]
  %v10211 = vld [vmem:[%s10171 + $0x138] sm:$0xff]
  %v10212 = vld [vmem:[%s10171 + $0x140] sm:$0xff]
  %v10213 = vld [vmem:[%s10171 + $0x148] sm:$0xff]
  %v10214 = vld [vmem:[%s10171 + $0x150] sm:$0xff]
  %v10215 = vld [vmem:[%s10171 + $0x158] sm:$0xff]
  %v10216 = vld [vmem:[%s10171 + $0x160] sm:$0xff]
  %v10217 = vld [vmem:[%s10171 + $0x168] sm:$0xff]
  %v10218 = vld [vmem:[%s10171 + $0x170] sm:$0xff]
  %v10219 = vld [vmem:[%s10171 + $0x178] sm:$0xff]
  %v10220 = vld [vmem:[%s10171 + $0x180] sm:$0xff]
  %v10221 = vld [vmem:[%s10171 + $0x188] sm:$0xff]
  %v10222 = vld [vmem:[%s10171 + $0x190] sm:$0xff]
  %v10223 = vld [vmem:[%s10171 + $0x198] sm:$0xff]
  %v10224 = vld [vmem:[%s10171 + $0x1a0] sm:$0xff]
  %v10225 = vld [vmem:[%s10171 + $0x1a8] sm:$0xff]
  %v10226 = vld [vmem:[%s10171 + $0x1b0] sm:$0xff]
  %v10227 = vld [vmem:[%s10171 + $0x1b8] sm:$0xff]
  %v10228 = vld [vmem:[%s10171 + $0x1c0] sm:$0xff]
  %v10229 = vld [vmem:[%s10171 + $0x1c8] sm:$0xff]
  %v10230 = vld [vmem:[%s10171 + $0x1d0] sm:$0xff]
  %v10231 = vld [vmem:[%s10171 + $0x1d8] sm:$0xff]
  %v10232 = vld [vmem:[%s10171 + $0x1e0] sm:$0xff]
  %v10233 = vld [vmem:[%s10171 + $0x1e8] sm:$0xff]
  %v10234 = vld [vmem:[%s10171 + $0x1f0] sm:$0xff]
  %v10235 = vld [vmem:[%s10171 + $0x1f8] sm:$0xff]
  %s10236 = scalar_lea.vmem %s9, 16
  %v10237 = vld [vmem:[%s10236] sm:$0xff]
  %v10238 = vld [vmem:[%s10236 + $0x8] sm:$0xff]
  %v10241 = vlaneseq
  %v10242 = vshrl.u32 %v10241, 7
  %v10243 = vsub.s32 0, %v10242
  %v10244 = vrot.slane %v10237, %v10243
  %v10245 = vlaneseq
  %v10246 = vshrl.u32 %v10245, 7
  %v10247 = vsub.s32 1, %v10246
  %v10248 = vrot.slane %v10237, %v10247
  %v10249 = vlaneseq
  %v10250 = vshrl.u32 %v10249, 7
  %v10251 = vsub.s32 2, %v10250
  %v10252 = vrot.slane %v10237, %v10251
  %v10253 = vlaneseq
  %v10254 = vshrl.u32 %v10253, 7
  %v10255 = vsub.s32 3, %v10254
  %v10256 = vrot.slane %v10237, %v10255
  %v10257 = vlaneseq
  %v10258 = vshrl.u32 %v10257, 7
  %v10259 = vsub.s32 4, %v10258
  %v10260 = vrot.slane %v10237, %v10259
  %v10261 = vlaneseq
  %v10262 = vshrl.u32 %v10261, 7
  %v10263 = vsub.s32 5, %v10262
  %v10264 = vrot.slane %v10237, %v10263
  %v10265 = vlaneseq
  %v10266 = vshrl.u32 %v10265, 7
  %v10267 = vsub.s32 6, %v10266
  %v10268 = vrot.slane %v10237, %v10267
  %v10269 = vlaneseq
  %v10270 = vshrl.u32 %v10269, 7
  %v10271 = vsub.s32 7, %v10270
  %v10272 = vrot.slane %v10237, %v10271
  %v10273 = vlaneseq
  %v10274 = vshrl.u32 %v10273, 7
  %v10275 = vsub.s32 0, %v10274
  %v10276 = vrot.slane %v10238, %v10275
  %v10277 = vlaneseq
  %v10278 = vshrl.u32 %v10277, 7
  %v10279 = vsub.s32 1, %v10278
  %v10280 = vrot.slane %v10238, %v10279
  %v10281 = vlaneseq
  %v10282 = vshrl.u32 %v10281, 7
  %v10283 = vsub.s32 2, %v10282
  %v10284 = vrot.slane %v10238, %v10283
  %v10285 = vlaneseq
  %v10286 = vshrl.u32 %v10285, 7
  %v10287 = vsub.s32 3, %v10286
  %v10288 = vrot.slane %v10238, %v10287
  %v10289 = vlaneseq
  %v10290 = vshrl.u32 %v10289, 7
  %v10291 = vsub.s32 4, %v10290
  %v10292 = vrot.slane %v10238, %v10291
  %v10293 = vlaneseq
  %v10294 = vshrl.u32 %v10293, 7
  %v10295 = vsub.s32 5, %v10294
  %v10296 = vrot.slane %v10238, %v10295
  %v10297 = vlaneseq
  %v10298 = vshrl.u32 %v10297, 7
  %v10299 = vsub.s32 6, %v10298
  %v10300 = vrot.slane %v10238, %v10299
  %v10301 = vlaneseq
  %v10302 = vshrl.u32 %v10301, 7
  %v10303 = vsub.s32 7, %v10302
  %v10304 = vrot.slane %v10238, %v10303
  %v10385 = vunpack.c.l.b16 %v10172
  %v10386 = vunpack.c.h.b16 %v10172
  %v10387 = vunpack.c.l.b16 %v10173
  %v10388 = vunpack.c.h.b16 %v10173
  %v10389 = vunpack.c.l.b16 %v10174
  %v10390 = vunpack.c.h.b16 %v10174
  %v10391 = vunpack.c.l.b16 %v10175
  %v10392 = vunpack.c.h.b16 %v10175
  %v10393 = vunpack.c.l.b16 %v10176
  %v10394 = vunpack.c.h.b16 %v10176
  %v10395 = vunpack.c.l.b16 %v10177
  %v10396 = vunpack.c.h.b16 %v10177
  %v10397 = vunpack.c.l.b16 %v10178
  %v10398 = vunpack.c.h.b16 %v10178
  %v10399 = vunpack.c.l.b16 %v10179
  %v10400 = vunpack.c.h.b16 %v10179
  %v10401 = vunpack.c.l.b16 %v10180
  %v10402 = vunpack.c.h.b16 %v10180
  %v10403 = vunpack.c.l.b16 %v10181
  %v10404 = vunpack.c.h.b16 %v10181
  %v10405 = vunpack.c.l.b16 %v10182
  %v10406 = vunpack.c.h.b16 %v10182
  %v10407 = vunpack.c.l.b16 %v10183
  %v10408 = vunpack.c.h.b16 %v10183
  %v10409 = vunpack.c.l.b16 %v10184
  %v10410 = vunpack.c.h.b16 %v10184
  %v10411 = vunpack.c.l.b16 %v10185
  %v10412 = vunpack.c.h.b16 %v10185
  %v10413 = vunpack.c.l.b16 %v10186
  %v10414 = vunpack.c.h.b16 %v10186
  %v10415 = vunpack.c.l.b16 %v10187
  %v10416 = vunpack.c.h.b16 %v10187
  %v10417 = vunpack.c.l.b16 %v10188
  %v10418 = vunpack.c.h.b16 %v10188
  %v10419 = vunpack.c.l.b16 %v10189
  %v10420 = vunpack.c.h.b16 %v10189
  %v10421 = vunpack.c.l.b16 %v10190
  %v10422 = vunpack.c.h.b16 %v10190
  %v10423 = vunpack.c.l.b16 %v10191
  %v10424 = vunpack.c.h.b16 %v10191
  %v10425 = vunpack.c.l.b16 %v10192
  %v10426 = vunpack.c.h.b16 %v10192
  %v10427 = vunpack.c.l.b16 %v10193
  %v10428 = vunpack.c.h.b16 %v10193
  %v10429 = vunpack.c.l.b16 %v10194
  %v10430 = vunpack.c.h.b16 %v10194
  %v10431 = vunpack.c.l.b16 %v10195
  %v10432 = vunpack.c.h.b16 %v10195
  %v10433 = vunpack.c.l.b16 %v10196
  %v10434 = vunpack.c.h.b16 %v10196
  %v10435 = vunpack.c.l.b16 %v10197
  %v10436 = vunpack.c.h.b16 %v10197
  %v10437 = vunpack.c.l.b16 %v10198
  %v10438 = vunpack.c.h.b16 %v10198
  %v10439 = vunpack.c.l.b16 %v10199
  %v10440 = vunpack.c.h.b16 %v10199
  %v10441 = vunpack.c.l.b16 %v10200
  %v10442 = vunpack.c.h.b16 %v10200
  %v10443 = vunpack.c.l.b16 %v10201
  %v10444 = vunpack.c.h.b16 %v10201
  %v10445 = vunpack.c.l.b16 %v10202
  %v10446 = vunpack.c.h.b16 %v10202
  %v10447 = vunpack.c.l.b16 %v10203
  %v10448 = vunpack.c.h.b16 %v10203
  %v10449 = vunpack.c.l.b16 %v10204
  %v10450 = vunpack.c.h.b16 %v10204
  %v10451 = vunpack.c.l.b16 %v10205
  %v10452 = vunpack.c.h.b16 %v10205
  %v10453 = vunpack.c.l.b16 %v10206
  %v10454 = vunpack.c.h.b16 %v10206
  %v10455 = vunpack.c.l.b16 %v10207
  %v10456 = vunpack.c.h.b16 %v10207
  %v10457 = vunpack.c.l.b16 %v10208
  %v10458 = vunpack.c.h.b16 %v10208
  %v10459 = vunpack.c.l.b16 %v10209
  %v10460 = vunpack.c.h.b16 %v10209
  %v10461 = vunpack.c.l.b16 %v10210
  %v10462 = vunpack.c.h.b16 %v10210
  %v10463 = vunpack.c.l.b16 %v10211
  %v10464 = vunpack.c.h.b16 %v10211
  %v10465 = vunpack.c.l.b16 %v10212
  %v10466 = vunpack.c.h.b16 %v10212
  %v10467 = vunpack.c.l.b16 %v10213
  %v10468 = vunpack.c.h.b16 %v10213
  %v10469 = vunpack.c.l.b16 %v10214
  %v10470 = vunpack.c.h.b16 %v10214
  %v10471 = vunpack.c.l.b16 %v10215
  %v10472 = vunpack.c.h.b16 %v10215
  %v10473 = vunpack.c.l.b16 %v10216
  %v10474 = vunpack.c.h.b16 %v10216
  %v10475 = vunpack.c.l.b16 %v10217
  %v10476 = vunpack.c.h.b16 %v10217
  %v10477 = vunpack.c.l.b16 %v10218
  %v10478 = vunpack.c.h.b16 %v10218
  %v10479 = vunpack.c.l.b16 %v10219
  %v10480 = vunpack.c.h.b16 %v10219
  %v10481 = vunpack.c.l.b16 %v10220
  %v10482 = vunpack.c.h.b16 %v10220
  %v10483 = vunpack.c.l.b16 %v10221
  %v10484 = vunpack.c.h.b16 %v10221
  %v10485 = vunpack.c.l.b16 %v10222
  %v10486 = vunpack.c.h.b16 %v10222
  %v10487 = vunpack.c.l.b16 %v10223
  %v10488 = vunpack.c.h.b16 %v10223
  %v10489 = vunpack.c.l.b16 %v10224
  %v10490 = vunpack.c.h.b16 %v10224
  %v10491 = vunpack.c.l.b16 %v10225
  %v10492 = vunpack.c.h.b16 %v10225
  %v10493 = vunpack.c.l.b16 %v10226
  %v10494 = vunpack.c.h.b16 %v10226
  %v10495 = vunpack.c.l.b16 %v10227
  %v10496 = vunpack.c.h.b16 %v10227
  %v10497 = vunpack.c.l.b16 %v10228
  %v10498 = vunpack.c.h.b16 %v10228
  %v10499 = vunpack.c.l.b16 %v10229
  %v10500 = vunpack.c.h.b16 %v10229
  %v10501 = vunpack.c.l.b16 %v10230
  %v10502 = vunpack.c.h.b16 %v10230
  %v10503 = vunpack.c.l.b16 %v10231
  %v10504 = vunpack.c.h.b16 %v10231
  %v10505 = vunpack.c.l.b16 %v10232
  %v10506 = vunpack.c.h.b16 %v10232
  %v10507 = vunpack.c.l.b16 %v10233
  %v10508 = vunpack.c.h.b16 %v10233
  %v10509 = vunpack.c.l.b16 %v10234
  %v10510 = vunpack.c.h.b16 %v10234
  %v10511 = vunpack.c.l.b16 %v10235
  %v10512 = vunpack.c.h.b16 %v10235
  %v10513 = vpack.c.b16 %v10401, %v10385
  %v10514 = vpack.c.b16 %v10402, %v10386
  %v10515 = vpack.c.b16 %v10403, %v10387
  %v10516 = vpack.c.b16 %v10404, %v10388
  %v10517 = vpack.c.b16 %v10405, %v10389
  %v10518 = vpack.c.b16 %v10406, %v10390
  %v10519 = vpack.c.b16 %v10407, %v10391
  %v10520 = vpack.c.b16 %v10408, %v10392
  %v10521 = vpack.c.b16 %v10409, %v10393
  %v10522 = vpack.c.b16 %v10410, %v10394
  %v10523 = vpack.c.b16 %v10411, %v10395
  %v10524 = vpack.c.b16 %v10412, %v10396
  %v10525 = vpack.c.b16 %v10413, %v10397
  %v10526 = vpack.c.b16 %v10414, %v10398
  %v10527 = vpack.c.b16 %v10415, %v10399
  %v10528 = vpack.c.b16 %v10416, %v10400
  %v10529 = vpack.c.b16 %v10433, %v10417
  %v10530 = vpack.c.b16 %v10434, %v10418
  %v10531 = vpack.c.b16 %v10435, %v10419
  %v10532 = vpack.c.b16 %v10436, %v10420
  %v10533 = vpack.c.b16 %v10437, %v10421
  %v10534 = vpack.c.b16 %v10438, %v10422
  %v10535 = vpack.c.b16 %v10439, %v10423
  %v10536 = vpack.c.b16 %v10440, %v10424
  %v10537 = vpack.c.b16 %v10441, %v10425
  %v10538 = vpack.c.b16 %v10442, %v10426
  %v10539 = vpack.c.b16 %v10443, %v10427
  %v10540 = vpack.c.b16 %v10444, %v10428
  %v10541 = vpack.c.b16 %v10445, %v10429
  %v10542 = vpack.c.b16 %v10446, %v10430
  %v10543 = vpack.c.b16 %v10447, %v10431
  %v10544 = vpack.c.b16 %v10448, %v10432
  %v10545 = vpack.c.b16 %v10465, %v10449
  %v10546 = vpack.c.b16 %v10466, %v10450
  %v10547 = vpack.c.b16 %v10467, %v10451
  %v10548 = vpack.c.b16 %v10468, %v10452
  %v10549 = vpack.c.b16 %v10469, %v10453
  %v10550 = vpack.c.b16 %v10470, %v10454
  %v10551 = vpack.c.b16 %v10471, %v10455
  %v10552 = vpack.c.b16 %v10472, %v10456
  %v10553 = vpack.c.b16 %v10473, %v10457
  %v10554 = vpack.c.b16 %v10474, %v10458
  %v10555 = vpack.c.b16 %v10475, %v10459
  %v10556 = vpack.c.b16 %v10476, %v10460
  %v10557 = vpack.c.b16 %v10477, %v10461
  %v10558 = vpack.c.b16 %v10478, %v10462
  %v10559 = vpack.c.b16 %v10479, %v10463
  %v10560 = vpack.c.b16 %v10480, %v10464
  %v10561 = vpack.c.b16 %v10497, %v10481
  %v10562 = vpack.c.b16 %v10498, %v10482
  %v10563 = vpack.c.b16 %v10499, %v10483
  %v10564 = vpack.c.b16 %v10500, %v10484
  %v10565 = vpack.c.b16 %v10501, %v10485
  %v10566 = vpack.c.b16 %v10502, %v10486
  %v10567 = vpack.c.b16 %v10503, %v10487
  %v10568 = vpack.c.b16 %v10504, %v10488
  %v10569 = vpack.c.b16 %v10505, %v10489
  %v10570 = vpack.c.b16 %v10506, %v10490
  %v10571 = vpack.c.b16 %v10507, %v10491
  %v10572 = vpack.c.b16 %v10508, %v10492
  %v10573 = vpack.c.b16 %v10509, %v10493
  %v10574 = vpack.c.b16 %v10510, %v10494
  %v10575 = vpack.c.b16 %v10511, %v10495
  %v10576 = vpack.c.b16 %v10512, %v10496
  %v10642 = vsel %vm77, %v10167, 0
  %v10645 = vsel %vm77, %v10168, 0
  %v10648 = vsel %vm77, %v10169, 0
  %v10651 = vsel %vm77, %v10170, 0
  %10653 = vmatprep.subr.bf16.mxu0 0
  %10654 = vmatpush1.bf16.msra.mxu0 0
  %10655 = vmatprep.subr.bf16.mxu0 0
  %10656 = vmatpush1.bf16.msra.mxu0 0
  %10657 = vmatprep.subr.bf16.mxu0 0
  %10658 = vmatpush1.bf16.msra.mxu0 0
  %10659 = vmatprep.subr.bf16.mxu0 0
  %10660 = vmatpush1.bf16.msra.mxu0 0
  %10661 = vmatprep.subr.bf16.mxu0 %v10562
  %10662 = vmatpush1.bf16.msra.mxu0 %v10561
  %10663 = vmatprep.subr.bf16.mxu0 %v10546
  %10664 = vmatpush1.bf16.msra.mxu0 %v10545
  %10665 = vmatprep.subr.bf16.mxu0 %v10530
  %10666 = vmatpush1.bf16.msra.mxu0 %v10529
  %10667 = vmatprep.subr.bf16.mxu0 %v10514
  %10668 = vmatpush1.bf16.msra.mxu0 %v10513
  %10669 = vmatprep.subr.bf16.mxu0 0
  %10670 = vmatpush2.bf16.msra.mxu0 0
  %10671 = vmatprep.subr.bf16.mxu0 0
  %10672 = vmatpush2.bf16.msra.mxu0 0
  %10673 = vmatprep.subr.bf16.mxu0 0
  %10674 = vmatpush2.bf16.msra.mxu0 0
  %10675 = vmatprep.subr.bf16.mxu0 0
  %10676 = vmatpush2.bf16.msra.mxu0 0
  %10677 = vmatprep.subr.bf16.mxu0 0
  %10678 = vmatpush2.bf16.msra.mxu0 0
  %10679 = vmatprep.subr.bf16.mxu0 0
  %10680 = vmatpush2.bf16.msra.mxu0 0
  %10681 = vmatprep.subr.bf16.mxu0 0
  %10682 = vmatpush2.bf16.msra.mxu0 0
  %10683 = vmatprep.subr.bf16.mxu0 0
  %10684 = vmatpush2.bf16.msra.mxu0 0
  %10685 = vmatprep.mubr.bf16.mxu0 0
  %10686 = vmatmul.mubr.bf16.gmra.mxu0 %v10642
  %v10687 = vpop.f32.mrf.mxu0
  %v10688 = vadd.f32 %v10244, %v10687
  %v10689 = vpop.f32.mrf.mxu0
  %v10690 = vadd.f32 %v10248, %v10689
  %v10691 = vpop.f32.mrf.mxu0
  %v10692 = vadd.f32 %v10244, %v10691
  %v10693 = vpop.f32.mrf.mxu0
  %v10694 = vadd.f32 %v10248, %v10693
  %10695 = vmatprep.mubr.bf16.mxu0 0
  %10696 = vmatmul.mubr.bf16.gmra.mxu0 %v10645
  %v10697 = vpop.f32.mrf.mxu0
  %v10698 = vadd.f32 %v10244, %v10697
  %v10699 = vpop.f32.mrf.mxu0
  %v10700 = vadd.f32 %v10248, %v10699
  %v10701 = vpop.f32.mrf.mxu0
  %v10702 = vadd.f32 %v10244, %v10701
  %v10703 = vpop.f32.mrf.mxu0
  %v10704 = vadd.f32 %v10248, %v10703
  %10705 = vmatprep.mubr.bf16.mxu0 0
  %10706 = vmatmul.mubr.bf16.gmra.mxu0 %v10648
  %v10707 = vpop.f32.mrf.mxu0
  %v10708 = vadd.f32 %v10244, %v10707
  %v10709 = vpop.f32.mrf.mxu0
  %v10710 = vadd.f32 %v10248, %v10709
  %v10711 = vpop.f32.mrf.mxu0
  %v10712 = vadd.f32 %v10244, %v10711
  %v10713 = vpop.f32.mrf.mxu0
  %v10714 = vadd.f32 %v10248, %v10713
  %10715 = vmatprep.mubr.bf16.mxu0 0
  %10716 = vmatmul.mubr.bf16.gmra.mxu0 %v10651
  %v10717 = vpop.f32.mrf.mxu0
  %v10718 = vadd.f32 %v10244, %v10717
  %v10719 = vpop.f32.mrf.mxu0
  %v10720 = vadd.f32 %v10248, %v10719
  %v10721 = vpop.f32.mrf.mxu0
  %v10722 = vpop.f32.mrf.mxu0
  %10723 = vdwg.mxu0
  %10724 = vmatprep.subr.bf16.mxu0 0
  %10725 = vmatpush1.bf16.msra.mxu0 0
  %10726 = vmatprep.subr.bf16.mxu0 0
  %10727 = vmatpush1.bf16.msra.mxu0 0
  %10728 = vmatprep.subr.bf16.mxu0 0
  %10729 = vmatpush1.bf16.msra.mxu0 0
  %10730 = vmatprep.subr.bf16.mxu0 0
  %10731 = vmatpush1.bf16.msra.mxu0 0
  %10732 = vmatprep.subr.bf16.mxu0 %v10564
  %10733 = vmatpush1.bf16.msra.mxu0 %v10563
  %10734 = vmatprep.subr.bf16.mxu0 %v10548
  %10735 = vmatpush1.bf16.msra.mxu0 %v10547
  %10736 = vmatprep.subr.bf16.mxu0 %v10532
  %10737 = vmatpush1.bf16.msra.mxu0 %v10531
  %10738 = vmatprep.subr.bf16.mxu0 %v10516
  %10739 = vmatpush1.bf16.msra.mxu0 %v10515
  %10740 = vmatprep.subr.bf16.mxu0 0
  %10741 = vmatpush2.bf16.msra.mxu0 0
  %10742 = vmatprep.subr.bf16.mxu0 0
  %10743 = vmatpush2.bf16.msra.mxu0 0
  %10744 = vmatprep.subr.bf16.mxu0 0
  %10745 = vmatpush2.bf16.msra.mxu0 0
  %10746 = vmatprep.subr.bf16.mxu0 0
  %10747 = vmatpush2.bf16.msra.mxu0 0
  %10748 = vmatprep.subr.bf16.mxu0 0
  %10749 = vmatpush2.bf16.msra.mxu0 0
  %10750 = vmatprep.subr.bf16.mxu0 0
  %10751 = vmatpush2.bf16.msra.mxu0 0
  %10752 = vmatprep.subr.bf16.mxu0 0
  %10753 = vmatpush2.bf16.msra.mxu0 0
  %10754 = vmatprep.subr.bf16.mxu0 0
  %10755 = vmatpush2.bf16.msra.mxu0 0
  %10756 = vmatprep.mubr.bf16.mxu0 0
  %10757 = vmatmul.mubr.bf16.gmra.mxu0 %v10642
  %v10758 = vpop.f32.mrf.mxu0
  %v10759 = vadd.f32 %v10252, %v10758
  %v10760 = vpop.f32.mrf.mxu0
  %v10761 = vadd.f32 %v10256, %v10760
  %v10762 = vpop.f32.mrf.mxu0
  %v10763 = vadd.f32 %v10252, %v10762
  %v10764 = vpop.f32.mrf.mxu0
  %v10765 = vadd.f32 %v10256, %v10764
  %10766 = vmatprep.mubr.bf16.mxu0 0
  %10767 = vmatmul.mubr.bf16.gmra.mxu0 %v10645
  %v10768 = vpop.f32.mrf.mxu0
  %v10769 = vadd.f32 %v10252, %v10768
  %v10770 = vpop.f32.mrf.mxu0
  %v10771 = vadd.f32 %v10256, %v10770
  %v10772 = vpop.f32.mrf.mxu0
  %v10773 = vadd.f32 %v10252, %v10772
  %v10774 = vpop.f32.mrf.mxu0
  %v10775 = vadd.f32 %v10256, %v10774
  %10776 = vmatprep.mubr.bf16.mxu0 0
  %10777 = vmatmul.mubr.bf16.gmra.mxu0 %v10648
  %v10778 = vpop.f32.mrf.mxu0
  %v10779 = vadd.f32 %v10252, %v10778
  %v10780 = vpop.f32.mrf.mxu0
  %v10781 = vadd.f32 %v10256, %v10780
  %v10782 = vpop.f32.mrf.mxu0
  %v10783 = vadd.f32 %v10252, %v10782
  %v10784 = vpop.f32.mrf.mxu0
  %v10785 = vadd.f32 %v10256, %v10784
  %10786 = vmatprep.mubr.bf16.mxu0 0
  %10787 = vmatmul.mubr.bf16.gmra.mxu0 %v10651
  %v10788 = vpop.f32.mrf.mxu0
  %v10789 = vadd.f32 %v10252, %v10788
  %v10790 = vpop.f32.mrf.mxu0
  %v10791 = vadd.f32 %v10256, %v10790
  %v10792 = vpop.f32.mrf.mxu0
  %v10793 = vpop.f32.mrf.mxu0
  %10794 = vdwg.mxu0
  %10795 = vmatprep.subr.bf16.mxu0 0
  %10796 = vmatpush1.bf16.msra.mxu0 0
  %10797 = vmatprep.subr.bf16.mxu0 0
  %10798 = vmatpush1.bf16.msra.mxu0 0
  %10799 = vmatprep.subr.bf16.mxu0 0
  %10800 = vmatpush1.bf16.msra.mxu0 0
  %10801 = vmatprep.subr.bf16.mxu0 0
  %10802 = vmatpush1.bf16.msra.mxu0 0
  %10803 = vmatprep.subr.bf16.mxu0 %v10566
  %10804 = vmatpush1.bf16.msra.mxu0 %v10565
  %10805 = vmatprep.subr.bf16.mxu0 %v10550
  %10806 = vmatpush1.bf16.msra.mxu0 %v10549
  %10807 = vmatprep.subr.bf16.mxu0 %v10534
  %10808 = vmatpush1.bf16.msra.mxu0 %v10533
  %10809 = vmatprep.subr.bf16.mxu0 %v10518
  %10810 = vmatpush1.bf16.msra.mxu0 %v10517
  %10811 = vmatprep.subr.bf16.mxu0 0
  %10812 = vmatpush2.bf16.msra.mxu0 0
  %10813 = vmatprep.subr.bf16.mxu0 0
  %10814 = vmatpush2.bf16.msra.mxu0 0
  %10815 = vmatprep.subr.bf16.mxu0 0
  %10816 = vmatpush2.bf16.msra.mxu0 0
  %10817 = vmatprep.subr.bf16.mxu0 0
  %10818 = vmatpush2.bf16.msra.mxu0 0
  %10819 = vmatprep.subr.bf16.mxu0 0
  %10820 = vmatpush2.bf16.msra.mxu0 0
  %10821 = vmatprep.subr.bf16.mxu0 0
  %10822 = vmatpush2.bf16.msra.mxu0 0
  %10823 = vmatprep.subr.bf16.mxu0 0
  %10824 = vmatpush2.bf16.msra.mxu0 0
  %10825 = vmatprep.subr.bf16.mxu0 0
  %10826 = vmatpush2.bf16.msra.mxu0 0
  %10827 = vmatprep.mubr.bf16.mxu0 0
  %10828 = vmatmul.mubr.bf16.gmra.mxu0 %v10642
  %v10829 = vpop.f32.mrf.mxu0
  %v10830 = vadd.f32 %v10260, %v10829
  %v10831 = vpop.f32.mrf.mxu0
  %v10832 = vadd.f32 %v10264, %v10831
  %v10833 = vpop.f32.mrf.mxu0
  %v10834 = vadd.f32 %v10260, %v10833
  %v10835 = vpop.f32.mrf.mxu0
  %v10836 = vadd.f32 %v10264, %v10835
  %10837 = vmatprep.mubr.bf16.mxu0 0
  %10838 = vmatmul.mubr.bf16.gmra.mxu0 %v10645
  %v10839 = vpop.f32.mrf.mxu0
  %v10840 = vadd.f32 %v10260, %v10839
  %v10841 = vpop.f32.mrf.mxu0
  %v10842 = vadd.f32 %v10264, %v10841
  %v10843 = vpop.f32.mrf.mxu0
  %v10844 = vadd.f32 %v10260, %v10843
  %v10845 = vpop.f32.mrf.mxu0
  %v10846 = vadd.f32 %v10264, %v10845
  %10847 = vmatprep.mubr.bf16.mxu0 0
  %10848 = vmatmul.mubr.bf16.gmra.mxu0 %v10648
  %v10849 = vpop.f32.mrf.mxu0
  %v10850 = vadd.f32 %v10260, %v10849
  %v10851 = vpop.f32.mrf.mxu0
  %v10852 = vadd.f32 %v10264, %v10851
  %v10853 = vpop.f32.mrf.mxu0
  %v10854 = vadd.f32 %v10260, %v10853
  %v10855 = vpop.f32.mrf.mxu0
  %v10856 = vadd.f32 %v10264, %v10855
  %10857 = vmatprep.mubr.bf16.mxu0 0
  %10858 = vmatmul.mubr.bf16.gmra.mxu0 %v10651
  %v10859 = vpop.f32.mrf.mxu0
  %v10860 = vadd.f32 %v10260, %v10859
  %v10861 = vpop.f32.mrf.mxu0
  %v10862 = vadd.f32 %v10264, %v10861
  %v10863 = vpop.f32.mrf.mxu0
  %v10864 = vpop.f32.mrf.mxu0
  %10865 = vdwg.mxu0
  %10866 = vmatprep.subr.bf16.mxu0 0
  %10867 = vmatpush1.bf16.msra.mxu0 0
  %10868 = vmatprep.subr.bf16.mxu0 0
  %10869 = vmatpush1.bf16.msra.mxu0 0
  %10870 = vmatprep.subr.bf16.mxu0 0
  %10871 = vmatpush1.bf16.msra.mxu0 0
  %10872 = vmatprep.subr.bf16.mxu0 0
  %10873 = vmatpush1.bf16.msra.mxu0 0
  %10874 = vmatprep.subr.bf16.mxu0 %v10568
  %10875 = vmatpush1.bf16.msra.mxu0 %v10567
  %10876 = vmatprep.subr.bf16.mxu0 %v10552
  %10877 = vmatpush1.bf16.msra.mxu0 %v10551
  %10878 = vmatprep.subr.bf16.mxu0 %v10536
  %10879 = vmatpush1.bf16.msra.mxu0 %v10535
  %10880 = vmatprep.subr.bf16.mxu0 %v10520
  %10881 = vmatpush1.bf16.msra.mxu0 %v10519
  %10882 = vmatprep.subr.bf16.mxu0 0
  %10883 = vmatpush2.bf16.msra.mxu0 0
  %10884 = vmatprep.subr.bf16.mxu0 0
  %10885 = vmatpush2.bf16.msra.mxu0 0
  %10886 = vmatprep.subr.bf16.mxu0 0
  %10887 = vmatpush2.bf16.msra.mxu0 0
  %10888 = vmatprep.subr.bf16.mxu0 0
  %10889 = vmatpush2.bf16.msra.mxu0 0
  %10890 = vmatprep.subr.bf16.mxu0 0
  %10891 = vmatpush2.bf16.msra.mxu0 0
  %10892 = vmatprep.subr.bf16.mxu0 0
  %10893 = vmatpush2.bf16.msra.mxu0 0
  %10894 = vmatprep.subr.bf16.mxu0 0
  %10895 = vmatpush2.bf16.msra.mxu0 0
  %10896 = vmatprep.subr.bf16.mxu0 0
  %10897 = vmatpush2.bf16.msra.mxu0 0
  %10898 = vmatprep.mubr.bf16.mxu0 0
  %10899 = vmatmul.mubr.bf16.gmra.mxu0 %v10642
  %v10900 = vpop.f32.mrf.mxu0
  %v10901 = vadd.f32 %v10268, %v10900
  %v10902 = vpop.f32.mrf.mxu0
  %v10903 = vadd.f32 %v10272, %v10902
  %v10904 = vpop.f32.mrf.mxu0
  %v10905 = vadd.f32 %v10268, %v10904
  %v10906 = vpop.f32.mrf.mxu0
  %v10907 = vadd.f32 %v10272, %v10906
  %10908 = vmatprep.mubr.bf16.mxu0 0
  %10909 = vmatmul.mubr.bf16.gmra.mxu0 %v10645
  %v10910 = vpop.f32.mrf.mxu0
  %v10911 = vadd.f32 %v10268, %v10910
  %v10912 = vpop.f32.mrf.mxu0
  %v10913 = vadd.f32 %v10272, %v10912
  %v10914 = vpop.f32.mrf.mxu0
  %v10915 = vadd.f32 %v10268, %v10914
  %v10916 = vpop.f32.mrf.mxu0
  %v10917 = vadd.f32 %v10272, %v10916
  %10918 = vmatprep.mubr.bf16.mxu0 0
  %10919 = vmatmul.mubr.bf16.gmra.mxu0 %v10648
  %v10920 = vpop.f32.mrf.mxu0
  %v10921 = vadd.f32 %v10268, %v10920
  %v10922 = vpop.f32.mrf.mxu0
  %v10923 = vadd.f32 %v10272, %v10922
  %v10924 = vpop.f32.mrf.mxu0
  %v10925 = vadd.f32 %v10268, %v10924
  %v10926 = vpop.f32.mrf.mxu0
  %v10927 = vadd.f32 %v10272, %v10926
  %10928 = vmatprep.mubr.bf16.mxu0 0
  %10929 = vmatmul.mubr.bf16.gmra.mxu0 %v10651
  %v10930 = vpop.f32.mrf.mxu0
  %v10931 = vadd.f32 %v10268, %v10930
  %v10932 = vpop.f32.mrf.mxu0
  %v10933 = vadd.f32 %v10272, %v10932
  %v10934 = vpop.f32.mrf.mxu0
  %v10935 = vpop.f32.mrf.mxu0
  %10936 = vdwg.mxu0
  %10937 = vmatprep.subr.bf16.mxu0 0
  %10938 = vmatpush1.bf16.msra.mxu0 0
  %10939 = vmatprep.subr.bf16.mxu0 0
  %10940 = vmatpush1.bf16.msra.mxu0 0
  %10941 = vmatprep.subr.bf16.mxu0 0
  %10942 = vmatpush1.bf16.msra.mxu0 0
  %10943 = vmatprep.subr.bf16.mxu0 0
  %10944 = vmatpush1.bf16.msra.mxu0 0
  %10945 = vmatprep.subr.bf16.mxu0 %v10570
  %10946 = vmatpush1.bf16.msra.mxu0 %v10569
  %10947 = vmatprep.subr.bf16.mxu0 %v10554
  %10948 = vmatpush1.bf16.msra.mxu0 %v10553
  %10949 = vmatprep.subr.bf16.mxu0 %v10538
  %10950 = vmatpush1.bf16.msra.mxu0 %v10537
  %10951 = vmatprep.subr.bf16.mxu0 %v10522
  %10952 = vmatpush1.bf16.msra.mxu0 %v10521
  %10953 = vmatprep.subr.bf16.mxu0 0
  %10954 = vmatpush2.bf16.msra.mxu0 0
  %10955 = vmatprep.subr.bf16.mxu0 0
  %10956 = vmatpush2.bf16.msra.mxu0 0
  %10957 = vmatprep.subr.bf16.mxu0 0
  %10958 = vmatpush2.bf16.msra.mxu0 0
  %10959 = vmatprep.subr.bf16.mxu0 0
  %10960 = vmatpush2.bf16.msra.mxu0 0
  %10961 = vmatprep.subr.bf16.mxu0 0
  %10962 = vmatpush2.bf16.msra.mxu0 0
  %10963 = vmatprep.subr.bf16.mxu0 0
  %10964 = vmatpush2.bf16.msra.mxu0 0
  %10965 = vmatprep.subr.bf16.mxu0 0
  %10966 = vmatpush2.bf16.msra.mxu0 0
  %10967 = vmatprep.subr.bf16.mxu0 0
  %10968 = vmatpush2.bf16.msra.mxu0 0
  %10969 = vmatprep.mubr.bf16.mxu0 0
  %10970 = vmatmul.mubr.bf16.gmra.mxu0 %v10642
  %v10971 = vpop.f32.mrf.mxu0
  %v10972 = vadd.f32 %v10276, %v10971
  %v10973 = vpop.f32.mrf.mxu0
  %v10974 = vadd.f32 %v10280, %v10973
  %v10975 = vpop.f32.mrf.mxu0
  %v10976 = vadd.f32 %v10276, %v10975
  %v10977 = vpop.f32.mrf.mxu0
  %v10978 = vadd.f32 %v10280, %v10977
  %10979 = vmatprep.mubr.bf16.mxu0 0
  %10980 = vmatmul.mubr.bf16.gmra.mxu0 %v10645
  %v10981 = vpop.f32.mrf.mxu0
  %v10982 = vadd.f32 %v10276, %v10981
  %v10983 = vpop.f32.mrf.mxu0
  %v10984 = vadd.f32 %v10280, %v10983
  %v10985 = vpop.f32.mrf.mxu0
  %v10986 = vadd.f32 %v10276, %v10985
  %v10987 = vpop.f32.mrf.mxu0
  %v10988 = vadd.f32 %v10280, %v10987
  %10989 = vmatprep.mubr.bf16.mxu0 0
  %10990 = vmatmul.mubr.bf16.gmra.mxu0 %v10648
  %v10991 = vpop.f32.mrf.mxu0
  %v10992 = vadd.f32 %v10276, %v10991
  %v10993 = vpop.f32.mrf.mxu0
  %v10994 = vadd.f32 %v10280, %v10993
  %v10995 = vpop.f32.mrf.mxu0
  %v10996 = vadd.f32 %v10276, %v10995
  %v10997 = vpop.f32.mrf.mxu0
  %v10998 = vadd.f32 %v10280, %v10997
  %10999 = vmatprep.mubr.bf16.mxu0 0
  %11000 = vmatmul.mubr.bf16.gmra.mxu0 %v10651
  %v11001 = vpop.f32.mrf.mxu0
  %v11002 = vadd.f32 %v10276, %v11001
  %v11003 = vpop.f32.mrf.mxu0
  %v11004 = vadd.f32 %v10280, %v11003
  %v11005 = vpop.f32.mrf.mxu0
  %v11006 = vpop.f32.mrf.mxu0
  %11007 = vdwg.mxu0
  %11008 = vmatprep.subr.bf16.mxu0 0
  %11009 = vmatpush1.bf16.msra.mxu0 0
  %11010 = vmatprep.subr.bf16.mxu0 0
  %11011 = vmatpush1.bf16.msra.mxu0 0
  %11012 = vmatprep.subr.bf16.mxu0 0
  %11013 = vmatpush1.bf16.msra.mxu0 0
  %11014 = vmatprep.subr.bf16.mxu0 0
  %11015 = vmatpush1.bf16.msra.mxu0 0
  %11016 = vmatprep.subr.bf16.mxu0 %v10572
  %11017 = vmatpush1.bf16.msra.mxu0 %v10571
  %11018 = vmatprep.subr.bf16.mxu0 %v10556
  %11019 = vmatpush1.bf16.msra.mxu0 %v10555
  %11020 = vmatprep.subr.bf16.mxu0 %v10540
  %11021 = vmatpush1.bf16.msra.mxu0 %v10539
  %11022 = vmatprep.subr.bf16.mxu0 %v10524
  %11023 = vmatpush1.bf16.msra.mxu0 %v10523
  %11024 = vmatprep.subr.bf16.mxu0 0
  %11025 = vmatpush2.bf16.msra.mxu0 0
  %11026 = vmatprep.subr.bf16.mxu0 0
  %11027 = vmatpush2.bf16.msra.mxu0 0
  %11028 = vmatprep.subr.bf16.mxu0 0
  %11029 = vmatpush2.bf16.msra.mxu0 0
  %11030 = vmatprep.subr.bf16.mxu0 0
  %11031 = vmatpush2.bf16.msra.mxu0 0
  %11032 = vmatprep.subr.bf16.mxu0 0
  %11033 = vmatpush2.bf16.msra.mxu0 0
  %11034 = vmatprep.subr.bf16.mxu0 0
  %11035 = vmatpush2.bf16.msra.mxu0 0
  %11036 = vmatprep.subr.bf16.mxu0 0
  %11037 = vmatpush2.bf16.msra.mxu0 0
  %11038 = vmatprep.subr.bf16.mxu0 0
  %11039 = vmatpush2.bf16.msra.mxu0 0
  %11040 = vmatprep.mubr.bf16.mxu0 0
  %11041 = vmatmul.mubr.bf16.gmra.mxu0 %v10642
  %v11042 = vpop.f32.mrf.mxu0
  %v11043 = vadd.f32 %v10284, %v11042
  %v11044 = vpop.f32.mrf.mxu0
  %v11045 = vadd.f32 %v10288, %v11044
  %v11046 = vpop.f32.mrf.mxu0
  %v11047 = vadd.f32 %v10284, %v11046
  %v11048 = vpop.f32.mrf.mxu0
  %v11049 = vadd.f32 %v10288, %v11048
  %11050 = vmatprep.mubr.bf16.mxu0 0
  %11051 = vmatmul.mubr.bf16.gmra.mxu0 %v10645
  %v11052 = vpop.f32.mrf.mxu0
  %v11053 = vadd.f32 %v10284, %v11052
  %v11054 = vpop.f32.mrf.mxu0
  %v11055 = vadd.f32 %v10288, %v11054
  %v11056 = vpop.f32.mrf.mxu0
  %v11057 = vadd.f32 %v10284, %v11056
  %v11058 = vpop.f32.mrf.mxu0
  %v11059 = vadd.f32 %v10288, %v11058
  %11060 = vmatprep.mubr.bf16.mxu0 0
  %11061 = vmatmul.mubr.bf16.gmra.mxu0 %v10648
  %v11062 = vpop.f32.mrf.mxu0
  %v11063 = vadd.f32 %v10284, %v11062
  %v11064 = vpop.f32.mrf.mxu0
  %v11065 = vadd.f32 %v10288, %v11064
  %v11066 = vpop.f32.mrf.mxu0
  %v11067 = vadd.f32 %v10284, %v11066
  %v11068 = vpop.f32.mrf.mxu0
  %v11069 = vadd.f32 %v10288, %v11068
  %11070 = vmatprep.mubr.bf16.mxu0 0
  %11071 = vmatmul.mubr.bf16.gmra.mxu0 %v10651
  %v11072 = vpop.f32.mrf.mxu0
  %v11073 = vadd.f32 %v10284, %v11072
  %v11074 = vpop.f32.mrf.mxu0
  %v11075 = vadd.f32 %v10288, %v11074
  %v11076 = vpop.f32.mrf.mxu0
  %v11077 = vpop.f32.mrf.mxu0
  %11078 = vdwg.mxu0
  %11079 = vmatprep.subr.bf16.mxu0 0
  %11080 = vmatpush1.bf16.msra.mxu0 0
  %11081 = vmatprep.subr.bf16.mxu0 0
  %11082 = vmatpush1.bf16.msra.mxu0 0
  %11083 = vmatprep.subr.bf16.mxu0 0
  %11084 = vmatpush1.bf16.msra.mxu0 0
  %11085 = vmatprep.subr.bf16.mxu0 0
  %11086 = vmatpush1.bf16.msra.mxu0 0
  %11087 = vmatprep.subr.bf16.mxu0 %v10574
  %11088 = vmatpush1.bf16.msra.mxu0 %v10573
  %11089 = vmatprep.subr.bf16.mxu0 %v10558
  %11090 = vmatpush1.bf16.msra.mxu0 %v10557
  %11091 = vmatprep.subr.bf16.mxu0 %v10542
  %11092 = vmatpush1.bf16.msra.mxu0 %v10541
  %11093 = vmatprep.subr.bf16.mxu0 %v10526
  %11094 = vmatpush1.bf16.msra.mxu0 %v10525
  %11095 = vmatprep.subr.bf16.mxu0 0
  %11096 = vmatpush2.bf16.msra.mxu0 0
  %11097 = vmatprep.subr.bf16.mxu0 0
  %11098 = vmatpush2.bf16.msra.mxu0 0
  %11099 = vmatprep.subr.bf16.mxu0 0
  %11100 = vmatpush2.bf16.msra.mxu0 0
  %11101 = vmatprep.subr.bf16.mxu0 0
  %11102 = vmatpush2.bf16.msra.mxu0 0
  %11103 = vmatprep.subr.bf16.mxu0 0
  %11104 = vmatpush2.bf16.msra.mxu0 0
  %11105 = vmatprep.subr.bf16.mxu0 0
  %11106 = vmatpush2.bf16.msra.mxu0 0
  %11107 = vmatprep.subr.bf16.mxu0 0
  %11108 = vmatpush2.bf16.msra.mxu0 0
  %11109 = vmatprep.subr.bf16.mxu0 0
  %11110 = vmatpush2.bf16.msra.mxu0 0
  %11111 = vmatprep.mubr.bf16.mxu0 0
  %11112 = vmatmul.mubr.bf16.gmra.mxu0 %v10642
  %v11113 = vpop.f32.mrf.mxu0
  %v11114 = vadd.f32 %v10292, %v11113
  %v11115 = vpop.f32.mrf.mxu0
  %v11116 = vadd.f32 %v10296, %v11115
  %v11117 = vpop.f32.mrf.mxu0
  %v11118 = vadd.f32 %v10292, %v11117
  %v11119 = vpop.f32.mrf.mxu0
  %v11120 = vadd.f32 %v10296, %v11119
  %11121 = vmatprep.mubr.bf16.mxu0 0
  %11122 = vmatmul.mubr.bf16.gmra.mxu0 %v10645
  %v11123 = vpop.f32.mrf.mxu0
  %v11124 = vadd.f32 %v10292, %v11123
  %v11125 = vpop.f32.mrf.mxu0
  %v11126 = vadd.f32 %v10296, %v11125
  %v11127 = vpop.f32.mrf.mxu0
  %v11128 = vadd.f32 %v10292, %v11127
  %v11129 = vpop.f32.mrf.mxu0
  %v11130 = vadd.f32 %v10296, %v11129
  %11131 = vmatprep.mubr.bf16.mxu0 0
  %11132 = vmatmul.mubr.bf16.gmra.mxu0 %v10648
  %v11133 = vpop.f32.mrf.mxu0
  %v11134 = vadd.f32 %v10292, %v11133
  %v11135 = vpop.f32.mrf.mxu0
  %v11136 = vadd.f32 %v10296, %v11135
  %v11137 = vpop.f32.mrf.mxu0
  %v11138 = vadd.f32 %v10292, %v11137
  %v11139 = vpop.f32.mrf.mxu0
  %v11140 = vadd.f32 %v10296, %v11139
  %11141 = vmatprep.mubr.bf16.mxu0 0
  %11142 = vmatmul.mubr.bf16.gmra.mxu0 %v10651
  %v11143 = vpop.f32.mrf.mxu0
  %v11144 = vadd.f32 %v10292, %v11143
  %v11145 = vpop.f32.mrf.mxu0
  %v11146 = vadd.f32 %v10296, %v11145
  %v11147 = vpop.f32.mrf.mxu0
  %v11148 = vpop.f32.mrf.mxu0
  %11149 = vdwg.mxu0
  %11150 = vmatprep.subr.bf16.mxu0 0
  %11151 = vmatpush1.bf16.msra.mxu0 0
  %11152 = vmatprep.subr.bf16.mxu0 0
  %11153 = vmatpush1.bf16.msra.mxu0 0
  %11154 = vmatprep.subr.bf16.mxu0 0
  %11155 = vmatpush1.bf16.msra.mxu0 0
  %11156 = vmatprep.subr.bf16.mxu0 0
  %11157 = vmatpush1.bf16.msra.mxu0 0
  %11158 = vmatprep.subr.bf16.mxu0 %v10576
  %11159 = vmatpush1.bf16.msra.mxu0 %v10575
  %11160 = vmatprep.subr.bf16.mxu0 %v10560
  %11161 = vmatpush1.bf16.msra.mxu0 %v10559
  %11162 = vmatprep.subr.bf16.mxu0 %v10544
  %11163 = vmatpush1.bf16.msra.mxu0 %v10543
  %11164 = vmatprep.subr.bf16.mxu0 %v10528
  %11165 = vmatpush1.bf16.msra.mxu0 %v10527
  %11166 = vmatprep.subr.bf16.mxu0 0
  %11167 = vmatpush2.bf16.msra.mxu0 0
  %11168 = vmatprep.subr.bf16.mxu0 0
  %11169 = vmatpush2.bf16.msra.mxu0 0
  %11170 = vmatprep.subr.bf16.mxu0 0
  %11171 = vmatpush2.bf16.msra.mxu0 0
  %11172 = vmatprep.subr.bf16.mxu0 0
  %11173 = vmatpush2.bf16.msra.mxu0 0
  %11174 = vmatprep.subr.bf16.mxu0 0
  %11175 = vmatpush2.bf16.msra.mxu0 0
  %11176 = vmatprep.subr.bf16.mxu0 0
  %11177 = vmatpush2.bf16.msra.mxu0 0
  %11178 = vmatprep.subr.bf16.mxu0 0
  %11179 = vmatpush2.bf16.msra.mxu0 0
  %11180 = vmatprep.subr.bf16.mxu0 0
  %11181 = vmatpush2.bf16.msra.mxu0 0
  %11182 = vmatprep.mubr.bf16.mxu0 0
  %11183 = vmatmul.mubr.bf16.gmra.mxu0 %v10642
  %v11184 = vpop.f32.mrf.mxu0
  %v11185 = vadd.f32 %v10300, %v11184
  %v11186 = vpop.f32.mrf.mxu0
  %v11187 = vadd.f32 %v10304, %v11186
  %v11188 = vpop.f32.mrf.mxu0
  %v11189 = vadd.f32 %v10300, %v11188
  %v11190 = vpop.f32.mrf.mxu0
  %v11191 = vadd.f32 %v10304, %v11190
  %11192 = vmatprep.mubr.bf16.mxu0 0
  %11193 = vmatmul.mubr.bf16.gmra.mxu0 %v10645
  %v11194 = vpop.f32.mrf.mxu0
  %v11195 = vadd.f32 %v10300, %v11194
  %v11196 = vpop.f32.mrf.mxu0
  %v11197 = vadd.f32 %v10304, %v11196
  %v11198 = vpop.f32.mrf.mxu0
  %v11199 = vadd.f32 %v10300, %v11198
  %v11200 = vpop.f32.mrf.mxu0
  %v11201 = vadd.f32 %v10304, %v11200
  %11202 = vmatprep.mubr.bf16.mxu0 0
  %11203 = vmatmul.mubr.bf16.gmra.mxu0 %v10648
  %v11204 = vpop.f32.mrf.mxu0
  %v11205 = vadd.f32 %v10300, %v11204
  %v11206 = vpop.f32.mrf.mxu0
  %v11207 = vadd.f32 %v10304, %v11206
  %v11208 = vpop.f32.mrf.mxu0
  %v11209 = vadd.f32 %v10300, %v11208
  %v11210 = vpop.f32.mrf.mxu0
  %v11211 = vadd.f32 %v10304, %v11210
  %11212 = vmatprep.mubr.bf16.mxu0 0
  %11213 = vmatmul.mubr.bf16.gmra.mxu0 %v10651
  %v11214 = vpop.f32.mrf.mxu0
  %v11215 = vadd.f32 %v10300, %v11214
  %v11216 = vpop.f32.mrf.mxu0
  %v11217 = vadd.f32 %v10304, %v11216
  %v11218 = vpop.f32.mrf.mxu0
  %v11219 = vpop.f32.mrf.mxu0
  %11220 = vdwg.mxu0
  %v11221 = vmax.f32 %v10688, 0.0
  %v11222 = vmax.f32 %v10690, 0.0
  %v11223 = vmax.f32 %v10759, 0.0
  %v11224 = vmax.f32 %v10761, 0.0
  %v11225 = vmax.f32 %v10830, 0.0
  %v11226 = vmax.f32 %v10832, 0.0
  %v11227 = vmax.f32 %v10901, 0.0
  %v11228 = vmax.f32 %v10903, 0.0
  %v11229 = vmax.f32 %v10972, 0.0
  %v11230 = vmax.f32 %v10974, 0.0
  %v11231 = vmax.f32 %v11043, 0.0
  %v11232 = vmax.f32 %v11045, 0.0
  %v11233 = vmax.f32 %v11114, 0.0
  %v11234 = vmax.f32 %v11116, 0.0
  %v11235 = vmax.f32 %v11185, 0.0
  %v11236 = vmax.f32 %v11187, 0.0
  %v11237 = vmax.f32 %v10692, 0.0
  %v11238 = vmax.f32 %v10694, 0.0
  %v11239 = vmax.f32 %v10763, 0.0
  %v11240 = vmax.f32 %v10765, 0.0
  %v11241 = vmax.f32 %v10834, 0.0
  %v11242 = vmax.f32 %v10836, 0.0
  %v11243 = vmax.f32 %v10905, 0.0
  %v11244 = vmax.f32 %v10907, 0.0
  %v11245 = vmax.f32 %v10976, 0.0
  %v11246 = vmax.f32 %v10978, 0.0
  %v11247 = vmax.f32 %v11047, 0.0
  %v11248 = vmax.f32 %v11049, 0.0
  %v11249 = vmax.f32 %v11118, 0.0
  %v11250 = vmax.f32 %v11120, 0.0
  %v11251 = vmax.f32 %v11189, 0.0
  %v11252 = vmax.f32 %v11191, 0.0
  %v11253 = vmax.f32 %v10698, 0.0
  %v11254 = vmax.f32 %v10700, 0.0
  %v11255 = vmax.f32 %v10769, 0.0
  %v11256 = vmax.f32 %v10771, 0.0
  %v11257 = vmax.f32 %v10840, 0.0
  %v11258 = vmax.f32 %v10842, 0.0
  %v11259 = vmax.f32 %v10911, 0.0
  %v11260 = vmax.f32 %v10913, 0.0
  %v11261 = vmax.f32 %v10982, 0.0
  %v11262 = vmax.f32 %v10984, 0.0
  %v11263 = vmax.f32 %v11053, 0.0
  %v11264 = vmax.f32 %v11055, 0.0
  %v11265 = vmax.f32 %v11124, 0.0
  %v11266 = vmax.f32 %v11126, 0.0
  %v11267 = vmax.f32 %v11195, 0.0
  %v11268 = vmax.f32 %v11197, 0.0
  %v11269 = vmax.f32 %v10702, 0.0
  %v11270 = vmax.f32 %v10704, 0.0
  %v11271 = vmax.f32 %v10773, 0.0
  %v11272 = vmax.f32 %v10775, 0.0
  %v11273 = vmax.f32 %v10844, 0.0
  %v11274 = vmax.f32 %v10846, 0.0
  %v11275 = vmax.f32 %v10915, 0.0
  %v11276 = vmax.f32 %v10917, 0.0
  %v11277 = vmax.f32 %v10986, 0.0
  %v11278 = vmax.f32 %v10988, 0.0
  %v11279 = vmax.f32 %v11057, 0.0
  %v11280 = vmax.f32 %v11059, 0.0
  %v11281 = vmax.f32 %v11128, 0.0
  %v11282 = vmax.f32 %v11130, 0.0
  %v11283 = vmax.f32 %v11199, 0.0
  %v11284 = vmax.f32 %v11201, 0.0
  %v11285 = vmax.f32 %v10708, 0.0
  %v11286 = vmax.f32 %v10710, 0.0
  %v11287 = vmax.f32 %v10779, 0.0
  %v11288 = vmax.f32 %v10781, 0.0
  %v11289 = vmax.f32 %v10850, 0.0
  %v11290 = vmax.f32 %v10852, 0.0
  %v11291 = vmax.f32 %v10921, 0.0
  %v11292 = vmax.f32 %v10923, 0.0
  %v11293 = vmax.f32 %v10992, 0.0
  %v11294 = vmax.f32 %v10994, 0.0
  %v11295 = vmax.f32 %v11063, 0.0
  %v11296 = vmax.f32 %v11065, 0.0
  %v11297 = vmax.f32 %v11134, 0.0
  %v11298 = vmax.f32 %v11136, 0.0
  %v11299 = vmax.f32 %v11205, 0.0
  %v11300 = vmax.f32 %v11207, 0.0
  %v11301 = vmax.f32 %v10712, 0.0
  %v11302 = vmax.f32 %v10714, 0.0
  %v11303 = vmax.f32 %v10783, 0.0
  %v11304 = vmax.f32 %v10785, 0.0
  %v11305 = vmax.f32 %v10854, 0.0
  %v11306 = vmax.f32 %v10856, 0.0
  %v11307 = vmax.f32 %v10925, 0.0
  %v11308 = vmax.f32 %v10927, 0.0
  %v11309 = vmax.f32 %v10996, 0.0
  %v11310 = vmax.f32 %v10998, 0.0
  %v11311 = vmax.f32 %v11067, 0.0
  %v11312 = vmax.f32 %v11069, 0.0
  %v11313 = vmax.f32 %v11138, 0.0
  %v11314 = vmax.f32 %v11140, 0.0
  %v11315 = vmax.f32 %v11209, 0.0
  %v11316 = vmax.f32 %v11211, 0.0
  %v11317 = vmax.f32 %v10718, 0.0
  %v11318 = vmax.f32 %v10720, 0.0
  %v11319 = vmax.f32 %v10789, 0.0
  %v11320 = vmax.f32 %v10791, 0.0
  %v11321 = vmax.f32 %v10860, 0.0
  %v11322 = vmax.f32 %v10862, 0.0
  %v11323 = vmax.f32 %v10931, 0.0
  %v11324 = vmax.f32 %v10933, 0.0
  %v11325 = vmax.f32 %v11002, 0.0
  %v11326 = vmax.f32 %v11004, 0.0
  %v11327 = vmax.f32 %v11073, 0.0
  %v11328 = vmax.f32 %v11075, 0.0
  %v11329 = vmax.f32 %v11144, 0.0
  %v11330 = vmax.f32 %v11146, 0.0
  %v11331 = vmax.f32 %v11215, 0.0
  %v11332 = vmax.f32 %v11217, 0.0
  %v11333 = vpack.c.bf16 %v11237, %v11221
  %v11334 = vpack.c.bf16 %v11238, %v11222
  %v11335 = vpack.c.bf16 %v11239, %v11223
  %v11336 = vpack.c.bf16 %v11240, %v11224
  %v11337 = vpack.c.bf16 %v11241, %v11225
  %v11338 = vpack.c.bf16 %v11242, %v11226
  %v11339 = vpack.c.bf16 %v11243, %v11227
  %v11340 = vpack.c.bf16 %v11244, %v11228
  %v11341 = vpack.c.bf16 %v11245, %v11229
  %v11342 = vpack.c.bf16 %v11246, %v11230
  %v11343 = vpack.c.bf16 %v11247, %v11231
  %v11344 = vpack.c.bf16 %v11248, %v11232
  %v11345 = vpack.c.bf16 %v11249, %v11233
  %v11346 = vpack.c.bf16 %v11250, %v11234
  %v11347 = vpack.c.bf16 %v11251, %v11235
  %v11348 = vpack.c.bf16 %v11252, %v11236
  %v11349 = vpack.c.bf16 %v11269, %v11253
  %v11350 = vpack.c.bf16 %v11270, %v11254
  %v11351 = vpack.c.bf16 %v11271, %v11255
  %v11352 = vpack.c.bf16 %v11272, %v11256
  %v11353 = vpack.c.bf16 %v11273, %v11257
  %v11354 = vpack.c.bf16 %v11274, %v11258
  %v11355 = vpack.c.bf16 %v11275, %v11259
  %v11356 = vpack.c.bf16 %v11276, %v11260
  %v11357 = vpack.c.bf16 %v11277, %v11261
  %v11358 = vpack.c.bf16 %v11278, %v11262
  %v11359 = vpack.c.bf16 %v11279, %v11263
  %v11360 = vpack.c.bf16 %v11280, %v11264
  %v11361 = vpack.c.bf16 %v11281, %v11265
  %v11362 = vpack.c.bf16 %v11282, %v11266
  %v11363 = vpack.c.bf16 %v11283, %v11267
  %v11364 = vpack.c.bf16 %v11284, %v11268
  %v11365 = vpack.c.bf16 %v11301, %v11285
  %v11366 = vpack.c.bf16 %v11302, %v11286
  %v11367 = vpack.c.bf16 %v11303, %v11287
  %v11368 = vpack.c.bf16 %v11304, %v11288
  %v11369 = vpack.c.bf16 %v11305, %v11289
  %v11370 = vpack.c.bf16 %v11306, %v11290
  %v11371 = vpack.c.bf16 %v11307, %v11291
  %v11372 = vpack.c.bf16 %v11308, %v11292
  %v11373 = vpack.c.bf16 %v11309, %v11293
  %v11374 = vpack.c.bf16 %v11310, %v11294
  %v11375 = vpack.c.bf16 %v11311, %v11295
  %v11376 = vpack.c.bf16 %v11312, %v11296
  %v11377 = vpack.c.bf16 %v11313, %v11297
  %v11378 = vpack.c.bf16 %v11314, %v11298
  %v11379 = vpack.c.bf16 %v11315, %v11299
  %v11380 = vpack.c.bf16 %v11316, %v11300
  %v11381 = vpack.c.bf16 %v11317, %v11317
  %v11382 = vpack.c.bf16 %v11318, %v11318
  %v11383 = vpack.c.bf16 %v11319, %v11319
  %v11384 = vpack.c.bf16 %v11320, %v11320
  %v11385 = vpack.c.bf16 %v11321, %v11321
  %v11386 = vpack.c.bf16 %v11322, %v11322
  %v11387 = vpack.c.bf16 %v11323, %v11323
  %v11388 = vpack.c.bf16 %v11324, %v11324
  %v11389 = vpack.c.bf16 %v11325, %v11325
  %v11390 = vpack.c.bf16 %v11326, %v11326
  %v11391 = vpack.c.bf16 %v11327, %v11327
  %v11392 = vpack.c.bf16 %v11328, %v11328
  %v11393 = vpack.c.bf16 %v11329, %v11329
  %v11394 = vpack.c.bf16 %v11330, %v11330
  %v11395 = vpack.c.bf16 %v11331, %v11331
  %v11396 = vpack.c.bf16 %v11332, %v11332
  %s11397 = scalar_lea.vmem %s10, 1024
  %v11398 = vld [vmem:[%s11397] sm:$0xf]
  %v11399 = vld [vmem:[%s11397 + $0x4] sm:$0xf]
  %v11400 = vld [vmem:[%s11397 + $0x8] sm:$0xf]
  %v11401 = vld [vmem:[%s11397 + $0xc] sm:$0xf]
  %v11402 = vld [vmem:[%s11397 + $0x10] sm:$0xf]
  %v11403 = vld [vmem:[%s11397 + $0x14] sm:$0xf]
  %v11404 = vld [vmem:[%s11397 + $0x18] sm:$0xf]
  %v11405 = vld [vmem:[%s11397 + $0x1c] sm:$0xf]
  %v11406 = vld [vmem:[%s11397 + $0x20] sm:$0xf]
  %v11407 = vld [vmem:[%s11397 + $0x24] sm:$0xf]
  %v11408 = vld [vmem:[%s11397 + $0x28] sm:$0xf]
  %v11409 = vld [vmem:[%s11397 + $0x2c] sm:$0xf]
  %v11410 = vld [vmem:[%s11397 + $0x30] sm:$0xf]
  %v11411 = vld [vmem:[%s11397 + $0x34] sm:$0xf]
  %v11412 = vld [vmem:[%s11397 + $0x38] sm:$0xf]
  %v11413 = vld [vmem:[%s11397 + $0x3c] sm:$0xf]
  %v11414 = vld [vmem:[%s11397 + $0x40] sm:$0xf]
  %v11415 = vld [vmem:[%s11397 + $0x44] sm:$0xf]
  %v11416 = vld [vmem:[%s11397 + $0x48] sm:$0xf]
  %v11417 = vld [vmem:[%s11397 + $0x4c] sm:$0xf]
  %v11418 = vld [vmem:[%s11397 + $0x50] sm:$0xf]
  %v11419 = vld [vmem:[%s11397 + $0x54] sm:$0xf]
  %v11420 = vld [vmem:[%s11397 + $0x58] sm:$0xf]
  %v11421 = vld [vmem:[%s11397 + $0x5c] sm:$0xf]
  %v11422 = vld [vmem:[%s11397 + $0x60] sm:$0xf]
  %v11423 = vld [vmem:[%s11397 + $0x64] sm:$0xf]
  %v11424 = vld [vmem:[%s11397 + $0x68] sm:$0xf]
  %v11425 = vld [vmem:[%s11397 + $0x6c] sm:$0xf]
  %v11426 = vld [vmem:[%s11397 + $0x70] sm:$0xf]
  %v11427 = vld [vmem:[%s11397 + $0x74] sm:$0xf]
  %v11428 = vld [vmem:[%s11397 + $0x78] sm:$0xf]
  %v11429 = vld [vmem:[%s11397 + $0x7c] sm:$0xf]
  %v11430 = vld [vmem:[%s11397 + $0x80] sm:$0xf]
  %v11431 = vld [vmem:[%s11397 + $0x84] sm:$0xf]
  %v11432 = vld [vmem:[%s11397 + $0x88] sm:$0xf]
  %v11433 = vld [vmem:[%s11397 + $0x8c] sm:$0xf]
  %v11434 = vld [vmem:[%s11397 + $0x90] sm:$0xf]
  %v11435 = vld [vmem:[%s11397 + $0x94] sm:$0xf]
  %v11436 = vld [vmem:[%s11397 + $0x98] sm:$0xf]
  %v11437 = vld [vmem:[%s11397 + $0x9c] sm:$0xf]
  %v11438 = vld [vmem:[%s11397 + $0xa0] sm:$0xf]
  %v11439 = vld [vmem:[%s11397 + $0xa4] sm:$0xf]
  %v11440 = vld [vmem:[%s11397 + $0xa8] sm:$0xf]
  %v11441 = vld [vmem:[%s11397 + $0xac] sm:$0xf]
  %v11442 = vld [vmem:[%s11397 + $0xb0] sm:$0xf]
  %v11443 = vld [vmem:[%s11397 + $0xb4] sm:$0xf]
  %v11444 = vld [vmem:[%s11397 + $0xb8] sm:$0xf]
  %v11445 = vld [vmem:[%s11397 + $0xbc] sm:$0xf]
  %v11446 = vld [vmem:[%s11397 + $0xc0] sm:$0xf]
  %v11447 = vld [vmem:[%s11397 + $0xc4] sm:$0xf]
  %v11448 = vld [vmem:[%s11397 + $0xc8] sm:$0xf]
  %v11449 = vld [vmem:[%s11397 + $0xcc] sm:$0xf]
  %v11450 = vld [vmem:[%s11397 + $0xd0] sm:$0xf]
  %v11451 = vld [vmem:[%s11397 + $0xd4] sm:$0xf]
  %v11452 = vld [vmem:[%s11397 + $0xd8] sm:$0xf]
  %v11453 = vld [vmem:[%s11397 + $0xdc] sm:$0xf]
  %v11454 = vld [vmem:[%s11397 + $0xe0] sm:$0xf]
  %v11455 = vld [vmem:[%s11397 + $0xe4] sm:$0xf]
  %v11456 = vld [vmem:[%s11397 + $0xe8] sm:$0xf]
  %v11457 = vld [vmem:[%s11397 + $0xec] sm:$0xf]
  %v11458 = vld [vmem:[%s11397 + $0xf0] sm:$0xf]
  %v11459 = vld [vmem:[%s11397 + $0xf4] sm:$0xf]
  %v11460 = vld [vmem:[%s11397 + $0xf8] sm:$0xf]
  %v11461 = vld [vmem:[%s11397 + $0xfc] sm:$0xf]
  %v11462 = vld [vmem:[%s11397 + $0x100] sm:$0xf]
  %v11463 = vld [vmem:[%s11397 + $0x104] sm:$0xf]
  %v11464 = vld [vmem:[%s11397 + $0x108] sm:$0xf]
  %v11465 = vld [vmem:[%s11397 + $0x10c] sm:$0xf]
  %v11466 = vld [vmem:[%s11397 + $0x110] sm:$0xf]
  %v11467 = vld [vmem:[%s11397 + $0x114] sm:$0xf]
  %v11468 = vld [vmem:[%s11397 + $0x118] sm:$0xf]
  %v11469 = vld [vmem:[%s11397 + $0x11c] sm:$0xf]
  %v11470 = vld [vmem:[%s11397 + $0x120] sm:$0xf]
  %v11471 = vld [vmem:[%s11397 + $0x124] sm:$0xf]
  %v11472 = vld [vmem:[%s11397 + $0x128] sm:$0xf]
  %v11473 = vld [vmem:[%s11397 + $0x12c] sm:$0xf]
  %v11474 = vld [vmem:[%s11397 + $0x130] sm:$0xf]
  %v11475 = vld [vmem:[%s11397 + $0x134] sm:$0xf]
  %v11476 = vld [vmem:[%s11397 + $0x138] sm:$0xf]
  %v11477 = vld [vmem:[%s11397 + $0x13c] sm:$0xf]
  %v11478 = vld [vmem:[%s11397 + $0x140] sm:$0xf]
  %v11479 = vld [vmem:[%s11397 + $0x144] sm:$0xf]
  %v11480 = vld [vmem:[%s11397 + $0x148] sm:$0xf]
  %v11481 = vld [vmem:[%s11397 + $0x14c] sm:$0xf]
  %v11482 = vld [vmem:[%s11397 + $0x150] sm:$0xf]
  %v11483 = vld [vmem:[%s11397 + $0x154] sm:$0xf]
  %v11484 = vld [vmem:[%s11397 + $0x158] sm:$0xf]
  %v11485 = vld [vmem:[%s11397 + $0x15c] sm:$0xf]
  %v11486 = vld [vmem:[%s11397 + $0x160] sm:$0xf]
  %v11487 = vld [vmem:[%s11397 + $0x164] sm:$0xf]
  %v11488 = vld [vmem:[%s11397 + $0x168] sm:$0xf]
  %v11489 = vld [vmem:[%s11397 + $0x16c] sm:$0xf]
  %v11490 = vld [vmem:[%s11397 + $0x170] sm:$0xf]
  %v11491 = vld [vmem:[%s11397 + $0x174] sm:$0xf]
  %v11492 = vld [vmem:[%s11397 + $0x178] sm:$0xf]
  %v11493 = vld [vmem:[%s11397 + $0x17c] sm:$0xf]
  %v11494 = vld [vmem:[%s11397 + $0x180] sm:$0xf]
  %v11495 = vld [vmem:[%s11397 + $0x184] sm:$0xf]
  %v11496 = vld [vmem:[%s11397 + $0x188] sm:$0xf]
  %v11497 = vld [vmem:[%s11397 + $0x18c] sm:$0xf]
  %v11498 = vld [vmem:[%s11397 + $0x190] sm:$0xf]
  %v11499 = vld [vmem:[%s11397 + $0x194] sm:$0xf]
  %v11500 = vld [vmem:[%s11397 + $0x198] sm:$0xf]
  %v11501 = vld [vmem:[%s11397 + $0x19c] sm:$0xf]
  %v11502 = vld [vmem:[%s11397 + $0x1a0] sm:$0xf]
  %v11503 = vld [vmem:[%s11397 + $0x1a4] sm:$0xf]
  %v11504 = vld [vmem:[%s11397 + $0x1a8] sm:$0xf]
  %v11505 = vld [vmem:[%s11397 + $0x1ac] sm:$0xf]
  %v11506 = vld [vmem:[%s11397 + $0x1b0] sm:$0xf]
  %v11507 = vld [vmem:[%s11397 + $0x1b4] sm:$0xf]
  %v11508 = vld [vmem:[%s11397 + $0x1b8] sm:$0xf]
  %v11509 = vld [vmem:[%s11397 + $0x1bc] sm:$0xf]
  %v11510 = vld [vmem:[%s11397 + $0x1c0] sm:$0xf]
  %v11511 = vld [vmem:[%s11397 + $0x1c4] sm:$0xf]
  %v11512 = vld [vmem:[%s11397 + $0x1c8] sm:$0xf]
  %v11513 = vld [vmem:[%s11397 + $0x1cc] sm:$0xf]
  %v11514 = vld [vmem:[%s11397 + $0x1d0] sm:$0xf]
  %v11515 = vld [vmem:[%s11397 + $0x1d4] sm:$0xf]
  %v11516 = vld [vmem:[%s11397 + $0x1d8] sm:$0xf]
  %v11517 = vld [vmem:[%s11397 + $0x1dc] sm:$0xf]
  %v11518 = vld [vmem:[%s11397 + $0x1e0] sm:$0xf]
  %v11519 = vld [vmem:[%s11397 + $0x1e4] sm:$0xf]
  %v11520 = vld [vmem:[%s11397 + $0x1e8] sm:$0xf]
  %v11521 = vld [vmem:[%s11397 + $0x1ec] sm:$0xf]
  %v11522 = vld [vmem:[%s11397 + $0x1f0] sm:$0xf]
  %v11523 = vld [vmem:[%s11397 + $0x1f4] sm:$0xf]
  %v11524 = vld [vmem:[%s11397 + $0x1f8] sm:$0xf]
  %v11525 = vld [vmem:[%s11397 + $0x1fc] sm:$0xf]
  %v11526 = vld [vmem:[%s11397 + $0x200] sm:$0xf]
  %v11527 = vld [vmem:[%s11397 + $0x204] sm:$0xf]
  %v11528 = vld [vmem:[%s11397 + $0x208] sm:$0xf]
  %v11529 = vld [vmem:[%s11397 + $0x20c] sm:$0xf]
  %v11530 = vld [vmem:[%s11397 + $0x210] sm:$0xf]
  %v11531 = vld [vmem:[%s11397 + $0x214] sm:$0xf]
  %v11532 = vld [vmem:[%s11397 + $0x218] sm:$0xf]
  %v11533 = vld [vmem:[%s11397 + $0x21c] sm:$0xf]
  %v11534 = vld [vmem:[%s11397 + $0x220] sm:$0xf]
  %v11535 = vld [vmem:[%s11397 + $0x224] sm:$0xf]
  %v11536 = vld [vmem:[%s11397 + $0x228] sm:$0xf]
  %v11537 = vld [vmem:[%s11397 + $0x22c] sm:$0xf]
  %v11538 = vld [vmem:[%s11397 + $0x230] sm:$0xf]
  %v11539 = vld [vmem:[%s11397 + $0x234] sm:$0xf]
  %v11540 = vld [vmem:[%s11397 + $0x238] sm:$0xf]
  %v11541 = vld [vmem:[%s11397 + $0x23c] sm:$0xf]
  %v11542 = vld [vmem:[%s11397 + $0x240] sm:$0xf]
  %v11543 = vld [vmem:[%s11397 + $0x244] sm:$0xf]
  %v11544 = vld [vmem:[%s11397 + $0x248] sm:$0xf]
  %v11545 = vld [vmem:[%s11397 + $0x24c] sm:$0xf]
  %v11546 = vld [vmem:[%s11397 + $0x250] sm:$0xf]
  %v11547 = vld [vmem:[%s11397 + $0x254] sm:$0xf]
  %v11548 = vld [vmem:[%s11397 + $0x258] sm:$0xf]
  %v11549 = vld [vmem:[%s11397 + $0x25c] sm:$0xf]
  %v11550 = vld [vmem:[%s11397 + $0x260] sm:$0xf]
  %v11551 = vld [vmem:[%s11397 + $0x264] sm:$0xf]
  %v11552 = vld [vmem:[%s11397 + $0x268] sm:$0xf]
  %v11553 = vld [vmem:[%s11397 + $0x26c] sm:$0xf]
  %v11554 = vld [vmem:[%s11397 + $0x270] sm:$0xf]
  %v11555 = vld [vmem:[%s11397 + $0x274] sm:$0xf]
  %v11556 = vld [vmem:[%s11397 + $0x278] sm:$0xf]
  %v11557 = vld [vmem:[%s11397 + $0x27c] sm:$0xf]
  %v11558 = vld [vmem:[%s11397 + $0x280] sm:$0xf]
  %v11559 = vld [vmem:[%s11397 + $0x284] sm:$0xf]
  %v11560 = vld [vmem:[%s11397 + $0x288] sm:$0xf]
  %v11561 = vld [vmem:[%s11397 + $0x28c] sm:$0xf]
  %v11562 = vld [vmem:[%s11397 + $0x290] sm:$0xf]
  %v11563 = vld [vmem:[%s11397 + $0x294] sm:$0xf]
  %v11564 = vld [vmem:[%s11397 + $0x298] sm:$0xf]
  %v11565 = vld [vmem:[%s11397 + $0x29c] sm:$0xf]
  %v11566 = vld [vmem:[%s11397 + $0x2a0] sm:$0xf]
  %v11567 = vld [vmem:[%s11397 + $0x2a4] sm:$0xf]
  %v11568 = vld [vmem:[%s11397 + $0x2a8] sm:$0xf]
  %v11569 = vld [vmem:[%s11397 + $0x2ac] sm:$0xf]
  %v11570 = vld [vmem:[%s11397 + $0x2b0] sm:$0xf]
  %v11571 = vld [vmem:[%s11397 + $0x2b4] sm:$0xf]
  %v11572 = vld [vmem:[%s11397 + $0x2b8] sm:$0xf]
  %v11573 = vld [vmem:[%s11397 + $0x2bc] sm:$0xf]
  %v11574 = vld [vmem:[%s11397 + $0x2c0] sm:$0xf]
  %v11575 = vld [vmem:[%s11397 + $0x2c4] sm:$0xf]
  %v11576 = vld [vmem:[%s11397 + $0x2c8] sm:$0xf]
  %v11577 = vld [vmem:[%s11397 + $0x2cc] sm:$0xf]
  %v11578 = vld [vmem:[%s11397 + $0x2d0] sm:$0xf]
  %v11579 = vld [vmem:[%s11397 + $0x2d4] sm:$0xf]
  %v11580 = vld [vmem:[%s11397 + $0x2d8] sm:$0xf]
  %v11581 = vld [vmem:[%s11397 + $0x2dc] sm:$0xf]
  %v11582 = vld [vmem:[%s11397 + $0x2e0] sm:$0xf]
  %v11583 = vld [vmem:[%s11397 + $0x2e4] sm:$0xf]
  %v11584 = vld [vmem:[%s11397 + $0x2e8] sm:$0xf]
  %v11585 = vld [vmem:[%s11397 + $0x2ec] sm:$0xf]
  %v11586 = vld [vmem:[%s11397 + $0x2f0] sm:$0xf]
  %v11587 = vld [vmem:[%s11397 + $0x2f4] sm:$0xf]
  %v11588 = vld [vmem:[%s11397 + $0x2f8] sm:$0xf]
  %v11589 = vld [vmem:[%s11397 + $0x2fc] sm:$0xf]
  %v11590 = vld [vmem:[%s11397 + $0x300] sm:$0xf]
  %v11591 = vld [vmem:[%s11397 + $0x304] sm:$0xf]
  %v11592 = vld [vmem:[%s11397 + $0x308] sm:$0xf]
  %v11593 = vld [vmem:[%s11397 + $0x30c] sm:$0xf]
  %v11594 = vld [vmem:[%s11397 + $0x310] sm:$0xf]
  %v11595 = vld [vmem:[%s11397 + $0x314] sm:$0xf]
  %v11596 = vld [vmem:[%s11397 + $0x318] sm:$0xf]
  %v11597 = vld [vmem:[%s11397 + $0x31c] sm:$0xf]
  %v11598 = vld [vmem:[%s11397 + $0x320] sm:$0xf]
  %v11599 = vld [vmem:[%s11397 + $0x324] sm:$0xf]
  %v11600 = vld [vmem:[%s11397 + $0x328] sm:$0xf]
  %v11601 = vld [vmem:[%s11397 + $0x32c] sm:$0xf]
  %v11602 = vld [vmem:[%s11397 + $0x330] sm:$0xf]
  %v11603 = vld [vmem:[%s11397 + $0x334] sm:$0xf]
  %v11604 = vld [vmem:[%s11397 + $0x338] sm:$0xf]
  %v11605 = vld [vmem:[%s11397 + $0x33c] sm:$0xf]
  %v11606 = vld [vmem:[%s11397 + $0x340] sm:$0xf]
  %v11607 = vld [vmem:[%s11397 + $0x344] sm:$0xf]
  %v11608 = vld [vmem:[%s11397 + $0x348] sm:$0xf]
  %v11609 = vld [vmem:[%s11397 + $0x34c] sm:$0xf]
  %v11610 = vld [vmem:[%s11397 + $0x350] sm:$0xf]
  %v11611 = vld [vmem:[%s11397 + $0x354] sm:$0xf]
  %v11612 = vld [vmem:[%s11397 + $0x358] sm:$0xf]
  %v11613 = vld [vmem:[%s11397 + $0x35c] sm:$0xf]
  %v11614 = vld [vmem:[%s11397 + $0x360] sm:$0xf]
  %v11615 = vld [vmem:[%s11397 + $0x364] sm:$0xf]
  %v11616 = vld [vmem:[%s11397 + $0x368] sm:$0xf]
  %v11617 = vld [vmem:[%s11397 + $0x36c] sm:$0xf]
  %v11618 = vld [vmem:[%s11397 + $0x370] sm:$0xf]
  %v11619 = vld [vmem:[%s11397 + $0x374] sm:$0xf]
  %v11620 = vld [vmem:[%s11397 + $0x378] sm:$0xf]
  %v11621 = vld [vmem:[%s11397 + $0x37c] sm:$0xf]
  %v11622 = vld [vmem:[%s11397 + $0x380] sm:$0xf]
  %v11623 = vld [vmem:[%s11397 + $0x384] sm:$0xf]
  %v11624 = vld [vmem:[%s11397 + $0x388] sm:$0xf]
  %v11625 = vld [vmem:[%s11397 + $0x38c] sm:$0xf]
  %v11626 = vld [vmem:[%s11397 + $0x390] sm:$0xf]
  %v11627 = vld [vmem:[%s11397 + $0x394] sm:$0xf]
  %v11628 = vld [vmem:[%s11397 + $0x398] sm:$0xf]
  %v11629 = vld [vmem:[%s11397 + $0x39c] sm:$0xf]
  %v11630 = vld [vmem:[%s11397 + $0x3a0] sm:$0xf]
  %v11631 = vld [vmem:[%s11397 + $0x3a4] sm:$0xf]
  %v11632 = vld [vmem:[%s11397 + $0x3a8] sm:$0xf]
  %v11633 = vld [vmem:[%s11397 + $0x3ac] sm:$0xf]
  %v11634 = vld [vmem:[%s11397 + $0x3b0] sm:$0xf]
  %v11635 = vld [vmem:[%s11397 + $0x3b4] sm:$0xf]
  %v11636 = vld [vmem:[%s11397 + $0x3b8] sm:$0xf]
  %v11637 = vld [vmem:[%s11397 + $0x3bc] sm:$0xf]
  %v11638 = vld [vmem:[%s11397 + $0x3c0] sm:$0xf]
  %v11639 = vld [vmem:[%s11397 + $0x3c4] sm:$0xf]
  %v11640 = vld [vmem:[%s11397 + $0x3c8] sm:$0xf]
  %v11641 = vld [vmem:[%s11397 + $0x3cc] sm:$0xf]
  %v11642 = vld [vmem:[%s11397 + $0x3d0] sm:$0xf]
  %v11643 = vld [vmem:[%s11397 + $0x3d4] sm:$0xf]
  %v11644 = vld [vmem:[%s11397 + $0x3d8] sm:$0xf]
  %v11645 = vld [vmem:[%s11397 + $0x3dc] sm:$0xf]
  %v11646 = vld [vmem:[%s11397 + $0x3e0] sm:$0xf]
  %v11647 = vld [vmem:[%s11397 + $0x3e4] sm:$0xf]
  %v11648 = vld [vmem:[%s11397 + $0x3e8] sm:$0xf]
  %v11649 = vld [vmem:[%s11397 + $0x3ec] sm:$0xf]
  %v11650 = vld [vmem:[%s11397 + $0x3f0] sm:$0xf]
  %v11651 = vld [vmem:[%s11397 + $0x3f4] sm:$0xf]
  %v11652 = vld [vmem:[%s11397 + $0x3f8] sm:$0xf]
  %v11653 = vld [vmem:[%s11397 + $0x3fc] sm:$0xf]
  %s11654 = scalar_lea.vmem %s11, 1
  %v11655 = vld [vmem:[%s11654] sm:$0x1]
  %v11657 = vlaneseq
  %v11658 = vshrl.u32 %v11657, 7
  %v11659 = vsub.s32 0, %v11658
  %v11660 = vrot.slane %v11655, %v11659
  %v11918 = vunpack.c.l.b16 %v11398
  %v11919 = vunpack.c.l.b16 %v11399
  %v11920 = vunpack.c.l.b16 %v11400
  %v11921 = vunpack.c.l.b16 %v11401
  %v11922 = vunpack.c.l.b16 %v11402
  %v11923 = vunpack.c.l.b16 %v11403
  %v11924 = vunpack.c.l.b16 %v11404
  %v11925 = vunpack.c.l.b16 %v11405
  %v11926 = vunpack.c.l.b16 %v11406
  %v11927 = vunpack.c.l.b16 %v11407
  %v11928 = vunpack.c.l.b16 %v11408
  %v11929 = vunpack.c.l.b16 %v11409
  %v11930 = vunpack.c.l.b16 %v11410
  %v11931 = vunpack.c.l.b16 %v11411
  %v11932 = vunpack.c.l.b16 %v11412
  %v11933 = vunpack.c.l.b16 %v11413
  %v11934 = vunpack.c.l.b16 %v11414
  %v11935 = vunpack.c.l.b16 %v11415
  %v11936 = vunpack.c.l.b16 %v11416
  %v11937 = vunpack.c.l.b16 %v11417
  %v11938 = vunpack.c.l.b16 %v11418
  %v11939 = vunpack.c.l.b16 %v11419
  %v11940 = vunpack.c.l.b16 %v11420
  %v11941 = vunpack.c.l.b16 %v11421
  %v11942 = vunpack.c.l.b16 %v11422
  %v11943 = vunpack.c.l.b16 %v11423
  %v11944 = vunpack.c.l.b16 %v11424
  %v11945 = vunpack.c.l.b16 %v11425
  %v11946 = vunpack.c.l.b16 %v11426
  %v11947 = vunpack.c.l.b16 %v11427
  %v11948 = vunpack.c.l.b16 %v11428
  %v11949 = vunpack.c.l.b16 %v11429
  %v11950 = vunpack.c.l.b16 %v11430
  %v11951 = vunpack.c.l.b16 %v11431
  %v11952 = vunpack.c.l.b16 %v11432
  %v11953 = vunpack.c.l.b16 %v11433
  %v11954 = vunpack.c.l.b16 %v11434
  %v11955 = vunpack.c.l.b16 %v11435
  %v11956 = vunpack.c.l.b16 %v11436
  %v11957 = vunpack.c.l.b16 %v11437
  %v11958 = vunpack.c.l.b16 %v11438
  %v11959 = vunpack.c.l.b16 %v11439
  %v11960 = vunpack.c.l.b16 %v11440
  %v11961 = vunpack.c.l.b16 %v11441
  %v11962 = vunpack.c.l.b16 %v11442
  %v11963 = vunpack.c.l.b16 %v11443
  %v11964 = vunpack.c.l.b16 %v11444
  %v11965 = vunpack.c.l.b16 %v11445
  %v11966 = vunpack.c.l.b16 %v11446
  %v11967 = vunpack.c.l.b16 %v11447
  %v11968 = vunpack.c.l.b16 %v11448
  %v11969 = vunpack.c.l.b16 %v11449
  %v11970 = vunpack.c.l.b16 %v11450
  %v11971 = vunpack.c.l.b16 %v11451
  %v11972 = vunpack.c.l.b16 %v11452
  %v11973 = vunpack.c.l.b16 %v11453
  %v11974 = vunpack.c.l.b16 %v11454
  %v11975 = vunpack.c.l.b16 %v11455
  %v11976 = vunpack.c.l.b16 %v11456
  %v11977 = vunpack.c.l.b16 %v11457
  %v11978 = vunpack.c.l.b16 %v11458
  %v11979 = vunpack.c.l.b16 %v11459
  %v11980 = vunpack.c.l.b16 %v11460
  %v11981 = vunpack.c.l.b16 %v11461
  %v11982 = vunpack.c.l.b16 %v11462
  %v11983 = vunpack.c.l.b16 %v11463
  %v11984 = vunpack.c.l.b16 %v11464
  %v11985 = vunpack.c.l.b16 %v11465
  %v11986 = vunpack.c.l.b16 %v11466
  %v11987 = vunpack.c.l.b16 %v11467
  %v11988 = vunpack.c.l.b16 %v11468
  %v11989 = vunpack.c.l.b16 %v11469
  %v11990 = vunpack.c.l.b16 %v11470
  %v11991 = vunpack.c.l.b16 %v11471
  %v11992 = vunpack.c.l.b16 %v11472
  %v11993 = vunpack.c.l.b16 %v11473
  %v11994 = vunpack.c.l.b16 %v11474
  %v11995 = vunpack.c.l.b16 %v11475
  %v11996 = vunpack.c.l.b16 %v11476
  %v11997 = vunpack.c.l.b16 %v11477
  %v11998 = vunpack.c.l.b16 %v11478
  %v11999 = vunpack.c.l.b16 %v11479
  %v12000 = vunpack.c.l.b16 %v11480
  %v12001 = vunpack.c.l.b16 %v11481
  %v12002 = vunpack.c.l.b16 %v11482
  %v12003 = vunpack.c.l.b16 %v11483
  %v12004 = vunpack.c.l.b16 %v11484
  %v12005 = vunpack.c.l.b16 %v11485
  %v12006 = vunpack.c.l.b16 %v11486
  %v12007 = vunpack.c.l.b16 %v11487
  %v12008 = vunpack.c.l.b16 %v11488
  %v12009 = vunpack.c.l.b16 %v11489
  %v12010 = vunpack.c.l.b16 %v11490
  %v12011 = vunpack.c.l.b16 %v11491
  %v12012 = vunpack.c.l.b16 %v11492
  %v12013 = vunpack.c.l.b16 %v11493
  %v12014 = vunpack.c.l.b16 %v11494
  %v12015 = vunpack.c.l.b16 %v11495
  %v12016 = vunpack.c.l.b16 %v11496
  %v12017 = vunpack.c.l.b16 %v11497
  %v12018 = vunpack.c.l.b16 %v11498
  %v12019 = vunpack.c.l.b16 %v11499
  %v12020 = vunpack.c.l.b16 %v11500
  %v12021 = vunpack.c.l.b16 %v11501
  %v12022 = vunpack.c.l.b16 %v11502
  %v12023 = vunpack.c.l.b16 %v11503
  %v12024 = vunpack.c.l.b16 %v11504
  %v12025 = vunpack.c.l.b16 %v11505
  %v12026 = vunpack.c.l.b16 %v11506
  %v12027 = vunpack.c.l.b16 %v11507
  %v12028 = vunpack.c.l.b16 %v11508
  %v12029 = vunpack.c.l.b16 %v11509
  %v12030 = vunpack.c.l.b16 %v11510
  %v12031 = vunpack.c.l.b16 %v11511
  %v12032 = vunpack.c.l.b16 %v11512
  %v12033 = vunpack.c.l.b16 %v11513
  %v12034 = vunpack.c.l.b16 %v11514
  %v12035 = vunpack.c.l.b16 %v11515
  %v12036 = vunpack.c.l.b16 %v11516
  %v12037 = vunpack.c.l.b16 %v11517
  %v12038 = vunpack.c.l.b16 %v11518
  %v12039 = vunpack.c.l.b16 %v11519
  %v12040 = vunpack.c.l.b16 %v11520
  %v12041 = vunpack.c.l.b16 %v11521
  %v12042 = vunpack.c.l.b16 %v11522
  %v12043 = vunpack.c.l.b16 %v11523
  %v12044 = vunpack.c.l.b16 %v11524
  %v12045 = vunpack.c.l.b16 %v11525
  %v12046 = vunpack.c.l.b16 %v11526
  %v12047 = vunpack.c.l.b16 %v11527
  %v12048 = vunpack.c.l.b16 %v11528
  %v12049 = vunpack.c.l.b16 %v11529
  %v12050 = vunpack.c.l.b16 %v11530
  %v12051 = vunpack.c.l.b16 %v11531
  %v12052 = vunpack.c.l.b16 %v11532
  %v12053 = vunpack.c.l.b16 %v11533
  %v12054 = vunpack.c.l.b16 %v11534
  %v12055 = vunpack.c.l.b16 %v11535
  %v12056 = vunpack.c.l.b16 %v11536
  %v12057 = vunpack.c.l.b16 %v11537
  %v12058 = vunpack.c.l.b16 %v11538
  %v12059 = vunpack.c.l.b16 %v11539
  %v12060 = vunpack.c.l.b16 %v11540
  %v12061 = vunpack.c.l.b16 %v11541
  %v12062 = vunpack.c.l.b16 %v11542
  %v12063 = vunpack.c.l.b16 %v11543
  %v12064 = vunpack.c.l.b16 %v11544
  %v12065 = vunpack.c.l.b16 %v11545
  %v12066 = vunpack.c.l.b16 %v11546
  %v12067 = vunpack.c.l.b16 %v11547
  %v12068 = vunpack.c.l.b16 %v11548
  %v12069 = vunpack.c.l.b16 %v11549
  %v12070 = vunpack.c.l.b16 %v11550
  %v12071 = vunpack.c.l.b16 %v11551
  %v12072 = vunpack.c.l.b16 %v11552
  %v12073 = vunpack.c.l.b16 %v11553
  %v12074 = vunpack.c.l.b16 %v11554
  %v12075 = vunpack.c.l.b16 %v11555
  %v12076 = vunpack.c.l.b16 %v11556
  %v12077 = vunpack.c.l.b16 %v11557
  %v12078 = vunpack.c.l.b16 %v11558
  %v12079 = vunpack.c.l.b16 %v11559
  %v12080 = vunpack.c.l.b16 %v11560
  %v12081 = vunpack.c.l.b16 %v11561
  %v12082 = vunpack.c.l.b16 %v11562
  %v12083 = vunpack.c.l.b16 %v11563
  %v12084 = vunpack.c.l.b16 %v11564
  %v12085 = vunpack.c.l.b16 %v11565
  %v12086 = vunpack.c.l.b16 %v11566
  %v12087 = vunpack.c.l.b16 %v11567
  %v12088 = vunpack.c.l.b16 %v11568
  %v12089 = vunpack.c.l.b16 %v11569
  %v12090 = vunpack.c.l.b16 %v11570
  %v12091 = vunpack.c.l.b16 %v11571
  %v12092 = vunpack.c.l.b16 %v11572
  %v12093 = vunpack.c.l.b16 %v11573
  %v12094 = vunpack.c.l.b16 %v11574
  %v12095 = vunpack.c.l.b16 %v11575
  %v12096 = vunpack.c.l.b16 %v11576
  %v12097 = vunpack.c.l.b16 %v11577
  %v12098 = vunpack.c.l.b16 %v11578
  %v12099 = vunpack.c.l.b16 %v11579
  %v12100 = vunpack.c.l.b16 %v11580
  %v12101 = vunpack.c.l.b16 %v11581
  %v12102 = vunpack.c.l.b16 %v11582
  %v12103 = vunpack.c.l.b16 %v11583
  %v12104 = vunpack.c.l.b16 %v11584
  %v12105 = vunpack.c.l.b16 %v11585
  %v12106 = vunpack.c.l.b16 %v11586
  %v12107 = vunpack.c.l.b16 %v11587
  %v12108 = vunpack.c.l.b16 %v11588
  %v12109 = vunpack.c.l.b16 %v11589
  %v12110 = vunpack.c.l.b16 %v11590
  %v12111 = vunpack.c.l.b16 %v11591
  %v12112 = vunpack.c.l.b16 %v11592
  %v12113 = vunpack.c.l.b16 %v11593
  %v12114 = vunpack.c.l.b16 %v11594
  %v12115 = vunpack.c.l.b16 %v11595
  %v12116 = vunpack.c.l.b16 %v11596
  %v12117 = vunpack.c.l.b16 %v11597
  %v12118 = vunpack.c.l.b16 %v11598
  %v12119 = vunpack.c.l.b16 %v11599
  %v12120 = vunpack.c.l.b16 %v11600
  %v12121 = vunpack.c.l.b16 %v11601
  %v12122 = vunpack.c.l.b16 %v11602
  %v12123 = vunpack.c.l.b16 %v11603
  %v12124 = vunpack.c.l.b16 %v11604
  %v12125 = vunpack.c.l.b16 %v11605
  %v12126 = vunpack.c.l.b16 %v11606
  %v12127 = vunpack.c.l.b16 %v11607
  %v12128 = vunpack.c.l.b16 %v11608
  %v12129 = vunpack.c.l.b16 %v11609
  %v12130 = vunpack.c.l.b16 %v11610
  %v12131 = vunpack.c.l.b16 %v11611
  %v12132 = vunpack.c.l.b16 %v11612
  %v12133 = vunpack.c.l.b16 %v11613
  %v12134 = vunpack.c.l.b16 %v11614
  %v12135 = vunpack.c.l.b16 %v11615
  %v12136 = vunpack.c.l.b16 %v11616
  %v12137 = vunpack.c.l.b16 %v11617
  %v12138 = vunpack.c.l.b16 %v11618
  %v12139 = vunpack.c.l.b16 %v11619
  %v12140 = vunpack.c.l.b16 %v11620
  %v12141 = vunpack.c.l.b16 %v11621
  %v12142 = vunpack.c.l.b16 %v11622
  %v12143 = vunpack.c.l.b16 %v11623
  %v12144 = vunpack.c.l.b16 %v11624
  %v12145 = vunpack.c.l.b16 %v11625
  %v12146 = vunpack.c.l.b16 %v11626
  %v12147 = vunpack.c.l.b16 %v11627
  %v12148 = vunpack.c.l.b16 %v11628
  %v12149 = vunpack.c.l.b16 %v11629
  %v12150 = vunpack.c.l.b16 %v11630
  %v12151 = vunpack.c.l.b16 %v11631
  %v12152 = vunpack.c.l.b16 %v11632
  %v12153 = vunpack.c.l.b16 %v11633
  %v12154 = vunpack.c.l.b16 %v11634
  %v12155 = vunpack.c.l.b16 %v11635
  %v12156 = vunpack.c.l.b16 %v11636
  %v12157 = vunpack.c.l.b16 %v11637
  %v12158 = vunpack.c.l.b16 %v11638
  %v12159 = vunpack.c.l.b16 %v11639
  %v12160 = vunpack.c.l.b16 %v11640
  %v12161 = vunpack.c.l.b16 %v11641
  %v12162 = vunpack.c.l.b16 %v11642
  %v12163 = vunpack.c.l.b16 %v11643
  %v12164 = vunpack.c.l.b16 %v11644
  %v12165 = vunpack.c.l.b16 %v11645
  %v12166 = vunpack.c.l.b16 %v11646
  %v12167 = vunpack.c.l.b16 %v11647
  %v12168 = vunpack.c.l.b16 %v11648
  %v12169 = vunpack.c.l.b16 %v11649
  %v12170 = vunpack.c.l.b16 %v11650
  %v12171 = vunpack.c.l.b16 %v11651
  %v12172 = vunpack.c.l.b16 %v11652
  %v12173 = vunpack.c.l.b16 %v11653
  %v12174 = vpack.c.b16 %v11919, %v11918
  %v12175 = vpack.c.b16 %v11921, %v11920
  %v12176 = vpack.c.b16 %v11923, %v11922
  %v12177 = vpack.c.b16 %v11925, %v11924
  %v12178 = vpack.c.b16 %v11927, %v11926
  %v12179 = vpack.c.b16 %v11929, %v11928
  %v12180 = vpack.c.b16 %v11931, %v11930
  %v12181 = vpack.c.b16 %v11933, %v11932
  %v12182 = vpack.c.b16 %v11935, %v11934
  %v12183 = vpack.c.b16 %v11937, %v11936
  %v12184 = vpack.c.b16 %v11939, %v11938
  %v12185 = vpack.c.b16 %v11941, %v11940
  %v12186 = vpack.c.b16 %v11943, %v11942
  %v12187 = vpack.c.b16 %v11945, %v11944
  %v12188 = vpack.c.b16 %v11947, %v11946
  %v12189 = vpack.c.b16 %v11949, %v11948
  %v12190 = vpack.c.b16 %v11951, %v11950
  %v12191 = vpack.c.b16 %v11953, %v11952
  %v12192 = vpack.c.b16 %v11955, %v11954
  %v12193 = vpack.c.b16 %v11957, %v11956
  %v12194 = vpack.c.b16 %v11959, %v11958
  %v12195 = vpack.c.b16 %v11961, %v11960
  %v12196 = vpack.c.b16 %v11963, %v11962
  %v12197 = vpack.c.b16 %v11965, %v11964
  %v12198 = vpack.c.b16 %v11967, %v11966
  %v12199 = vpack.c.b16 %v11969, %v11968
  %v12200 = vpack.c.b16 %v11971, %v11970
  %v12201 = vpack.c.b16 %v11973, %v11972
  %v12202 = vpack.c.b16 %v11975, %v11974
  %v12203 = vpack.c.b16 %v11977, %v11976
  %v12204 = vpack.c.b16 %v11979, %v11978
  %v12205 = vpack.c.b16 %v11981, %v11980
  %v12206 = vpack.c.b16 %v11983, %v11982
  %v12207 = vpack.c.b16 %v11985, %v11984
  %v12208 = vpack.c.b16 %v11987, %v11986
  %v12209 = vpack.c.b16 %v11989, %v11988
  %v12210 = vpack.c.b16 %v11991, %v11990
  %v12211 = vpack.c.b16 %v11993, %v11992
  %v12212 = vpack.c.b16 %v11995, %v11994
  %v12213 = vpack.c.b16 %v11997, %v11996
  %v12214 = vpack.c.b16 %v11999, %v11998
  %v12215 = vpack.c.b16 %v12001, %v12000
  %v12216 = vpack.c.b16 %v12003, %v12002
  %v12217 = vpack.c.b16 %v12005, %v12004
  %v12218 = vpack.c.b16 %v12007, %v12006
  %v12219 = vpack.c.b16 %v12009, %v12008
  %v12220 = vpack.c.b16 %v12011, %v12010
  %v12221 = vpack.c.b16 %v12013, %v12012
  %v12222 = vpack.c.b16 %v12015, %v12014
  %v12223 = vpack.c.b16 %v12017, %v12016
  %v12224 = vpack.c.b16 %v12019, %v12018
  %v12225 = vpack.c.b16 %v12021, %v12020
  %v12226 = vpack.c.b16 %v12023, %v12022
  %v12227 = vpack.c.b16 %v12025, %v12024
  %v12228 = vpack.c.b16 %v12027, %v12026
  %v12229 = vpack.c.b16 %v12029, %v12028
  %v12230 = vpack.c.b16 %v12031, %v12030
  %v12231 = vpack.c.b16 %v12033, %v12032
  %v12232 = vpack.c.b16 %v12035, %v12034
  %v12233 = vpack.c.b16 %v12037, %v12036
  %v12234 = vpack.c.b16 %v12039, %v12038
  %v12235 = vpack.c.b16 %v12041, %v12040
  %v12236 = vpack.c.b16 %v12043, %v12042
  %v12237 = vpack.c.b16 %v12045, %v12044
  %v12238 = vpack.c.b16 %v12047, %v12046
  %v12239 = vpack.c.b16 %v12049, %v12048
  %v12240 = vpack.c.b16 %v12051, %v12050
  %v12241 = vpack.c.b16 %v12053, %v12052
  %v12242 = vpack.c.b16 %v12055, %v12054
  %v12243 = vpack.c.b16 %v12057, %v12056
  %v12244 = vpack.c.b16 %v12059, %v12058
  %v12245 = vpack.c.b16 %v12061, %v12060
  %v12246 = vpack.c.b16 %v12063, %v12062
  %v12247 = vpack.c.b16 %v12065, %v12064
  %v12248 = vpack.c.b16 %v12067, %v12066
  %v12249 = vpack.c.b16 %v12069, %v12068
  %v12250 = vpack.c.b16 %v12071, %v12070
  %v12251 = vpack.c.b16 %v12073, %v12072
  %v12252 = vpack.c.b16 %v12075, %v12074
  %v12253 = vpack.c.b16 %v12077, %v12076
  %v12254 = vpack.c.b16 %v12079, %v12078
  %v12255 = vpack.c.b16 %v12081, %v12080
  %v12256 = vpack.c.b16 %v12083, %v12082
  %v12257 = vpack.c.b16 %v12085, %v12084
  %v12258 = vpack.c.b16 %v12087, %v12086
  %v12259 = vpack.c.b16 %v12089, %v12088
  %v12260 = vpack.c.b16 %v12091, %v12090
  %v12261 = vpack.c.b16 %v12093, %v12092
  %v12262 = vpack.c.b16 %v12095, %v12094
  %v12263 = vpack.c.b16 %v12097, %v12096
  %v12264 = vpack.c.b16 %v12099, %v12098
  %v12265 = vpack.c.b16 %v12101, %v12100
  %v12266 = vpack.c.b16 %v12103, %v12102
  %v12267 = vpack.c.b16 %v12105, %v12104
  %v12268 = vpack.c.b16 %v12107, %v12106
  %v12269 = vpack.c.b16 %v12109, %v12108
  %v12270 = vpack.c.b16 %v12111, %v12110
  %v12271 = vpack.c.b16 %v12113, %v12112
  %v12272 = vpack.c.b16 %v12115, %v12114
  %v12273 = vpack.c.b16 %v12117, %v12116
  %v12274 = vpack.c.b16 %v12119, %v12118
  %v12275 = vpack.c.b16 %v12121, %v12120
  %v12276 = vpack.c.b16 %v12123, %v12122
  %v12277 = vpack.c.b16 %v12125, %v12124
  %v12278 = vpack.c.b16 %v12127, %v12126
  %v12279 = vpack.c.b16 %v12129, %v12128
  %v12280 = vpack.c.b16 %v12131, %v12130
  %v12281 = vpack.c.b16 %v12133, %v12132
  %v12282 = vpack.c.b16 %v12135, %v12134
  %v12283 = vpack.c.b16 %v12137, %v12136
  %v12284 = vpack.c.b16 %v12139, %v12138
  %v12285 = vpack.c.b16 %v12141, %v12140
  %v12286 = vpack.c.b16 %v12143, %v12142
  %v12287 = vpack.c.b16 %v12145, %v12144
  %v12288 = vpack.c.b16 %v12147, %v12146
  %v12289 = vpack.c.b16 %v12149, %v12148
  %v12290 = vpack.c.b16 %v12151, %v12150
  %v12291 = vpack.c.b16 %v12153, %v12152
  %v12292 = vpack.c.b16 %v12155, %v12154
  %v12293 = vpack.c.b16 %v12157, %v12156
  %v12294 = vpack.c.b16 %v12159, %v12158
  %v12295 = vpack.c.b16 %v12161, %v12160
  %v12296 = vpack.c.b16 %v12163, %v12162
  %v12297 = vpack.c.b16 %v12165, %v12164
  %v12298 = vpack.c.b16 %v12167, %v12166
  %v12299 = vpack.c.b16 %v12169, %v12168
  %v12300 = vpack.c.b16 %v12171, %v12170
  %v12301 = vpack.c.b16 %v12173, %v12172
  %12430 = vmatprep.subr.bf16.mxu0 0
  %12431 = vmatpush1.bf16.msra.mxu0 %v12181
  %12432 = vmatprep.subr.bf16.mxu0 0
  %12433 = vmatpush1.bf16.msra.mxu0 %v12180
  %12434 = vmatprep.subr.bf16.mxu0 0
  %12435 = vmatpush1.bf16.msra.mxu0 %v12179
  %12436 = vmatprep.subr.bf16.mxu0 0
  %12437 = vmatpush1.bf16.msra.mxu0 %v12178
  %12438 = vmatprep.subr.bf16.mxu0 0
  %12439 = vmatpush1.bf16.msra.mxu0 %v12177
  %12440 = vmatprep.subr.bf16.mxu0 0
  %12441 = vmatpush1.bf16.msra.mxu0 %v12176
  %12442 = vmatprep.subr.bf16.mxu0 0
  %12443 = vmatpush1.bf16.msra.mxu0 %v12175
  %12444 = vmatprep.subr.bf16.mxu0 0
  %12445 = vmatpush1.bf16.msra.mxu0 %v12174
  %12446 = vmatprep.subr.bf16.mxu0 0
  %12447 = vmatpush2.bf16.msra.mxu0 %v12189
  %12448 = vmatprep.subr.bf16.mxu0 0
  %12449 = vmatpush2.bf16.msra.mxu0 %v12188
  %12450 = vmatprep.subr.bf16.mxu0 0
  %12451 = vmatpush2.bf16.msra.mxu0 %v12187
  %12452 = vmatprep.subr.bf16.mxu0 0
  %12453 = vmatpush2.bf16.msra.mxu0 %v12186
  %12454 = vmatprep.subr.bf16.mxu0 0
  %12455 = vmatpush2.bf16.msra.mxu0 %v12185
  %12456 = vmatprep.subr.bf16.mxu0 0
  %12457 = vmatpush2.bf16.msra.mxu0 %v12184
  %12458 = vmatprep.subr.bf16.mxu0 0
  %12459 = vmatpush2.bf16.msra.mxu0 %v12183
  %12460 = vmatprep.subr.bf16.mxu0 0
  %12461 = vmatpush2.bf16.msra.mxu0 %v12182
  %12462 = vmatprep.mubr.bf16.mxu0 %v11334
  %12463 = vmatmul.mubr.bf16.gmra.mxu0 %v11333
  %v12464 = vpop.f32.mrf.mxu0
  %v12465 = vadd.f32 %v11660, %v12464
  %v12466 = vpop.f32.mrf.mxu0
  %v12467 = vpop.f32.mrf.mxu0
  %v12468 = vadd.f32 %v11660, %v12467
  %v12469 = vpop.f32.mrf.mxu0
  %12470 = vmatprep.mubr.bf16.mxu0 %v11350
  %12471 = vmatmul.mubr.bf16.gmra.mxu0 %v11349
  %v12472 = vpop.f32.mrf.mxu0
  %v12473 = vadd.f32 %v11660, %v12472
  %v12474 = vpop.f32.mrf.mxu0
  %v12475 = vpop.f32.mrf.mxu0
  %v12476 = vadd.f32 %v11660, %v12475
  %v12477 = vpop.f32.mrf.mxu0
  %12478 = vmatprep.mubr.bf16.mxu0 %v11366
  %12479 = vmatmul.mubr.bf16.gmra.mxu0 %v11365
  %v12480 = vpop.f32.mrf.mxu0
  %v12481 = vadd.f32 %v11660, %v12480
  %v12482 = vpop.f32.mrf.mxu0
  %v12483 = vpop.f32.mrf.mxu0
  %v12484 = vadd.f32 %v11660, %v12483
  %v12485 = vpop.f32.mrf.mxu0
  %12486 = vmatprep.mubr.bf16.mxu0 %v11382
  %12487 = vmatmul.mubr.bf16.gmra.mxu0 %v11381
  %v12488 = vpop.f32.mrf.mxu0
  %v12489 = vadd.f32 %v11660, %v12488
  %v12490 = vpop.f32.mrf.mxu0
  %v12491 = vpop.f32.mrf.mxu0
  %v12492 = vpop.f32.mrf.mxu0
  %12493 = vdwg.mxu0
  %12494 = vmatprep.subr.bf16.mxu0 0
  %12495 = vmatpush1.bf16.msra.mxu0 %v12197
  %12496 = vmatprep.subr.bf16.mxu0 0
  %12497 = vmatpush1.bf16.msra.mxu0 %v12196
  %12498 = vmatprep.subr.bf16.mxu0 0
  %12499 = vmatpush1.bf16.msra.mxu0 %v12195
  %12500 = vmatprep.subr.bf16.mxu0 0
  %12501 = vmatpush1.bf16.msra.mxu0 %v12194
  %12502 = vmatprep.subr.bf16.mxu0 0
  %12503 = vmatpush1.bf16.msra.mxu0 %v12193
  %12504 = vmatprep.subr.bf16.mxu0 0
  %12505 = vmatpush1.bf16.msra.mxu0 %v12192
  %12506 = vmatprep.subr.bf16.mxu0 0
  %12507 = vmatpush1.bf16.msra.mxu0 %v12191
  %12508 = vmatprep.subr.bf16.mxu0 0
  %12509 = vmatpush1.bf16.msra.mxu0 %v12190
  %12510 = vmatprep.subr.bf16.mxu0 0
  %12511 = vmatpush2.bf16.msra.mxu0 %v12205
  %12512 = vmatprep.subr.bf16.mxu0 0
  %12513 = vmatpush2.bf16.msra.mxu0 %v12204
  %12514 = vmatprep.subr.bf16.mxu0 0
  %12515 = vmatpush2.bf16.msra.mxu0 %v12203
  %12516 = vmatprep.subr.bf16.mxu0 0
  %12517 = vmatpush2.bf16.msra.mxu0 %v12202
  %12518 = vmatprep.subr.bf16.mxu0 0
  %12519 = vmatpush2.bf16.msra.mxu0 %v12201
  %12520 = vmatprep.subr.bf16.mxu0 0
  %12521 = vmatpush2.bf16.msra.mxu0 %v12200
  %12522 = vmatprep.subr.bf16.mxu0 0
  %12523 = vmatpush2.bf16.msra.mxu0 %v12199
  %12524 = vmatprep.subr.bf16.mxu0 0
  %12525 = vmatpush2.bf16.msra.mxu0 %v12198
  %12526 = vmatprep.mubr.bf16.mxu0 %v11336
  %12527 = vmatmul.mubr.bf16.gmra.mxu0 %v11335
  %v12528 = vpop.f32.mrf.mxu0
  %v12529 = vadd.f32 %v12465, %v12528
  %v12530 = vpop.f32.mrf.mxu0
  %v12531 = vpop.f32.mrf.mxu0
  %v12532 = vadd.f32 %v12468, %v12531
  %v12533 = vpop.f32.mrf.mxu0
  %12534 = vmatprep.mubr.bf16.mxu0 %v11352
  %12535 = vmatmul.mubr.bf16.gmra.mxu0 %v11351
  %v12536 = vpop.f32.mrf.mxu0
  %v12537 = vadd.f32 %v12473, %v12536
  %v12538 = vpop.f32.mrf.mxu0
  %v12539 = vpop.f32.mrf.mxu0
  %v12540 = vadd.f32 %v12476, %v12539
  %v12541 = vpop.f32.mrf.mxu0
  %12542 = vmatprep.mubr.bf16.mxu0 %v11368
  %12543 = vmatmul.mubr.bf16.gmra.mxu0 %v11367
  %v12544 = vpop.f32.mrf.mxu0
  %v12545 = vadd.f32 %v12481, %v12544
  %v12546 = vpop.f32.mrf.mxu0
  %v12547 = vpop.f32.mrf.mxu0
  %v12548 = vadd.f32 %v12484, %v12547
  %v12549 = vpop.f32.mrf.mxu0
  %12550 = vmatprep.mubr.bf16.mxu0 %v11384
  %12551 = vmatmul.mubr.bf16.gmra.mxu0 %v11383
  %v12552 = vpop.f32.mrf.mxu0
  %v12553 = vadd.f32 %v12489, %v12552
  %v12554 = vpop.f32.mrf.mxu0
  %v12555 = vpop.f32.mrf.mxu0
  %v12556 = vpop.f32.mrf.mxu0
  %12557 = vdwg.mxu0
  %12558 = vmatprep.subr.bf16.mxu0 0
  %12559 = vmatpush1.bf16.msra.mxu0 %v12213
  %12560 = vmatprep.subr.bf16.mxu0 0
  %12561 = vmatpush1.bf16.msra.mxu0 %v12212
  %12562 = vmatprep.subr.bf16.mxu0 0
  %12563 = vmatpush1.bf16.msra.mxu0 %v12211
  %12564 = vmatprep.subr.bf16.mxu0 0
  %12565 = vmatpush1.bf16.msra.mxu0 %v12210
  %12566 = vmatprep.subr.bf16.mxu0 0
  %12567 = vmatpush1.bf16.msra.mxu0 %v12209
  %12568 = vmatprep.subr.bf16.mxu0 0
  %12569 = vmatpush1.bf16.msra.mxu0 %v12208
  %12570 = vmatprep.subr.bf16.mxu0 0
  %12571 = vmatpush1.bf16.msra.mxu0 %v12207
  %12572 = vmatprep.subr.bf16.mxu0 0
  %12573 = vmatpush1.bf16.msra.mxu0 %v12206
  %12574 = vmatprep.subr.bf16.mxu0 0
  %12575 = vmatpush2.bf16.msra.mxu0 %v12221
  %12576 = vmatprep.subr.bf16.mxu0 0
  %12577 = vmatpush2.bf16.msra.mxu0 %v12220
  %12578 = vmatprep.subr.bf16.mxu0 0
  %12579 = vmatpush2.bf16.msra.mxu0 %v12219
  %12580 = vmatprep.subr.bf16.mxu0 0
  %12581 = vmatpush2.bf16.msra.mxu0 %v12218
  %12582 = vmatprep.subr.bf16.mxu0 0
  %12583 = vmatpush2.bf16.msra.mxu0 %v12217
  %12584 = vmatprep.subr.bf16.mxu0 0
  %12585 = vmatpush2.bf16.msra.mxu0 %v12216
  %12586 = vmatprep.subr.bf16.mxu0 0
  %12587 = vmatpush2.bf16.msra.mxu0 %v12215
  %12588 = vmatprep.subr.bf16.mxu0 0
  %12589 = vmatpush2.bf16.msra.mxu0 %v12214
  %12590 = vmatprep.mubr.bf16.mxu0 %v11338
  %12591 = vmatmul.mubr.bf16.gmra.mxu0 %v11337
  %v12592 = vpop.f32.mrf.mxu0
  %v12593 = vadd.f32 %v12529, %v12592
  %v12594 = vpop.f32.mrf.mxu0
  %v12595 = vpop.f32.mrf.mxu0
  %v12596 = vadd.f32 %v12532, %v12595
  %v12597 = vpop.f32.mrf.mxu0
  %12598 = vmatprep.mubr.bf16.mxu0 %v11354
  %12599 = vmatmul.mubr.bf16.gmra.mxu0 %v11353
  %v12600 = vpop.f32.mrf.mxu0
  %v12601 = vadd.f32 %v12537, %v12600
  %v12602 = vpop.f32.mrf.mxu0
  %v12603 = vpop.f32.mrf.mxu0
  %v12604 = vadd.f32 %v12540, %v12603
  %v12605 = vpop.f32.mrf.mxu0
  %12606 = vmatprep.mubr.bf16.mxu0 %v11370
  %12607 = vmatmul.mubr.bf16.gmra.mxu0 %v11369
  %v12608 = vpop.f32.mrf.mxu0
  %v12609 = vadd.f32 %v12545, %v12608
  %v12610 = vpop.f32.mrf.mxu0
  %v12611 = vpop.f32.mrf.mxu0
  %v12612 = vadd.f32 %v12548, %v12611
  %v12613 = vpop.f32.mrf.mxu0
  %12614 = vmatprep.mubr.bf16.mxu0 %v11386
  %12615 = vmatmul.mubr.bf16.gmra.mxu0 %v11385
  %v12616 = vpop.f32.mrf.mxu0
  %v12617 = vadd.f32 %v12553, %v12616
  %v12618 = vpop.f32.mrf.mxu0
  %v12619 = vpop.f32.mrf.mxu0
  %v12620 = vpop.f32.mrf.mxu0
  %12621 = vdwg.mxu0
  %12622 = vmatprep.subr.bf16.mxu0 0
  %12623 = vmatpush1.bf16.msra.mxu0 %v12229
  %12624 = vmatprep.subr.bf16.mxu0 0
  %12625 = vmatpush1.bf16.msra.mxu0 %v12228
  %12626 = vmatprep.subr.bf16.mxu0 0
  %12627 = vmatpush1.bf16.msra.mxu0 %v12227
  %12628 = vmatprep.subr.bf16.mxu0 0
  %12629 = vmatpush1.bf16.msra.mxu0 %v12226
  %12630 = vmatprep.subr.bf16.mxu0 0
  %12631 = vmatpush1.bf16.msra.mxu0 %v12225
  %12632 = vmatprep.subr.bf16.mxu0 0
  %12633 = vmatpush1.bf16.msra.mxu0 %v12224
  %12634 = vmatprep.subr.bf16.mxu0 0
  %12635 = vmatpush1.bf16.msra.mxu0 %v12223
  %12636 = vmatprep.subr.bf16.mxu0 0
  %12637 = vmatpush1.bf16.msra.mxu0 %v12222
  %12638 = vmatprep.subr.bf16.mxu0 0
  %12639 = vmatpush2.bf16.msra.mxu0 %v12237
  %12640 = vmatprep.subr.bf16.mxu0 0
  %12641 = vmatpush2.bf16.msra.mxu0 %v12236
  %12642 = vmatprep.subr.bf16.mxu0 0
  %12643 = vmatpush2.bf16.msra.mxu0 %v12235
  %12644 = vmatprep.subr.bf16.mxu0 0
  %12645 = vmatpush2.bf16.msra.mxu0 %v12234
  %12646 = vmatprep.subr.bf16.mxu0 0
  %12647 = vmatpush2.bf16.msra.mxu0 %v12233
  %12648 = vmatprep.subr.bf16.mxu0 0
  %12649 = vmatpush2.bf16.msra.mxu0 %v12232
  %12650 = vmatprep.subr.bf16.mxu0 0
  %12651 = vmatpush2.bf16.msra.mxu0 %v12231
  %12652 = vmatprep.subr.bf16.mxu0 0
  %12653 = vmatpush2.bf16.msra.mxu0 %v12230
  %12654 = vmatprep.mubr.bf16.mxu0 %v11340
  %12655 = vmatmul.mubr.bf16.gmra.mxu0 %v11339
  %v12656 = vpop.f32.mrf.mxu0
  %v12657 = vadd.f32 %v12593, %v12656
  %v12658 = vpop.f32.mrf.mxu0
  %v12659 = vpop.f32.mrf.mxu0
  %v12660 = vadd.f32 %v12596, %v12659
  %v12661 = vpop.f32.mrf.mxu0
  %12662 = vmatprep.mubr.bf16.mxu0 %v11356
  %12663 = vmatmul.mubr.bf16.gmra.mxu0 %v11355
  %v12664 = vpop.f32.mrf.mxu0
  %v12665 = vadd.f32 %v12601, %v12664
  %v12666 = vpop.f32.mrf.mxu0
  %v12667 = vpop.f32.mrf.mxu0
  %v12668 = vadd.f32 %v12604, %v12667
  %v12669 = vpop.f32.mrf.mxu0
  %12670 = vmatprep.mubr.bf16.mxu0 %v11372
  %12671 = vmatmul.mubr.bf16.gmra.mxu0 %v11371
  %v12672 = vpop.f32.mrf.mxu0
  %v12673 = vadd.f32 %v12609, %v12672
  %v12674 = vpop.f32.mrf.mxu0
  %v12675 = vpop.f32.mrf.mxu0
  %v12676 = vadd.f32 %v12612, %v12675
  %v12677 = vpop.f32.mrf.mxu0
  %12678 = vmatprep.mubr.bf16.mxu0 %v11388
  %12679 = vmatmul.mubr.bf16.gmra.mxu0 %v11387
  %v12680 = vpop.f32.mrf.mxu0
  %v12681 = vadd.f32 %v12617, %v12680
  %v12682 = vpop.f32.mrf.mxu0
  %v12683 = vpop.f32.mrf.mxu0
  %v12684 = vpop.f32.mrf.mxu0
  %12685 = vdwg.mxu0
  %12686 = vmatprep.subr.bf16.mxu0 0
  %12687 = vmatpush1.bf16.msra.mxu0 %v12245
  %12688 = vmatprep.subr.bf16.mxu0 0
  %12689 = vmatpush1.bf16.msra.mxu0 %v12244
  %12690 = vmatprep.subr.bf16.mxu0 0
  %12691 = vmatpush1.bf16.msra.mxu0 %v12243
  %12692 = vmatprep.subr.bf16.mxu0 0
  %12693 = vmatpush1.bf16.msra.mxu0 %v12242
  %12694 = vmatprep.subr.bf16.mxu0 0
  %12695 = vmatpush1.bf16.msra.mxu0 %v12241
  %12696 = vmatprep.subr.bf16.mxu0 0
  %12697 = vmatpush1.bf16.msra.mxu0 %v12240
  %12698 = vmatprep.subr.bf16.mxu0 0
  %12699 = vmatpush1.bf16.msra.mxu0 %v12239
  %12700 = vmatprep.subr.bf16.mxu0 0
  %12701 = vmatpush1.bf16.msra.mxu0 %v12238
  %12702 = vmatprep.subr.bf16.mxu0 0
  %12703 = vmatpush2.bf16.msra.mxu0 %v12253
  %12704 = vmatprep.subr.bf16.mxu0 0
  %12705 = vmatpush2.bf16.msra.mxu0 %v12252
  %12706 = vmatprep.subr.bf16.mxu0 0
  %12707 = vmatpush2.bf16.msra.mxu0 %v12251
  %12708 = vmatprep.subr.bf16.mxu0 0
  %12709 = vmatpush2.bf16.msra.mxu0 %v12250
  %12710 = vmatprep.subr.bf16.mxu0 0
  %12711 = vmatpush2.bf16.msra.mxu0 %v12249
  %12712 = vmatprep.subr.bf16.mxu0 0
  %12713 = vmatpush2.bf16.msra.mxu0 %v12248
  %12714 = vmatprep.subr.bf16.mxu0 0
  %12715 = vmatpush2.bf16.msra.mxu0 %v12247
  %12716 = vmatprep.subr.bf16.mxu0 0
  %12717 = vmatpush2.bf16.msra.mxu0 %v12246
  %12718 = vmatprep.mubr.bf16.mxu0 %v11342
  %12719 = vmatmul.mubr.bf16.gmra.mxu0 %v11341
  %v12720 = vpop.f32.mrf.mxu0
  %v12721 = vadd.f32 %v12657, %v12720
  %v12722 = vpop.f32.mrf.mxu0
  %v12723 = vpop.f32.mrf.mxu0
  %v12724 = vadd.f32 %v12660, %v12723
  %v12725 = vpop.f32.mrf.mxu0
  %12726 = vmatprep.mubr.bf16.mxu0 %v11358
  %12727 = vmatmul.mubr.bf16.gmra.mxu0 %v11357
  %v12728 = vpop.f32.mrf.mxu0
  %v12729 = vadd.f32 %v12665, %v12728
  %v12730 = vpop.f32.mrf.mxu0
  %v12731 = vpop.f32.mrf.mxu0
  %v12732 = vadd.f32 %v12668, %v12731
  %v12733 = vpop.f32.mrf.mxu0
  %12734 = vmatprep.mubr.bf16.mxu0 %v11374
  %12735 = vmatmul.mubr.bf16.gmra.mxu0 %v11373
  %v12736 = vpop.f32.mrf.mxu0
  %v12737 = vadd.f32 %v12673, %v12736
  %v12738 = vpop.f32.mrf.mxu0
  %v12739 = vpop.f32.mrf.mxu0
  %v12740 = vadd.f32 %v12676, %v12739
  %v12741 = vpop.f32.mrf.mxu0
  %12742 = vmatprep.mubr.bf16.mxu0 %v11390
  %12743 = vmatmul.mubr.bf16.gmra.mxu0 %v11389
  %v12744 = vpop.f32.mrf.mxu0
  %v12745 = vadd.f32 %v12681, %v12744
  %v12746 = vpop.f32.mrf.mxu0
  %v12747 = vpop.f32.mrf.mxu0
  %v12748 = vpop.f32.mrf.mxu0
  %12749 = vdwg.mxu0
  %12750 = vmatprep.subr.bf16.mxu0 0
  %12751 = vmatpush1.bf16.msra.mxu0 %v12261
  %12752 = vmatprep.subr.bf16.mxu0 0
  %12753 = vmatpush1.bf16.msra.mxu0 %v12260
  %12754 = vmatprep.subr.bf16.mxu0 0
  %12755 = vmatpush1.bf16.msra.mxu0 %v12259
  %12756 = vmatprep.subr.bf16.mxu0 0
  %12757 = vmatpush1.bf16.msra.mxu0 %v12258
  %12758 = vmatprep.subr.bf16.mxu0 0
  %12759 = vmatpush1.bf16.msra.mxu0 %v12257
  %12760 = vmatprep.subr.bf16.mxu0 0
  %12761 = vmatpush1.bf16.msra.mxu0 %v12256
  %12762 = vmatprep.subr.bf16.mxu0 0
  %12763 = vmatpush1.bf16.msra.mxu0 %v12255
  %12764 = vmatprep.subr.bf16.mxu0 0
  %12765 = vmatpush1.bf16.msra.mxu0 %v12254
  %12766 = vmatprep.subr.bf16.mxu0 0
  %12767 = vmatpush2.bf16.msra.mxu0 %v12269
  %12768 = vmatprep.subr.bf16.mxu0 0
  %12769 = vmatpush2.bf16.msra.mxu0 %v12268
  %12770 = vmatprep.subr.bf16.mxu0 0
  %12771 = vmatpush2.bf16.msra.mxu0 %v12267
  %12772 = vmatprep.subr.bf16.mxu0 0
  %12773 = vmatpush2.bf16.msra.mxu0 %v12266
  %12774 = vmatprep.subr.bf16.mxu0 0
  %12775 = vmatpush2.bf16.msra.mxu0 %v12265
  %12776 = vmatprep.subr.bf16.mxu0 0
  %12777 = vmatpush2.bf16.msra.mxu0 %v12264
  %12778 = vmatprep.subr.bf16.mxu0 0
  %12779 = vmatpush2.bf16.msra.mxu0 %v12263
  %12780 = vmatprep.subr.bf16.mxu0 0
  %12781 = vmatpush2.bf16.msra.mxu0 %v12262
  %12782 = vmatprep.mubr.bf16.mxu0 %v11344
  %12783 = vmatmul.mubr.bf16.gmra.mxu0 %v11343
  %v12784 = vpop.f32.mrf.mxu0
  %v12785 = vadd.f32 %v12721, %v12784
  %v12786 = vpop.f32.mrf.mxu0
  %v12787 = vpop.f32.mrf.mxu0
  %v12788 = vadd.f32 %v12724, %v12787
  %v12789 = vpop.f32.mrf.mxu0
  %12790 = vmatprep.mubr.bf16.mxu0 %v11360
  %12791 = vmatmul.mubr.bf16.gmra.mxu0 %v11359
  %v12792 = vpop.f32.mrf.mxu0
  %v12793 = vadd.f32 %v12729, %v12792
  %v12794 = vpop.f32.mrf.mxu0
  %v12795 = vpop.f32.mrf.mxu0
  %v12796 = vadd.f32 %v12732, %v12795
  %v12797 = vpop.f32.mrf.mxu0
  %12798 = vmatprep.mubr.bf16.mxu0 %v11376
  %12799 = vmatmul.mubr.bf16.gmra.mxu0 %v11375
  %v12800 = vpop.f32.mrf.mxu0
  %v12801 = vadd.f32 %v12737, %v12800
  %v12802 = vpop.f32.mrf.mxu0
  %v12803 = vpop.f32.mrf.mxu0
  %v12804 = vadd.f32 %v12740, %v12803
  %v12805 = vpop.f32.mrf.mxu0
  %12806 = vmatprep.mubr.bf16.mxu0 %v11392
  %12807 = vmatmul.mubr.bf16.gmra.mxu0 %v11391
  %v12808 = vpop.f32.mrf.mxu0
  %v12809 = vadd.f32 %v12745, %v12808
  %v12810 = vpop.f32.mrf.mxu0
  %v12811 = vpop.f32.mrf.mxu0
  %v12812 = vpop.f32.mrf.mxu0
  %12813 = vdwg.mxu0
  %12814 = vmatprep.subr.bf16.mxu0 0
  %12815 = vmatpush1.bf16.msra.mxu0 %v12277
  %12816 = vmatprep.subr.bf16.mxu0 0
  %12817 = vmatpush1.bf16.msra.mxu0 %v12276
  %12818 = vmatprep.subr.bf16.mxu0 0
  %12819 = vmatpush1.bf16.msra.mxu0 %v12275
  %12820 = vmatprep.subr.bf16.mxu0 0
  %12821 = vmatpush1.bf16.msra.mxu0 %v12274
  %12822 = vmatprep.subr.bf16.mxu0 0
  %12823 = vmatpush1.bf16.msra.mxu0 %v12273
  %12824 = vmatprep.subr.bf16.mxu0 0
  %12825 = vmatpush1.bf16.msra.mxu0 %v12272
  %12826 = vmatprep.subr.bf16.mxu0 0
  %12827 = vmatpush1.bf16.msra.mxu0 %v12271
  %12828 = vmatprep.subr.bf16.mxu0 0
  %12829 = vmatpush1.bf16.msra.mxu0 %v12270
  %12830 = vmatprep.subr.bf16.mxu0 0
  %12831 = vmatpush2.bf16.msra.mxu0 %v12285
  %12832 = vmatprep.subr.bf16.mxu0 0
  %12833 = vmatpush2.bf16.msra.mxu0 %v12284
  %12834 = vmatprep.subr.bf16.mxu0 0
  %12835 = vmatpush2.bf16.msra.mxu0 %v12283
  %12836 = vmatprep.subr.bf16.mxu0 0
  %12837 = vmatpush2.bf16.msra.mxu0 %v12282
  %12838 = vmatprep.subr.bf16.mxu0 0
  %12839 = vmatpush2.bf16.msra.mxu0 %v12281
  %12840 = vmatprep.subr.bf16.mxu0 0
  %12841 = vmatpush2.bf16.msra.mxu0 %v12280
  %12842 = vmatprep.subr.bf16.mxu0 0
  %12843 = vmatpush2.bf16.msra.mxu0 %v12279
  %12844 = vmatprep.subr.bf16.mxu0 0
  %12845 = vmatpush2.bf16.msra.mxu0 %v12278
  %12846 = vmatprep.mubr.bf16.mxu0 %v11346
  %12847 = vmatmul.mubr.bf16.gmra.mxu0 %v11345
  %v12848 = vpop.f32.mrf.mxu0
  %v12849 = vadd.f32 %v12785, %v12848
  %v12850 = vpop.f32.mrf.mxu0
  %v12851 = vpop.f32.mrf.mxu0
  %v12852 = vadd.f32 %v12788, %v12851
  %v12853 = vpop.f32.mrf.mxu0
  %12854 = vmatprep.mubr.bf16.mxu0 %v11362
  %12855 = vmatmul.mubr.bf16.gmra.mxu0 %v11361
  %v12856 = vpop.f32.mrf.mxu0
  %v12857 = vadd.f32 %v12793, %v12856
  %v12858 = vpop.f32.mrf.mxu0
  %v12859 = vpop.f32.mrf.mxu0
  %v12860 = vadd.f32 %v12796, %v12859
  %v12861 = vpop.f32.mrf.mxu0
  %12862 = vmatprep.mubr.bf16.mxu0 %v11378
  %12863 = vmatmul.mubr.bf16.gmra.mxu0 %v11377
  %v12864 = vpop.f32.mrf.mxu0
  %v12865 = vadd.f32 %v12801, %v12864
  %v12866 = vpop.f32.mrf.mxu0
  %v12867 = vpop.f32.mrf.mxu0
  %v12868 = vadd.f32 %v12804, %v12867
  %v12869 = vpop.f32.mrf.mxu0
  %12870 = vmatprep.mubr.bf16.mxu0 %v11394
  %12871 = vmatmul.mubr.bf16.gmra.mxu0 %v11393
  %v12872 = vpop.f32.mrf.mxu0
  %v12873 = vadd.f32 %v12809, %v12872
  %v12874 = vpop.f32.mrf.mxu0
  %v12875 = vpop.f32.mrf.mxu0
  %v12876 = vpop.f32.mrf.mxu0
  %12877 = vdwg.mxu0
  %12878 = vmatprep.subr.bf16.mxu0 0
  %12879 = vmatpush1.bf16.msra.mxu0 %v12293
  %12880 = vmatprep.subr.bf16.mxu0 0
  %12881 = vmatpush1.bf16.msra.mxu0 %v12292
  %12882 = vmatprep.subr.bf16.mxu0 0
  %12883 = vmatpush1.bf16.msra.mxu0 %v12291
  %12884 = vmatprep.subr.bf16.mxu0 0
  %12885 = vmatpush1.bf16.msra.mxu0 %v12290
  %12886 = vmatprep.subr.bf16.mxu0 0
  %12887 = vmatpush1.bf16.msra.mxu0 %v12289
  %12888 = vmatprep.subr.bf16.mxu0 0
  %12889 = vmatpush1.bf16.msra.mxu0 %v12288
  %12890 = vmatprep.subr.bf16.mxu0 0
  %12891 = vmatpush1.bf16.msra.mxu0 %v12287
  %12892 = vmatprep.subr.bf16.mxu0 0
  %12893 = vmatpush1.bf16.msra.mxu0 %v12286
  %12894 = vmatprep.subr.bf16.mxu0 0
  %12895 = vmatpush2.bf16.msra.mxu0 %v12301
  %12896 = vmatprep.subr.bf16.mxu0 0
  %12897 = vmatpush2.bf16.msra.mxu0 %v12300
  %12898 = vmatprep.subr.bf16.mxu0 0
  %12899 = vmatpush2.bf16.msra.mxu0 %v12299
  %12900 = vmatprep.subr.bf16.mxu0 0
  %12901 = vmatpush2.bf16.msra.mxu0 %v12298
  %12902 = vmatprep.subr.bf16.mxu0 0
  %12903 = vmatpush2.bf16.msra.mxu0 %v12297
  %12904 = vmatprep.subr.bf16.mxu0 0
  %12905 = vmatpush2.bf16.msra.mxu0 %v12296
  %12906 = vmatprep.subr.bf16.mxu0 0
  %12907 = vmatpush2.bf16.msra.mxu0 %v12295
  %12908 = vmatprep.subr.bf16.mxu0 0
  %12909 = vmatpush2.bf16.msra.mxu0 %v12294
  %12910 = vmatprep.mubr.bf16.mxu0 %v11348
  %12911 = vmatmul.mubr.bf16.gmra.mxu0 %v11347
  %v12912 = vpop.f32.mrf.mxu0
  %v12913 = vadd.f32 %v12849, %v12912
  %v12914 = vpop.f32.mrf.mxu0
  %v12915 = vpop.f32.mrf.mxu0
  %v12916 = vadd.f32 %v12852, %v12915
  %v12917 = vpop.f32.mrf.mxu0
  %12918 = vmatprep.mubr.bf16.mxu0 %v11364
  %12919 = vmatmul.mubr.bf16.gmra.mxu0 %v11363
  %v12920 = vpop.f32.mrf.mxu0
  %v12921 = vadd.f32 %v12857, %v12920
  %v12922 = vpop.f32.mrf.mxu0
  %v12923 = vpop.f32.mrf.mxu0
  %v12924 = vadd.f32 %v12860, %v12923
  %v12925 = vpop.f32.mrf.mxu0
  %12926 = vmatprep.mubr.bf16.mxu0 %v11380
  %12927 = vmatmul.mubr.bf16.gmra.mxu0 %v11379
  %v12928 = vpop.f32.mrf.mxu0
  %v12929 = vadd.f32 %v12865, %v12928
  %v12930 = vpop.f32.mrf.mxu0
  %v12931 = vpop.f32.mrf.mxu0
  %v12932 = vadd.f32 %v12868, %v12931
  %v12933 = vpop.f32.mrf.mxu0
  %12934 = vmatprep.mubr.bf16.mxu0 %v11396
  %12935 = vmatmul.mubr.bf16.gmra.mxu0 %v11395
  %v12936 = vpop.f32.mrf.mxu0
  %v12937 = vadd.f32 %v12873, %v12936
  %v12938 = vpop.f32.mrf.mxu0
  %v12939 = vpop.f32.mrf.mxu0
  %v12940 = vpop.f32.mrf.mxu0
  %12941 = vdwg.mxu0
  %v12942 = vadd.f32 %v10160, %v12913
  %v12943 = vadd.f32 %v10161, %v12916
  %v12944 = vadd.f32 %v10162, %v12921
  %v12945 = vadd.f32 %v10163, %v12924
  %v12946 = vadd.f32 %v10164, %v12929
  %v12947 = vadd.f32 %v10165, %v12932
  %v12948 = vadd.f32 %v10166, %v12937
  %s12949 = scalar_lea.vmem %s12, 1
  %v12950 = vld [vmem:[%s12949] sm:$0x1]
  %s12951 = scalar_lea.vmem %s13, 1
  %v12952 = vld [vmem:[%s12951] sm:$0x1]
  %v12953 = vsel %vm77, %v12942, 0.0
  %12954 = vadd.xlane.f32.xlu0 %v12953
  %v12955 = vpop.xlane.xlu0 %12954
  %v12956 = vsel %vm77, %v12943, 0.0
  %12957 = vadd.xlane.f32.xlu0 %v12956
  %v12958 = vpop.xlane.xlu0 %12957
  %v12959 = vsel %vm77, %v12944, 0.0
  %12960 = vadd.xlane.f32.xlu0 %v12959
  %v12961 = vpop.xlane.xlu0 %12960
  %v12962 = vsel %vm77, %v12945, 0.0
  %12963 = vadd.xlane.f32.xlu0 %v12962
  %v12964 = vpop.xlane.xlu0 %12963
  %v12965 = vsel %vm77, %v12946, 0.0
  %12966 = vadd.xlane.f32.xlu0 %v12965
  %v12967 = vpop.xlane.xlu0 %12966
  %v12968 = vsel %vm77, %v12947, 0.0
  %12969 = vadd.xlane.f32.xlu0 %v12968
  %v12970 = vpop.xlane.xlu0 %12969
  %v12971 = vsel %vm77, %v12948, 0.0
  %12972 = vadd.xlane.f32.xlu0 %v12971
  %v12973 = vpop.xlane.xlu0 %12972
  %v12974 = vmul.f32 %v12955, %v3568
  %v12975 = vmul.f32 %v12958, %v3568
  %v12976 = vmul.f32 %v12961, %v3568
  %v12977 = vmul.f32 %v12964, %v3568
  %v12978 = vmul.f32 %v12967, %v3568
  %v12979 = vmul.f32 %v12970, %v3568
  %v12980 = vmul.f32 %v12973, %v3568
  %v12981 = vsub.f32 %v12942, %v12974
  %v12982 = vsub.f32 %v12943, %v12975
  %v12983 = vsub.f32 %v12944, %v12976
  %v12984 = vsub.f32 %v12945, %v12977
  %v12985 = vsub.f32 %v12946, %v12978
  %v12986 = vsub.f32 %v12947, %v12979
  %v12987 = vsub.f32 %v12948, %v12980
  %v12988 = vmul.f32 %v12981, %v12981
  %v12989 = vmul.f32 %v12982, %v12982
  %v12990 = vmul.f32 %v12983, %v12983
  %v12991 = vmul.f32 %v12984, %v12984
  %v12992 = vmul.f32 %v12985, %v12985
  %v12993 = vmul.f32 %v12986, %v12986
  %v12994 = vmul.f32 %v12987, %v12987
  %v12995 = vsel %vm77, %v12988, 0.0
  %12996 = vadd.xlane.f32.xlu0 %v12995
  %v12997 = vpop.xlane.xlu0 %12996
  %v12998 = vsel %vm77, %v12989, 0.0
  %12999 = vadd.xlane.f32.xlu0 %v12998
  %v13000 = vpop.xlane.xlu0 %12999
  %v13001 = vsel %vm77, %v12990, 0.0
  %13002 = vadd.xlane.f32.xlu0 %v13001
  %v13003 = vpop.xlane.xlu0 %13002
  %v13004 = vsel %vm77, %v12991, 0.0
  %13005 = vadd.xlane.f32.xlu0 %v13004
  %v13006 = vpop.xlane.xlu0 %13005
  %v13007 = vsel %vm77, %v12992, 0.0
  %13008 = vadd.xlane.f32.xlu0 %v13007
  %v13009 = vpop.xlane.xlu0 %13008
  %v13010 = vsel %vm77, %v12993, 0.0
  %13011 = vadd.xlane.f32.xlu0 %v13010
  %v13012 = vpop.xlane.xlu0 %13011
  %v13013 = vsel %vm77, %v12994, 0.0
  %13014 = vadd.xlane.f32.xlu0 %v13013
  %v13015 = vpop.xlane.xlu0 %13014
  %v13016 = vmul.f32 %v12997, %v3568
  %v13017 = vmul.f32 %v13000, %v3568
  %v13018 = vmul.f32 %v13003, %v3568
  %v13019 = vmul.f32 %v13006, %v3568
  %v13020 = vmul.f32 %v13009, %v3568
  %v13021 = vmul.f32 %v13012, %v3568
  %v13022 = vmul.f32 %v13015, %v3568
  %v13023 = vadd.f32 %v13016, 1e-05
  %v13024 = vadd.f32 %v13017, 1e-05
  %v13025 = vadd.f32 %v13018, 1e-05
  %v13026 = vadd.f32 %v13019, 1e-05
  %v13027 = vadd.f32 %v13020, 1e-05
  %v13028 = vadd.f32 %v13021, 1e-05
  %v13029 = vadd.f32 %v13022, 1e-05
  %v13030 = vrsqrt.pop %v13023
  %v13031 = vrsqrt.pop %v13024
  %v13032 = vrsqrt.pop %v13025
  %v13033 = vrsqrt.pop %v13026
  %v13034 = vrsqrt.pop %v13027
  %v13035 = vrsqrt.pop %v13028
  %v13036 = vrsqrt.pop %v13029
  %v13037 = vmul.f32 %v12981, %v13030
  %v13038 = vmul.f32 %v12982, %v13031
  %v13039 = vmul.f32 %v12983, %v13032
  %v13040 = vmul.f32 %v12984, %v13033
  %v13041 = vmul.f32 %v12985, %v13034
  %v13042 = vmul.f32 %v12986, %v13035
  %v13043 = vmul.f32 %v12987, %v13036
  %v13045 = vlaneseq
  %v13046 = vshrl.u32 %v13045, 7
  %v13047 = vsub.s32 0, %v13046
  %v13048 = vrot.slane %v12950, %v13047
  %v13050 = vmul.f32 %v13037, %v13048
  %v13051 = vmul.f32 %v13038, %v13048
  %v13052 = vmul.f32 %v13039, %v13048
  %v13053 = vmul.f32 %v13040, %v13048
  %v13054 = vmul.f32 %v13041, %v13048
  %v13055 = vmul.f32 %v13042, %v13048
  %v13056 = vmul.f32 %v13043, %v13048
  %v13058 = vlaneseq
  %v13059 = vshrl.u32 %v13058, 7
  %v13060 = vsub.s32 0, %v13059
  %v13061 = vrot.slane %v12952, %v13060
  %v13063 = vadd.f32 %v13050, %v13061
  %v13064 = vadd.f32 %v13051, %v13061
  %v13065 = vadd.f32 %v13052, %v13061
  %v13066 = vadd.f32 %v13053, %v13061
  %v13067 = vadd.f32 %v13054, %v13061
  %v13068 = vadd.f32 %v13055, %v13061
  %v13069 = vadd.f32 %v13056, %v13061
  %13070 = vst.msk [vmem:[%s14] sm:$0xff] %vm77, %v13063
  %13071 = vst.msk [vmem:[%s14 + $0x8] sm:$0xff] %vm77, %v13064
  %13072 = vst.msk [vmem:[%s14 + $0x10] sm:$0xff] %vm77, %v13065
  %13073 = vst.msk [vmem:[%s14 + $0x18] sm:$0xff] %vm77, %v13066
  %13074 = vst.msk [vmem:[%s14 + $0x20] sm:$0xff] %vm77, %v13067
  %13075 = vst.msk [vmem:[%s14 + $0x28] sm:$0xff] %vm77, %v13068
  %13076 = vst.msk [vmem:[%s14 + $0x30] sm:$0xff] %vm77, %v13069
  // Predicated region
  $region58: #{transformer_forward.1} parent=0 // pred_check
    _
  $region59: #{transformer_forward.1} parent=0 // pred_check_branch
    %13078 = sbr.rel (0) target = $region61
  $region60: #{transformer_forward.1} parent=0 // pred_region
    _
  $region61: #{transformer_forward.1} parent=0 // pred_fallthru
    _
  // Predicated region
  $region62: #{transformer_forward.1} parent=0 // pred_check
    _
  $region63: #{transformer_forward.1} parent=0 // pred_check_branch
    %13080 = sbr.rel (0) target = $region65
  $region64: #{transformer_forward.1} parent=0 // pred_region
    _
  $region65: #{transformer_forward.1} parent=0 // pred_fallthru
    _

</llo_original>
